<compile_context>
chip_gen: v5e
topology: v5e:2x2
jax: 0.10.0
libtpu: 0.0.40
codegen_flags: <defaults>
</compile_context>

<pallas_src>
import jax
import jax.numpy as jnp
from jax.experimental import pallas as pl
from jax.experimental.pallas import tpu as pltpu

EPS = 1e-5


def _round_up(x, n):
    return (x + n - 1) // n * n


def fused_bn_add_relu_conv1x1_kernel(x_ref, r_ref, g_ref, b_ref, w_ref, o_ref):
    # x_ref, r_ref: (Cin, M) f32   g_ref, b_ref: (Cin, 1) f32
    # w_ref: (Cout_tile, Cin) bf16 o_ref: (Cout_tile, M) f32
    x = x_ref[...]
    m = x.shape[1]
    inv_m = 1.0 / m  # static constant -> single VPU multiply, no divide
    # One-pass biased batch statistics per channel (training-mode BatchNorm2d):
    # reduce along the lane axis (XLU), avoid a second full read of x.
    s1 = jnp.sum(x, axis=1, keepdims=True)          # (Cin, 1)
    s2 = jnp.sum(x * x, axis=1, keepdims=True)      # (Cin, 1)
    mean = s1 * inv_m
    var = s2 * inv_m - mean * mean
    scale = g_ref[...] * jax.lax.rsqrt(var + EPS)   # (Cin, 1)  EUP rsqrt
    shift = b_ref[...] - mean * scale
    # normalize + residual add + ReLU (VPU, broadcast per-channel scale/shift)
    y = jnp.maximum(x * scale + shift + r_ref[...], 0.0)       # (Cin, M)
    # 1x1 conv == matmul on the MXU; bf16 operands, f32 accumulation.
    o_ref[...] = jnp.dot(
        w_ref[...], y.astype(jnp.bfloat16), preferred_element_type=jnp.float32
    ).astype(o_ref.dtype)


def forward(x397, x390, gamma, beta, weight):
    """x397, x390: (N, Cin, H, W) NCHW.  weight: (Cout, Cin, 1, 1).  -> (N, Cout, H, W)."""
    n, c, h, w = x397.shape
    cout = weight.shape[0]
    m = n * h * w

    if n == 1:
        # zero-copy views: NCHW with N=1 is already channel-major (Cin, H*W)
        xm = x397.reshape(c, m)
        rm = x390.reshape(c, m)
    else:
        # general case needs an explicit (N,C,H,W) -> (C, N*H*W) relayout
        xm = jnp.transpose(x397, (1, 0, 2, 3)).reshape(c, m)
        rm = jnp.transpose(x390, (1, 0, 2, 3)).reshape(c, m)

    wk = weight.reshape(cout, c).astype(jnp.bfloat16)   # (Cout, Cin) bf16 weight tile
    g = gamma.reshape(c, 1).astype(jnp.float32)
    b = beta.reshape(c, 1).astype(jnp.float32)

    # Tile Cout across the grid (2 x 128 for Cout=256) -> megacore-parallel on v7x.
    cout_tile = 128 if (cout % 128 == 0) else cout
    grid = (cout // cout_tile,)

    # Explicit VMEM budget from the actual tile footprint (x2 for double buffering),
    # generous headroom, still far under v7x's 64 MiB physical VMEM.
    m_pad = _round_up(m, 128)
    per_buf = (
        2 * c * m_pad * 4            # x, r tiles (f32)
        + 2 * c * 128 * 4            # gamma, beta (lane-padded f32)
        + cout_tile * c * 2          # weight tile (bf16)
        + cout_tile * m_pad * 4      # output tile (f32)
    )
    vmem_limit = min(48 * 1024 * 1024, 2 * per_buf + (16 << 20))

    cost = pl.CostEstimate(
        flops=2 * m * c * cout,
        transcendentals=c * grid[0],  # rsqrt per channel per Cout tile
        bytes_accessed=(xm.size + rm.size) * 4 + wk.size * 2
        + (g.size + b.size) * 4 + cout * m * 4,
    )

    out_flat = pl.pallas_call(
        fused_bn_add_relu_conv1x1_kernel,
        out_shape=jax.ShapeDtypeStruct((cout, m), x397.dtype),
        grid=grid,
        in_specs=[
            pl.BlockSpec((c, m), lambda j: (0, 0)),          # x (shared across Cout tiles)
            pl.BlockSpec((c, m), lambda j: (0, 0)),          # residual
            pl.BlockSpec((c, 1), lambda j: (0, 0)),          # gamma
            pl.BlockSpec((c, 1), lambda j: (0, 0)),          # beta
            pl.BlockSpec((cout_tile, c), lambda j: (j, 0)),  # weight tile
        ],
        out_specs=pl.BlockSpec((cout_tile, m), lambda j: (j, 0)),
        compiler_params=pltpu.CompilerParams(
            dimension_semantics=("parallel",),
            vmem_limit_bytes=vmem_limit,
        ),
        cost_estimate=cost,
    )(xm, rm, g, b, wk)

    if n == 1:
        return out_flat.reshape(1, cout, h, w)               # zero-copy back to NCHW
    return jnp.transpose(out_flat.reshape(cout, n, h, w), (1, 0, 2, 3))


def reference(x397, x390, gamma, beta, weight):
    mean = jnp.mean(x397, axis=(0, 2, 3), keepdims=True)
    var = jnp.mean((x397 - mean) ** 2, axis=(0, 2, 3), keepdims=True)
    xhat = (x397 - mean) * jax.lax.rsqrt(var + EPS)
    y = jnp.maximum(
        xhat * gamma[None, :, None, None] + beta[None, :, None, None] + x390, 0.0
    )
    n, c, h, w = y.shape
    cout = weight.shape[0]
    ym = jnp.transpose(y, (0, 2, 3, 1)).reshape(n * h * w, c)
    om = jnp.dot(ym, weight.reshape(cout, c).T, preferred_element_type=jnp.float32)
    return jnp.transpose(om.reshape(n, h, w, cout), (0, 3, 1, 2))


if __name__ == "__main__":
    # Shapes straight from the module spec: (1, 1024, 14, 14), 1x1 conv 1024 -> 256.
    N, CIN, COUT, H, W = 1, 1024, 256, 14, 14

    key = jax.random.PRNGKey(0)
    k1, k2, k3, k4, k5 = jax.random.split(key, 5)

    x397 = jax.random.normal(k1, (N, CIN, H, W), dtype=jnp.float32)
    x390 = jax.random.normal(k2, (N, CIN, H, W), dtype=jnp.float32)

    # Synthetic deterministic params (PyTorch default would be gamma=1, beta=0).
    gamma = 1.0 + 0.1 * jax.random.normal(k3, (CIN,), dtype=jnp.float32)
    beta = 0.1 * jax.random.normal(k4, (CIN,), dtype=jnp.float32)
    weight = jax.random.normal(k5, (COUT, CIN, 1, 1), dtype=jnp.float32) * (
        1.0 / jnp.sqrt(CIN)
    )

    fwd = jax.jit(forward)
    out = jax.block_until_ready(fwd(x397, x390, gamma, beta, weight))
    ref = jax.block_until_ready(reference(x397, x390, gamma, beta, weight))

    assert out.shape == (N, COUT, H, W), out.shape
    assert jnp.allclose(out, ref, atol=5e-2, rtol=5e-2), float(
        jnp.max(jnp.abs(out - ref))
    )

    print("KERNEL_OK")
</pallas_src>

<mosaic_0001>
module attributes {stable_mosaic.version = 11 : i64} {
  func.func @fused_bn_add_relu_conv1x1_kernel(%arg0: i32, %arg1: memref<1024x196xf32, #tpu.memory_space<vmem>>, %arg2: memref<1024x196xf32, #tpu.memory_space<vmem>>, %arg3: memref<1024x1xf32, #tpu.memory_space<vmem>>, %arg4: memref<1024x1xf32, #tpu.memory_space<vmem>>, %arg5: memref<128x1024xbf16, #tpu.memory_space<vmem>>, %arg6: memref<128x196xf32, #tpu.memory_space<vmem>>) attributes {dimension_semantics = [#tpu.dimension_semantics<parallel>], iteration_bounds = array<i64: 2>, scalar_prefetch = 0 : i64, scratch_operands = 0 : i64, tpu.core_type = #tpu.core_type<tc>, window_params = [{pipeline_mode = #tpu.pipeline_mode<synchronous>, transform_indices = @transform_0, window_bounds = array<i64: 1024, 196>}, {pipeline_mode = #tpu.pipeline_mode<synchronous>, transform_indices = @transform_1, window_bounds = array<i64: 1024, 196>}, {pipeline_mode = #tpu.pipeline_mode<synchronous>, transform_indices = @transform_2, window_bounds = array<i64: 1024, 1>}, {pipeline_mode = #tpu.pipeline_mode<synchronous>, transform_indices = @transform_3, window_bounds = array<i64: 1024, 1>}, {transform_indices = @transform_4, window_bounds = array<i64: 128, 1024>}, {transform_indices = @transform_5, window_bounds = array<i64: 128, 196>}]} {
    %c0 = arith.constant 0 : index
    %c0_0 = arith.constant 0 : index
    %0 = vector.load %arg1[%c0, %c0_0] : memref<1024x196xf32, #tpu.memory_space<vmem>>, vector<1024x196xf32>
    %cst = arith.constant dense<0.000000e+00> : vector<1024xf32>
    %1 = vector.multi_reduction <add>, %0, %cst [1] : vector<1024x196xf32> to vector<1024xf32>
    %2 = vector.shape_cast %1 : vector<1024xf32> to vector<1024x1xf32>
    %3 = arith.mulf %0, %0 : vector<1024x196xf32>
    %cst_1 = arith.constant dense<0.000000e+00> : vector<1024xf32>
    %4 = vector.multi_reduction <add>, %3, %cst_1 [1] : vector<1024x196xf32> to vector<1024xf32>
    %5 = vector.shape_cast %4 : vector<1024xf32> to vector<1024x1xf32>
    %cst_2 = arith.constant 0.00510204071 : f32
    %6 = vector.broadcast %cst_2 : f32 to vector<1024x1xf32>
    %7 = arith.mulf %2, %6 : vector<1024x1xf32>
    %cst_3 = arith.constant 0.00510204071 : f32
    %8 = vector.broadcast %cst_3 : f32 to vector<1024x1xf32>
    %9 = arith.mulf %5, %8 : vector<1024x1xf32>
    %10 = arith.mulf %7, %7 : vector<1024x1xf32>
    %11 = arith.subf %9, %10 : vector<1024x1xf32>
    %c0_4 = arith.constant 0 : index
    %c0_5 = arith.constant 0 : index
    %12 = vector.load %arg3[%c0_4, %c0_5] : memref<1024x1xf32, #tpu.memory_space<vmem>>, vector<1024x1xf32>
    %cst_6 = arith.constant 9.99999974E-6 : f32
    %13 = vector.broadcast %cst_6 : f32 to vector<1024x1xf32>
    %14 = arith.addf %11, %13 : vector<1024x1xf32>
    %15 = math.rsqrt %14 : vector<1024x1xf32>
    %16 = arith.mulf %12, %15 : vector<1024x1xf32>
    %c0_7 = arith.constant 0 : index
    %c0_8 = arith.constant 0 : index
    %17 = vector.load %arg4[%c0_7, %c0_8] : memref<1024x1xf32, #tpu.memory_space<vmem>>, vector<1024x1xf32>
    %18 = arith.mulf %7, %16 : vector<1024x1xf32>
    %19 = arith.subf %17, %18 : vector<1024x1xf32>
    %20 = vector.broadcast %16 : vector<1024x1xf32> to vector<1024x196xf32>
    %21 = arith.mulf %0, %20 : vector<1024x196xf32>
    %22 = vector.broadcast %19 : vector<1024x1xf32> to vector<1024x196xf32>
    %23 = arith.addf %21, %22 : vector<1024x196xf32>
    %c0_9 = arith.constant 0 : index
    %c0_10 = arith.constant 0 : index
    %24 = vector.load %arg2[%c0_9, %c0_10] : memref<1024x196xf32, #tpu.memory_space<vmem>>, vector<1024x196xf32>
    %25 = arith.addf %23, %24 : vector<1024x196xf32>
    %cst_11 = arith.constant 0.000000e+00 : f32
    %26 = vector.broadcast %cst_11 : f32 to vector<1024x196xf32>
    %27 = arith.maximumf %25, %26 : vector<1024x196xf32>
    %c0_12 = arith.constant 0 : index
    %c0_13 = arith.constant 0 : index
    %28 = vector.load %arg5[%c0_12, %c0_13] : memref<128x1024xbf16, #tpu.memory_space<vmem>>, vector<128x1024xbf16>
    %29 = arith.truncf %27 : vector<1024x196xf32> to vector<1024x196xbf16>
    %cst_14 = arith.constant dense<0.000000e+00> : vector<128x196xf32>
    %30 = tpu.matmul %28, %29, %cst_14 {dimension_numbers = #tpu.dot_dimension_numbers<[1], [0], [0], [1], [0, 0, 1, 1], [], []>} : vector<128x1024xbf16>, vector<1024x196xbf16>, vector<128x196xf32> -> vector<128x196xf32>
    %c0_15 = arith.constant 0 : index
    %c0_16 = arith.constant 0 : index
    %31 = vector.load %arg6[%c0_15, %c0_16] : memref<128x196xf32, #tpu.memory_space<vmem>>, vector<128x196xf32>
    tpu.vector_store %arg6[%c0_15, %c0_16], %30 {strides = array<i32>} : memref<128x196xf32, #tpu.memory_space<vmem>>, vector<128x196xf32>,
    return
  }
  func.func @transform_0(%arg0: i32) -> (i32, i32) {
    %c0_i32 = arith.constant 0 : i32
    %c0_i32_0 = arith.constant 0 : i32
    %c0_i32_1 = arith.constant 0 : i32
    return %c0_i32, %c0_i32_0 : i32, i32
  }
  func.func @transform_1(%arg0: i32) -> (i32, i32) {
    %c0_i32 = arith.constant 0 : i32
    %c0_i32_0 = arith.constant 0 : i32
    %c0_i32_1 = arith.constant 0 : i32
    return %c0_i32, %c0_i32_0 : i32, i32
  }
  func.func @transform_2(%arg0: i32) -> (i32, i32) {
    %c0_i32 = arith.constant 0 : i32
    %c0_i32_0 = arith.constant 0 : i32
    %c0_i32_1 = arith.constant 0 : i32
    return %c0_i32, %c0_i32_0 : i32, i32
  }
  func.func @transform_3(%arg0: i32) -> (i32, i32) {
    %c0_i32 = arith.constant 0 : i32
    %c0_i32_0 = arith.constant 0 : i32
    %c0_i32_1 = arith.constant 0 : i32
    return %c0_i32, %c0_i32_0 : i32, i32
  }
  func.func @transform_4(%arg0: i32) -> (i32, i32) {
    %c0_i32 = arith.constant 0 : i32
    %c0_i32_0 = arith.constant 0 : i32
    return %arg0, %c0_i32 : i32, i32
  }
  func.func @transform_5(%arg0: i32) -> (i32, i32) {
    %c0_i32 = arith.constant 0 : i32
    %c0_i32_0 = arith.constant 0 : i32
    return %arg0, %c0_i32 : i32, i32
  }
}

</mosaic_0001>

<llo_original>
// kernel: forward.1
$region0: #{forward.1}
  #allocation0 [shape = 'u32[]', space=smem, size = 0x4, offset = 0x4, fixed_abs, tag = 'smem constant byte address 0x4 - core index']
  #allocation1 [shape = 'u32[72,128]{1,0:T(1,128)}', space=vmem, size = 0x9000, scoped, tag = 'internal scratch']
  %s0 = inlined_call_operand.vmem [shape: f32[1024,196], index: 0, kind: input, shape index: {}]
  %s1 = inlined_call_operand.vmem [shape: f32[1024,196], index: 1, kind: input, shape index: {}]
  %s2 = inlined_call_operand.vmem [shape: f32[1024,1], index: 2, kind: input, shape index: {}]
  %s3 = inlined_call_operand.vmem [shape: f32[1024,1], index: 3, kind: input, shape index: {}]
  %s4 = inlined_call_operand.vmem [shape: bf16[256,1024], index: 4, kind: input, shape index: {}]
  %s5 = inlined_call_operand.vmem [shape: f32[256,196], index: 5, kind: output, shape index: {}]
  %s6 = sld [smem:[#allocation0]]
  $region53: #{forward.1} parent=0
    _
  %s8 = ssub.s32 1, %s6
  %s9 = scalar_select 0, %s8, %s6
  loop: start=0, step=1, limit=4
  $region2: #{forward.1} parent=0 // loop_pre_header
    _
  $region3: #{forward.1} parent=0 // loop_header
    %s11 = sphi 0, %s15
    %p12 = scmp.ge.s32.totalorder %s11, 4
    %s19 = sphi 0, %s19
    %s21 = sphi 0, %s19
    %s22 = sphi 0, %s21
    %s36 = sphi 0, %s22
    %s40 = sphi 0, %s40
    %s42 = sphi 0, %s40
    %s43 = sphi 0, %s42
    %s57 = sphi 0, %s43
    %s61 = sphi 0, %s61
    %s63 = sphi 0, %s61
    %s64 = sphi 0, %s63
    %s78 = sphi 0, %s64
    %s82 = sphi 0, %s82
    %s84 = sphi 0, %s82
    %s85 = sphi 0, %s84
    %s99 = sphi 0, %s85
    %s105 = sphi 0, %s107
    %s108 = sphi 0, %s105
    %s109 = sphi 0, %s108
    %s125 = sphi 0, %s109
    %s131 = sphi 0, %s133
    %s134 = sphi 0, %s131
    %s135 = sphi 0, %s134
    %s151 = sphi 0, %s135
  $region4: #{forward.1} parent=0 // loop_header_branch
    %14 = sbr.rel (%p12) target = $region8
  $region5: #{forward.1} parent=0 // loop_body
    %s16 = ssub.s32 %s11, 1
    %s17 = ssub.s32 %s11, 2
    %s18 = sadd.s32 %s11, 1
    %s20 = sadd.s32 %s19, 1
    %p23 = scmp.eq.s32.totalorder %s11, 1
    %p24 = scmp.ne.s32.totalorder %s19, %s21
    %p25 = scmp.eq.s32.totalorder %s11, 0
    %p26 = por %p24, %p25
    %p27 = scmp.ne.s32.totalorder %s19, %s21
    %p28 = scmp.eq.s32.totalorder %s16, 1
    %p29 = por %p27, %p28
    %p30 = scmp.ne.s32.totalorder %s21, %s22
    %p31 = scmp.eq.s32.totalorder %s16, 0
    %p32 = por %p30, %p31
    %p33 = scmp.ne.s32.totalorder %s21, %s22
    %p34 = scmp.eq.s32.totalorder %s17, 1
    %p35 = por %p33, %p34
    %p37 = scmp.ne.s32.totalorder %s22, %s36
    %p38 = scmp.eq.s32.totalorder %s17, 0
    %p39 = por %p37, %p38
    %s41 = sadd.s32 %s40, 1
    %p44 = scmp.eq.s32.totalorder %s11, 1
    %p45 = scmp.ne.s32.totalorder %s40, %s42
    %p46 = scmp.eq.s32.totalorder %s11, 0
    %p47 = por %p45, %p46
    %p48 = scmp.ne.s32.totalorder %s40, %s42
    %p49 = scmp.eq.s32.totalorder %s16, 1
    %p50 = por %p48, %p49
    %p51 = scmp.ne.s32.totalorder %s42, %s43
    %p52 = scmp.eq.s32.totalorder %s16, 0
    %p53 = por %p51, %p52
    %p54 = scmp.ne.s32.totalorder %s42, %s43
    %p55 = scmp.eq.s32.totalorder %s17, 1
    %p56 = por %p54, %p55
    %p58 = scmp.ne.s32.totalorder %s43, %s57
    %p59 = scmp.eq.s32.totalorder %s17, 0
    %p60 = por %p58, %p59
    %s62 = sadd.s32 %s61, 1
    %p65 = scmp.eq.s32.totalorder %s11, 1
    %p66 = scmp.ne.s32.totalorder %s61, %s63
    %p67 = scmp.eq.s32.totalorder %s11, 0
    %p68 = por %p66, %p67
    %p69 = scmp.ne.s32.totalorder %s61, %s63
    %p70 = scmp.eq.s32.totalorder %s16, 1
    %p71 = por %p69, %p70
    %p72 = scmp.ne.s32.totalorder %s63, %s64
    %p73 = scmp.eq.s32.totalorder %s16, 0
    %p74 = por %p72, %p73
    %p75 = scmp.ne.s32.totalorder %s63, %s64
    %p76 = scmp.eq.s32.totalorder %s17, 1
    %p77 = por %p75, %p76
    %p79 = scmp.ne.s32.totalorder %s64, %s78
    %p80 = scmp.eq.s32.totalorder %s17, 0
    %p81 = por %p79, %p80
    %s83 = sadd.s32 %s82, 1
    %p86 = scmp.eq.s32.totalorder %s11, 1
    %p87 = scmp.ne.s32.totalorder %s82, %s84
    %p88 = scmp.eq.s32.totalorder %s11, 0
    %p89 = por %p87, %p88
    %p90 = scmp.ne.s32.totalorder %s82, %s84
    %p91 = scmp.eq.s32.totalorder %s16, 1
    %p92 = por %p90, %p91
    %p93 = scmp.ne.s32.totalorder %s84, %s85
    %p94 = scmp.eq.s32.totalorder %s16, 0
    %p95 = por %p93, %p94
    %p96 = scmp.ne.s32.totalorder %s84, %s85
    %p97 = scmp.eq.s32.totalorder %s17, 1
    %p98 = por %p96, %p97
    %p100 = scmp.ne.s32.totalorder %s85, %s99
    %p101 = scmp.eq.s32.totalorder %s17, 0
    %p102 = por %p100, %p101
    %s103 = ssub.s32 %s11, %s18
    %p104 = scmp.eq.s32.totalorder %s103, 0
    %s106 = sadd.s32 %s105, 1
    %s107 = scalar_select %p104, %s105, %s106
    %p110 = pneg %p104
    %p111 = scmp.eq.s32.totalorder %s11, 1
    %p112 = por %p110, %p111
    %p113 = scmp.ne.s32.totalorder %s105, %s108
    %p114 = scmp.eq.s32.totalorder %s11, 0
    %p115 = por %p113, %p114
    %p116 = scmp.ne.s32.totalorder %s105, %s108
    %p117 = scmp.eq.s32.totalorder %s16, 1
    %p118 = por %p116, %p117
    %p119 = scmp.ne.s32.totalorder %s108, %s109
    %p120 = scmp.eq.s32.totalorder %s16, 0
    %p121 = por %p119, %p120
    %p122 = scmp.ne.s32.totalorder %s108, %s109
    %p123 = scmp.eq.s32.totalorder %s17, 1
    %p124 = por %p122, %p123
    %p126 = scmp.ne.s32.totalorder %s109, %s125
    %p127 = scmp.eq.s32.totalorder %s17, 0
    %p128 = por %p126, %p127
    %s129 = ssub.s32 %s11, %s18
    %p130 = scmp.eq.s32.totalorder %s129, 0
    %s132 = sadd.s32 %s131, 1
    %s133 = scalar_select %p130, %s131, %s132
    %p136 = pneg %p130
    %p137 = scmp.eq.s32.totalorder %s11, 1
    %p138 = por %p136, %p137
    %p139 = scmp.ne.s32.totalorder %s131, %s134
    %p140 = scmp.eq.s32.totalorder %s11, 0
    %p141 = por %p139, %p140
    %p142 = scmp.ne.s32.totalorder %s131, %s134
    %p143 = scmp.eq.s32.totalorder %s16, 1
    %p144 = por %p142, %p143
    %p145 = scmp.ne.s32.totalorder %s134, %s135
    %p146 = scmp.eq.s32.totalorder %s16, 0
    %p147 = por %p145, %p146
    %p148 = scmp.ne.s32.totalorder %s134, %s135
    %p149 = scmp.eq.s32.totalorder %s17, 1
    %p150 = por %p148, %p149
    %p152 = scmp.ne.s32.totalorder %s135, %s151
    %p153 = scmp.eq.s32.totalorder %s17, 0
    %p154 = por %p152, %p153
    %p155 = scmp.le.s32.totalorder 1, %s11
    %p156 = scmp.lt.s32.totalorder %s11, 3
    %p157 = pnand %p155, %p156
    %p158 = pneg %p157
    // Predicated region
    $region9: #{forward.1} parent=5 // pred_check
      _
    $region10: #{forward.1} parent=5 // pred_check_branch
      %160 = sbr.rel (%p157) target = $region12
    $region11: #{forward.1} parent=5 // pred_region
      %s161 = ssub.s32 %s11, 1
      // Predicated region
      $region13: #{forward.1} parent=11 // pred_check
        %p162 = pneg %p32
      $region14: #{forward.1} parent=11 // pred_check_branch
        %164 = sbr.rel (%p162) target = $region16
      $region15: #{forward.1} parent=11 // pred_region
        _
      $region16: #{forward.1} parent=11 // pred_fallthru
        _
      // Predicated region
      $region17: #{forward.1} parent=11 // pred_check
        %p165 = pneg %p53
      $region18: #{forward.1} parent=11 // pred_check_branch
        %167 = sbr.rel (%p165) target = $region20
      $region19: #{forward.1} parent=11 // pred_region
        _
      $region20: #{forward.1} parent=11 // pred_fallthru
        _
      // Predicated region
      $region21: #{forward.1} parent=11 // pred_check
        %p168 = pneg %p74
      $region22: #{forward.1} parent=11 // pred_check_branch
        %170 = sbr.rel (%p168) target = $region24
      $region23: #{forward.1} parent=11 // pred_region
        _
      $region24: #{forward.1} parent=11 // pred_fallthru
        _
      // Predicated region
      $region25: #{forward.1} parent=11 // pred_check
        %p171 = pneg %p95
      $region26: #{forward.1} parent=11 // pred_check_branch
        %173 = sbr.rel (%p171) target = $region28
      $region27: #{forward.1} parent=11 // pred_region
        _
      $region28: #{forward.1} parent=11 // pred_fallthru
        _
    $region12: #{forward.1} parent=5 // pred_fallthru
      _
    %p174 = scmp.lt.s32.totalorder %s11, 2
    // Predicated region
    $region29: #{forward.1} parent=5 // pred_check
      %p175 = pneg %p174
    $region30: #{forward.1} parent=5 // pred_check_branch
      %177 = sbr.rel (%p175) target = $region32
    $region31: #{forward.1} parent=5 // pred_region
      // Predicated region
      $region33: #{forward.1} parent=31 // pred_check
        %p178 = pneg %p115
      $region34: #{forward.1} parent=31 // pred_check_branch
        %180 = sbr.rel (%p178) target = $region36
      $region35: #{forward.1} parent=31 // pred_region
        %s181 = smul.u32 16, %s11
        %p182 = scmp.lt.s32.totalorder %s181, 31
        %s183 = scalar_select %p182, %s181, 31
        %s184 = smul.addr %s183, 8
        %s185 = smul.addr %s184, 4
        %s186 = scalar_lea.vmem %s4, %s185
        %s187 = smul.u32 16, %s11
      $region36: #{forward.1} parent=31 // pred_fallthru
        _
    $region32: #{forward.1} parent=5 // pred_fallthru
      _
    %p188 = scmp.le.s32.totalorder 1, %s11
    %p189 = scmp.lt.s32.totalorder %s11, 3
    %p190 = pnand %p188, %p189
    %p191 = pneg %p190
    // Predicated region
    $region37: #{forward.1} parent=5 // pred_check
      _
    $region38: #{forward.1} parent=5 // pred_check_branch
      %193 = sbr.rel (%p190) target = $region40
    $region39: #{forward.1} parent=5 // pred_region
      %s194 = ssub.s32 %s11, 1
      %p195 = pneg %p32
      %p196 = pneg %p29
      %p197 = pneg %p53
      %p198 = pneg %p50
      %p199 = pneg %p74
      %p200 = pneg %p71
      %p201 = pneg %p95
      %p202 = pneg %p92
      %s203 = smul.u32 16, %s16
      %p204 = scmp.lt.s32.totalorder %s203, 31
      %s205 = scalar_select %p204, %s203, 31
      %s206 = smul.addr %s205, 8
      %s207 = smul.addr %s206, 4
      %s208 = scalar_lea.vmem %s4, %s207
      %p209 = pneg %p121
      %p210 = pneg %p118
      %p211 = pneg %p147
      %p212 = pneg %p144
      %s213 = smul.u32 16, %s16
      %p214 = scmp.lt.s32.totalorder %s213, 31
      %s215 = scalar_select %p214, %s213, 31
      %s216 = smul.addr %s215, 2
      %s217 = smul.addr %s216, 8
      %s218 = scalar_lea.vmem %s5, %s217
      %s219 = smul.u32 16, %s16
      %p220 = scmp.lt.s32.totalorder %s219, 31
      %s221 = scalar_select %p220, %s219, 31
      %s222 = smul.addr %s221, 8
      %s223 = smul.addr %s222, 4
      %s224 = scalar_lea.vmem %s4, %s223
      %s225 = smul.u32 16, %s16
      %s226 = smul.u32 16, %s16
      %p227 = scmp.lt.s32.totalorder %s226, 31
      %s228 = scalar_select %p227, %s226, 31
      %s229 = smul.addr %s228, 2
      %s230 = smul.addr %s229, 8
      %s231 = scalar_lea.vmem %s5, %s230
      %s232 = smul.u32 16, %s16
      %v233 = vld [vmem:[%s0] sm:$0xff]
      %v234 = vld [vmem:[%s0 + $0x8] sm:$0xff]
      %v235 = vld [vmem:[%s0 + $0x10] sm:$0xff]
      %v236 = vld [vmem:[%s0 + $0x18] sm:$0xff]
      %v237 = vld [vmem:[%s0 + $0x20] sm:$0xff]
      %v238 = vld [vmem:[%s0 + $0x28] sm:$0xff]
      %v239 = vld [vmem:[%s0 + $0x30] sm:$0xff]
      %v240 = vld [vmem:[%s0 + $0x38] sm:$0xff]
      %v241 = vld [vmem:[%s0 + $0x40] sm:$0xff]
      %v242 = vld [vmem:[%s0 + $0x48] sm:$0xff]
      %v243 = vld [vmem:[%s0 + $0x50] sm:$0xff]
      %v244 = vld [vmem:[%s0 + $0x58] sm:$0xff]
      %v245 = vld [vmem:[%s0 + $0x60] sm:$0xff]
      %v246 = vld [vmem:[%s0 + $0x68] sm:$0xff]
      %v247 = vld [vmem:[%s0 + $0x70] sm:$0xff]
      %v248 = vld [vmem:[%s0 + $0x78] sm:$0xff]
      %v249 = vld [vmem:[%s0 + $0x80] sm:$0xff]
      %v250 = vld [vmem:[%s0 + $0x88] sm:$0xff]
      %v251 = vld [vmem:[%s0 + $0x90] sm:$0xff]
      %v252 = vld [vmem:[%s0 + $0x98] sm:$0xff]
      %v253 = vld [vmem:[%s0 + $0xa0] sm:$0xff]
      %v254 = vld [vmem:[%s0 + $0xa8] sm:$0xff]
      %v255 = vld [vmem:[%s0 + $0xb0] sm:$0xff]
      %v256 = vld [vmem:[%s0 + $0xb8] sm:$0xff]
      %v257 = vld [vmem:[%s0 + $0xc0] sm:$0xff]
      %v258 = vld [vmem:[%s0 + $0xc8] sm:$0xff]
      %v259 = vld [vmem:[%s0 + $0xd0] sm:$0xff]
      %v260 = vld [vmem:[%s0 + $0xd8] sm:$0xff]
      %v261 = vld [vmem:[%s0 + $0xe0] sm:$0xff]
      %v262 = vld [vmem:[%s0 + $0xe8] sm:$0xff]
      %v263 = vld [vmem:[%s0 + $0xf0] sm:$0xff]
      %v264 = vld [vmem:[%s0 + $0xf8] sm:$0xff]
      %v265 = vld [vmem:[%s0 + $0x100] sm:$0xff]
      %v266 = vld [vmem:[%s0 + $0x108] sm:$0xff]
      %v267 = vld [vmem:[%s0 + $0x110] sm:$0xff]
      %v268 = vld [vmem:[%s0 + $0x118] sm:$0xff]
      %v269 = vld [vmem:[%s0 + $0x120] sm:$0xff]
      %v270 = vld [vmem:[%s0 + $0x128] sm:$0xff]
      %v271 = vld [vmem:[%s0 + $0x130] sm:$0xff]
      %v272 = vld [vmem:[%s0 + $0x138] sm:$0xff]
      %v273 = vld [vmem:[%s0 + $0x140] sm:$0xff]
      %v274 = vld [vmem:[%s0 + $0x148] sm:$0xff]
      %v275 = vld [vmem:[%s0 + $0x150] sm:$0xff]
      %v276 = vld [vmem:[%s0 + $0x158] sm:$0xff]
      %v277 = vld [vmem:[%s0 + $0x160] sm:$0xff]
      %v278 = vld [vmem:[%s0 + $0x168] sm:$0xff]
      %v279 = vld [vmem:[%s0 + $0x170] sm:$0xff]
      %v280 = vld [vmem:[%s0 + $0x178] sm:$0xff]
      %v281 = vld [vmem:[%s0 + $0x180] sm:$0xff]
      %v282 = vld [vmem:[%s0 + $0x188] sm:$0xff]
      %v283 = vld [vmem:[%s0 + $0x190] sm:$0xff]
      %v284 = vld [vmem:[%s0 + $0x198] sm:$0xff]
      %v285 = vld [vmem:[%s0 + $0x1a0] sm:$0xff]
      %v286 = vld [vmem:[%s0 + $0x1a8] sm:$0xff]
      %v287 = vld [vmem:[%s0 + $0x1b0] sm:$0xff]
      %v288 = vld [vmem:[%s0 + $0x1b8] sm:$0xff]
      %v289 = vld [vmem:[%s0 + $0x1c0] sm:$0xff]
      %v290 = vld [vmem:[%s0 + $0x1c8] sm:$0xff]
      %v291 = vld [vmem:[%s0 + $0x1d0] sm:$0xff]
      %v292 = vld [vmem:[%s0 + $0x1d8] sm:$0xff]
      %v293 = vld [vmem:[%s0 + $0x1e0] sm:$0xff]
      %v294 = vld [vmem:[%s0 + $0x1e8] sm:$0xff]
      %v295 = vld [vmem:[%s0 + $0x1f0] sm:$0xff]
      %v296 = vld [vmem:[%s0 + $0x1f8] sm:$0xff]
      %v297 = vld [vmem:[%s0 + $0x200] sm:$0xff]
      %v298 = vld [vmem:[%s0 + $0x208] sm:$0xff]
      %v299 = vld [vmem:[%s0 + $0x210] sm:$0xff]
      %v300 = vld [vmem:[%s0 + $0x218] sm:$0xff]
      %v301 = vld [vmem:[%s0 + $0x220] sm:$0xff]
      %v302 = vld [vmem:[%s0 + $0x228] sm:$0xff]
      %v303 = vld [vmem:[%s0 + $0x230] sm:$0xff]
      %v304 = vld [vmem:[%s0 + $0x238] sm:$0xff]
      %v305 = vld [vmem:[%s0 + $0x240] sm:$0xff]
      %v306 = vld [vmem:[%s0 + $0x248] sm:$0xff]
      %v307 = vld [vmem:[%s0 + $0x250] sm:$0xff]
      %v308 = vld [vmem:[%s0 + $0x258] sm:$0xff]
      %v309 = vld [vmem:[%s0 + $0x260] sm:$0xff]
      %v310 = vld [vmem:[%s0 + $0x268] sm:$0xff]
      %v311 = vld [vmem:[%s0 + $0x270] sm:$0xff]
      %v312 = vld [vmem:[%s0 + $0x278] sm:$0xff]
      %v313 = vld [vmem:[%s0 + $0x280] sm:$0xff]
      %v314 = vld [vmem:[%s0 + $0x288] sm:$0xff]
      %v315 = vld [vmem:[%s0 + $0x290] sm:$0xff]
      %v316 = vld [vmem:[%s0 + $0x298] sm:$0xff]
      %v317 = vld [vmem:[%s0 + $0x2a0] sm:$0xff]
      %v318 = vld [vmem:[%s0 + $0x2a8] sm:$0xff]
      %v319 = vld [vmem:[%s0 + $0x2b0] sm:$0xff]
      %v320 = vld [vmem:[%s0 + $0x2b8] sm:$0xff]
      %v321 = vld [vmem:[%s0 + $0x2c0] sm:$0xff]
      %v322 = vld [vmem:[%s0 + $0x2c8] sm:$0xff]
      %v323 = vld [vmem:[%s0 + $0x2d0] sm:$0xff]
      %v324 = vld [vmem:[%s0 + $0x2d8] sm:$0xff]
      %v325 = vld [vmem:[%s0 + $0x2e0] sm:$0xff]
      %v326 = vld [vmem:[%s0 + $0x2e8] sm:$0xff]
      %v327 = vld [vmem:[%s0 + $0x2f0] sm:$0xff]
      %v328 = vld [vmem:[%s0 + $0x2f8] sm:$0xff]
      %v329 = vld [vmem:[%s0 + $0x300] sm:$0xff]
      %v330 = vld [vmem:[%s0 + $0x308] sm:$0xff]
      %v331 = vld [vmem:[%s0 + $0x310] sm:$0xff]
      %v332 = vld [vmem:[%s0 + $0x318] sm:$0xff]
      %v333 = vld [vmem:[%s0 + $0x320] sm:$0xff]
      %v334 = vld [vmem:[%s0 + $0x328] sm:$0xff]
      %v335 = vld [vmem:[%s0 + $0x330] sm:$0xff]
      %v336 = vld [vmem:[%s0 + $0x338] sm:$0xff]
      %v337 = vld [vmem:[%s0 + $0x340] sm:$0xff]
      %v338 = vld [vmem:[%s0 + $0x348] sm:$0xff]
      %v339 = vld [vmem:[%s0 + $0x350] sm:$0xff]
      %v340 = vld [vmem:[%s0 + $0x358] sm:$0xff]
      %v341 = vld [vmem:[%s0 + $0x360] sm:$0xff]
      %v342 = vld [vmem:[%s0 + $0x368] sm:$0xff]
      %v343 = vld [vmem:[%s0 + $0x370] sm:$0xff]
      %v344 = vld [vmem:[%s0 + $0x378] sm:$0xff]
      %v345 = vld [vmem:[%s0 + $0x380] sm:$0xff]
      %v346 = vld [vmem:[%s0 + $0x388] sm:$0xff]
      %v347 = vld [vmem:[%s0 + $0x390] sm:$0xff]
      %v348 = vld [vmem:[%s0 + $0x398] sm:$0xff]
      %v349 = vld [vmem:[%s0 + $0x3a0] sm:$0xff]
      %v350 = vld [vmem:[%s0 + $0x3a8] sm:$0xff]
      %v351 = vld [vmem:[%s0 + $0x3b0] sm:$0xff]
      %v352 = vld [vmem:[%s0 + $0x3b8] sm:$0xff]
      %v353 = vld [vmem:[%s0 + $0x3c0] sm:$0xff]
      %v354 = vld [vmem:[%s0 + $0x3c8] sm:$0xff]
      %v355 = vld [vmem:[%s0 + $0x3d0] sm:$0xff]
      %v356 = vld [vmem:[%s0 + $0x3d8] sm:$0xff]
      %v357 = vld [vmem:[%s0 + $0x3e0] sm:$0xff]
      %v358 = vld [vmem:[%s0 + $0x3e8] sm:$0xff]
      %v359 = vld [vmem:[%s0 + $0x3f0] sm:$0xff]
      %v360 = vld [vmem:[%s0 + $0x3f8] sm:$0xff]
      %v361 = vld [vmem:[%s0 + $0x400] sm:$0xff]
      %v362 = vld [vmem:[%s0 + $0x408] sm:$0xff]
      %v363 = vld [vmem:[%s0 + $0x410] sm:$0xff]
      %v364 = vld [vmem:[%s0 + $0x418] sm:$0xff]
      %v365 = vld [vmem:[%s0 + $0x420] sm:$0xff]
      %v366 = vld [vmem:[%s0 + $0x428] sm:$0xff]
      %v367 = vld [vmem:[%s0 + $0x430] sm:$0xff]
      %v368 = vld [vmem:[%s0 + $0x438] sm:$0xff]
      %v369 = vld [vmem:[%s0 + $0x440] sm:$0xff]
      %v370 = vld [vmem:[%s0 + $0x448] sm:$0xff]
      %v371 = vld [vmem:[%s0 + $0x450] sm:$0xff]
      %v372 = vld [vmem:[%s0 + $0x458] sm:$0xff]
      %v373 = vld [vmem:[%s0 + $0x460] sm:$0xff]
      %v374 = vld [vmem:[%s0 + $0x468] sm:$0xff]
      %v375 = vld [vmem:[%s0 + $0x470] sm:$0xff]
      %v376 = vld [vmem:[%s0 + $0x478] sm:$0xff]
      %v377 = vld [vmem:[%s0 + $0x480] sm:$0xff]
      %v378 = vld [vmem:[%s0 + $0x488] sm:$0xff]
      %v379 = vld [vmem:[%s0 + $0x490] sm:$0xff]
      %v380 = vld [vmem:[%s0 + $0x498] sm:$0xff]
      %v381 = vld [vmem:[%s0 + $0x4a0] sm:$0xff]
      %v382 = vld [vmem:[%s0 + $0x4a8] sm:$0xff]
      %v383 = vld [vmem:[%s0 + $0x4b0] sm:$0xff]
      %v384 = vld [vmem:[%s0 + $0x4b8] sm:$0xff]
      %v385 = vld [vmem:[%s0 + $0x4c0] sm:$0xff]
      %v386 = vld [vmem:[%s0 + $0x4c8] sm:$0xff]
      %v387 = vld [vmem:[%s0 + $0x4d0] sm:$0xff]
      %v388 = vld [vmem:[%s0 + $0x4d8] sm:$0xff]
      %v389 = vld [vmem:[%s0 + $0x4e0] sm:$0xff]
      %v390 = vld [vmem:[%s0 + $0x4e8] sm:$0xff]
      %v391 = vld [vmem:[%s0 + $0x4f0] sm:$0xff]
      %v392 = vld [vmem:[%s0 + $0x4f8] sm:$0xff]
      %v393 = vld [vmem:[%s0 + $0x500] sm:$0xff]
      %v394 = vld [vmem:[%s0 + $0x508] sm:$0xff]
      %v395 = vld [vmem:[%s0 + $0x510] sm:$0xff]
      %v396 = vld [vmem:[%s0 + $0x518] sm:$0xff]
      %v397 = vld [vmem:[%s0 + $0x520] sm:$0xff]
      %v398 = vld [vmem:[%s0 + $0x528] sm:$0xff]
      %v399 = vld [vmem:[%s0 + $0x530] sm:$0xff]
      %v400 = vld [vmem:[%s0 + $0x538] sm:$0xff]
      %v401 = vld [vmem:[%s0 + $0x540] sm:$0xff]
      %v402 = vld [vmem:[%s0 + $0x548] sm:$0xff]
      %v403 = vld [vmem:[%s0 + $0x550] sm:$0xff]
      %v404 = vld [vmem:[%s0 + $0x558] sm:$0xff]
      %v405 = vld [vmem:[%s0 + $0x560] sm:$0xff]
      %v406 = vld [vmem:[%s0 + $0x568] sm:$0xff]
      %v407 = vld [vmem:[%s0 + $0x570] sm:$0xff]
      %v408 = vld [vmem:[%s0 + $0x578] sm:$0xff]
      %v409 = vld [vmem:[%s0 + $0x580] sm:$0xff]
      %v410 = vld [vmem:[%s0 + $0x588] sm:$0xff]
      %v411 = vld [vmem:[%s0 + $0x590] sm:$0xff]
      %v412 = vld [vmem:[%s0 + $0x598] sm:$0xff]
      %v413 = vld [vmem:[%s0 + $0x5a0] sm:$0xff]
      %v414 = vld [vmem:[%s0 + $0x5a8] sm:$0xff]
      %v415 = vld [vmem:[%s0 + $0x5b0] sm:$0xff]
      %v416 = vld [vmem:[%s0 + $0x5b8] sm:$0xff]
      %v417 = vld [vmem:[%s0 + $0x5c0] sm:$0xff]
      %v418 = vld [vmem:[%s0 + $0x5c8] sm:$0xff]
      %v419 = vld [vmem:[%s0 + $0x5d0] sm:$0xff]
      %v420 = vld [vmem:[%s0 + $0x5d8] sm:$0xff]
      %v421 = vld [vmem:[%s0 + $0x5e0] sm:$0xff]
      %v422 = vld [vmem:[%s0 + $0x5e8] sm:$0xff]
      %v423 = vld [vmem:[%s0 + $0x5f0] sm:$0xff]
      %v424 = vld [vmem:[%s0 + $0x5f8] sm:$0xff]
      %v425 = vld [vmem:[%s0 + $0x600] sm:$0xff]
      %v426 = vld [vmem:[%s0 + $0x608] sm:$0xff]
      %v427 = vld [vmem:[%s0 + $0x610] sm:$0xff]
      %v428 = vld [vmem:[%s0 + $0x618] sm:$0xff]
      %v429 = vld [vmem:[%s0 + $0x620] sm:$0xff]
      %v430 = vld [vmem:[%s0 + $0x628] sm:$0xff]
      %v431 = vld [vmem:[%s0 + $0x630] sm:$0xff]
      %v432 = vld [vmem:[%s0 + $0x638] sm:$0xff]
      %v433 = vld [vmem:[%s0 + $0x640] sm:$0xff]
      %v434 = vld [vmem:[%s0 + $0x648] sm:$0xff]
      %v435 = vld [vmem:[%s0 + $0x650] sm:$0xff]
      %v436 = vld [vmem:[%s0 + $0x658] sm:$0xff]
      %v437 = vld [vmem:[%s0 + $0x660] sm:$0xff]
      %v438 = vld [vmem:[%s0 + $0x668] sm:$0xff]
      %v439 = vld [vmem:[%s0 + $0x670] sm:$0xff]
      %v440 = vld [vmem:[%s0 + $0x678] sm:$0xff]
      %v441 = vld [vmem:[%s0 + $0x680] sm:$0xff]
      %v442 = vld [vmem:[%s0 + $0x688] sm:$0xff]
      %v443 = vld [vmem:[%s0 + $0x690] sm:$0xff]
      %v444 = vld [vmem:[%s0 + $0x698] sm:$0xff]
      %v445 = vld [vmem:[%s0 + $0x6a0] sm:$0xff]
      %v446 = vld [vmem:[%s0 + $0x6a8] sm:$0xff]
      %v447 = vld [vmem:[%s0 + $0x6b0] sm:$0xff]
      %v448 = vld [vmem:[%s0 + $0x6b8] sm:$0xff]
      %v449 = vld [vmem:[%s0 + $0x6c0] sm:$0xff]
      %v450 = vld [vmem:[%s0 + $0x6c8] sm:$0xff]
      %v451 = vld [vmem:[%s0 + $0x6d0] sm:$0xff]
      %v452 = vld [vmem:[%s0 + $0x6d8] sm:$0xff]
      %v453 = vld [vmem:[%s0 + $0x6e0] sm:$0xff]
      %v454 = vld [vmem:[%s0 + $0x6e8] sm:$0xff]
      %v455 = vld [vmem:[%s0 + $0x6f0] sm:$0xff]
      %v456 = vld [vmem:[%s0 + $0x6f8] sm:$0xff]
      %v457 = vld [vmem:[%s0 + $0x700] sm:$0xff]
      %v458 = vld [vmem:[%s0 + $0x708] sm:$0xff]
      %v459 = vld [vmem:[%s0 + $0x710] sm:$0xff]
      %v460 = vld [vmem:[%s0 + $0x718] sm:$0xff]
      %v461 = vld [vmem:[%s0 + $0x720] sm:$0xff]
      %v462 = vld [vmem:[%s0 + $0x728] sm:$0xff]
      %v463 = vld [vmem:[%s0 + $0x730] sm:$0xff]
      %v464 = vld [vmem:[%s0 + $0x738] sm:$0xff]
      %v465 = vld [vmem:[%s0 + $0x740] sm:$0xff]
      %v466 = vld [vmem:[%s0 + $0x748] sm:$0xff]
      %v467 = vld [vmem:[%s0 + $0x750] sm:$0xff]
      %v468 = vld [vmem:[%s0 + $0x758] sm:$0xff]
      %v469 = vld [vmem:[%s0 + $0x760] sm:$0xff]
      %v470 = vld [vmem:[%s0 + $0x768] sm:$0xff]
      %v471 = vld [vmem:[%s0 + $0x770] sm:$0xff]
      %v472 = vld [vmem:[%s0 + $0x778] sm:$0xff]
      %v473 = vld [vmem:[%s0 + $0x780] sm:$0xff]
      %v474 = vld [vmem:[%s0 + $0x788] sm:$0xff]
      %v475 = vld [vmem:[%s0 + $0x790] sm:$0xff]
      %v476 = vld [vmem:[%s0 + $0x798] sm:$0xff]
      %v477 = vld [vmem:[%s0 + $0x7a0] sm:$0xff]
      %v478 = vld [vmem:[%s0 + $0x7a8] sm:$0xff]
      %v479 = vld [vmem:[%s0 + $0x7b0] sm:$0xff]
      %v480 = vld [vmem:[%s0 + $0x7b8] sm:$0xff]
      %v481 = vld [vmem:[%s0 + $0x7c0] sm:$0xff]
      %v482 = vld [vmem:[%s0 + $0x7c8] sm:$0xff]
      %v483 = vld [vmem:[%s0 + $0x7d0] sm:$0xff]
      %v484 = vld [vmem:[%s0 + $0x7d8] sm:$0xff]
      %v485 = vld [vmem:[%s0 + $0x7e0] sm:$0xff]
      %v486 = vld [vmem:[%s0 + $0x7e8] sm:$0xff]
      %v487 = vld [vmem:[%s0 + $0x7f0] sm:$0xff]
      %v488 = vld [vmem:[%s0 + $0x7f8] sm:$0xff]
      %vm489 = vcmask 556032
      %v490 = vsel %vm489, %v234, 0.0
      %v491 = vadd.f32 %v233, %v490
      %492 = vadd.xlane.f32.xlu0 %v491
      %v493 = vpop.xlane.xlu0 %492
      %v494 = vsel %vm489, %v236, 0.0
      %v495 = vadd.f32 %v235, %v494
      %496 = vadd.xlane.f32.xlu0 %v495
      %v497 = vpop.xlane.xlu0 %496
      %v498 = vsel %vm489, %v238, 0.0
      %v499 = vadd.f32 %v237, %v498
      %500 = vadd.xlane.f32.xlu0 %v499
      %v501 = vpop.xlane.xlu0 %500
      %v502 = vsel %vm489, %v240, 0.0
      %v503 = vadd.f32 %v239, %v502
      %504 = vadd.xlane.f32.xlu0 %v503
      %v505 = vpop.xlane.xlu0 %504
      %v506 = vsel %vm489, %v242, 0.0
      %v507 = vadd.f32 %v241, %v506
      %508 = vadd.xlane.f32.xlu0 %v507
      %v509 = vpop.xlane.xlu0 %508
      %v510 = vsel %vm489, %v244, 0.0
      %v511 = vadd.f32 %v243, %v510
      %512 = vadd.xlane.f32.xlu0 %v511
      %v513 = vpop.xlane.xlu0 %512
      %v514 = vsel %vm489, %v246, 0.0
      %v515 = vadd.f32 %v245, %v514
      %516 = vadd.xlane.f32.xlu0 %v515
      %v517 = vpop.xlane.xlu0 %516
      %v518 = vsel %vm489, %v248, 0.0
      %v519 = vadd.f32 %v247, %v518
      %520 = vadd.xlane.f32.xlu0 %v519
      %v521 = vpop.xlane.xlu0 %520
      %v522 = vsel %vm489, %v250, 0.0
      %v523 = vadd.f32 %v249, %v522
      %524 = vadd.xlane.f32.xlu0 %v523
      %v525 = vpop.xlane.xlu0 %524
      %v526 = vsel %vm489, %v252, 0.0
      %v527 = vadd.f32 %v251, %v526
      %528 = vadd.xlane.f32.xlu0 %v527
      %v529 = vpop.xlane.xlu0 %528
      %v530 = vsel %vm489, %v254, 0.0
      %v531 = vadd.f32 %v253, %v530
      %532 = vadd.xlane.f32.xlu0 %v531
      %v533 = vpop.xlane.xlu0 %532
      %v534 = vsel %vm489, %v256, 0.0
      %v535 = vadd.f32 %v255, %v534
      %536 = vadd.xlane.f32.xlu0 %v535
      %v537 = vpop.xlane.xlu0 %536
      %v538 = vsel %vm489, %v258, 0.0
      %v539 = vadd.f32 %v257, %v538
      %540 = vadd.xlane.f32.xlu0 %v539
      %v541 = vpop.xlane.xlu0 %540
      %v542 = vsel %vm489, %v260, 0.0
      %v543 = vadd.f32 %v259, %v542
      %544 = vadd.xlane.f32.xlu0 %v543
      %v545 = vpop.xlane.xlu0 %544
      %v546 = vsel %vm489, %v262, 0.0
      %v547 = vadd.f32 %v261, %v546
      %548 = vadd.xlane.f32.xlu0 %v547
      %v549 = vpop.xlane.xlu0 %548
      %v550 = vsel %vm489, %v264, 0.0
      %v551 = vadd.f32 %v263, %v550
      %552 = vadd.xlane.f32.xlu0 %v551
      %v553 = vpop.xlane.xlu0 %552
      %v554 = vsel %vm489, %v266, 0.0
      %v555 = vadd.f32 %v265, %v554
      %556 = vadd.xlane.f32.xlu0 %v555
      %v557 = vpop.xlane.xlu0 %556
      %v558 = vsel %vm489, %v268, 0.0
      %v559 = vadd.f32 %v267, %v558
      %560 = vadd.xlane.f32.xlu0 %v559
      %v561 = vpop.xlane.xlu0 %560
      %v562 = vsel %vm489, %v270, 0.0
      %v563 = vadd.f32 %v269, %v562
      %564 = vadd.xlane.f32.xlu0 %v563
      %v565 = vpop.xlane.xlu0 %564
      %v566 = vsel %vm489, %v272, 0.0
      %v567 = vadd.f32 %v271, %v566
      %568 = vadd.xlane.f32.xlu0 %v567
      %v569 = vpop.xlane.xlu0 %568
      %v570 = vsel %vm489, %v274, 0.0
      %v571 = vadd.f32 %v273, %v570
      %572 = vadd.xlane.f32.xlu0 %v571
      %v573 = vpop.xlane.xlu0 %572
      %v574 = vsel %vm489, %v276, 0.0
      %v575 = vadd.f32 %v275, %v574
      %576 = vadd.xlane.f32.xlu0 %v575
      %v577 = vpop.xlane.xlu0 %576
      %v578 = vsel %vm489, %v278, 0.0
      %v579 = vadd.f32 %v277, %v578
      %580 = vadd.xlane.f32.xlu0 %v579
      %v581 = vpop.xlane.xlu0 %580
      %v582 = vsel %vm489, %v280, 0.0
      %v583 = vadd.f32 %v279, %v582
      %584 = vadd.xlane.f32.xlu0 %v583
      %v585 = vpop.xlane.xlu0 %584
      %v586 = vsel %vm489, %v282, 0.0
      %v587 = vadd.f32 %v281, %v586
      %588 = vadd.xlane.f32.xlu0 %v587
      %v589 = vpop.xlane.xlu0 %588
      %v590 = vsel %vm489, %v284, 0.0
      %v591 = vadd.f32 %v283, %v590
      %592 = vadd.xlane.f32.xlu0 %v591
      %v593 = vpop.xlane.xlu0 %592
      %v594 = vsel %vm489, %v286, 0.0
      %v595 = vadd.f32 %v285, %v594
      %596 = vadd.xlane.f32.xlu0 %v595
      %v597 = vpop.xlane.xlu0 %596
      %v598 = vsel %vm489, %v288, 0.0
      %v599 = vadd.f32 %v287, %v598
      %600 = vadd.xlane.f32.xlu0 %v599
      %v601 = vpop.xlane.xlu0 %600
      %v602 = vsel %vm489, %v290, 0.0
      %v603 = vadd.f32 %v289, %v602
      %604 = vadd.xlane.f32.xlu0 %v603
      %v605 = vpop.xlane.xlu0 %604
      %v606 = vsel %vm489, %v292, 0.0
      %v607 = vadd.f32 %v291, %v606
      %608 = vadd.xlane.f32.xlu0 %v607
      %v609 = vpop.xlane.xlu0 %608
      %v610 = vsel %vm489, %v294, 0.0
      %v611 = vadd.f32 %v293, %v610
      %612 = vadd.xlane.f32.xlu0 %v611
      %v613 = vpop.xlane.xlu0 %612
      %v614 = vsel %vm489, %v296, 0.0
      %v615 = vadd.f32 %v295, %v614
      %616 = vadd.xlane.f32.xlu0 %v615
      %v617 = vpop.xlane.xlu0 %616
      %v618 = vsel %vm489, %v298, 0.0
      %v619 = vadd.f32 %v297, %v618
      %620 = vadd.xlane.f32.xlu0 %v619
      %v621 = vpop.xlane.xlu0 %620
      %v622 = vsel %vm489, %v300, 0.0
      %v623 = vadd.f32 %v299, %v622
      %624 = vadd.xlane.f32.xlu0 %v623
      %v625 = vpop.xlane.xlu0 %624
      %v626 = vsel %vm489, %v302, 0.0
      %v627 = vadd.f32 %v301, %v626
      %628 = vadd.xlane.f32.xlu0 %v627
      %v629 = vpop.xlane.xlu0 %628
      %v630 = vsel %vm489, %v304, 0.0
      %v631 = vadd.f32 %v303, %v630
      %632 = vadd.xlane.f32.xlu0 %v631
      %v633 = vpop.xlane.xlu0 %632
      %v634 = vsel %vm489, %v306, 0.0
      %v635 = vadd.f32 %v305, %v634
      %636 = vadd.xlane.f32.xlu0 %v635
      %v637 = vpop.xlane.xlu0 %636
      %v638 = vsel %vm489, %v308, 0.0
      %v639 = vadd.f32 %v307, %v638
      %640 = vadd.xlane.f32.xlu0 %v639
      %v641 = vpop.xlane.xlu0 %640
      %v642 = vsel %vm489, %v310, 0.0
      %v643 = vadd.f32 %v309, %v642
      %644 = vadd.xlane.f32.xlu0 %v643
      %v645 = vpop.xlane.xlu0 %644
      %v646 = vsel %vm489, %v312, 0.0
      %v647 = vadd.f32 %v311, %v646
      %648 = vadd.xlane.f32.xlu0 %v647
      %v649 = vpop.xlane.xlu0 %648
      %v650 = vsel %vm489, %v314, 0.0
      %v651 = vadd.f32 %v313, %v650
      %652 = vadd.xlane.f32.xlu0 %v651
      %v653 = vpop.xlane.xlu0 %652
      %v654 = vsel %vm489, %v316, 0.0
      %v655 = vadd.f32 %v315, %v654
      %656 = vadd.xlane.f32.xlu0 %v655
      %v657 = vpop.xlane.xlu0 %656
      %v658 = vsel %vm489, %v318, 0.0
      %v659 = vadd.f32 %v317, %v658
      %660 = vadd.xlane.f32.xlu0 %v659
      %v661 = vpop.xlane.xlu0 %660
      %v662 = vsel %vm489, %v320, 0.0
      %v663 = vadd.f32 %v319, %v662
      %664 = vadd.xlane.f32.xlu0 %v663
      %v665 = vpop.xlane.xlu0 %664
      %v666 = vsel %vm489, %v322, 0.0
      %v667 = vadd.f32 %v321, %v666
      %668 = vadd.xlane.f32.xlu0 %v667
      %v669 = vpop.xlane.xlu0 %668
      %v670 = vsel %vm489, %v324, 0.0
      %v671 = vadd.f32 %v323, %v670
      %672 = vadd.xlane.f32.xlu0 %v671
      %v673 = vpop.xlane.xlu0 %672
      %v674 = vsel %vm489, %v326, 0.0
      %v675 = vadd.f32 %v325, %v674
      %676 = vadd.xlane.f32.xlu0 %v675
      %v677 = vpop.xlane.xlu0 %676
      %v678 = vsel %vm489, %v328, 0.0
      %v679 = vadd.f32 %v327, %v678
      %680 = vadd.xlane.f32.xlu0 %v679
      %v681 = vpop.xlane.xlu0 %680
      %v682 = vsel %vm489, %v330, 0.0
      %v683 = vadd.f32 %v329, %v682
      %684 = vadd.xlane.f32.xlu0 %v683
      %v685 = vpop.xlane.xlu0 %684
      %v686 = vsel %vm489, %v332, 0.0
      %v687 = vadd.f32 %v331, %v686
      %688 = vadd.xlane.f32.xlu0 %v687
      %v689 = vpop.xlane.xlu0 %688
      %v690 = vsel %vm489, %v334, 0.0
      %v691 = vadd.f32 %v333, %v690
      %692 = vadd.xlane.f32.xlu0 %v691
      %v693 = vpop.xlane.xlu0 %692
      %v694 = vsel %vm489, %v336, 0.0
      %v695 = vadd.f32 %v335, %v694
      %696 = vadd.xlane.f32.xlu0 %v695
      %v697 = vpop.xlane.xlu0 %696
      %v698 = vsel %vm489, %v338, 0.0
      %v699 = vadd.f32 %v337, %v698
      %700 = vadd.xlane.f32.xlu0 %v699
      %v701 = vpop.xlane.xlu0 %700
      %v702 = vsel %vm489, %v340, 0.0
      %v703 = vadd.f32 %v339, %v702
      %704 = vadd.xlane.f32.xlu0 %v703
      %v705 = vpop.xlane.xlu0 %704
      %v706 = vsel %vm489, %v342, 0.0
      %v707 = vadd.f32 %v341, %v706
      %708 = vadd.xlane.f32.xlu0 %v707
      %v709 = vpop.xlane.xlu0 %708
      %v710 = vsel %vm489, %v344, 0.0
      %v711 = vadd.f32 %v343, %v710
      %712 = vadd.xlane.f32.xlu0 %v711
      %v713 = vpop.xlane.xlu0 %712
      %v714 = vsel %vm489, %v346, 0.0
      %v715 = vadd.f32 %v345, %v714
      %716 = vadd.xlane.f32.xlu0 %v715
      %v717 = vpop.xlane.xlu0 %716
      %v718 = vsel %vm489, %v348, 0.0
      %v719 = vadd.f32 %v347, %v718
      %720 = vadd.xlane.f32.xlu0 %v719
      %v721 = vpop.xlane.xlu0 %720
      %v722 = vsel %vm489, %v350, 0.0
      %v723 = vadd.f32 %v349, %v722
      %724 = vadd.xlane.f32.xlu0 %v723
      %v725 = vpop.xlane.xlu0 %724
      %v726 = vsel %vm489, %v352, 0.0
      %v727 = vadd.f32 %v351, %v726
      %728 = vadd.xlane.f32.xlu0 %v727
      %v729 = vpop.xlane.xlu0 %728
      %v730 = vsel %vm489, %v354, 0.0
      %v731 = vadd.f32 %v353, %v730
      %732 = vadd.xlane.f32.xlu0 %v731
      %v733 = vpop.xlane.xlu0 %732
      %v734 = vsel %vm489, %v356, 0.0
      %v735 = vadd.f32 %v355, %v734
      %736 = vadd.xlane.f32.xlu0 %v735
      %v737 = vpop.xlane.xlu0 %736
      %v738 = vsel %vm489, %v358, 0.0
      %v739 = vadd.f32 %v357, %v738
      %740 = vadd.xlane.f32.xlu0 %v739
      %v741 = vpop.xlane.xlu0 %740
      %v742 = vsel %vm489, %v360, 0.0
      %v743 = vadd.f32 %v359, %v742
      %744 = vadd.xlane.f32.xlu0 %v743
      %v745 = vpop.xlane.xlu0 %744
      %v746 = vsel %vm489, %v362, 0.0
      %v747 = vadd.f32 %v361, %v746
      %748 = vadd.xlane.f32.xlu0 %v747
      %v749 = vpop.xlane.xlu0 %748
      %v750 = vsel %vm489, %v364, 0.0
      %v751 = vadd.f32 %v363, %v750
      %752 = vadd.xlane.f32.xlu0 %v751
      %v753 = vpop.xlane.xlu0 %752
      %v754 = vsel %vm489, %v366, 0.0
      %v755 = vadd.f32 %v365, %v754
      %756 = vadd.xlane.f32.xlu0 %v755
      %v757 = vpop.xlane.xlu0 %756
      %v758 = vsel %vm489, %v368, 0.0
      %v759 = vadd.f32 %v367, %v758
      %760 = vadd.xlane.f32.xlu0 %v759
      %v761 = vpop.xlane.xlu0 %760
      %v762 = vsel %vm489, %v370, 0.0
      %v763 = vadd.f32 %v369, %v762
      %764 = vadd.xlane.f32.xlu0 %v763
      %v765 = vpop.xlane.xlu0 %764
      %v766 = vsel %vm489, %v372, 0.0
      %v767 = vadd.f32 %v371, %v766
      %768 = vadd.xlane.f32.xlu0 %v767
      %v769 = vpop.xlane.xlu0 %768
      %v770 = vsel %vm489, %v374, 0.0
      %v771 = vadd.f32 %v373, %v770
      %772 = vadd.xlane.f32.xlu0 %v771
      %v773 = vpop.xlane.xlu0 %772
      %v774 = vsel %vm489, %v376, 0.0
      %v775 = vadd.f32 %v375, %v774
      %776 = vadd.xlane.f32.xlu0 %v775
      %v777 = vpop.xlane.xlu0 %776
      %v778 = vsel %vm489, %v378, 0.0
      %v779 = vadd.f32 %v377, %v778
      %780 = vadd.xlane.f32.xlu0 %v779
      %v781 = vpop.xlane.xlu0 %780
      %v782 = vsel %vm489, %v380, 0.0
      %v783 = vadd.f32 %v379, %v782
      %784 = vadd.xlane.f32.xlu0 %v783
      %v785 = vpop.xlane.xlu0 %784
      %v786 = vsel %vm489, %v382, 0.0
      %v787 = vadd.f32 %v381, %v786
      %788 = vadd.xlane.f32.xlu0 %v787
      %v789 = vpop.xlane.xlu0 %788
      %v790 = vsel %vm489, %v384, 0.0
      %v791 = vadd.f32 %v383, %v790
      %792 = vadd.xlane.f32.xlu0 %v791
      %v793 = vpop.xlane.xlu0 %792
      %v794 = vsel %vm489, %v386, 0.0
      %v795 = vadd.f32 %v385, %v794
      %796 = vadd.xlane.f32.xlu0 %v795
      %v797 = vpop.xlane.xlu0 %796
      %v798 = vsel %vm489, %v388, 0.0
      %v799 = vadd.f32 %v387, %v798
      %800 = vadd.xlane.f32.xlu0 %v799
      %v801 = vpop.xlane.xlu0 %800
      %v802 = vsel %vm489, %v390, 0.0
      %v803 = vadd.f32 %v389, %v802
      %804 = vadd.xlane.f32.xlu0 %v803
      %v805 = vpop.xlane.xlu0 %804
      %v806 = vsel %vm489, %v392, 0.0
      %v807 = vadd.f32 %v391, %v806
      %808 = vadd.xlane.f32.xlu0 %v807
      %v809 = vpop.xlane.xlu0 %808
      %v810 = vsel %vm489, %v394, 0.0
      %v811 = vadd.f32 %v393, %v810
      %812 = vadd.xlane.f32.xlu0 %v811
      %v813 = vpop.xlane.xlu0 %812
      %v814 = vsel %vm489, %v396, 0.0
      %v815 = vadd.f32 %v395, %v814
      %816 = vadd.xlane.f32.xlu0 %v815
      %v817 = vpop.xlane.xlu0 %816
      %v818 = vsel %vm489, %v398, 0.0
      %v819 = vadd.f32 %v397, %v818
      %820 = vadd.xlane.f32.xlu0 %v819
      %v821 = vpop.xlane.xlu0 %820
      %v822 = vsel %vm489, %v400, 0.0
      %v823 = vadd.f32 %v399, %v822
      %824 = vadd.xlane.f32.xlu0 %v823
      %v825 = vpop.xlane.xlu0 %824
      %v826 = vsel %vm489, %v402, 0.0
      %v827 = vadd.f32 %v401, %v826
      %828 = vadd.xlane.f32.xlu0 %v827
      %v829 = vpop.xlane.xlu0 %828
      %v830 = vsel %vm489, %v404, 0.0
      %v831 = vadd.f32 %v403, %v830
      %832 = vadd.xlane.f32.xlu0 %v831
      %v833 = vpop.xlane.xlu0 %832
      %v834 = vsel %vm489, %v406, 0.0
      %v835 = vadd.f32 %v405, %v834
      %836 = vadd.xlane.f32.xlu0 %v835
      %v837 = vpop.xlane.xlu0 %836
      %v838 = vsel %vm489, %v408, 0.0
      %v839 = vadd.f32 %v407, %v838
      %840 = vadd.xlane.f32.xlu0 %v839
      %v841 = vpop.xlane.xlu0 %840
      %v842 = vsel %vm489, %v410, 0.0
      %v843 = vadd.f32 %v409, %v842
      %844 = vadd.xlane.f32.xlu0 %v843
      %v845 = vpop.xlane.xlu0 %844
      %v846 = vsel %vm489, %v412, 0.0
      %v847 = vadd.f32 %v411, %v846
      %848 = vadd.xlane.f32.xlu0 %v847
      %v849 = vpop.xlane.xlu0 %848
      %v850 = vsel %vm489, %v414, 0.0
      %v851 = vadd.f32 %v413, %v850
      %852 = vadd.xlane.f32.xlu0 %v851
      %v853 = vpop.xlane.xlu0 %852
      %v854 = vsel %vm489, %v416, 0.0
      %v855 = vadd.f32 %v415, %v854
      %856 = vadd.xlane.f32.xlu0 %v855
      %v857 = vpop.xlane.xlu0 %856
      %v858 = vsel %vm489, %v418, 0.0
      %v859 = vadd.f32 %v417, %v858
      %860 = vadd.xlane.f32.xlu0 %v859
      %v861 = vpop.xlane.xlu0 %860
      %v862 = vsel %vm489, %v420, 0.0
      %v863 = vadd.f32 %v419, %v862
      %864 = vadd.xlane.f32.xlu0 %v863
      %v865 = vpop.xlane.xlu0 %864
      %v866 = vsel %vm489, %v422, 0.0
      %v867 = vadd.f32 %v421, %v866
      %868 = vadd.xlane.f32.xlu0 %v867
      %v869 = vpop.xlane.xlu0 %868
      %v870 = vsel %vm489, %v424, 0.0
      %v871 = vadd.f32 %v423, %v870
      %872 = vadd.xlane.f32.xlu0 %v871
      %v873 = vpop.xlane.xlu0 %872
      %v874 = vsel %vm489, %v426, 0.0
      %v875 = vadd.f32 %v425, %v874
      %876 = vadd.xlane.f32.xlu0 %v875
      %v877 = vpop.xlane.xlu0 %876
      %v878 = vsel %vm489, %v428, 0.0
      %v879 = vadd.f32 %v427, %v878
      %880 = vadd.xlane.f32.xlu0 %v879
      %v881 = vpop.xlane.xlu0 %880
      %v882 = vsel %vm489, %v430, 0.0
      %v883 = vadd.f32 %v429, %v882
      %884 = vadd.xlane.f32.xlu0 %v883
      %v885 = vpop.xlane.xlu0 %884
      %v886 = vsel %vm489, %v432, 0.0
      %v887 = vadd.f32 %v431, %v886
      %888 = vadd.xlane.f32.xlu0 %v887
      %v889 = vpop.xlane.xlu0 %888
      %v890 = vsel %vm489, %v434, 0.0
      %v891 = vadd.f32 %v433, %v890
      %892 = vadd.xlane.f32.xlu0 %v891
      %v893 = vpop.xlane.xlu0 %892
      %v894 = vsel %vm489, %v436, 0.0
      %v895 = vadd.f32 %v435, %v894
      %896 = vadd.xlane.f32.xlu0 %v895
      %v897 = vpop.xlane.xlu0 %896
      %v898 = vsel %vm489, %v438, 0.0
      %v899 = vadd.f32 %v437, %v898
      %900 = vadd.xlane.f32.xlu0 %v899
      %v901 = vpop.xlane.xlu0 %900
      %v902 = vsel %vm489, %v440, 0.0
      %v903 = vadd.f32 %v439, %v902
      %904 = vadd.xlane.f32.xlu0 %v903
      %v905 = vpop.xlane.xlu0 %904
      %v906 = vsel %vm489, %v442, 0.0
      %v907 = vadd.f32 %v441, %v906
      %908 = vadd.xlane.f32.xlu0 %v907
      %v909 = vpop.xlane.xlu0 %908
      %v910 = vsel %vm489, %v444, 0.0
      %v911 = vadd.f32 %v443, %v910
      %912 = vadd.xlane.f32.xlu0 %v911
      %v913 = vpop.xlane.xlu0 %912
      %v914 = vsel %vm489, %v446, 0.0
      %v915 = vadd.f32 %v445, %v914
      %916 = vadd.xlane.f32.xlu0 %v915
      %v917 = vpop.xlane.xlu0 %916
      %v918 = vsel %vm489, %v448, 0.0
      %v919 = vadd.f32 %v447, %v918
      %920 = vadd.xlane.f32.xlu0 %v919
      %v921 = vpop.xlane.xlu0 %920
      %v922 = vsel %vm489, %v450, 0.0
      %v923 = vadd.f32 %v449, %v922
      %924 = vadd.xlane.f32.xlu0 %v923
      %v925 = vpop.xlane.xlu0 %924
      %v926 = vsel %vm489, %v452, 0.0
      %v927 = vadd.f32 %v451, %v926
      %928 = vadd.xlane.f32.xlu0 %v927
      %v929 = vpop.xlane.xlu0 %928
      %v930 = vsel %vm489, %v454, 0.0
      %v931 = vadd.f32 %v453, %v930
      %932 = vadd.xlane.f32.xlu0 %v931
      %v933 = vpop.xlane.xlu0 %932
      %v934 = vsel %vm489, %v456, 0.0
      %v935 = vadd.f32 %v455, %v934
      %936 = vadd.xlane.f32.xlu0 %v935
      %v937 = vpop.xlane.xlu0 %936
      %v938 = vsel %vm489, %v458, 0.0
      %v939 = vadd.f32 %v457, %v938
      %940 = vadd.xlane.f32.xlu0 %v939
      %v941 = vpop.xlane.xlu0 %940
      %v942 = vsel %vm489, %v460, 0.0
      %v943 = vadd.f32 %v459, %v942
      %944 = vadd.xlane.f32.xlu0 %v943
      %v945 = vpop.xlane.xlu0 %944
      %v946 = vsel %vm489, %v462, 0.0
      %v947 = vadd.f32 %v461, %v946
      %948 = vadd.xlane.f32.xlu0 %v947
      %v949 = vpop.xlane.xlu0 %948
      %v950 = vsel %vm489, %v464, 0.0
      %v951 = vadd.f32 %v463, %v950
      %952 = vadd.xlane.f32.xlu0 %v951
      %v953 = vpop.xlane.xlu0 %952
      %v954 = vsel %vm489, %v466, 0.0
      %v955 = vadd.f32 %v465, %v954
      %956 = vadd.xlane.f32.xlu0 %v955
      %v957 = vpop.xlane.xlu0 %956
      %v958 = vsel %vm489, %v468, 0.0
      %v959 = vadd.f32 %v467, %v958
      %960 = vadd.xlane.f32.xlu0 %v959
      %v961 = vpop.xlane.xlu0 %960
      %v962 = vsel %vm489, %v470, 0.0
      %v963 = vadd.f32 %v469, %v962
      %964 = vadd.xlane.f32.xlu0 %v963
      %v965 = vpop.xlane.xlu0 %964
      %v966 = vsel %vm489, %v472, 0.0
      %v967 = vadd.f32 %v471, %v966
      %968 = vadd.xlane.f32.xlu0 %v967
      %v969 = vpop.xlane.xlu0 %968
      %v970 = vsel %vm489, %v474, 0.0
      %v971 = vadd.f32 %v473, %v970
      %972 = vadd.xlane.f32.xlu0 %v971
      %v973 = vpop.xlane.xlu0 %972
      %v974 = vsel %vm489, %v476, 0.0
      %v975 = vadd.f32 %v475, %v974
      %976 = vadd.xlane.f32.xlu0 %v975
      %v977 = vpop.xlane.xlu0 %976
      %v978 = vsel %vm489, %v478, 0.0
      %v979 = vadd.f32 %v477, %v978
      %980 = vadd.xlane.f32.xlu0 %v979
      %v981 = vpop.xlane.xlu0 %980
      %v982 = vsel %vm489, %v480, 0.0
      %v983 = vadd.f32 %v479, %v982
      %984 = vadd.xlane.f32.xlu0 %v983
      %v985 = vpop.xlane.xlu0 %984
      %v986 = vsel %vm489, %v482, 0.0
      %v987 = vadd.f32 %v481, %v986
      %988 = vadd.xlane.f32.xlu0 %v987
      %v989 = vpop.xlane.xlu0 %988
      %v990 = vsel %vm489, %v484, 0.0
      %v991 = vadd.f32 %v483, %v990
      %992 = vadd.xlane.f32.xlu0 %v991
      %v993 = vpop.xlane.xlu0 %992
      %v994 = vsel %vm489, %v486, 0.0
      %v995 = vadd.f32 %v485, %v994
      %996 = vadd.xlane.f32.xlu0 %v995
      %v997 = vpop.xlane.xlu0 %996
      %v998 = vsel %vm489, %v488, 0.0
      %v999 = vadd.f32 %v487, %v998
      %1000 = vadd.xlane.f32.xlu0 %v999
      %v1001 = vpop.xlane.xlu0 %1000
      %v1002 = vmul.f32 %v233, %v233
      %v1003 = vmul.f32 %v234, %v234
      %v1004 = vmul.f32 %v235, %v235
      %v1005 = vmul.f32 %v236, %v236
      %v1006 = vmul.f32 %v237, %v237
      %v1007 = vmul.f32 %v238, %v238
      %v1008 = vmul.f32 %v239, %v239
      %v1009 = vmul.f32 %v240, %v240
      %v1010 = vmul.f32 %v241, %v241
      %v1011 = vmul.f32 %v242, %v242
      %v1012 = vmul.f32 %v243, %v243
      %v1013 = vmul.f32 %v244, %v244
      %v1014 = vmul.f32 %v245, %v245
      %v1015 = vmul.f32 %v246, %v246
      %v1016 = vmul.f32 %v247, %v247
      %v1017 = vmul.f32 %v248, %v248
      %v1018 = vmul.f32 %v249, %v249
      %v1019 = vmul.f32 %v250, %v250
      %v1020 = vmul.f32 %v251, %v251
      %v1021 = vmul.f32 %v252, %v252
      %v1022 = vmul.f32 %v253, %v253
      %v1023 = vmul.f32 %v254, %v254
      %v1024 = vmul.f32 %v255, %v255
      %v1025 = vmul.f32 %v256, %v256
      %v1026 = vmul.f32 %v257, %v257
      %v1027 = vmul.f32 %v258, %v258
      %v1028 = vmul.f32 %v259, %v259
      %v1029 = vmul.f32 %v260, %v260
      %v1030 = vmul.f32 %v261, %v261
      %v1031 = vmul.f32 %v262, %v262
      %v1032 = vmul.f32 %v263, %v263
      %v1033 = vmul.f32 %v264, %v264
      %v1034 = vmul.f32 %v265, %v265
      %v1035 = vmul.f32 %v266, %v266
      %v1036 = vmul.f32 %v267, %v267
      %v1037 = vmul.f32 %v268, %v268
      %v1038 = vmul.f32 %v269, %v269
      %v1039 = vmul.f32 %v270, %v270
      %v1040 = vmul.f32 %v271, %v271
      %v1041 = vmul.f32 %v272, %v272
      %v1042 = vmul.f32 %v273, %v273
      %v1043 = vmul.f32 %v274, %v274
      %v1044 = vmul.f32 %v275, %v275
      %v1045 = vmul.f32 %v276, %v276
      %v1046 = vmul.f32 %v277, %v277
      %v1047 = vmul.f32 %v278, %v278
      %v1048 = vmul.f32 %v279, %v279
      %v1049 = vmul.f32 %v280, %v280
      %v1050 = vmul.f32 %v281, %v281
      %v1051 = vmul.f32 %v282, %v282
      %v1052 = vmul.f32 %v283, %v283
      %v1053 = vmul.f32 %v284, %v284
      %v1054 = vmul.f32 %v285, %v285
      %v1055 = vmul.f32 %v286, %v286
      %v1056 = vmul.f32 %v287, %v287
      %v1057 = vmul.f32 %v288, %v288
      %v1058 = vmul.f32 %v289, %v289
      %v1059 = vmul.f32 %v290, %v290
      %v1060 = vmul.f32 %v291, %v291
      %v1061 = vmul.f32 %v292, %v292
      %v1062 = vmul.f32 %v293, %v293
      %v1063 = vmul.f32 %v294, %v294
      %v1064 = vmul.f32 %v295, %v295
      %v1065 = vmul.f32 %v296, %v296
      %v1066 = vmul.f32 %v297, %v297
      %v1067 = vmul.f32 %v298, %v298
      %v1068 = vmul.f32 %v299, %v299
      %v1069 = vmul.f32 %v300, %v300
      %v1070 = vmul.f32 %v301, %v301
      %v1071 = vmul.f32 %v302, %v302
      %v1072 = vmul.f32 %v303, %v303
      %v1073 = vmul.f32 %v304, %v304
      %v1074 = vmul.f32 %v305, %v305
      %v1075 = vmul.f32 %v306, %v306
      %v1076 = vmul.f32 %v307, %v307
      %v1077 = vmul.f32 %v308, %v308
      %v1078 = vmul.f32 %v309, %v309
      %v1079 = vmul.f32 %v310, %v310
      %v1080 = vmul.f32 %v311, %v311
      %v1081 = vmul.f32 %v312, %v312
      %v1082 = vmul.f32 %v313, %v313
      %v1083 = vmul.f32 %v314, %v314
      %v1084 = vmul.f32 %v315, %v315
      %v1085 = vmul.f32 %v316, %v316
      %v1086 = vmul.f32 %v317, %v317
      %v1087 = vmul.f32 %v318, %v318
      %v1088 = vmul.f32 %v319, %v319
      %v1089 = vmul.f32 %v320, %v320
      %v1090 = vmul.f32 %v321, %v321
      %v1091 = vmul.f32 %v322, %v322
      %v1092 = vmul.f32 %v323, %v323
      %v1093 = vmul.f32 %v324, %v324
      %v1094 = vmul.f32 %v325, %v325
      %v1095 = vmul.f32 %v326, %v326
      %v1096 = vmul.f32 %v327, %v327
      %v1097 = vmul.f32 %v328, %v328
      %v1098 = vmul.f32 %v329, %v329
      %v1099 = vmul.f32 %v330, %v330
      %v1100 = vmul.f32 %v331, %v331
      %v1101 = vmul.f32 %v332, %v332
      %v1102 = vmul.f32 %v333, %v333
      %v1103 = vmul.f32 %v334, %v334
      %v1104 = vmul.f32 %v335, %v335
      %v1105 = vmul.f32 %v336, %v336
      %v1106 = vmul.f32 %v337, %v337
      %v1107 = vmul.f32 %v338, %v338
      %v1108 = vmul.f32 %v339, %v339
      %v1109 = vmul.f32 %v340, %v340
      %v1110 = vmul.f32 %v341, %v341
      %v1111 = vmul.f32 %v342, %v342
      %v1112 = vmul.f32 %v343, %v343
      %v1113 = vmul.f32 %v344, %v344
      %v1114 = vmul.f32 %v345, %v345
      %v1115 = vmul.f32 %v346, %v346
      %v1116 = vmul.f32 %v347, %v347
      %v1117 = vmul.f32 %v348, %v348
      %v1118 = vmul.f32 %v349, %v349
      %v1119 = vmul.f32 %v350, %v350
      %v1120 = vmul.f32 %v351, %v351
      %v1121 = vmul.f32 %v352, %v352
      %v1122 = vmul.f32 %v353, %v353
      %v1123 = vmul.f32 %v354, %v354
      %v1124 = vmul.f32 %v355, %v355
      %v1125 = vmul.f32 %v356, %v356
      %v1126 = vmul.f32 %v357, %v357
      %v1127 = vmul.f32 %v358, %v358
      %v1128 = vmul.f32 %v359, %v359
      %v1129 = vmul.f32 %v360, %v360
      %v1130 = vmul.f32 %v361, %v361
      %v1131 = vmul.f32 %v362, %v362
      %v1132 = vmul.f32 %v363, %v363
      %v1133 = vmul.f32 %v364, %v364
      %v1134 = vmul.f32 %v365, %v365
      %v1135 = vmul.f32 %v366, %v366
      %v1136 = vmul.f32 %v367, %v367
      %v1137 = vmul.f32 %v368, %v368
      %v1138 = vmul.f32 %v369, %v369
      %v1139 = vmul.f32 %v370, %v370
      %v1140 = vmul.f32 %v371, %v371
      %v1141 = vmul.f32 %v372, %v372
      %v1142 = vmul.f32 %v373, %v373
      %v1143 = vmul.f32 %v374, %v374
      %v1144 = vmul.f32 %v375, %v375
      %v1145 = vmul.f32 %v376, %v376
      %v1146 = vmul.f32 %v377, %v377
      %v1147 = vmul.f32 %v378, %v378
      %v1148 = vmul.f32 %v379, %v379
      %v1149 = vmul.f32 %v380, %v380
      %v1150 = vmul.f32 %v381, %v381
      %v1151 = vmul.f32 %v382, %v382
      %v1152 = vmul.f32 %v383, %v383
      %v1153 = vmul.f32 %v384, %v384
      %v1154 = vmul.f32 %v385, %v385
      %v1155 = vmul.f32 %v386, %v386
      %v1156 = vmul.f32 %v387, %v387
      %v1157 = vmul.f32 %v388, %v388
      %v1158 = vmul.f32 %v389, %v389
      %v1159 = vmul.f32 %v390, %v390
      %v1160 = vmul.f32 %v391, %v391
      %v1161 = vmul.f32 %v392, %v392
      %v1162 = vmul.f32 %v393, %v393
      %v1163 = vmul.f32 %v394, %v394
      %v1164 = vmul.f32 %v395, %v395
      %v1165 = vmul.f32 %v396, %v396
      %v1166 = vmul.f32 %v397, %v397
      %v1167 = vmul.f32 %v398, %v398
      %v1168 = vmul.f32 %v399, %v399
      %v1169 = vmul.f32 %v400, %v400
      %v1170 = vmul.f32 %v401, %v401
      %v1171 = vmul.f32 %v402, %v402
      %v1172 = vmul.f32 %v403, %v403
      %v1173 = vmul.f32 %v404, %v404
      %v1174 = vmul.f32 %v405, %v405
      %v1175 = vmul.f32 %v406, %v406
      %v1176 = vmul.f32 %v407, %v407
      %v1177 = vmul.f32 %v408, %v408
      %v1178 = vmul.f32 %v409, %v409
      %v1179 = vmul.f32 %v410, %v410
      %v1180 = vmul.f32 %v411, %v411
      %v1181 = vmul.f32 %v412, %v412
      %v1182 = vmul.f32 %v413, %v413
      %v1183 = vmul.f32 %v414, %v414
      %v1184 = vmul.f32 %v415, %v415
      %v1185 = vmul.f32 %v416, %v416
      %v1186 = vmul.f32 %v417, %v417
      %v1187 = vmul.f32 %v418, %v418
      %v1188 = vmul.f32 %v419, %v419
      %v1189 = vmul.f32 %v420, %v420
      %v1190 = vmul.f32 %v421, %v421
      %v1191 = vmul.f32 %v422, %v422
      %v1192 = vmul.f32 %v423, %v423
      %v1193 = vmul.f32 %v424, %v424
      %v1194 = vmul.f32 %v425, %v425
      %v1195 = vmul.f32 %v426, %v426
      %v1196 = vmul.f32 %v427, %v427
      %v1197 = vmul.f32 %v428, %v428
      %v1198 = vmul.f32 %v429, %v429
      %v1199 = vmul.f32 %v430, %v430
      %v1200 = vmul.f32 %v431, %v431
      %v1201 = vmul.f32 %v432, %v432
      %v1202 = vmul.f32 %v433, %v433
      %v1203 = vmul.f32 %v434, %v434
      %v1204 = vmul.f32 %v435, %v435
      %v1205 = vmul.f32 %v436, %v436
      %v1206 = vmul.f32 %v437, %v437
      %v1207 = vmul.f32 %v438, %v438
      %v1208 = vmul.f32 %v439, %v439
      %v1209 = vmul.f32 %v440, %v440
      %v1210 = vmul.f32 %v441, %v441
      %v1211 = vmul.f32 %v442, %v442
      %v1212 = vmul.f32 %v443, %v443
      %v1213 = vmul.f32 %v444, %v444
      %v1214 = vmul.f32 %v445, %v445
      %v1215 = vmul.f32 %v446, %v446
      %v1216 = vmul.f32 %v447, %v447
      %v1217 = vmul.f32 %v448, %v448
      %v1218 = vmul.f32 %v449, %v449
      %v1219 = vmul.f32 %v450, %v450
      %v1220 = vmul.f32 %v451, %v451
      %v1221 = vmul.f32 %v452, %v452
      %v1222 = vmul.f32 %v453, %v453
      %v1223 = vmul.f32 %v454, %v454
      %v1224 = vmul.f32 %v455, %v455
      %v1225 = vmul.f32 %v456, %v456
      %v1226 = vmul.f32 %v457, %v457
      %v1227 = vmul.f32 %v458, %v458
      %v1228 = vmul.f32 %v459, %v459
      %v1229 = vmul.f32 %v460, %v460
      %v1230 = vmul.f32 %v461, %v461
      %v1231 = vmul.f32 %v462, %v462
      %v1232 = vmul.f32 %v463, %v463
      %v1233 = vmul.f32 %v464, %v464
      %v1234 = vmul.f32 %v465, %v465
      %v1235 = vmul.f32 %v466, %v466
      %v1236 = vmul.f32 %v467, %v467
      %v1237 = vmul.f32 %v468, %v468
      %v1238 = vmul.f32 %v469, %v469
      %v1239 = vmul.f32 %v470, %v470
      %v1240 = vmul.f32 %v471, %v471
      %v1241 = vmul.f32 %v472, %v472
      %v1242 = vmul.f32 %v473, %v473
      %v1243 = vmul.f32 %v474, %v474
      %v1244 = vmul.f32 %v475, %v475
      %v1245 = vmul.f32 %v476, %v476
      %v1246 = vmul.f32 %v477, %v477
      %v1247 = vmul.f32 %v478, %v478
      %v1248 = vmul.f32 %v479, %v479
      %v1249 = vmul.f32 %v480, %v480
      %v1250 = vmul.f32 %v481, %v481
      %v1251 = vmul.f32 %v482, %v482
      %v1252 = vmul.f32 %v483, %v483
      %v1253 = vmul.f32 %v484, %v484
      %v1254 = vmul.f32 %v485, %v485
      %v1255 = vmul.f32 %v486, %v486
      %v1256 = vmul.f32 %v487, %v487
      %v1257 = vmul.f32 %v488, %v488
      %v1258 = vsel %vm489, %v1003, 0.0
      %v1259 = vadd.f32 %v1002, %v1258
      %1260 = vadd.xlane.f32.xlu0 %v1259
      %v1261 = vpop.xlane.xlu0 %1260
      %v1262 = vsel %vm489, %v1005, 0.0
      %v1263 = vadd.f32 %v1004, %v1262
      %1264 = vadd.xlane.f32.xlu0 %v1263
      %v1265 = vpop.xlane.xlu0 %1264
      %v1266 = vsel %vm489, %v1007, 0.0
      %v1267 = vadd.f32 %v1006, %v1266
      %1268 = vadd.xlane.f32.xlu0 %v1267
      %v1269 = vpop.xlane.xlu0 %1268
      %v1270 = vsel %vm489, %v1009, 0.0
      %v1271 = vadd.f32 %v1008, %v1270
      %1272 = vadd.xlane.f32.xlu0 %v1271
      %v1273 = vpop.xlane.xlu0 %1272
      %v1274 = vsel %vm489, %v1011, 0.0
      %v1275 = vadd.f32 %v1010, %v1274
      %1276 = vadd.xlane.f32.xlu0 %v1275
      %v1277 = vpop.xlane.xlu0 %1276
      %v1278 = vsel %vm489, %v1013, 0.0
      %v1279 = vadd.f32 %v1012, %v1278
      %1280 = vadd.xlane.f32.xlu0 %v1279
      %v1281 = vpop.xlane.xlu0 %1280
      %v1282 = vsel %vm489, %v1015, 0.0
      %v1283 = vadd.f32 %v1014, %v1282
      %1284 = vadd.xlane.f32.xlu0 %v1283
      %v1285 = vpop.xlane.xlu0 %1284
      %v1286 = vsel %vm489, %v1017, 0.0
      %v1287 = vadd.f32 %v1016, %v1286
      %1288 = vadd.xlane.f32.xlu0 %v1287
      %v1289 = vpop.xlane.xlu0 %1288
      %v1290 = vsel %vm489, %v1019, 0.0
      %v1291 = vadd.f32 %v1018, %v1290
      %1292 = vadd.xlane.f32.xlu0 %v1291
      %v1293 = vpop.xlane.xlu0 %1292
      %v1294 = vsel %vm489, %v1021, 0.0
      %v1295 = vadd.f32 %v1020, %v1294
      %1296 = vadd.xlane.f32.xlu0 %v1295
      %v1297 = vpop.xlane.xlu0 %1296
      %v1298 = vsel %vm489, %v1023, 0.0
      %v1299 = vadd.f32 %v1022, %v1298
      %1300 = vadd.xlane.f32.xlu0 %v1299
      %v1301 = vpop.xlane.xlu0 %1300
      %v1302 = vsel %vm489, %v1025, 0.0
      %v1303 = vadd.f32 %v1024, %v1302
      %1304 = vadd.xlane.f32.xlu0 %v1303
      %v1305 = vpop.xlane.xlu0 %1304
      %v1306 = vsel %vm489, %v1027, 0.0
      %v1307 = vadd.f32 %v1026, %v1306
      %1308 = vadd.xlane.f32.xlu0 %v1307
      %v1309 = vpop.xlane.xlu0 %1308
      %v1310 = vsel %vm489, %v1029, 0.0
      %v1311 = vadd.f32 %v1028, %v1310
      %1312 = vadd.xlane.f32.xlu0 %v1311
      %v1313 = vpop.xlane.xlu0 %1312
      %v1314 = vsel %vm489, %v1031, 0.0
      %v1315 = vadd.f32 %v1030, %v1314
      %1316 = vadd.xlane.f32.xlu0 %v1315
      %v1317 = vpop.xlane.xlu0 %1316
      %v1318 = vsel %vm489, %v1033, 0.0
      %v1319 = vadd.f32 %v1032, %v1318
      %1320 = vadd.xlane.f32.xlu0 %v1319
      %v1321 = vpop.xlane.xlu0 %1320
      %v1322 = vsel %vm489, %v1035, 0.0
      %v1323 = vadd.f32 %v1034, %v1322
      %1324 = vadd.xlane.f32.xlu0 %v1323
      %v1325 = vpop.xlane.xlu0 %1324
      %v1326 = vsel %vm489, %v1037, 0.0
      %v1327 = vadd.f32 %v1036, %v1326
      %1328 = vadd.xlane.f32.xlu0 %v1327
      %v1329 = vpop.xlane.xlu0 %1328
      %v1330 = vsel %vm489, %v1039, 0.0
      %v1331 = vadd.f32 %v1038, %v1330
      %1332 = vadd.xlane.f32.xlu0 %v1331
      %v1333 = vpop.xlane.xlu0 %1332
      %v1334 = vsel %vm489, %v1041, 0.0
      %v1335 = vadd.f32 %v1040, %v1334
      %1336 = vadd.xlane.f32.xlu0 %v1335
      %v1337 = vpop.xlane.xlu0 %1336
      %v1338 = vsel %vm489, %v1043, 0.0
      %v1339 = vadd.f32 %v1042, %v1338
      %1340 = vadd.xlane.f32.xlu0 %v1339
      %v1341 = vpop.xlane.xlu0 %1340
      %v1342 = vsel %vm489, %v1045, 0.0
      %v1343 = vadd.f32 %v1044, %v1342
      %1344 = vadd.xlane.f32.xlu0 %v1343
      %v1345 = vpop.xlane.xlu0 %1344
      %v1346 = vsel %vm489, %v1047, 0.0
      %v1347 = vadd.f32 %v1046, %v1346
      %1348 = vadd.xlane.f32.xlu0 %v1347
      %v1349 = vpop.xlane.xlu0 %1348
      %v1350 = vsel %vm489, %v1049, 0.0
      %v1351 = vadd.f32 %v1048, %v1350
      %1352 = vadd.xlane.f32.xlu0 %v1351
      %v1353 = vpop.xlane.xlu0 %1352
      %v1354 = vsel %vm489, %v1051, 0.0
      %v1355 = vadd.f32 %v1050, %v1354
      %1356 = vadd.xlane.f32.xlu0 %v1355
      %v1357 = vpop.xlane.xlu0 %1356
      %v1358 = vsel %vm489, %v1053, 0.0
      %v1359 = vadd.f32 %v1052, %v1358
      %1360 = vadd.xlane.f32.xlu0 %v1359
      %v1361 = vpop.xlane.xlu0 %1360
      %v1362 = vsel %vm489, %v1055, 0.0
      %v1363 = vadd.f32 %v1054, %v1362
      %1364 = vadd.xlane.f32.xlu0 %v1363
      %v1365 = vpop.xlane.xlu0 %1364
      %v1366 = vsel %vm489, %v1057, 0.0
      %v1367 = vadd.f32 %v1056, %v1366
      %1368 = vadd.xlane.f32.xlu0 %v1367
      %v1369 = vpop.xlane.xlu0 %1368
      %v1370 = vsel %vm489, %v1059, 0.0
      %v1371 = vadd.f32 %v1058, %v1370
      %1372 = vadd.xlane.f32.xlu0 %v1371
      %v1373 = vpop.xlane.xlu0 %1372
      %v1374 = vsel %vm489, %v1061, 0.0
      %v1375 = vadd.f32 %v1060, %v1374
      %1376 = vadd.xlane.f32.xlu0 %v1375
      %v1377 = vpop.xlane.xlu0 %1376
      %v1378 = vsel %vm489, %v1063, 0.0
      %v1379 = vadd.f32 %v1062, %v1378
      %1380 = vadd.xlane.f32.xlu0 %v1379
      %v1381 = vpop.xlane.xlu0 %1380
      %v1382 = vsel %vm489, %v1065, 0.0
      %v1383 = vadd.f32 %v1064, %v1382
      %1384 = vadd.xlane.f32.xlu0 %v1383
      %v1385 = vpop.xlane.xlu0 %1384
      %v1386 = vsel %vm489, %v1067, 0.0
      %v1387 = vadd.f32 %v1066, %v1386
      %1388 = vadd.xlane.f32.xlu0 %v1387
      %v1389 = vpop.xlane.xlu0 %1388
      %v1390 = vsel %vm489, %v1069, 0.0
      %v1391 = vadd.f32 %v1068, %v1390
      %1392 = vadd.xlane.f32.xlu0 %v1391
      %v1393 = vpop.xlane.xlu0 %1392
      %v1394 = vsel %vm489, %v1071, 0.0
      %v1395 = vadd.f32 %v1070, %v1394
      %1396 = vadd.xlane.f32.xlu0 %v1395
      %v1397 = vpop.xlane.xlu0 %1396
      %v1398 = vsel %vm489, %v1073, 0.0
      %v1399 = vadd.f32 %v1072, %v1398
      %1400 = vadd.xlane.f32.xlu0 %v1399
      %v1401 = vpop.xlane.xlu0 %1400
      %v1402 = vsel %vm489, %v1075, 0.0
      %v1403 = vadd.f32 %v1074, %v1402
      %1404 = vadd.xlane.f32.xlu0 %v1403
      %v1405 = vpop.xlane.xlu0 %1404
      %v1406 = vsel %vm489, %v1077, 0.0
      %v1407 = vadd.f32 %v1076, %v1406
      %1408 = vadd.xlane.f32.xlu0 %v1407
      %v1409 = vpop.xlane.xlu0 %1408
      %v1410 = vsel %vm489, %v1079, 0.0
      %v1411 = vadd.f32 %v1078, %v1410
      %1412 = vadd.xlane.f32.xlu0 %v1411
      %v1413 = vpop.xlane.xlu0 %1412
      %v1414 = vsel %vm489, %v1081, 0.0
      %v1415 = vadd.f32 %v1080, %v1414
      %1416 = vadd.xlane.f32.xlu0 %v1415
      %v1417 = vpop.xlane.xlu0 %1416
      %v1418 = vsel %vm489, %v1083, 0.0
      %v1419 = vadd.f32 %v1082, %v1418
      %1420 = vadd.xlane.f32.xlu0 %v1419
      %v1421 = vpop.xlane.xlu0 %1420
      %v1422 = vsel %vm489, %v1085, 0.0
      %v1423 = vadd.f32 %v1084, %v1422
      %1424 = vadd.xlane.f32.xlu0 %v1423
      %v1425 = vpop.xlane.xlu0 %1424
      %v1426 = vsel %vm489, %v1087, 0.0
      %v1427 = vadd.f32 %v1086, %v1426
      %1428 = vadd.xlane.f32.xlu0 %v1427
      %v1429 = vpop.xlane.xlu0 %1428
      %v1430 = vsel %vm489, %v1089, 0.0
      %v1431 = vadd.f32 %v1088, %v1430
      %1432 = vadd.xlane.f32.xlu0 %v1431
      %v1433 = vpop.xlane.xlu0 %1432
      %v1434 = vsel %vm489, %v1091, 0.0
      %v1435 = vadd.f32 %v1090, %v1434
      %1436 = vadd.xlane.f32.xlu0 %v1435
      %v1437 = vpop.xlane.xlu0 %1436
      %v1438 = vsel %vm489, %v1093, 0.0
      %v1439 = vadd.f32 %v1092, %v1438
      %1440 = vadd.xlane.f32.xlu0 %v1439
      %v1441 = vpop.xlane.xlu0 %1440
      %v1442 = vsel %vm489, %v1095, 0.0
      %v1443 = vadd.f32 %v1094, %v1442
      %1444 = vadd.xlane.f32.xlu0 %v1443
      %v1445 = vpop.xlane.xlu0 %1444
      %v1446 = vsel %vm489, %v1097, 0.0
      %v1447 = vadd.f32 %v1096, %v1446
      %1448 = vadd.xlane.f32.xlu0 %v1447
      %v1449 = vpop.xlane.xlu0 %1448
      %v1450 = vsel %vm489, %v1099, 0.0
      %v1451 = vadd.f32 %v1098, %v1450
      %1452 = vadd.xlane.f32.xlu0 %v1451
      %v1453 = vpop.xlane.xlu0 %1452
      %v1454 = vsel %vm489, %v1101, 0.0
      %v1455 = vadd.f32 %v1100, %v1454
      %1456 = vadd.xlane.f32.xlu0 %v1455
      %v1457 = vpop.xlane.xlu0 %1456
      %v1458 = vsel %vm489, %v1103, 0.0
      %v1459 = vadd.f32 %v1102, %v1458
      %1460 = vadd.xlane.f32.xlu0 %v1459
      %v1461 = vpop.xlane.xlu0 %1460
      %v1462 = vsel %vm489, %v1105, 0.0
      %v1463 = vadd.f32 %v1104, %v1462
      %1464 = vadd.xlane.f32.xlu0 %v1463
      %v1465 = vpop.xlane.xlu0 %1464
      %v1466 = vsel %vm489, %v1107, 0.0
      %v1467 = vadd.f32 %v1106, %v1466
      %1468 = vadd.xlane.f32.xlu0 %v1467
      %v1469 = vpop.xlane.xlu0 %1468
      %v1470 = vsel %vm489, %v1109, 0.0
      %v1471 = vadd.f32 %v1108, %v1470
      %1472 = vadd.xlane.f32.xlu0 %v1471
      %v1473 = vpop.xlane.xlu0 %1472
      %v1474 = vsel %vm489, %v1111, 0.0
      %v1475 = vadd.f32 %v1110, %v1474
      %1476 = vadd.xlane.f32.xlu0 %v1475
      %v1477 = vpop.xlane.xlu0 %1476
      %v1478 = vsel %vm489, %v1113, 0.0
      %v1479 = vadd.f32 %v1112, %v1478
      %1480 = vadd.xlane.f32.xlu0 %v1479
      %v1481 = vpop.xlane.xlu0 %1480
      %v1482 = vsel %vm489, %v1115, 0.0
      %v1483 = vadd.f32 %v1114, %v1482
      %1484 = vadd.xlane.f32.xlu0 %v1483
      %v1485 = vpop.xlane.xlu0 %1484
      %v1486 = vsel %vm489, %v1117, 0.0
      %v1487 = vadd.f32 %v1116, %v1486
      %1488 = vadd.xlane.f32.xlu0 %v1487
      %v1489 = vpop.xlane.xlu0 %1488
      %v1490 = vsel %vm489, %v1119, 0.0
      %v1491 = vadd.f32 %v1118, %v1490
      %1492 = vadd.xlane.f32.xlu0 %v1491
      %v1493 = vpop.xlane.xlu0 %1492
      %v1494 = vsel %vm489, %v1121, 0.0
      %v1495 = vadd.f32 %v1120, %v1494
      %1496 = vadd.xlane.f32.xlu0 %v1495
      %v1497 = vpop.xlane.xlu0 %1496
      %v1498 = vsel %vm489, %v1123, 0.0
      %v1499 = vadd.f32 %v1122, %v1498
      %1500 = vadd.xlane.f32.xlu0 %v1499
      %v1501 = vpop.xlane.xlu0 %1500
      %v1502 = vsel %vm489, %v1125, 0.0
      %v1503 = vadd.f32 %v1124, %v1502
      %1504 = vadd.xlane.f32.xlu0 %v1503
      %v1505 = vpop.xlane.xlu0 %1504
      %v1506 = vsel %vm489, %v1127, 0.0
      %v1507 = vadd.f32 %v1126, %v1506
      %1508 = vadd.xlane.f32.xlu0 %v1507
      %v1509 = vpop.xlane.xlu0 %1508
      %v1510 = vsel %vm489, %v1129, 0.0
      %v1511 = vadd.f32 %v1128, %v1510
      %1512 = vadd.xlane.f32.xlu0 %v1511
      %v1513 = vpop.xlane.xlu0 %1512
      %v1514 = vsel %vm489, %v1131, 0.0
      %v1515 = vadd.f32 %v1130, %v1514
      %1516 = vadd.xlane.f32.xlu0 %v1515
      %v1517 = vpop.xlane.xlu0 %1516
      %v1518 = vsel %vm489, %v1133, 0.0
      %v1519 = vadd.f32 %v1132, %v1518
      %1520 = vadd.xlane.f32.xlu0 %v1519
      %v1521 = vpop.xlane.xlu0 %1520
      %v1522 = vsel %vm489, %v1135, 0.0
      %v1523 = vadd.f32 %v1134, %v1522
      %1524 = vadd.xlane.f32.xlu0 %v1523
      %v1525 = vpop.xlane.xlu0 %1524
      %v1526 = vsel %vm489, %v1137, 0.0
      %v1527 = vadd.f32 %v1136, %v1526
      %1528 = vadd.xlane.f32.xlu0 %v1527
      %v1529 = vpop.xlane.xlu0 %1528
      %v1530 = vsel %vm489, %v1139, 0.0
      %v1531 = vadd.f32 %v1138, %v1530
      %1532 = vadd.xlane.f32.xlu0 %v1531
      %v1533 = vpop.xlane.xlu0 %1532
      %v1534 = vsel %vm489, %v1141, 0.0
      %v1535 = vadd.f32 %v1140, %v1534
      %1536 = vadd.xlane.f32.xlu0 %v1535
      %v1537 = vpop.xlane.xlu0 %1536
      %v1538 = vsel %vm489, %v1143, 0.0
      %v1539 = vadd.f32 %v1142, %v1538
      %1540 = vadd.xlane.f32.xlu0 %v1539
      %v1541 = vpop.xlane.xlu0 %1540
      %v1542 = vsel %vm489, %v1145, 0.0
      %v1543 = vadd.f32 %v1144, %v1542
      %1544 = vadd.xlane.f32.xlu0 %v1543
      %v1545 = vpop.xlane.xlu0 %1544
      %v1546 = vsel %vm489, %v1147, 0.0
      %v1547 = vadd.f32 %v1146, %v1546
      %1548 = vadd.xlane.f32.xlu0 %v1547
      %v1549 = vpop.xlane.xlu0 %1548
      %v1550 = vsel %vm489, %v1149, 0.0
      %v1551 = vadd.f32 %v1148, %v1550
      %1552 = vadd.xlane.f32.xlu0 %v1551
      %v1553 = vpop.xlane.xlu0 %1552
      %v1554 = vsel %vm489, %v1151, 0.0
      %v1555 = vadd.f32 %v1150, %v1554
      %1556 = vadd.xlane.f32.xlu0 %v1555
      %v1557 = vpop.xlane.xlu0 %1556
      %v1558 = vsel %vm489, %v1153, 0.0
      %v1559 = vadd.f32 %v1152, %v1558
      %1560 = vadd.xlane.f32.xlu0 %v1559
      %v1561 = vpop.xlane.xlu0 %1560
      %v1562 = vsel %vm489, %v1155, 0.0
      %v1563 = vadd.f32 %v1154, %v1562
      %1564 = vadd.xlane.f32.xlu0 %v1563
      %v1565 = vpop.xlane.xlu0 %1564
      %v1566 = vsel %vm489, %v1157, 0.0
      %v1567 = vadd.f32 %v1156, %v1566
      %1568 = vadd.xlane.f32.xlu0 %v1567
      %v1569 = vpop.xlane.xlu0 %1568
      %v1570 = vsel %vm489, %v1159, 0.0
      %v1571 = vadd.f32 %v1158, %v1570
      %1572 = vadd.xlane.f32.xlu0 %v1571
      %v1573 = vpop.xlane.xlu0 %1572
      %v1574 = vsel %vm489, %v1161, 0.0
      %v1575 = vadd.f32 %v1160, %v1574
      %1576 = vadd.xlane.f32.xlu0 %v1575
      %v1577 = vpop.xlane.xlu0 %1576
      %v1578 = vsel %vm489, %v1163, 0.0
      %v1579 = vadd.f32 %v1162, %v1578
      %1580 = vadd.xlane.f32.xlu0 %v1579
      %v1581 = vpop.xlane.xlu0 %1580
      %v1582 = vsel %vm489, %v1165, 0.0
      %v1583 = vadd.f32 %v1164, %v1582
      %1584 = vadd.xlane.f32.xlu0 %v1583
      %v1585 = vpop.xlane.xlu0 %1584
      %v1586 = vsel %vm489, %v1167, 0.0
      %v1587 = vadd.f32 %v1166, %v1586
      %1588 = vadd.xlane.f32.xlu0 %v1587
      %v1589 = vpop.xlane.xlu0 %1588
      %v1590 = vsel %vm489, %v1169, 0.0
      %v1591 = vadd.f32 %v1168, %v1590
      %1592 = vadd.xlane.f32.xlu0 %v1591
      %v1593 = vpop.xlane.xlu0 %1592
      %v1594 = vsel %vm489, %v1171, 0.0
      %v1595 = vadd.f32 %v1170, %v1594
      %1596 = vadd.xlane.f32.xlu0 %v1595
      %v1597 = vpop.xlane.xlu0 %1596
      %v1598 = vsel %vm489, %v1173, 0.0
      %v1599 = vadd.f32 %v1172, %v1598
      %1600 = vadd.xlane.f32.xlu0 %v1599
      %v1601 = vpop.xlane.xlu0 %1600
      %v1602 = vsel %vm489, %v1175, 0.0
      %v1603 = vadd.f32 %v1174, %v1602
      %1604 = vadd.xlane.f32.xlu0 %v1603
      %v1605 = vpop.xlane.xlu0 %1604
      %v1606 = vsel %vm489, %v1177, 0.0
      %v1607 = vadd.f32 %v1176, %v1606
      %1608 = vadd.xlane.f32.xlu0 %v1607
      %v1609 = vpop.xlane.xlu0 %1608
      %v1610 = vsel %vm489, %v1179, 0.0
      %v1611 = vadd.f32 %v1178, %v1610
      %1612 = vadd.xlane.f32.xlu0 %v1611
      %v1613 = vpop.xlane.xlu0 %1612
      %v1614 = vsel %vm489, %v1181, 0.0
      %v1615 = vadd.f32 %v1180, %v1614
      %1616 = vadd.xlane.f32.xlu0 %v1615
      %v1617 = vpop.xlane.xlu0 %1616
      %v1618 = vsel %vm489, %v1183, 0.0
      %v1619 = vadd.f32 %v1182, %v1618
      %1620 = vadd.xlane.f32.xlu0 %v1619
      %v1621 = vpop.xlane.xlu0 %1620
      %v1622 = vsel %vm489, %v1185, 0.0
      %v1623 = vadd.f32 %v1184, %v1622
      %1624 = vadd.xlane.f32.xlu0 %v1623
      %v1625 = vpop.xlane.xlu0 %1624
      %v1626 = vsel %vm489, %v1187, 0.0
      %v1627 = vadd.f32 %v1186, %v1626
      %1628 = vadd.xlane.f32.xlu0 %v1627
      %v1629 = vpop.xlane.xlu0 %1628
      %v1630 = vsel %vm489, %v1189, 0.0
      %v1631 = vadd.f32 %v1188, %v1630
      %1632 = vadd.xlane.f32.xlu0 %v1631
      %v1633 = vpop.xlane.xlu0 %1632
      %v1634 = vsel %vm489, %v1191, 0.0
      %v1635 = vadd.f32 %v1190, %v1634
      %1636 = vadd.xlane.f32.xlu0 %v1635
      %v1637 = vpop.xlane.xlu0 %1636
      %v1638 = vsel %vm489, %v1193, 0.0
      %v1639 = vadd.f32 %v1192, %v1638
      %1640 = vadd.xlane.f32.xlu0 %v1639
      %v1641 = vpop.xlane.xlu0 %1640
      %v1642 = vsel %vm489, %v1195, 0.0
      %v1643 = vadd.f32 %v1194, %v1642
      %1644 = vadd.xlane.f32.xlu0 %v1643
      %v1645 = vpop.xlane.xlu0 %1644
      %v1646 = vsel %vm489, %v1197, 0.0
      %v1647 = vadd.f32 %v1196, %v1646
      %1648 = vadd.xlane.f32.xlu0 %v1647
      %v1649 = vpop.xlane.xlu0 %1648
      %v1650 = vsel %vm489, %v1199, 0.0
      %v1651 = vadd.f32 %v1198, %v1650
      %1652 = vadd.xlane.f32.xlu0 %v1651
      %v1653 = vpop.xlane.xlu0 %1652
      %v1654 = vsel %vm489, %v1201, 0.0
      %v1655 = vadd.f32 %v1200, %v1654
      %1656 = vadd.xlane.f32.xlu0 %v1655
      %v1657 = vpop.xlane.xlu0 %1656
      %v1658 = vsel %vm489, %v1203, 0.0
      %v1659 = vadd.f32 %v1202, %v1658
      %1660 = vadd.xlane.f32.xlu0 %v1659
      %v1661 = vpop.xlane.xlu0 %1660
      %v1662 = vsel %vm489, %v1205, 0.0
      %v1663 = vadd.f32 %v1204, %v1662
      %1664 = vadd.xlane.f32.xlu0 %v1663
      %v1665 = vpop.xlane.xlu0 %1664
      %v1666 = vsel %vm489, %v1207, 0.0
      %v1667 = vadd.f32 %v1206, %v1666
      %1668 = vadd.xlane.f32.xlu0 %v1667
      %v1669 = vpop.xlane.xlu0 %1668
      %v1670 = vsel %vm489, %v1209, 0.0
      %v1671 = vadd.f32 %v1208, %v1670
      %1672 = vadd.xlane.f32.xlu0 %v1671
      %v1673 = vpop.xlane.xlu0 %1672
      %v1674 = vsel %vm489, %v1211, 0.0
      %v1675 = vadd.f32 %v1210, %v1674
      %1676 = vadd.xlane.f32.xlu0 %v1675
      %v1677 = vpop.xlane.xlu0 %1676
      %v1678 = vsel %vm489, %v1213, 0.0
      %v1679 = vadd.f32 %v1212, %v1678
      %1680 = vadd.xlane.f32.xlu0 %v1679
      %v1681 = vpop.xlane.xlu0 %1680
      %v1682 = vsel %vm489, %v1215, 0.0
      %v1683 = vadd.f32 %v1214, %v1682
      %1684 = vadd.xlane.f32.xlu0 %v1683
      %v1685 = vpop.xlane.xlu0 %1684
      %v1686 = vsel %vm489, %v1217, 0.0
      %v1687 = vadd.f32 %v1216, %v1686
      %1688 = vadd.xlane.f32.xlu0 %v1687
      %v1689 = vpop.xlane.xlu0 %1688
      %v1690 = vsel %vm489, %v1219, 0.0
      %v1691 = vadd.f32 %v1218, %v1690
      %1692 = vadd.xlane.f32.xlu0 %v1691
      %v1693 = vpop.xlane.xlu0 %1692
      %v1694 = vsel %vm489, %v1221, 0.0
      %v1695 = vadd.f32 %v1220, %v1694
      %1696 = vadd.xlane.f32.xlu0 %v1695
      %v1697 = vpop.xlane.xlu0 %1696
      %v1698 = vsel %vm489, %v1223, 0.0
      %v1699 = vadd.f32 %v1222, %v1698
      %1700 = vadd.xlane.f32.xlu0 %v1699
      %v1701 = vpop.xlane.xlu0 %1700
      %v1702 = vsel %vm489, %v1225, 0.0
      %v1703 = vadd.f32 %v1224, %v1702
      %1704 = vadd.xlane.f32.xlu0 %v1703
      %v1705 = vpop.xlane.xlu0 %1704
      %v1706 = vsel %vm489, %v1227, 0.0
      %v1707 = vadd.f32 %v1226, %v1706
      %1708 = vadd.xlane.f32.xlu0 %v1707
      %v1709 = vpop.xlane.xlu0 %1708
      %v1710 = vsel %vm489, %v1229, 0.0
      %v1711 = vadd.f32 %v1228, %v1710
      %1712 = vadd.xlane.f32.xlu0 %v1711
      %v1713 = vpop.xlane.xlu0 %1712
      %v1714 = vsel %vm489, %v1231, 0.0
      %v1715 = vadd.f32 %v1230, %v1714
      %1716 = vadd.xlane.f32.xlu0 %v1715
      %v1717 = vpop.xlane.xlu0 %1716
      %v1718 = vsel %vm489, %v1233, 0.0
      %v1719 = vadd.f32 %v1232, %v1718
      %1720 = vadd.xlane.f32.xlu0 %v1719
      %v1721 = vpop.xlane.xlu0 %1720
      %v1722 = vsel %vm489, %v1235, 0.0
      %v1723 = vadd.f32 %v1234, %v1722
      %1724 = vadd.xlane.f32.xlu0 %v1723
      %v1725 = vpop.xlane.xlu0 %1724
      %v1726 = vsel %vm489, %v1237, 0.0
      %v1727 = vadd.f32 %v1236, %v1726
      %1728 = vadd.xlane.f32.xlu0 %v1727
      %v1729 = vpop.xlane.xlu0 %1728
      %v1730 = vsel %vm489, %v1239, 0.0
      %v1731 = vadd.f32 %v1238, %v1730
      %1732 = vadd.xlane.f32.xlu0 %v1731
      %v1733 = vpop.xlane.xlu0 %1732
      %v1734 = vsel %vm489, %v1241, 0.0
      %v1735 = vadd.f32 %v1240, %v1734
      %1736 = vadd.xlane.f32.xlu0 %v1735
      %v1737 = vpop.xlane.xlu0 %1736
      %v1738 = vsel %vm489, %v1243, 0.0
      %v1739 = vadd.f32 %v1242, %v1738
      %1740 = vadd.xlane.f32.xlu0 %v1739
      %v1741 = vpop.xlane.xlu0 %1740
      %v1742 = vsel %vm489, %v1245, 0.0
      %v1743 = vadd.f32 %v1244, %v1742
      %1744 = vadd.xlane.f32.xlu0 %v1743
      %v1745 = vpop.xlane.xlu0 %1744
      %v1746 = vsel %vm489, %v1247, 0.0
      %v1747 = vadd.f32 %v1246, %v1746
      %1748 = vadd.xlane.f32.xlu0 %v1747
      %v1749 = vpop.xlane.xlu0 %1748
      %v1750 = vsel %vm489, %v1249, 0.0
      %v1751 = vadd.f32 %v1248, %v1750
      %1752 = vadd.xlane.f32.xlu0 %v1751
      %v1753 = vpop.xlane.xlu0 %1752
      %v1754 = vsel %vm489, %v1251, 0.0
      %v1755 = vadd.f32 %v1250, %v1754
      %1756 = vadd.xlane.f32.xlu0 %v1755
      %v1757 = vpop.xlane.xlu0 %1756
      %v1758 = vsel %vm489, %v1253, 0.0
      %v1759 = vadd.f32 %v1252, %v1758
      %1760 = vadd.xlane.f32.xlu0 %v1759
      %v1761 = vpop.xlane.xlu0 %1760
      %v1762 = vsel %vm489, %v1255, 0.0
      %v1763 = vadd.f32 %v1254, %v1762
      %1764 = vadd.xlane.f32.xlu0 %v1763
      %v1765 = vpop.xlane.xlu0 %1764
      %v1766 = vsel %vm489, %v1257, 0.0
      %v1767 = vadd.f32 %v1256, %v1766
      %1768 = vadd.xlane.f32.xlu0 %v1767
      %v1769 = vpop.xlane.xlu0 %1768
      %v1770 = vmul.f32 %v493, 0.0051020407
      %v1771 = vmul.f32 %v497, 0.0051020407
      %v1772 = vmul.f32 %v501, 0.0051020407
      %v1773 = vmul.f32 %v505, 0.0051020407
      %v1774 = vmul.f32 %v509, 0.0051020407
      %v1775 = vmul.f32 %v513, 0.0051020407
      %v1776 = vmul.f32 %v517, 0.0051020407
      %v1777 = vmul.f32 %v521, 0.0051020407
      %v1778 = vmul.f32 %v525, 0.0051020407
      %v1779 = vmul.f32 %v529, 0.0051020407
      %v1780 = vmul.f32 %v533, 0.0051020407
      %v1781 = vmul.f32 %v537, 0.0051020407
      %v1782 = vmul.f32 %v541, 0.0051020407
      %v1783 = vmul.f32 %v545, 0.0051020407
      %v1784 = vmul.f32 %v549, 0.0051020407
      %v1785 = vmul.f32 %v553, 0.0051020407
      %v1786 = vmul.f32 %v557, 0.0051020407
      %v1787 = vmul.f32 %v561, 0.0051020407
      %v1788 = vmul.f32 %v565, 0.0051020407
      %v1789 = vmul.f32 %v569, 0.0051020407
      %v1790 = vmul.f32 %v573, 0.0051020407
      %v1791 = vmul.f32 %v577, 0.0051020407
      %v1792 = vmul.f32 %v581, 0.0051020407
      %v1793 = vmul.f32 %v585, 0.0051020407
      %v1794 = vmul.f32 %v589, 0.0051020407
      %v1795 = vmul.f32 %v593, 0.0051020407
      %v1796 = vmul.f32 %v597, 0.0051020407
      %v1797 = vmul.f32 %v601, 0.0051020407
      %v1798 = vmul.f32 %v605, 0.0051020407
      %v1799 = vmul.f32 %v609, 0.0051020407
      %v1800 = vmul.f32 %v613, 0.0051020407
      %v1801 = vmul.f32 %v617, 0.0051020407
      %v1802 = vmul.f32 %v621, 0.0051020407
      %v1803 = vmul.f32 %v625, 0.0051020407
      %v1804 = vmul.f32 %v629, 0.0051020407
      %v1805 = vmul.f32 %v633, 0.0051020407
      %v1806 = vmul.f32 %v637, 0.0051020407
      %v1807 = vmul.f32 %v641, 0.0051020407
      %v1808 = vmul.f32 %v645, 0.0051020407
      %v1809 = vmul.f32 %v649, 0.0051020407
      %v1810 = vmul.f32 %v653, 0.0051020407
      %v1811 = vmul.f32 %v657, 0.0051020407
      %v1812 = vmul.f32 %v661, 0.0051020407
      %v1813 = vmul.f32 %v665, 0.0051020407
      %v1814 = vmul.f32 %v669, 0.0051020407
      %v1815 = vmul.f32 %v673, 0.0051020407
      %v1816 = vmul.f32 %v677, 0.0051020407
      %v1817 = vmul.f32 %v681, 0.0051020407
      %v1818 = vmul.f32 %v685, 0.0051020407
      %v1819 = vmul.f32 %v689, 0.0051020407
      %v1820 = vmul.f32 %v693, 0.0051020407
      %v1821 = vmul.f32 %v697, 0.0051020407
      %v1822 = vmul.f32 %v701, 0.0051020407
      %v1823 = vmul.f32 %v705, 0.0051020407
      %v1824 = vmul.f32 %v709, 0.0051020407
      %v1825 = vmul.f32 %v713, 0.0051020407
      %v1826 = vmul.f32 %v717, 0.0051020407
      %v1827 = vmul.f32 %v721, 0.0051020407
      %v1828 = vmul.f32 %v725, 0.0051020407
      %v1829 = vmul.f32 %v729, 0.0051020407
      %v1830 = vmul.f32 %v733, 0.0051020407
      %v1831 = vmul.f32 %v737, 0.0051020407
      %v1832 = vmul.f32 %v741, 0.0051020407
      %v1833 = vmul.f32 %v745, 0.0051020407
      %v1834 = vmul.f32 %v749, 0.0051020407
      %v1835 = vmul.f32 %v753, 0.0051020407
      %v1836 = vmul.f32 %v757, 0.0051020407
      %v1837 = vmul.f32 %v761, 0.0051020407
      %v1838 = vmul.f32 %v765, 0.0051020407
      %v1839 = vmul.f32 %v769, 0.0051020407
      %v1840 = vmul.f32 %v773, 0.0051020407
      %v1841 = vmul.f32 %v777, 0.0051020407
      %v1842 = vmul.f32 %v781, 0.0051020407
      %v1843 = vmul.f32 %v785, 0.0051020407
      %v1844 = vmul.f32 %v789, 0.0051020407
      %v1845 = vmul.f32 %v793, 0.0051020407
      %v1846 = vmul.f32 %v797, 0.0051020407
      %v1847 = vmul.f32 %v801, 0.0051020407
      %v1848 = vmul.f32 %v805, 0.0051020407
      %v1849 = vmul.f32 %v809, 0.0051020407
      %v1850 = vmul.f32 %v813, 0.0051020407
      %v1851 = vmul.f32 %v817, 0.0051020407
      %v1852 = vmul.f32 %v821, 0.0051020407
      %v1853 = vmul.f32 %v825, 0.0051020407
      %v1854 = vmul.f32 %v829, 0.0051020407
      %v1855 = vmul.f32 %v833, 0.0051020407
      %v1856 = vmul.f32 %v837, 0.0051020407
      %v1857 = vmul.f32 %v841, 0.0051020407
      %v1858 = vmul.f32 %v845, 0.0051020407
      %v1859 = vmul.f32 %v849, 0.0051020407
      %v1860 = vmul.f32 %v853, 0.0051020407
      %v1861 = vmul.f32 %v857, 0.0051020407
      %v1862 = vmul.f32 %v861, 0.0051020407
      %v1863 = vmul.f32 %v865, 0.0051020407
      %v1864 = vmul.f32 %v869, 0.0051020407
      %v1865 = vmul.f32 %v873, 0.0051020407
      %v1866 = vmul.f32 %v877, 0.0051020407
      %v1867 = vmul.f32 %v881, 0.0051020407
      %v1868 = vmul.f32 %v885, 0.0051020407
      %v1869 = vmul.f32 %v889, 0.0051020407
      %v1870 = vmul.f32 %v893, 0.0051020407
      %v1871 = vmul.f32 %v897, 0.0051020407
      %v1872 = vmul.f32 %v901, 0.0051020407
      %v1873 = vmul.f32 %v905, 0.0051020407
      %v1874 = vmul.f32 %v909, 0.0051020407
      %v1875 = vmul.f32 %v913, 0.0051020407
      %v1876 = vmul.f32 %v917, 0.0051020407
      %v1877 = vmul.f32 %v921, 0.0051020407
      %v1878 = vmul.f32 %v925, 0.0051020407
      %v1879 = vmul.f32 %v929, 0.0051020407
      %v1880 = vmul.f32 %v933, 0.0051020407
      %v1881 = vmul.f32 %v937, 0.0051020407
      %v1882 = vmul.f32 %v941, 0.0051020407
      %v1883 = vmul.f32 %v945, 0.0051020407
      %v1884 = vmul.f32 %v949, 0.0051020407
      %v1885 = vmul.f32 %v953, 0.0051020407
      %v1886 = vmul.f32 %v957, 0.0051020407
      %v1887 = vmul.f32 %v961, 0.0051020407
      %v1888 = vmul.f32 %v965, 0.0051020407
      %v1889 = vmul.f32 %v969, 0.0051020407
      %v1890 = vmul.f32 %v973, 0.0051020407
      %v1891 = vmul.f32 %v977, 0.0051020407
      %v1892 = vmul.f32 %v981, 0.0051020407
      %v1893 = vmul.f32 %v985, 0.0051020407
      %v1894 = vmul.f32 %v989, 0.0051020407
      %v1895 = vmul.f32 %v993, 0.0051020407
      %v1896 = vmul.f32 %v997, 0.0051020407
      %v1897 = vmul.f32 %v1001, 0.0051020407
      %v1898 = vmul.f32 %v1261, 0.0051020407
      %v1899 = vmul.f32 %v1265, 0.0051020407
      %v1900 = vmul.f32 %v1269, 0.0051020407
      %v1901 = vmul.f32 %v1273, 0.0051020407
      %v1902 = vmul.f32 %v1277, 0.0051020407
      %v1903 = vmul.f32 %v1281, 0.0051020407
      %v1904 = vmul.f32 %v1285, 0.0051020407
      %v1905 = vmul.f32 %v1289, 0.0051020407
      %v1906 = vmul.f32 %v1293, 0.0051020407
      %v1907 = vmul.f32 %v1297, 0.0051020407
      %v1908 = vmul.f32 %v1301, 0.0051020407
      %v1909 = vmul.f32 %v1305, 0.0051020407
      %v1910 = vmul.f32 %v1309, 0.0051020407
      %v1911 = vmul.f32 %v1313, 0.0051020407
      %v1912 = vmul.f32 %v1317, 0.0051020407
      %v1913 = vmul.f32 %v1321, 0.0051020407
      %v1914 = vmul.f32 %v1325, 0.0051020407
      %v1915 = vmul.f32 %v1329, 0.0051020407
      %v1916 = vmul.f32 %v1333, 0.0051020407
      %v1917 = vmul.f32 %v1337, 0.0051020407
      %v1918 = vmul.f32 %v1341, 0.0051020407
      %v1919 = vmul.f32 %v1345, 0.0051020407
      %v1920 = vmul.f32 %v1349, 0.0051020407
      %v1921 = vmul.f32 %v1353, 0.0051020407
      %v1922 = vmul.f32 %v1357, 0.0051020407
      %v1923 = vmul.f32 %v1361, 0.0051020407
      %v1924 = vmul.f32 %v1365, 0.0051020407
      %v1925 = vmul.f32 %v1369, 0.0051020407
      %v1926 = vmul.f32 %v1373, 0.0051020407
      %v1927 = vmul.f32 %v1377, 0.0051020407
      %v1928 = vmul.f32 %v1381, 0.0051020407
      %v1929 = vmul.f32 %v1385, 0.0051020407
      %v1930 = vmul.f32 %v1389, 0.0051020407
      %v1931 = vmul.f32 %v1393, 0.0051020407
      %v1932 = vmul.f32 %v1397, 0.0051020407
      %v1933 = vmul.f32 %v1401, 0.0051020407
      %v1934 = vmul.f32 %v1405, 0.0051020407
      %v1935 = vmul.f32 %v1409, 0.0051020407
      %v1936 = vmul.f32 %v1413, 0.0051020407
      %v1937 = vmul.f32 %v1417, 0.0051020407
      %v1938 = vmul.f32 %v1421, 0.0051020407
      %v1939 = vmul.f32 %v1425, 0.0051020407
      %v1940 = vmul.f32 %v1429, 0.0051020407
      %v1941 = vmul.f32 %v1433, 0.0051020407
      %v1942 = vmul.f32 %v1437, 0.0051020407
      %v1943 = vmul.f32 %v1441, 0.0051020407
      %v1944 = vmul.f32 %v1445, 0.0051020407
      %v1945 = vmul.f32 %v1449, 0.0051020407
      %v1946 = vmul.f32 %v1453, 0.0051020407
      %v1947 = vmul.f32 %v1457, 0.0051020407
      %v1948 = vmul.f32 %v1461, 0.0051020407
      %v1949 = vmul.f32 %v1465, 0.0051020407
      %v1950 = vmul.f32 %v1469, 0.0051020407
      %v1951 = vmul.f32 %v1473, 0.0051020407
      %v1952 = vmul.f32 %v1477, 0.0051020407
      %v1953 = vmul.f32 %v1481, 0.0051020407
      %v1954 = vmul.f32 %v1485, 0.0051020407
      %v1955 = vmul.f32 %v1489, 0.0051020407
      %v1956 = vmul.f32 %v1493, 0.0051020407
      %v1957 = vmul.f32 %v1497, 0.0051020407
      %v1958 = vmul.f32 %v1501, 0.0051020407
      %v1959 = vmul.f32 %v1505, 0.0051020407
      %v1960 = vmul.f32 %v1509, 0.0051020407
      %v1961 = vmul.f32 %v1513, 0.0051020407
      %v1962 = vmul.f32 %v1517, 0.0051020407
      %v1963 = vmul.f32 %v1521, 0.0051020407
      %v1964 = vmul.f32 %v1525, 0.0051020407
      %v1965 = vmul.f32 %v1529, 0.0051020407
      %v1966 = vmul.f32 %v1533, 0.0051020407
      %v1967 = vmul.f32 %v1537, 0.0051020407
      %v1968 = vmul.f32 %v1541, 0.0051020407
      %v1969 = vmul.f32 %v1545, 0.0051020407
      %v1970 = vmul.f32 %v1549, 0.0051020407
      %v1971 = vmul.f32 %v1553, 0.0051020407
      %v1972 = vmul.f32 %v1557, 0.0051020407
      %v1973 = vmul.f32 %v1561, 0.0051020407
      %v1974 = vmul.f32 %v1565, 0.0051020407
      %v1975 = vmul.f32 %v1569, 0.0051020407
      %v1976 = vmul.f32 %v1573, 0.0051020407
      %v1977 = vmul.f32 %v1577, 0.0051020407
      %v1978 = vmul.f32 %v1581, 0.0051020407
      %v1979 = vmul.f32 %v1585, 0.0051020407
      %v1980 = vmul.f32 %v1589, 0.0051020407
      %v1981 = vmul.f32 %v1593, 0.0051020407
      %v1982 = vmul.f32 %v1597, 0.0051020407
      %v1983 = vmul.f32 %v1601, 0.0051020407
      %v1984 = vmul.f32 %v1605, 0.0051020407
      %v1985 = vmul.f32 %v1609, 0.0051020407
      %v1986 = vmul.f32 %v1613, 0.0051020407
      %v1987 = vmul.f32 %v1617, 0.0051020407
      %v1988 = vmul.f32 %v1621, 0.0051020407
      %v1989 = vmul.f32 %v1625, 0.0051020407
      %v1990 = vmul.f32 %v1629, 0.0051020407
      %v1991 = vmul.f32 %v1633, 0.0051020407
      %v1992 = vmul.f32 %v1637, 0.0051020407
      %v1993 = vmul.f32 %v1641, 0.0051020407
      %v1994 = vmul.f32 %v1645, 0.0051020407
      %v1995 = vmul.f32 %v1649, 0.0051020407
      %v1996 = vmul.f32 %v1653, 0.0051020407
      %v1997 = vmul.f32 %v1657, 0.0051020407
      %v1998 = vmul.f32 %v1661, 0.0051020407
      %v1999 = vmul.f32 %v1665, 0.0051020407
      %v2000 = vmul.f32 %v1669, 0.0051020407
      %v2001 = vmul.f32 %v1673, 0.0051020407
      %v2002 = vmul.f32 %v1677, 0.0051020407
      %v2003 = vmul.f32 %v1681, 0.0051020407
      %v2004 = vmul.f32 %v1685, 0.0051020407
      %v2005 = vmul.f32 %v1689, 0.0051020407
      %v2006 = vmul.f32 %v1693, 0.0051020407
      %v2007 = vmul.f32 %v1697, 0.0051020407
      %v2008 = vmul.f32 %v1701, 0.0051020407
      %v2009 = vmul.f32 %v1705, 0.0051020407
      %v2010 = vmul.f32 %v1709, 0.0051020407
      %v2011 = vmul.f32 %v1713, 0.0051020407
      %v2012 = vmul.f32 %v1717, 0.0051020407
      %v2013 = vmul.f32 %v1721, 0.0051020407
      %v2014 = vmul.f32 %v1725, 0.0051020407
      %v2015 = vmul.f32 %v1729, 0.0051020407
      %v2016 = vmul.f32 %v1733, 0.0051020407
      %v2017 = vmul.f32 %v1737, 0.0051020407
      %v2018 = vmul.f32 %v1741, 0.0051020407
      %v2019 = vmul.f32 %v1745, 0.0051020407
      %v2020 = vmul.f32 %v1749, 0.0051020407
      %v2021 = vmul.f32 %v1753, 0.0051020407
      %v2022 = vmul.f32 %v1757, 0.0051020407
      %v2023 = vmul.f32 %v1761, 0.0051020407
      %v2024 = vmul.f32 %v1765, 0.0051020407
      %v2025 = vmul.f32 %v1769, 0.0051020407
      %v2026 = vmul.f32 %v1770, %v1770
      %v2027 = vmul.f32 %v1771, %v1771
      %v2028 = vmul.f32 %v1772, %v1772
      %v2029 = vmul.f32 %v1773, %v1773
      %v2030 = vmul.f32 %v1774, %v1774
      %v2031 = vmul.f32 %v1775, %v1775
      %v2032 = vmul.f32 %v1776, %v1776
      %v2033 = vmul.f32 %v1777, %v1777
      %v2034 = vmul.f32 %v1778, %v1778
      %v2035 = vmul.f32 %v1779, %v1779
      %v2036 = vmul.f32 %v1780, %v1780
      %v2037 = vmul.f32 %v1781, %v1781
      %v2038 = vmul.f32 %v1782, %v1782
      %v2039 = vmul.f32 %v1783, %v1783
      %v2040 = vmul.f32 %v1784, %v1784
      %v2041 = vmul.f32 %v1785, %v1785
      %v2042 = vmul.f32 %v1786, %v1786
      %v2043 = vmul.f32 %v1787, %v1787
      %v2044 = vmul.f32 %v1788, %v1788
      %v2045 = vmul.f32 %v1789, %v1789
      %v2046 = vmul.f32 %v1790, %v1790
      %v2047 = vmul.f32 %v1791, %v1791
      %v2048 = vmul.f32 %v1792, %v1792
      %v2049 = vmul.f32 %v1793, %v1793
      %v2050 = vmul.f32 %v1794, %v1794
      %v2051 = vmul.f32 %v1795, %v1795
      %v2052 = vmul.f32 %v1796, %v1796
      %v2053 = vmul.f32 %v1797, %v1797
      %v2054 = vmul.f32 %v1798, %v1798
      %v2055 = vmul.f32 %v1799, %v1799
      %v2056 = vmul.f32 %v1800, %v1800
      %v2057 = vmul.f32 %v1801, %v1801
      %v2058 = vmul.f32 %v1802, %v1802
      %v2059 = vmul.f32 %v1803, %v1803
      %v2060 = vmul.f32 %v1804, %v1804
      %v2061 = vmul.f32 %v1805, %v1805
      %v2062 = vmul.f32 %v1806, %v1806
      %v2063 = vmul.f32 %v1807, %v1807
      %v2064 = vmul.f32 %v1808, %v1808
      %v2065 = vmul.f32 %v1809, %v1809
      %v2066 = vmul.f32 %v1810, %v1810
      %v2067 = vmul.f32 %v1811, %v1811
      %v2068 = vmul.f32 %v1812, %v1812
      %v2069 = vmul.f32 %v1813, %v1813
      %v2070 = vmul.f32 %v1814, %v1814
      %v2071 = vmul.f32 %v1815, %v1815
      %v2072 = vmul.f32 %v1816, %v1816
      %v2073 = vmul.f32 %v1817, %v1817
      %v2074 = vmul.f32 %v1818, %v1818
      %v2075 = vmul.f32 %v1819, %v1819
      %v2076 = vmul.f32 %v1820, %v1820
      %v2077 = vmul.f32 %v1821, %v1821
      %v2078 = vmul.f32 %v1822, %v1822
      %v2079 = vmul.f32 %v1823, %v1823
      %v2080 = vmul.f32 %v1824, %v1824
      %v2081 = vmul.f32 %v1825, %v1825
      %v2082 = vmul.f32 %v1826, %v1826
      %v2083 = vmul.f32 %v1827, %v1827
      %v2084 = vmul.f32 %v1828, %v1828
      %v2085 = vmul.f32 %v1829, %v1829
      %v2086 = vmul.f32 %v1830, %v1830
      %v2087 = vmul.f32 %v1831, %v1831
      %v2088 = vmul.f32 %v1832, %v1832
      %v2089 = vmul.f32 %v1833, %v1833
      %v2090 = vmul.f32 %v1834, %v1834
      %v2091 = vmul.f32 %v1835, %v1835
      %v2092 = vmul.f32 %v1836, %v1836
      %v2093 = vmul.f32 %v1837, %v1837
      %v2094 = vmul.f32 %v1838, %v1838
      %v2095 = vmul.f32 %v1839, %v1839
      %v2096 = vmul.f32 %v1840, %v1840
      %v2097 = vmul.f32 %v1841, %v1841
      %v2098 = vmul.f32 %v1842, %v1842
      %v2099 = vmul.f32 %v1843, %v1843
      %v2100 = vmul.f32 %v1844, %v1844
      %v2101 = vmul.f32 %v1845, %v1845
      %v2102 = vmul.f32 %v1846, %v1846
      %v2103 = vmul.f32 %v1847, %v1847
      %v2104 = vmul.f32 %v1848, %v1848
      %v2105 = vmul.f32 %v1849, %v1849
      %v2106 = vmul.f32 %v1850, %v1850
      %v2107 = vmul.f32 %v1851, %v1851
      %v2108 = vmul.f32 %v1852, %v1852
      %v2109 = vmul.f32 %v1853, %v1853
      %v2110 = vmul.f32 %v1854, %v1854
      %v2111 = vmul.f32 %v1855, %v1855
      %v2112 = vmul.f32 %v1856, %v1856
      %v2113 = vmul.f32 %v1857, %v1857
      %v2114 = vmul.f32 %v1858, %v1858
      %v2115 = vmul.f32 %v1859, %v1859
      %v2116 = vmul.f32 %v1860, %v1860
      %v2117 = vmul.f32 %v1861, %v1861
      %v2118 = vmul.f32 %v1862, %v1862
      %v2119 = vmul.f32 %v1863, %v1863
      %v2120 = vmul.f32 %v1864, %v1864
      %v2121 = vmul.f32 %v1865, %v1865
      %v2122 = vmul.f32 %v1866, %v1866
      %v2123 = vmul.f32 %v1867, %v1867
      %v2124 = vmul.f32 %v1868, %v1868
      %v2125 = vmul.f32 %v1869, %v1869
      %v2126 = vmul.f32 %v1870, %v1870
      %v2127 = vmul.f32 %v1871, %v1871
      %v2128 = vmul.f32 %v1872, %v1872
      %v2129 = vmul.f32 %v1873, %v1873
      %v2130 = vmul.f32 %v1874, %v1874
      %v2131 = vmul.f32 %v1875, %v1875
      %v2132 = vmul.f32 %v1876, %v1876
      %v2133 = vmul.f32 %v1877, %v1877
      %v2134 = vmul.f32 %v1878, %v1878
      %v2135 = vmul.f32 %v1879, %v1879
      %v2136 = vmul.f32 %v1880, %v1880
      %v2137 = vmul.f32 %v1881, %v1881
      %v2138 = vmul.f32 %v1882, %v1882
      %v2139 = vmul.f32 %v1883, %v1883
      %v2140 = vmul.f32 %v1884, %v1884
      %v2141 = vmul.f32 %v1885, %v1885
      %v2142 = vmul.f32 %v1886, %v1886
      %v2143 = vmul.f32 %v1887, %v1887
      %v2144 = vmul.f32 %v1888, %v1888
      %v2145 = vmul.f32 %v1889, %v1889
      %v2146 = vmul.f32 %v1890, %v1890
      %v2147 = vmul.f32 %v1891, %v1891
      %v2148 = vmul.f32 %v1892, %v1892
      %v2149 = vmul.f32 %v1893, %v1893
      %v2150 = vmul.f32 %v1894, %v1894
      %v2151 = vmul.f32 %v1895, %v1895
      %v2152 = vmul.f32 %v1896, %v1896
      %v2153 = vmul.f32 %v1897, %v1897
      %v2154 = vsub.f32 %v1898, %v2026
      %v2155 = vsub.f32 %v1899, %v2027
      %v2156 = vsub.f32 %v1900, %v2028
      %v2157 = vsub.f32 %v1901, %v2029
      %v2158 = vsub.f32 %v1902, %v2030
      %v2159 = vsub.f32 %v1903, %v2031
      %v2160 = vsub.f32 %v1904, %v2032
      %v2161 = vsub.f32 %v1905, %v2033
      %v2162 = vsub.f32 %v1906, %v2034
      %v2163 = vsub.f32 %v1907, %v2035
      %v2164 = vsub.f32 %v1908, %v2036
      %v2165 = vsub.f32 %v1909, %v2037
      %v2166 = vsub.f32 %v1910, %v2038
      %v2167 = vsub.f32 %v1911, %v2039
      %v2168 = vsub.f32 %v1912, %v2040
      %v2169 = vsub.f32 %v1913, %v2041
      %v2170 = vsub.f32 %v1914, %v2042
      %v2171 = vsub.f32 %v1915, %v2043
      %v2172 = vsub.f32 %v1916, %v2044
      %v2173 = vsub.f32 %v1917, %v2045
      %v2174 = vsub.f32 %v1918, %v2046
      %v2175 = vsub.f32 %v1919, %v2047
      %v2176 = vsub.f32 %v1920, %v2048
      %v2177 = vsub.f32 %v1921, %v2049
      %v2178 = vsub.f32 %v1922, %v2050
      %v2179 = vsub.f32 %v1923, %v2051
      %v2180 = vsub.f32 %v1924, %v2052
      %v2181 = vsub.f32 %v1925, %v2053
      %v2182 = vsub.f32 %v1926, %v2054
      %v2183 = vsub.f32 %v1927, %v2055
      %v2184 = vsub.f32 %v1928, %v2056
      %v2185 = vsub.f32 %v1929, %v2057
      %v2186 = vsub.f32 %v1930, %v2058
      %v2187 = vsub.f32 %v1931, %v2059
      %v2188 = vsub.f32 %v1932, %v2060
      %v2189 = vsub.f32 %v1933, %v2061
      %v2190 = vsub.f32 %v1934, %v2062
      %v2191 = vsub.f32 %v1935, %v2063
      %v2192 = vsub.f32 %v1936, %v2064
      %v2193 = vsub.f32 %v1937, %v2065
      %v2194 = vsub.f32 %v1938, %v2066
      %v2195 = vsub.f32 %v1939, %v2067
      %v2196 = vsub.f32 %v1940, %v2068
      %v2197 = vsub.f32 %v1941, %v2069
      %v2198 = vsub.f32 %v1942, %v2070
      %v2199 = vsub.f32 %v1943, %v2071
      %v2200 = vsub.f32 %v1944, %v2072
      %v2201 = vsub.f32 %v1945, %v2073
      %v2202 = vsub.f32 %v1946, %v2074
      %v2203 = vsub.f32 %v1947, %v2075
      %v2204 = vsub.f32 %v1948, %v2076
      %v2205 = vsub.f32 %v1949, %v2077
      %v2206 = vsub.f32 %v1950, %v2078
      %v2207 = vsub.f32 %v1951, %v2079
      %v2208 = vsub.f32 %v1952, %v2080
      %v2209 = vsub.f32 %v1953, %v2081
      %v2210 = vsub.f32 %v1954, %v2082
      %v2211 = vsub.f32 %v1955, %v2083
      %v2212 = vsub.f32 %v1956, %v2084
      %v2213 = vsub.f32 %v1957, %v2085
      %v2214 = vsub.f32 %v1958, %v2086
      %v2215 = vsub.f32 %v1959, %v2087
      %v2216 = vsub.f32 %v1960, %v2088
      %v2217 = vsub.f32 %v1961, %v2089
      %v2218 = vsub.f32 %v1962, %v2090
      %v2219 = vsub.f32 %v1963, %v2091
      %v2220 = vsub.f32 %v1964, %v2092
      %v2221 = vsub.f32 %v1965, %v2093
      %v2222 = vsub.f32 %v1966, %v2094
      %v2223 = vsub.f32 %v1967, %v2095
      %v2224 = vsub.f32 %v1968, %v2096
      %v2225 = vsub.f32 %v1969, %v2097
      %v2226 = vsub.f32 %v1970, %v2098
      %v2227 = vsub.f32 %v1971, %v2099
      %v2228 = vsub.f32 %v1972, %v2100
      %v2229 = vsub.f32 %v1973, %v2101
      %v2230 = vsub.f32 %v1974, %v2102
      %v2231 = vsub.f32 %v1975, %v2103
      %v2232 = vsub.f32 %v1976, %v2104
      %v2233 = vsub.f32 %v1977, %v2105
      %v2234 = vsub.f32 %v1978, %v2106
      %v2235 = vsub.f32 %v1979, %v2107
      %v2236 = vsub.f32 %v1980, %v2108
      %v2237 = vsub.f32 %v1981, %v2109
      %v2238 = vsub.f32 %v1982, %v2110
      %v2239 = vsub.f32 %v1983, %v2111
      %v2240 = vsub.f32 %v1984, %v2112
      %v2241 = vsub.f32 %v1985, %v2113
      %v2242 = vsub.f32 %v1986, %v2114
      %v2243 = vsub.f32 %v1987, %v2115
      %v2244 = vsub.f32 %v1988, %v2116
      %v2245 = vsub.f32 %v1989, %v2117
      %v2246 = vsub.f32 %v1990, %v2118
      %v2247 = vsub.f32 %v1991, %v2119
      %v2248 = vsub.f32 %v1992, %v2120
      %v2249 = vsub.f32 %v1993, %v2121
      %v2250 = vsub.f32 %v1994, %v2122
      %v2251 = vsub.f32 %v1995, %v2123
      %v2252 = vsub.f32 %v1996, %v2124
      %v2253 = vsub.f32 %v1997, %v2125
      %v2254 = vsub.f32 %v1998, %v2126
      %v2255 = vsub.f32 %v1999, %v2127
      %v2256 = vsub.f32 %v2000, %v2128
      %v2257 = vsub.f32 %v2001, %v2129
      %v2258 = vsub.f32 %v2002, %v2130
      %v2259 = vsub.f32 %v2003, %v2131
      %v2260 = vsub.f32 %v2004, %v2132
      %v2261 = vsub.f32 %v2005, %v2133
      %v2262 = vsub.f32 %v2006, %v2134
      %v2263 = vsub.f32 %v2007, %v2135
      %v2264 = vsub.f32 %v2008, %v2136
      %v2265 = vsub.f32 %v2009, %v2137
      %v2266 = vsub.f32 %v2010, %v2138
      %v2267 = vsub.f32 %v2011, %v2139
      %v2268 = vsub.f32 %v2012, %v2140
      %v2269 = vsub.f32 %v2013, %v2141
      %v2270 = vsub.f32 %v2014, %v2142
      %v2271 = vsub.f32 %v2015, %v2143
      %v2272 = vsub.f32 %v2016, %v2144
      %v2273 = vsub.f32 %v2017, %v2145
      %v2274 = vsub.f32 %v2018, %v2146
      %v2275 = vsub.f32 %v2019, %v2147
      %v2276 = vsub.f32 %v2020, %v2148
      %v2277 = vsub.f32 %v2021, %v2149
      %v2278 = vsub.f32 %v2022, %v2150
      %v2279 = vsub.f32 %v2023, %v2151
      %v2280 = vsub.f32 %v2024, %v2152
      %v2281 = vsub.f32 %v2025, %v2153
      %v2282 = vld [vmem:[%s2] sm:$0xff]
      %v2283 = vld [vmem:[%s2 + $0x8] sm:$0xff]
      %v2284 = vld [vmem:[%s2 + $0x10] sm:$0xff]
      %v2285 = vld [vmem:[%s2 + $0x18] sm:$0xff]
      %v2286 = vld [vmem:[%s2 + $0x20] sm:$0xff]
      %v2287 = vld [vmem:[%s2 + $0x28] sm:$0xff]
      %v2288 = vld [vmem:[%s2 + $0x30] sm:$0xff]
      %v2289 = vld [vmem:[%s2 + $0x38] sm:$0xff]
      %v2290 = vld [vmem:[%s2 + $0x40] sm:$0xff]
      %v2291 = vld [vmem:[%s2 + $0x48] sm:$0xff]
      %v2292 = vld [vmem:[%s2 + $0x50] sm:$0xff]
      %v2293 = vld [vmem:[%s2 + $0x58] sm:$0xff]
      %v2294 = vld [vmem:[%s2 + $0x60] sm:$0xff]
      %v2295 = vld [vmem:[%s2 + $0x68] sm:$0xff]
      %v2296 = vld [vmem:[%s2 + $0x70] sm:$0xff]
      %v2297 = vld [vmem:[%s2 + $0x78] sm:$0xff]
      %v2298 = vld [vmem:[%s2 + $0x80] sm:$0xff]
      %v2299 = vld [vmem:[%s2 + $0x88] sm:$0xff]
      %v2300 = vld [vmem:[%s2 + $0x90] sm:$0xff]
      %v2301 = vld [vmem:[%s2 + $0x98] sm:$0xff]
      %v2302 = vld [vmem:[%s2 + $0xa0] sm:$0xff]
      %v2303 = vld [vmem:[%s2 + $0xa8] sm:$0xff]
      %v2304 = vld [vmem:[%s2 + $0xb0] sm:$0xff]
      %v2305 = vld [vmem:[%s2 + $0xb8] sm:$0xff]
      %v2306 = vld [vmem:[%s2 + $0xc0] sm:$0xff]
      %v2307 = vld [vmem:[%s2 + $0xc8] sm:$0xff]
      %v2308 = vld [vmem:[%s2 + $0xd0] sm:$0xff]
      %v2309 = vld [vmem:[%s2 + $0xd8] sm:$0xff]
      %v2310 = vld [vmem:[%s2 + $0xe0] sm:$0xff]
      %v2311 = vld [vmem:[%s2 + $0xe8] sm:$0xff]
      %v2312 = vld [vmem:[%s2 + $0xf0] sm:$0xff]
      %v2313 = vld [vmem:[%s2 + $0xf8] sm:$0xff]
      %v2314 = vld [vmem:[%s2 + $0x100] sm:$0xff]
      %v2315 = vld [vmem:[%s2 + $0x108] sm:$0xff]
      %v2316 = vld [vmem:[%s2 + $0x110] sm:$0xff]
      %v2317 = vld [vmem:[%s2 + $0x118] sm:$0xff]
      %v2318 = vld [vmem:[%s2 + $0x120] sm:$0xff]
      %v2319 = vld [vmem:[%s2 + $0x128] sm:$0xff]
      %v2320 = vld [vmem:[%s2 + $0x130] sm:$0xff]
      %v2321 = vld [vmem:[%s2 + $0x138] sm:$0xff]
      %v2322 = vld [vmem:[%s2 + $0x140] sm:$0xff]
      %v2323 = vld [vmem:[%s2 + $0x148] sm:$0xff]
      %v2324 = vld [vmem:[%s2 + $0x150] sm:$0xff]
      %v2325 = vld [vmem:[%s2 + $0x158] sm:$0xff]
      %v2326 = vld [vmem:[%s2 + $0x160] sm:$0xff]
      %v2327 = vld [vmem:[%s2 + $0x168] sm:$0xff]
      %v2328 = vld [vmem:[%s2 + $0x170] sm:$0xff]
      %v2329 = vld [vmem:[%s2 + $0x178] sm:$0xff]
      %v2330 = vld [vmem:[%s2 + $0x180] sm:$0xff]
      %v2331 = vld [vmem:[%s2 + $0x188] sm:$0xff]
      %v2332 = vld [vmem:[%s2 + $0x190] sm:$0xff]
      %v2333 = vld [vmem:[%s2 + $0x198] sm:$0xff]
      %v2334 = vld [vmem:[%s2 + $0x1a0] sm:$0xff]
      %v2335 = vld [vmem:[%s2 + $0x1a8] sm:$0xff]
      %v2336 = vld [vmem:[%s2 + $0x1b0] sm:$0xff]
      %v2337 = vld [vmem:[%s2 + $0x1b8] sm:$0xff]
      %v2338 = vld [vmem:[%s2 + $0x1c0] sm:$0xff]
      %v2339 = vld [vmem:[%s2 + $0x1c8] sm:$0xff]
      %v2340 = vld [vmem:[%s2 + $0x1d0] sm:$0xff]
      %v2341 = vld [vmem:[%s2 + $0x1d8] sm:$0xff]
      %v2342 = vld [vmem:[%s2 + $0x1e0] sm:$0xff]
      %v2343 = vld [vmem:[%s2 + $0x1e8] sm:$0xff]
      %v2344 = vld [vmem:[%s2 + $0x1f0] sm:$0xff]
      %v2345 = vld [vmem:[%s2 + $0x1f8] sm:$0xff]
      %v2346 = vld [vmem:[%s2 + $0x200] sm:$0xff]
      %v2347 = vld [vmem:[%s2 + $0x208] sm:$0xff]
      %v2348 = vld [vmem:[%s2 + $0x210] sm:$0xff]
      %v2349 = vld [vmem:[%s2 + $0x218] sm:$0xff]
      %v2350 = vld [vmem:[%s2 + $0x220] sm:$0xff]
      %v2351 = vld [vmem:[%s2 + $0x228] sm:$0xff]
      %v2352 = vld [vmem:[%s2 + $0x230] sm:$0xff]
      %v2353 = vld [vmem:[%s2 + $0x238] sm:$0xff]
      %v2354 = vld [vmem:[%s2 + $0x240] sm:$0xff]
      %v2355 = vld [vmem:[%s2 + $0x248] sm:$0xff]
      %v2356 = vld [vmem:[%s2 + $0x250] sm:$0xff]
      %v2357 = vld [vmem:[%s2 + $0x258] sm:$0xff]
      %v2358 = vld [vmem:[%s2 + $0x260] sm:$0xff]
      %v2359 = vld [vmem:[%s2 + $0x268] sm:$0xff]
      %v2360 = vld [vmem:[%s2 + $0x270] sm:$0xff]
      %v2361 = vld [vmem:[%s2 + $0x278] sm:$0xff]
      %v2362 = vld [vmem:[%s2 + $0x280] sm:$0xff]
      %v2363 = vld [vmem:[%s2 + $0x288] sm:$0xff]
      %v2364 = vld [vmem:[%s2 + $0x290] sm:$0xff]
      %v2365 = vld [vmem:[%s2 + $0x298] sm:$0xff]
      %v2366 = vld [vmem:[%s2 + $0x2a0] sm:$0xff]
      %v2367 = vld [vmem:[%s2 + $0x2a8] sm:$0xff]
      %v2368 = vld [vmem:[%s2 + $0x2b0] sm:$0xff]
      %v2369 = vld [vmem:[%s2 + $0x2b8] sm:$0xff]
      %v2370 = vld [vmem:[%s2 + $0x2c0] sm:$0xff]
      %v2371 = vld [vmem:[%s2 + $0x2c8] sm:$0xff]
      %v2372 = vld [vmem:[%s2 + $0x2d0] sm:$0xff]
      %v2373 = vld [vmem:[%s2 + $0x2d8] sm:$0xff]
      %v2374 = vld [vmem:[%s2 + $0x2e0] sm:$0xff]
      %v2375 = vld [vmem:[%s2 + $0x2e8] sm:$0xff]
      %v2376 = vld [vmem:[%s2 + $0x2f0] sm:$0xff]
      %v2377 = vld [vmem:[%s2 + $0x2f8] sm:$0xff]
      %v2378 = vld [vmem:[%s2 + $0x300] sm:$0xff]
      %v2379 = vld [vmem:[%s2 + $0x308] sm:$0xff]
      %v2380 = vld [vmem:[%s2 + $0x310] sm:$0xff]
      %v2381 = vld [vmem:[%s2 + $0x318] sm:$0xff]
      %v2382 = vld [vmem:[%s2 + $0x320] sm:$0xff]
      %v2383 = vld [vmem:[%s2 + $0x328] sm:$0xff]
      %v2384 = vld [vmem:[%s2 + $0x330] sm:$0xff]
      %v2385 = vld [vmem:[%s2 + $0x338] sm:$0xff]
      %v2386 = vld [vmem:[%s2 + $0x340] sm:$0xff]
      %v2387 = vld [vmem:[%s2 + $0x348] sm:$0xff]
      %v2388 = vld [vmem:[%s2 + $0x350] sm:$0xff]
      %v2389 = vld [vmem:[%s2 + $0x358] sm:$0xff]
      %v2390 = vld [vmem:[%s2 + $0x360] sm:$0xff]
      %v2391 = vld [vmem:[%s2 + $0x368] sm:$0xff]
      %v2392 = vld [vmem:[%s2 + $0x370] sm:$0xff]
      %v2393 = vld [vmem:[%s2 + $0x378] sm:$0xff]
      %v2394 = vld [vmem:[%s2 + $0x380] sm:$0xff]
      %v2395 = vld [vmem:[%s2 + $0x388] sm:$0xff]
      %v2396 = vld [vmem:[%s2 + $0x390] sm:$0xff]
      %v2397 = vld [vmem:[%s2 + $0x398] sm:$0xff]
      %v2398 = vld [vmem:[%s2 + $0x3a0] sm:$0xff]
      %v2399 = vld [vmem:[%s2 + $0x3a8] sm:$0xff]
      %v2400 = vld [vmem:[%s2 + $0x3b0] sm:$0xff]
      %v2401 = vld [vmem:[%s2 + $0x3b8] sm:$0xff]
      %v2402 = vld [vmem:[%s2 + $0x3c0] sm:$0xff]
      %v2403 = vld [vmem:[%s2 + $0x3c8] sm:$0xff]
      %v2404 = vld [vmem:[%s2 + $0x3d0] sm:$0xff]
      %v2405 = vld [vmem:[%s2 + $0x3d8] sm:$0xff]
      %v2406 = vld [vmem:[%s2 + $0x3e0] sm:$0xff]
      %v2407 = vld [vmem:[%s2 + $0x3e8] sm:$0xff]
      %v2408 = vld [vmem:[%s2 + $0x3f0] sm:$0xff]
      %v2409 = vld [vmem:[%s2 + $0x3f8] sm:$0xff]
      %v2410 = vadd.f32 %v2154, 1e-05
      %v2411 = vadd.f32 %v2155, 1e-05
      %v2412 = vadd.f32 %v2156, 1e-05
      %v2413 = vadd.f32 %v2157, 1e-05
      %v2414 = vadd.f32 %v2158, 1e-05
      %v2415 = vadd.f32 %v2159, 1e-05
      %v2416 = vadd.f32 %v2160, 1e-05
      %v2417 = vadd.f32 %v2161, 1e-05
      %v2418 = vadd.f32 %v2162, 1e-05
      %v2419 = vadd.f32 %v2163, 1e-05
      %v2420 = vadd.f32 %v2164, 1e-05
      %v2421 = vadd.f32 %v2165, 1e-05
      %v2422 = vadd.f32 %v2166, 1e-05
      %v2423 = vadd.f32 %v2167, 1e-05
      %v2424 = vadd.f32 %v2168, 1e-05
      %v2425 = vadd.f32 %v2169, 1e-05
      %v2426 = vadd.f32 %v2170, 1e-05
      %v2427 = vadd.f32 %v2171, 1e-05
      %v2428 = vadd.f32 %v2172, 1e-05
      %v2429 = vadd.f32 %v2173, 1e-05
      %v2430 = vadd.f32 %v2174, 1e-05
      %v2431 = vadd.f32 %v2175, 1e-05
      %v2432 = vadd.f32 %v2176, 1e-05
      %v2433 = vadd.f32 %v2177, 1e-05
      %v2434 = vadd.f32 %v2178, 1e-05
      %v2435 = vadd.f32 %v2179, 1e-05
      %v2436 = vadd.f32 %v2180, 1e-05
      %v2437 = vadd.f32 %v2181, 1e-05
      %v2438 = vadd.f32 %v2182, 1e-05
      %v2439 = vadd.f32 %v2183, 1e-05
      %v2440 = vadd.f32 %v2184, 1e-05
      %v2441 = vadd.f32 %v2185, 1e-05
      %v2442 = vadd.f32 %v2186, 1e-05
      %v2443 = vadd.f32 %v2187, 1e-05
      %v2444 = vadd.f32 %v2188, 1e-05
      %v2445 = vadd.f32 %v2189, 1e-05
      %v2446 = vadd.f32 %v2190, 1e-05
      %v2447 = vadd.f32 %v2191, 1e-05
      %v2448 = vadd.f32 %v2192, 1e-05
      %v2449 = vadd.f32 %v2193, 1e-05
      %v2450 = vadd.f32 %v2194, 1e-05
      %v2451 = vadd.f32 %v2195, 1e-05
      %v2452 = vadd.f32 %v2196, 1e-05
      %v2453 = vadd.f32 %v2197, 1e-05
      %v2454 = vadd.f32 %v2198, 1e-05
      %v2455 = vadd.f32 %v2199, 1e-05
      %v2456 = vadd.f32 %v2200, 1e-05
      %v2457 = vadd.f32 %v2201, 1e-05
      %v2458 = vadd.f32 %v2202, 1e-05
      %v2459 = vadd.f32 %v2203, 1e-05
      %v2460 = vadd.f32 %v2204, 1e-05
      %v2461 = vadd.f32 %v2205, 1e-05
      %v2462 = vadd.f32 %v2206, 1e-05
      %v2463 = vadd.f32 %v2207, 1e-05
      %v2464 = vadd.f32 %v2208, 1e-05
      %v2465 = vadd.f32 %v2209, 1e-05
      %v2466 = vadd.f32 %v2210, 1e-05
      %v2467 = vadd.f32 %v2211, 1e-05
      %v2468 = vadd.f32 %v2212, 1e-05
      %v2469 = vadd.f32 %v2213, 1e-05
      %v2470 = vadd.f32 %v2214, 1e-05
      %v2471 = vadd.f32 %v2215, 1e-05
      %v2472 = vadd.f32 %v2216, 1e-05
      %v2473 = vadd.f32 %v2217, 1e-05
      %v2474 = vadd.f32 %v2218, 1e-05
      %v2475 = vadd.f32 %v2219, 1e-05
      %v2476 = vadd.f32 %v2220, 1e-05
      %v2477 = vadd.f32 %v2221, 1e-05
      %v2478 = vadd.f32 %v2222, 1e-05
      %v2479 = vadd.f32 %v2223, 1e-05
      %v2480 = vadd.f32 %v2224, 1e-05
      %v2481 = vadd.f32 %v2225, 1e-05
      %v2482 = vadd.f32 %v2226, 1e-05
      %v2483 = vadd.f32 %v2227, 1e-05
      %v2484 = vadd.f32 %v2228, 1e-05
      %v2485 = vadd.f32 %v2229, 1e-05
      %v2486 = vadd.f32 %v2230, 1e-05
      %v2487 = vadd.f32 %v2231, 1e-05
      %v2488 = vadd.f32 %v2232, 1e-05
      %v2489 = vadd.f32 %v2233, 1e-05
      %v2490 = vadd.f32 %v2234, 1e-05
      %v2491 = vadd.f32 %v2235, 1e-05
      %v2492 = vadd.f32 %v2236, 1e-05
      %v2493 = vadd.f32 %v2237, 1e-05
      %v2494 = vadd.f32 %v2238, 1e-05
      %v2495 = vadd.f32 %v2239, 1e-05
      %v2496 = vadd.f32 %v2240, 1e-05
      %v2497 = vadd.f32 %v2241, 1e-05
      %v2498 = vadd.f32 %v2242, 1e-05
      %v2499 = vadd.f32 %v2243, 1e-05
      %v2500 = vadd.f32 %v2244, 1e-05
      %v2501 = vadd.f32 %v2245, 1e-05
      %v2502 = vadd.f32 %v2246, 1e-05
      %v2503 = vadd.f32 %v2247, 1e-05
      %v2504 = vadd.f32 %v2248, 1e-05
      %v2505 = vadd.f32 %v2249, 1e-05
      %v2506 = vadd.f32 %v2250, 1e-05
      %v2507 = vadd.f32 %v2251, 1e-05
      %v2508 = vadd.f32 %v2252, 1e-05
      %v2509 = vadd.f32 %v2253, 1e-05
      %v2510 = vadd.f32 %v2254, 1e-05
      %v2511 = vadd.f32 %v2255, 1e-05
      %v2512 = vadd.f32 %v2256, 1e-05
      %v2513 = vadd.f32 %v2257, 1e-05
      %v2514 = vadd.f32 %v2258, 1e-05
      %v2515 = vadd.f32 %v2259, 1e-05
      %v2516 = vadd.f32 %v2260, 1e-05
      %v2517 = vadd.f32 %v2261, 1e-05
      %v2518 = vadd.f32 %v2262, 1e-05
      %v2519 = vadd.f32 %v2263, 1e-05
      %v2520 = vadd.f32 %v2264, 1e-05
      %v2521 = vadd.f32 %v2265, 1e-05
      %v2522 = vadd.f32 %v2266, 1e-05
      %v2523 = vadd.f32 %v2267, 1e-05
      %v2524 = vadd.f32 %v2268, 1e-05
      %v2525 = vadd.f32 %v2269, 1e-05
      %v2526 = vadd.f32 %v2270, 1e-05
      %v2527 = vadd.f32 %v2271, 1e-05
      %v2528 = vadd.f32 %v2272, 1e-05
      %v2529 = vadd.f32 %v2273, 1e-05
      %v2530 = vadd.f32 %v2274, 1e-05
      %v2531 = vadd.f32 %v2275, 1e-05
      %v2532 = vadd.f32 %v2276, 1e-05
      %v2533 = vadd.f32 %v2277, 1e-05
      %v2534 = vadd.f32 %v2278, 1e-05
      %v2535 = vadd.f32 %v2279, 1e-05
      %v2536 = vadd.f32 %v2280, 1e-05
      %v2537 = vadd.f32 %v2281, 1e-05
      %v2538 = vrsqrt.pop %v2410
      %v2539 = vmul.f32 %v2538, %v2410
      %v2540 = vmul.f32 %v2539, %v2538
      %v2541 = vmul.f32 0.5, %v2540
      %v2542 = vsub.f32 1.5, %v2541
      %v2543 = vmul.f32 %v2538, %v2542
      %vm2544 = vweird.f32 %v2410
      %vm2545 = vweird.f32 %v2538
      %vm2546 = vmor %vm2544, %vm2545
      %v2547 = vsel %vm2546, %v2538, %v2543
      %v2548 = vrsqrt.pop %v2411
      %v2549 = vmul.f32 %v2548, %v2411
      %v2550 = vmul.f32 %v2549, %v2548
      %v2551 = vmul.f32 0.5, %v2550
      %v2552 = vsub.f32 1.5, %v2551
      %v2553 = vmul.f32 %v2548, %v2552
      %vm2554 = vweird.f32 %v2411
      %vm2555 = vweird.f32 %v2548
      %vm2556 = vmor %vm2554, %vm2555
      %v2557 = vsel %vm2556, %v2548, %v2553
      %v2558 = vrsqrt.pop %v2412
      %v2559 = vmul.f32 %v2558, %v2412
      %v2560 = vmul.f32 %v2559, %v2558
      %v2561 = vmul.f32 0.5, %v2560
      %v2562 = vsub.f32 1.5, %v2561
      %v2563 = vmul.f32 %v2558, %v2562
      %vm2564 = vweird.f32 %v2412
      %vm2565 = vweird.f32 %v2558
      %vm2566 = vmor %vm2564, %vm2565
      %v2567 = vsel %vm2566, %v2558, %v2563
      %v2568 = vrsqrt.pop %v2413
      %v2569 = vmul.f32 %v2568, %v2413
      %v2570 = vmul.f32 %v2569, %v2568
      %v2571 = vmul.f32 0.5, %v2570
      %v2572 = vsub.f32 1.5, %v2571
      %v2573 = vmul.f32 %v2568, %v2572
      %vm2574 = vweird.f32 %v2413
      %vm2575 = vweird.f32 %v2568
      %vm2576 = vmor %vm2574, %vm2575
      %v2577 = vsel %vm2576, %v2568, %v2573
      %v2578 = vrsqrt.pop %v2414
      %v2579 = vmul.f32 %v2578, %v2414
      %v2580 = vmul.f32 %v2579, %v2578
      %v2581 = vmul.f32 0.5, %v2580
      %v2582 = vsub.f32 1.5, %v2581
      %v2583 = vmul.f32 %v2578, %v2582
      %vm2584 = vweird.f32 %v2414
      %vm2585 = vweird.f32 %v2578
      %vm2586 = vmor %vm2584, %vm2585
      %v2587 = vsel %vm2586, %v2578, %v2583
      %v2588 = vrsqrt.pop %v2415
      %v2589 = vmul.f32 %v2588, %v2415
      %v2590 = vmul.f32 %v2589, %v2588
      %v2591 = vmul.f32 0.5, %v2590
      %v2592 = vsub.f32 1.5, %v2591
      %v2593 = vmul.f32 %v2588, %v2592
      %vm2594 = vweird.f32 %v2415
      %vm2595 = vweird.f32 %v2588
      %vm2596 = vmor %vm2594, %vm2595
      %v2597 = vsel %vm2596, %v2588, %v2593
      %v2598 = vrsqrt.pop %v2416
      %v2599 = vmul.f32 %v2598, %v2416
      %v2600 = vmul.f32 %v2599, %v2598
      %v2601 = vmul.f32 0.5, %v2600
      %v2602 = vsub.f32 1.5, %v2601
      %v2603 = vmul.f32 %v2598, %v2602
      %vm2604 = vweird.f32 %v2416
      %vm2605 = vweird.f32 %v2598
      %vm2606 = vmor %vm2604, %vm2605
      %v2607 = vsel %vm2606, %v2598, %v2603
      %v2608 = vrsqrt.pop %v2417
      %v2609 = vmul.f32 %v2608, %v2417
      %v2610 = vmul.f32 %v2609, %v2608
      %v2611 = vmul.f32 0.5, %v2610
      %v2612 = vsub.f32 1.5, %v2611
      %v2613 = vmul.f32 %v2608, %v2612
      %vm2614 = vweird.f32 %v2417
      %vm2615 = vweird.f32 %v2608
      %vm2616 = vmor %vm2614, %vm2615
      %v2617 = vsel %vm2616, %v2608, %v2613
      %v2618 = vrsqrt.pop %v2418
      %v2619 = vmul.f32 %v2618, %v2418
      %v2620 = vmul.f32 %v2619, %v2618
      %v2621 = vmul.f32 0.5, %v2620
      %v2622 = vsub.f32 1.5, %v2621
      %v2623 = vmul.f32 %v2618, %v2622
      %vm2624 = vweird.f32 %v2418
      %vm2625 = vweird.f32 %v2618
      %vm2626 = vmor %vm2624, %vm2625
      %v2627 = vsel %vm2626, %v2618, %v2623
      %v2628 = vrsqrt.pop %v2419
      %v2629 = vmul.f32 %v2628, %v2419
      %v2630 = vmul.f32 %v2629, %v2628
      %v2631 = vmul.f32 0.5, %v2630
      %v2632 = vsub.f32 1.5, %v2631
      %v2633 = vmul.f32 %v2628, %v2632
      %vm2634 = vweird.f32 %v2419
      %vm2635 = vweird.f32 %v2628
      %vm2636 = vmor %vm2634, %vm2635
      %v2637 = vsel %vm2636, %v2628, %v2633
      %v2638 = vrsqrt.pop %v2420
      %v2639 = vmul.f32 %v2638, %v2420
      %v2640 = vmul.f32 %v2639, %v2638
      %v2641 = vmul.f32 0.5, %v2640
      %v2642 = vsub.f32 1.5, %v2641
      %v2643 = vmul.f32 %v2638, %v2642
      %vm2644 = vweird.f32 %v2420
      %vm2645 = vweird.f32 %v2638
      %vm2646 = vmor %vm2644, %vm2645
      %v2647 = vsel %vm2646, %v2638, %v2643
      %v2648 = vrsqrt.pop %v2421
      %v2649 = vmul.f32 %v2648, %v2421
      %v2650 = vmul.f32 %v2649, %v2648
      %v2651 = vmul.f32 0.5, %v2650
      %v2652 = vsub.f32 1.5, %v2651
      %v2653 = vmul.f32 %v2648, %v2652
      %vm2654 = vweird.f32 %v2421
      %vm2655 = vweird.f32 %v2648
      %vm2656 = vmor %vm2654, %vm2655
      %v2657 = vsel %vm2656, %v2648, %v2653
      %v2658 = vrsqrt.pop %v2422
      %v2659 = vmul.f32 %v2658, %v2422
      %v2660 = vmul.f32 %v2659, %v2658
      %v2661 = vmul.f32 0.5, %v2660
      %v2662 = vsub.f32 1.5, %v2661
      %v2663 = vmul.f32 %v2658, %v2662
      %vm2664 = vweird.f32 %v2422
      %vm2665 = vweird.f32 %v2658
      %vm2666 = vmor %vm2664, %vm2665
      %v2667 = vsel %vm2666, %v2658, %v2663
      %v2668 = vrsqrt.pop %v2423
      %v2669 = vmul.f32 %v2668, %v2423
      %v2670 = vmul.f32 %v2669, %v2668
      %v2671 = vmul.f32 0.5, %v2670
      %v2672 = vsub.f32 1.5, %v2671
      %v2673 = vmul.f32 %v2668, %v2672
      %vm2674 = vweird.f32 %v2423
      %vm2675 = vweird.f32 %v2668
      %vm2676 = vmor %vm2674, %vm2675
      %v2677 = vsel %vm2676, %v2668, %v2673
      %v2678 = vrsqrt.pop %v2424
      %v2679 = vmul.f32 %v2678, %v2424
      %v2680 = vmul.f32 %v2679, %v2678
      %v2681 = vmul.f32 0.5, %v2680
      %v2682 = vsub.f32 1.5, %v2681
      %v2683 = vmul.f32 %v2678, %v2682
      %vm2684 = vweird.f32 %v2424
      %vm2685 = vweird.f32 %v2678
      %vm2686 = vmor %vm2684, %vm2685
      %v2687 = vsel %vm2686, %v2678, %v2683
      %v2688 = vrsqrt.pop %v2425
      %v2689 = vmul.f32 %v2688, %v2425
      %v2690 = vmul.f32 %v2689, %v2688
      %v2691 = vmul.f32 0.5, %v2690
      %v2692 = vsub.f32 1.5, %v2691
      %v2693 = vmul.f32 %v2688, %v2692
      %vm2694 = vweird.f32 %v2425
      %vm2695 = vweird.f32 %v2688
      %vm2696 = vmor %vm2694, %vm2695
      %v2697 = vsel %vm2696, %v2688, %v2693
      %v2698 = vrsqrt.pop %v2426
      %v2699 = vmul.f32 %v2698, %v2426
      %v2700 = vmul.f32 %v2699, %v2698
      %v2701 = vmul.f32 0.5, %v2700
      %v2702 = vsub.f32 1.5, %v2701
      %v2703 = vmul.f32 %v2698, %v2702
      %vm2704 = vweird.f32 %v2426
      %vm2705 = vweird.f32 %v2698
      %vm2706 = vmor %vm2704, %vm2705
      %v2707 = vsel %vm2706, %v2698, %v2703
      %v2708 = vrsqrt.pop %v2427
      %v2709 = vmul.f32 %v2708, %v2427
      %v2710 = vmul.f32 %v2709, %v2708
      %v2711 = vmul.f32 0.5, %v2710
      %v2712 = vsub.f32 1.5, %v2711
      %v2713 = vmul.f32 %v2708, %v2712
      %vm2714 = vweird.f32 %v2427
      %vm2715 = vweird.f32 %v2708
      %vm2716 = vmor %vm2714, %vm2715
      %v2717 = vsel %vm2716, %v2708, %v2713
      %v2718 = vrsqrt.pop %v2428
      %v2719 = vmul.f32 %v2718, %v2428
      %v2720 = vmul.f32 %v2719, %v2718
      %v2721 = vmul.f32 0.5, %v2720
      %v2722 = vsub.f32 1.5, %v2721
      %v2723 = vmul.f32 %v2718, %v2722
      %vm2724 = vweird.f32 %v2428
      %vm2725 = vweird.f32 %v2718
      %vm2726 = vmor %vm2724, %vm2725
      %v2727 = vsel %vm2726, %v2718, %v2723
      %v2728 = vrsqrt.pop %v2429
      %v2729 = vmul.f32 %v2728, %v2429
      %v2730 = vmul.f32 %v2729, %v2728
      %v2731 = vmul.f32 0.5, %v2730
      %v2732 = vsub.f32 1.5, %v2731
      %v2733 = vmul.f32 %v2728, %v2732
      %vm2734 = vweird.f32 %v2429
      %vm2735 = vweird.f32 %v2728
      %vm2736 = vmor %vm2734, %vm2735
      %v2737 = vsel %vm2736, %v2728, %v2733
      %v2738 = vrsqrt.pop %v2430
      %v2739 = vmul.f32 %v2738, %v2430
      %v2740 = vmul.f32 %v2739, %v2738
      %v2741 = vmul.f32 0.5, %v2740
      %v2742 = vsub.f32 1.5, %v2741
      %v2743 = vmul.f32 %v2738, %v2742
      %vm2744 = vweird.f32 %v2430
      %vm2745 = vweird.f32 %v2738
      %vm2746 = vmor %vm2744, %vm2745
      %v2747 = vsel %vm2746, %v2738, %v2743
      %v2748 = vrsqrt.pop %v2431
      %v2749 = vmul.f32 %v2748, %v2431
      %v2750 = vmul.f32 %v2749, %v2748
      %v2751 = vmul.f32 0.5, %v2750
      %v2752 = vsub.f32 1.5, %v2751
      %v2753 = vmul.f32 %v2748, %v2752
      %vm2754 = vweird.f32 %v2431
      %vm2755 = vweird.f32 %v2748
      %vm2756 = vmor %vm2754, %vm2755
      %v2757 = vsel %vm2756, %v2748, %v2753
      %v2758 = vrsqrt.pop %v2432
      %v2759 = vmul.f32 %v2758, %v2432
      %v2760 = vmul.f32 %v2759, %v2758
      %v2761 = vmul.f32 0.5, %v2760
      %v2762 = vsub.f32 1.5, %v2761
      %v2763 = vmul.f32 %v2758, %v2762
      %vm2764 = vweird.f32 %v2432
      %vm2765 = vweird.f32 %v2758
      %vm2766 = vmor %vm2764, %vm2765
      %v2767 = vsel %vm2766, %v2758, %v2763
      %v2768 = vrsqrt.pop %v2433
      %v2769 = vmul.f32 %v2768, %v2433
      %v2770 = vmul.f32 %v2769, %v2768
      %v2771 = vmul.f32 0.5, %v2770
      %v2772 = vsub.f32 1.5, %v2771
      %v2773 = vmul.f32 %v2768, %v2772
      %vm2774 = vweird.f32 %v2433
      %vm2775 = vweird.f32 %v2768
      %vm2776 = vmor %vm2774, %vm2775
      %v2777 = vsel %vm2776, %v2768, %v2773
      %v2778 = vrsqrt.pop %v2434
      %v2779 = vmul.f32 %v2778, %v2434
      %v2780 = vmul.f32 %v2779, %v2778
      %v2781 = vmul.f32 0.5, %v2780
      %v2782 = vsub.f32 1.5, %v2781
      %v2783 = vmul.f32 %v2778, %v2782
      %vm2784 = vweird.f32 %v2434
      %vm2785 = vweird.f32 %v2778
      %vm2786 = vmor %vm2784, %vm2785
      %v2787 = vsel %vm2786, %v2778, %v2783
      %v2788 = vrsqrt.pop %v2435
      %v2789 = vmul.f32 %v2788, %v2435
      %v2790 = vmul.f32 %v2789, %v2788
      %v2791 = vmul.f32 0.5, %v2790
      %v2792 = vsub.f32 1.5, %v2791
      %v2793 = vmul.f32 %v2788, %v2792
      %vm2794 = vweird.f32 %v2435
      %vm2795 = vweird.f32 %v2788
      %vm2796 = vmor %vm2794, %vm2795
      %v2797 = vsel %vm2796, %v2788, %v2793
      %v2798 = vrsqrt.pop %v2436
      %v2799 = vmul.f32 %v2798, %v2436
      %v2800 = vmul.f32 %v2799, %v2798
      %v2801 = vmul.f32 0.5, %v2800
      %v2802 = vsub.f32 1.5, %v2801
      %v2803 = vmul.f32 %v2798, %v2802
      %vm2804 = vweird.f32 %v2436
      %vm2805 = vweird.f32 %v2798
      %vm2806 = vmor %vm2804, %vm2805
      %v2807 = vsel %vm2806, %v2798, %v2803
      %v2808 = vrsqrt.pop %v2437
      %v2809 = vmul.f32 %v2808, %v2437
      %v2810 = vmul.f32 %v2809, %v2808
      %v2811 = vmul.f32 0.5, %v2810
      %v2812 = vsub.f32 1.5, %v2811
      %v2813 = vmul.f32 %v2808, %v2812
      %vm2814 = vweird.f32 %v2437
      %vm2815 = vweird.f32 %v2808
      %vm2816 = vmor %vm2814, %vm2815
      %v2817 = vsel %vm2816, %v2808, %v2813
      %v2818 = vrsqrt.pop %v2438
      %v2819 = vmul.f32 %v2818, %v2438
      %v2820 = vmul.f32 %v2819, %v2818
      %v2821 = vmul.f32 0.5, %v2820
      %v2822 = vsub.f32 1.5, %v2821
      %v2823 = vmul.f32 %v2818, %v2822
      %vm2824 = vweird.f32 %v2438
      %vm2825 = vweird.f32 %v2818
      %vm2826 = vmor %vm2824, %vm2825
      %v2827 = vsel %vm2826, %v2818, %v2823
      %v2828 = vrsqrt.pop %v2439
      %v2829 = vmul.f32 %v2828, %v2439
      %v2830 = vmul.f32 %v2829, %v2828
      %v2831 = vmul.f32 0.5, %v2830
      %v2832 = vsub.f32 1.5, %v2831
      %v2833 = vmul.f32 %v2828, %v2832
      %vm2834 = vweird.f32 %v2439
      %vm2835 = vweird.f32 %v2828
      %vm2836 = vmor %vm2834, %vm2835
      %v2837 = vsel %vm2836, %v2828, %v2833
      %v2838 = vrsqrt.pop %v2440
      %v2839 = vmul.f32 %v2838, %v2440
      %v2840 = vmul.f32 %v2839, %v2838
      %v2841 = vmul.f32 0.5, %v2840
      %v2842 = vsub.f32 1.5, %v2841
      %v2843 = vmul.f32 %v2838, %v2842
      %vm2844 = vweird.f32 %v2440
      %vm2845 = vweird.f32 %v2838
      %vm2846 = vmor %vm2844, %vm2845
      %v2847 = vsel %vm2846, %v2838, %v2843
      %v2848 = vrsqrt.pop %v2441
      %v2849 = vmul.f32 %v2848, %v2441
      %v2850 = vmul.f32 %v2849, %v2848
      %v2851 = vmul.f32 0.5, %v2850
      %v2852 = vsub.f32 1.5, %v2851
      %v2853 = vmul.f32 %v2848, %v2852
      %vm2854 = vweird.f32 %v2441
      %vm2855 = vweird.f32 %v2848
      %vm2856 = vmor %vm2854, %vm2855
      %v2857 = vsel %vm2856, %v2848, %v2853
      %v2858 = vrsqrt.pop %v2442
      %v2859 = vmul.f32 %v2858, %v2442
      %v2860 = vmul.f32 %v2859, %v2858
      %v2861 = vmul.f32 0.5, %v2860
      %v2862 = vsub.f32 1.5, %v2861
      %v2863 = vmul.f32 %v2858, %v2862
      %vm2864 = vweird.f32 %v2442
      %vm2865 = vweird.f32 %v2858
      %vm2866 = vmor %vm2864, %vm2865
      %v2867 = vsel %vm2866, %v2858, %v2863
      %v2868 = vrsqrt.pop %v2443
      %v2869 = vmul.f32 %v2868, %v2443
      %v2870 = vmul.f32 %v2869, %v2868
      %v2871 = vmul.f32 0.5, %v2870
      %v2872 = vsub.f32 1.5, %v2871
      %v2873 = vmul.f32 %v2868, %v2872
      %vm2874 = vweird.f32 %v2443
      %vm2875 = vweird.f32 %v2868
      %vm2876 = vmor %vm2874, %vm2875
      %v2877 = vsel %vm2876, %v2868, %v2873
      %v2878 = vrsqrt.pop %v2444
      %v2879 = vmul.f32 %v2878, %v2444
      %v2880 = vmul.f32 %v2879, %v2878
      %v2881 = vmul.f32 0.5, %v2880
      %v2882 = vsub.f32 1.5, %v2881
      %v2883 = vmul.f32 %v2878, %v2882
      %vm2884 = vweird.f32 %v2444
      %vm2885 = vweird.f32 %v2878
      %vm2886 = vmor %vm2884, %vm2885
      %v2887 = vsel %vm2886, %v2878, %v2883
      %v2888 = vrsqrt.pop %v2445
      %v2889 = vmul.f32 %v2888, %v2445
      %v2890 = vmul.f32 %v2889, %v2888
      %v2891 = vmul.f32 0.5, %v2890
      %v2892 = vsub.f32 1.5, %v2891
      %v2893 = vmul.f32 %v2888, %v2892
      %vm2894 = vweird.f32 %v2445
      %vm2895 = vweird.f32 %v2888
      %vm2896 = vmor %vm2894, %vm2895
      %v2897 = vsel %vm2896, %v2888, %v2893
      %v2898 = vrsqrt.pop %v2446
      %v2899 = vmul.f32 %v2898, %v2446
      %v2900 = vmul.f32 %v2899, %v2898
      %v2901 = vmul.f32 0.5, %v2900
      %v2902 = vsub.f32 1.5, %v2901
      %v2903 = vmul.f32 %v2898, %v2902
      %vm2904 = vweird.f32 %v2446
      %vm2905 = vweird.f32 %v2898
      %vm2906 = vmor %vm2904, %vm2905
      %v2907 = vsel %vm2906, %v2898, %v2903
      %v2908 = vrsqrt.pop %v2447
      %v2909 = vmul.f32 %v2908, %v2447
      %v2910 = vmul.f32 %v2909, %v2908
      %v2911 = vmul.f32 0.5, %v2910
      %v2912 = vsub.f32 1.5, %v2911
      %v2913 = vmul.f32 %v2908, %v2912
      %vm2914 = vweird.f32 %v2447
      %vm2915 = vweird.f32 %v2908
      %vm2916 = vmor %vm2914, %vm2915
      %v2917 = vsel %vm2916, %v2908, %v2913
      %v2918 = vrsqrt.pop %v2448
      %v2919 = vmul.f32 %v2918, %v2448
      %v2920 = vmul.f32 %v2919, %v2918
      %v2921 = vmul.f32 0.5, %v2920
      %v2922 = vsub.f32 1.5, %v2921
      %v2923 = vmul.f32 %v2918, %v2922
      %vm2924 = vweird.f32 %v2448
      %vm2925 = vweird.f32 %v2918
      %vm2926 = vmor %vm2924, %vm2925
      %v2927 = vsel %vm2926, %v2918, %v2923
      %v2928 = vrsqrt.pop %v2449
      %v2929 = vmul.f32 %v2928, %v2449
      %v2930 = vmul.f32 %v2929, %v2928
      %v2931 = vmul.f32 0.5, %v2930
      %v2932 = vsub.f32 1.5, %v2931
      %v2933 = vmul.f32 %v2928, %v2932
      %vm2934 = vweird.f32 %v2449
      %vm2935 = vweird.f32 %v2928
      %vm2936 = vmor %vm2934, %vm2935
      %v2937 = vsel %vm2936, %v2928, %v2933
      %v2938 = vrsqrt.pop %v2450
      %v2939 = vmul.f32 %v2938, %v2450
      %v2940 = vmul.f32 %v2939, %v2938
      %v2941 = vmul.f32 0.5, %v2940
      %v2942 = vsub.f32 1.5, %v2941
      %v2943 = vmul.f32 %v2938, %v2942
      %vm2944 = vweird.f32 %v2450
      %vm2945 = vweird.f32 %v2938
      %vm2946 = vmor %vm2944, %vm2945
      %v2947 = vsel %vm2946, %v2938, %v2943
      %v2948 = vrsqrt.pop %v2451
      %v2949 = vmul.f32 %v2948, %v2451
      %v2950 = vmul.f32 %v2949, %v2948
      %v2951 = vmul.f32 0.5, %v2950
      %v2952 = vsub.f32 1.5, %v2951
      %v2953 = vmul.f32 %v2948, %v2952
      %vm2954 = vweird.f32 %v2451
      %vm2955 = vweird.f32 %v2948
      %vm2956 = vmor %vm2954, %vm2955
      %v2957 = vsel %vm2956, %v2948, %v2953
      %v2958 = vrsqrt.pop %v2452
      %v2959 = vmul.f32 %v2958, %v2452
      %v2960 = vmul.f32 %v2959, %v2958
      %v2961 = vmul.f32 0.5, %v2960
      %v2962 = vsub.f32 1.5, %v2961
      %v2963 = vmul.f32 %v2958, %v2962
      %vm2964 = vweird.f32 %v2452
      %vm2965 = vweird.f32 %v2958
      %vm2966 = vmor %vm2964, %vm2965
      %v2967 = vsel %vm2966, %v2958, %v2963
      %v2968 = vrsqrt.pop %v2453
      %v2969 = vmul.f32 %v2968, %v2453
      %v2970 = vmul.f32 %v2969, %v2968
      %v2971 = vmul.f32 0.5, %v2970
      %v2972 = vsub.f32 1.5, %v2971
      %v2973 = vmul.f32 %v2968, %v2972
      %vm2974 = vweird.f32 %v2453
      %vm2975 = vweird.f32 %v2968
      %vm2976 = vmor %vm2974, %vm2975
      %v2977 = vsel %vm2976, %v2968, %v2973
      %v2978 = vrsqrt.pop %v2454
      %v2979 = vmul.f32 %v2978, %v2454
      %v2980 = vmul.f32 %v2979, %v2978
      %v2981 = vmul.f32 0.5, %v2980
      %v2982 = vsub.f32 1.5, %v2981
      %v2983 = vmul.f32 %v2978, %v2982
      %vm2984 = vweird.f32 %v2454
      %vm2985 = vweird.f32 %v2978
      %vm2986 = vmor %vm2984, %vm2985
      %v2987 = vsel %vm2986, %v2978, %v2983
      %v2988 = vrsqrt.pop %v2455
      %v2989 = vmul.f32 %v2988, %v2455
      %v2990 = vmul.f32 %v2989, %v2988
      %v2991 = vmul.f32 0.5, %v2990
      %v2992 = vsub.f32 1.5, %v2991
      %v2993 = vmul.f32 %v2988, %v2992
      %vm2994 = vweird.f32 %v2455
      %vm2995 = vweird.f32 %v2988
      %vm2996 = vmor %vm2994, %vm2995
      %v2997 = vsel %vm2996, %v2988, %v2993
      %v2998 = vrsqrt.pop %v2456
      %v2999 = vmul.f32 %v2998, %v2456
      %v3000 = vmul.f32 %v2999, %v2998
      %v3001 = vmul.f32 0.5, %v3000
      %v3002 = vsub.f32 1.5, %v3001
      %v3003 = vmul.f32 %v2998, %v3002
      %vm3004 = vweird.f32 %v2456
      %vm3005 = vweird.f32 %v2998
      %vm3006 = vmor %vm3004, %vm3005
      %v3007 = vsel %vm3006, %v2998, %v3003
      %v3008 = vrsqrt.pop %v2457
      %v3009 = vmul.f32 %v3008, %v2457
      %v3010 = vmul.f32 %v3009, %v3008
      %v3011 = vmul.f32 0.5, %v3010
      %v3012 = vsub.f32 1.5, %v3011
      %v3013 = vmul.f32 %v3008, %v3012
      %vm3014 = vweird.f32 %v2457
      %vm3015 = vweird.f32 %v3008
      %vm3016 = vmor %vm3014, %vm3015
      %v3017 = vsel %vm3016, %v3008, %v3013
      %v3018 = vrsqrt.pop %v2458
      %v3019 = vmul.f32 %v3018, %v2458
      %v3020 = vmul.f32 %v3019, %v3018
      %v3021 = vmul.f32 0.5, %v3020
      %v3022 = vsub.f32 1.5, %v3021
      %v3023 = vmul.f32 %v3018, %v3022
      %vm3024 = vweird.f32 %v2458
      %vm3025 = vweird.f32 %v3018
      %vm3026 = vmor %vm3024, %vm3025
      %v3027 = vsel %vm3026, %v3018, %v3023
      %v3028 = vrsqrt.pop %v2459
      %v3029 = vmul.f32 %v3028, %v2459
      %v3030 = vmul.f32 %v3029, %v3028
      %v3031 = vmul.f32 0.5, %v3030
      %v3032 = vsub.f32 1.5, %v3031
      %v3033 = vmul.f32 %v3028, %v3032
      %vm3034 = vweird.f32 %v2459
      %vm3035 = vweird.f32 %v3028
      %vm3036 = vmor %vm3034, %vm3035
      %v3037 = vsel %vm3036, %v3028, %v3033
      %v3038 = vrsqrt.pop %v2460
      %v3039 = vmul.f32 %v3038, %v2460
      %v3040 = vmul.f32 %v3039, %v3038
      %v3041 = vmul.f32 0.5, %v3040
      %v3042 = vsub.f32 1.5, %v3041
      %v3043 = vmul.f32 %v3038, %v3042
      %vm3044 = vweird.f32 %v2460
      %vm3045 = vweird.f32 %v3038
      %vm3046 = vmor %vm3044, %vm3045
      %v3047 = vsel %vm3046, %v3038, %v3043
      %v3048 = vrsqrt.pop %v2461
      %v3049 = vmul.f32 %v3048, %v2461
      %v3050 = vmul.f32 %v3049, %v3048
      %v3051 = vmul.f32 0.5, %v3050
      %v3052 = vsub.f32 1.5, %v3051
      %v3053 = vmul.f32 %v3048, %v3052
      %vm3054 = vweird.f32 %v2461
      %vm3055 = vweird.f32 %v3048
      %vm3056 = vmor %vm3054, %vm3055
      %v3057 = vsel %vm3056, %v3048, %v3053
      %v3058 = vrsqrt.pop %v2462
      %v3059 = vmul.f32 %v3058, %v2462
      %v3060 = vmul.f32 %v3059, %v3058
      %v3061 = vmul.f32 0.5, %v3060
      %v3062 = vsub.f32 1.5, %v3061
      %v3063 = vmul.f32 %v3058, %v3062
      %vm3064 = vweird.f32 %v2462
      %vm3065 = vweird.f32 %v3058
      %vm3066 = vmor %vm3064, %vm3065
      %v3067 = vsel %vm3066, %v3058, %v3063
      %v3068 = vrsqrt.pop %v2463
      %v3069 = vmul.f32 %v3068, %v2463
      %v3070 = vmul.f32 %v3069, %v3068
      %v3071 = vmul.f32 0.5, %v3070
      %v3072 = vsub.f32 1.5, %v3071
      %v3073 = vmul.f32 %v3068, %v3072
      %vm3074 = vweird.f32 %v2463
      %vm3075 = vweird.f32 %v3068
      %vm3076 = vmor %vm3074, %vm3075
      %v3077 = vsel %vm3076, %v3068, %v3073
      %v3078 = vrsqrt.pop %v2464
      %v3079 = vmul.f32 %v3078, %v2464
      %v3080 = vmul.f32 %v3079, %v3078
      %v3081 = vmul.f32 0.5, %v3080
      %v3082 = vsub.f32 1.5, %v3081
      %v3083 = vmul.f32 %v3078, %v3082
      %vm3084 = vweird.f32 %v2464
      %vm3085 = vweird.f32 %v3078
      %vm3086 = vmor %vm3084, %vm3085
      %v3087 = vsel %vm3086, %v3078, %v3083
      %v3088 = vrsqrt.pop %v2465
      %v3089 = vmul.f32 %v3088, %v2465
      %v3090 = vmul.f32 %v3089, %v3088
      %v3091 = vmul.f32 0.5, %v3090
      %v3092 = vsub.f32 1.5, %v3091
      %v3093 = vmul.f32 %v3088, %v3092
      %vm3094 = vweird.f32 %v2465
      %vm3095 = vweird.f32 %v3088
      %vm3096 = vmor %vm3094, %vm3095
      %v3097 = vsel %vm3096, %v3088, %v3093
      %v3098 = vrsqrt.pop %v2466
      %v3099 = vmul.f32 %v3098, %v2466
      %v3100 = vmul.f32 %v3099, %v3098
      %v3101 = vmul.f32 0.5, %v3100
      %v3102 = vsub.f32 1.5, %v3101
      %v3103 = vmul.f32 %v3098, %v3102
      %vm3104 = vweird.f32 %v2466
      %vm3105 = vweird.f32 %v3098
      %vm3106 = vmor %vm3104, %vm3105
      %v3107 = vsel %vm3106, %v3098, %v3103
      %v3108 = vrsqrt.pop %v2467
      %v3109 = vmul.f32 %v3108, %v2467
      %v3110 = vmul.f32 %v3109, %v3108
      %v3111 = vmul.f32 0.5, %v3110
      %v3112 = vsub.f32 1.5, %v3111
      %v3113 = vmul.f32 %v3108, %v3112
      %vm3114 = vweird.f32 %v2467
      %vm3115 = vweird.f32 %v3108
      %vm3116 = vmor %vm3114, %vm3115
      %v3117 = vsel %vm3116, %v3108, %v3113
      %v3118 = vrsqrt.pop %v2468
      %v3119 = vmul.f32 %v3118, %v2468
      %v3120 = vmul.f32 %v3119, %v3118
      %v3121 = vmul.f32 0.5, %v3120
      %v3122 = vsub.f32 1.5, %v3121
      %v3123 = vmul.f32 %v3118, %v3122
      %vm3124 = vweird.f32 %v2468
      %vm3125 = vweird.f32 %v3118
      %vm3126 = vmor %vm3124, %vm3125
      %v3127 = vsel %vm3126, %v3118, %v3123
      %v3128 = vrsqrt.pop %v2469
      %v3129 = vmul.f32 %v3128, %v2469
      %v3130 = vmul.f32 %v3129, %v3128
      %v3131 = vmul.f32 0.5, %v3130
      %v3132 = vsub.f32 1.5, %v3131
      %v3133 = vmul.f32 %v3128, %v3132
      %vm3134 = vweird.f32 %v2469
      %vm3135 = vweird.f32 %v3128
      %vm3136 = vmor %vm3134, %vm3135
      %v3137 = vsel %vm3136, %v3128, %v3133
      %v3138 = vrsqrt.pop %v2470
      %v3139 = vmul.f32 %v3138, %v2470
      %v3140 = vmul.f32 %v3139, %v3138
      %v3141 = vmul.f32 0.5, %v3140
      %v3142 = vsub.f32 1.5, %v3141
      %v3143 = vmul.f32 %v3138, %v3142
      %vm3144 = vweird.f32 %v2470
      %vm3145 = vweird.f32 %v3138
      %vm3146 = vmor %vm3144, %vm3145
      %v3147 = vsel %vm3146, %v3138, %v3143
      %v3148 = vrsqrt.pop %v2471
      %v3149 = vmul.f32 %v3148, %v2471
      %v3150 = vmul.f32 %v3149, %v3148
      %v3151 = vmul.f32 0.5, %v3150
      %v3152 = vsub.f32 1.5, %v3151
      %v3153 = vmul.f32 %v3148, %v3152
      %vm3154 = vweird.f32 %v2471
      %vm3155 = vweird.f32 %v3148
      %vm3156 = vmor %vm3154, %vm3155
      %v3157 = vsel %vm3156, %v3148, %v3153
      %v3158 = vrsqrt.pop %v2472
      %v3159 = vmul.f32 %v3158, %v2472
      %v3160 = vmul.f32 %v3159, %v3158
      %v3161 = vmul.f32 0.5, %v3160
      %v3162 = vsub.f32 1.5, %v3161
      %v3163 = vmul.f32 %v3158, %v3162
      %vm3164 = vweird.f32 %v2472
      %vm3165 = vweird.f32 %v3158
      %vm3166 = vmor %vm3164, %vm3165
      %v3167 = vsel %vm3166, %v3158, %v3163
      %v3168 = vrsqrt.pop %v2473
      %v3169 = vmul.f32 %v3168, %v2473
      %v3170 = vmul.f32 %v3169, %v3168
      %v3171 = vmul.f32 0.5, %v3170
      %v3172 = vsub.f32 1.5, %v3171
      %v3173 = vmul.f32 %v3168, %v3172
      %vm3174 = vweird.f32 %v2473
      %vm3175 = vweird.f32 %v3168
      %vm3176 = vmor %vm3174, %vm3175
      %v3177 = vsel %vm3176, %v3168, %v3173
      %v3178 = vrsqrt.pop %v2474
      %v3179 = vmul.f32 %v3178, %v2474
      %v3180 = vmul.f32 %v3179, %v3178
      %v3181 = vmul.f32 0.5, %v3180
      %v3182 = vsub.f32 1.5, %v3181
      %v3183 = vmul.f32 %v3178, %v3182
      %vm3184 = vweird.f32 %v2474
      %vm3185 = vweird.f32 %v3178
      %vm3186 = vmor %vm3184, %vm3185
      %v3187 = vsel %vm3186, %v3178, %v3183
      %v3188 = vrsqrt.pop %v2475
      %v3189 = vmul.f32 %v3188, %v2475
      %v3190 = vmul.f32 %v3189, %v3188
      %v3191 = vmul.f32 0.5, %v3190
      %v3192 = vsub.f32 1.5, %v3191
      %v3193 = vmul.f32 %v3188, %v3192
      %vm3194 = vweird.f32 %v2475
      %vm3195 = vweird.f32 %v3188
      %vm3196 = vmor %vm3194, %vm3195
      %v3197 = vsel %vm3196, %v3188, %v3193
      %v3198 = vrsqrt.pop %v2476
      %v3199 = vmul.f32 %v3198, %v2476
      %v3200 = vmul.f32 %v3199, %v3198
      %v3201 = vmul.f32 0.5, %v3200
      %v3202 = vsub.f32 1.5, %v3201
      %v3203 = vmul.f32 %v3198, %v3202
      %vm3204 = vweird.f32 %v2476
      %vm3205 = vweird.f32 %v3198
      %vm3206 = vmor %vm3204, %vm3205
      %v3207 = vsel %vm3206, %v3198, %v3203
      %v3208 = vrsqrt.pop %v2477
      %v3209 = vmul.f32 %v3208, %v2477
      %v3210 = vmul.f32 %v3209, %v3208
      %v3211 = vmul.f32 0.5, %v3210
      %v3212 = vsub.f32 1.5, %v3211
      %v3213 = vmul.f32 %v3208, %v3212
      %vm3214 = vweird.f32 %v2477
      %vm3215 = vweird.f32 %v3208
      %vm3216 = vmor %vm3214, %vm3215
      %v3217 = vsel %vm3216, %v3208, %v3213
      %v3218 = vrsqrt.pop %v2478
      %v3219 = vmul.f32 %v3218, %v2478
      %v3220 = vmul.f32 %v3219, %v3218
      %v3221 = vmul.f32 0.5, %v3220
      %v3222 = vsub.f32 1.5, %v3221
      %v3223 = vmul.f32 %v3218, %v3222
      %vm3224 = vweird.f32 %v2478
      %vm3225 = vweird.f32 %v3218
      %vm3226 = vmor %vm3224, %vm3225
      %v3227 = vsel %vm3226, %v3218, %v3223
      %v3228 = vrsqrt.pop %v2479
      %v3229 = vmul.f32 %v3228, %v2479
      %v3230 = vmul.f32 %v3229, %v3228
      %v3231 = vmul.f32 0.5, %v3230
      %v3232 = vsub.f32 1.5, %v3231
      %v3233 = vmul.f32 %v3228, %v3232
      %vm3234 = vweird.f32 %v2479
      %vm3235 = vweird.f32 %v3228
      %vm3236 = vmor %vm3234, %vm3235
      %v3237 = vsel %vm3236, %v3228, %v3233
      %v3238 = vrsqrt.pop %v2480
      %v3239 = vmul.f32 %v3238, %v2480
      %v3240 = vmul.f32 %v3239, %v3238
      %v3241 = vmul.f32 0.5, %v3240
      %v3242 = vsub.f32 1.5, %v3241
      %v3243 = vmul.f32 %v3238, %v3242
      %vm3244 = vweird.f32 %v2480
      %vm3245 = vweird.f32 %v3238
      %vm3246 = vmor %vm3244, %vm3245
      %v3247 = vsel %vm3246, %v3238, %v3243
      %v3248 = vrsqrt.pop %v2481
      %v3249 = vmul.f32 %v3248, %v2481
      %v3250 = vmul.f32 %v3249, %v3248
      %v3251 = vmul.f32 0.5, %v3250
      %v3252 = vsub.f32 1.5, %v3251
      %v3253 = vmul.f32 %v3248, %v3252
      %vm3254 = vweird.f32 %v2481
      %vm3255 = vweird.f32 %v3248
      %vm3256 = vmor %vm3254, %vm3255
      %v3257 = vsel %vm3256, %v3248, %v3253
      %v3258 = vrsqrt.pop %v2482
      %v3259 = vmul.f32 %v3258, %v2482
      %v3260 = vmul.f32 %v3259, %v3258
      %v3261 = vmul.f32 0.5, %v3260
      %v3262 = vsub.f32 1.5, %v3261
      %v3263 = vmul.f32 %v3258, %v3262
      %vm3264 = vweird.f32 %v2482
      %vm3265 = vweird.f32 %v3258
      %vm3266 = vmor %vm3264, %vm3265
      %v3267 = vsel %vm3266, %v3258, %v3263
      %v3268 = vrsqrt.pop %v2483
      %v3269 = vmul.f32 %v3268, %v2483
      %v3270 = vmul.f32 %v3269, %v3268
      %v3271 = vmul.f32 0.5, %v3270
      %v3272 = vsub.f32 1.5, %v3271
      %v3273 = vmul.f32 %v3268, %v3272
      %vm3274 = vweird.f32 %v2483
      %vm3275 = vweird.f32 %v3268
      %vm3276 = vmor %vm3274, %vm3275
      %v3277 = vsel %vm3276, %v3268, %v3273
      %v3278 = vrsqrt.pop %v2484
      %v3279 = vmul.f32 %v3278, %v2484
      %v3280 = vmul.f32 %v3279, %v3278
      %v3281 = vmul.f32 0.5, %v3280
      %v3282 = vsub.f32 1.5, %v3281
      %v3283 = vmul.f32 %v3278, %v3282
      %vm3284 = vweird.f32 %v2484
      %vm3285 = vweird.f32 %v3278
      %vm3286 = vmor %vm3284, %vm3285
      %v3287 = vsel %vm3286, %v3278, %v3283
      %v3288 = vrsqrt.pop %v2485
      %v3289 = vmul.f32 %v3288, %v2485
      %v3290 = vmul.f32 %v3289, %v3288
      %v3291 = vmul.f32 0.5, %v3290
      %v3292 = vsub.f32 1.5, %v3291
      %v3293 = vmul.f32 %v3288, %v3292
      %vm3294 = vweird.f32 %v2485
      %vm3295 = vweird.f32 %v3288
      %vm3296 = vmor %vm3294, %vm3295
      %v3297 = vsel %vm3296, %v3288, %v3293
      %v3298 = vrsqrt.pop %v2486
      %v3299 = vmul.f32 %v3298, %v2486
      %v3300 = vmul.f32 %v3299, %v3298
      %v3301 = vmul.f32 0.5, %v3300
      %v3302 = vsub.f32 1.5, %v3301
      %v3303 = vmul.f32 %v3298, %v3302
      %vm3304 = vweird.f32 %v2486
      %vm3305 = vweird.f32 %v3298
      %vm3306 = vmor %vm3304, %vm3305
      %v3307 = vsel %vm3306, %v3298, %v3303
      %v3308 = vrsqrt.pop %v2487
      %v3309 = vmul.f32 %v3308, %v2487
      %v3310 = vmul.f32 %v3309, %v3308
      %v3311 = vmul.f32 0.5, %v3310
      %v3312 = vsub.f32 1.5, %v3311
      %v3313 = vmul.f32 %v3308, %v3312
      %vm3314 = vweird.f32 %v2487
      %vm3315 = vweird.f32 %v3308
      %vm3316 = vmor %vm3314, %vm3315
      %v3317 = vsel %vm3316, %v3308, %v3313
      %v3318 = vrsqrt.pop %v2488
      %v3319 = vmul.f32 %v3318, %v2488
      %v3320 = vmul.f32 %v3319, %v3318
      %v3321 = vmul.f32 0.5, %v3320
      %v3322 = vsub.f32 1.5, %v3321
      %v3323 = vmul.f32 %v3318, %v3322
      %vm3324 = vweird.f32 %v2488
      %vm3325 = vweird.f32 %v3318
      %vm3326 = vmor %vm3324, %vm3325
      %v3327 = vsel %vm3326, %v3318, %v3323
      %v3328 = vrsqrt.pop %v2489
      %v3329 = vmul.f32 %v3328, %v2489
      %v3330 = vmul.f32 %v3329, %v3328
      %v3331 = vmul.f32 0.5, %v3330
      %v3332 = vsub.f32 1.5, %v3331
      %v3333 = vmul.f32 %v3328, %v3332
      %vm3334 = vweird.f32 %v2489
      %vm3335 = vweird.f32 %v3328
      %vm3336 = vmor %vm3334, %vm3335
      %v3337 = vsel %vm3336, %v3328, %v3333
      %v3338 = vrsqrt.pop %v2490
      %v3339 = vmul.f32 %v3338, %v2490
      %v3340 = vmul.f32 %v3339, %v3338
      %v3341 = vmul.f32 0.5, %v3340
      %v3342 = vsub.f32 1.5, %v3341
      %v3343 = vmul.f32 %v3338, %v3342
      %vm3344 = vweird.f32 %v2490
      %vm3345 = vweird.f32 %v3338
      %vm3346 = vmor %vm3344, %vm3345
      %v3347 = vsel %vm3346, %v3338, %v3343
      %v3348 = vrsqrt.pop %v2491
      %v3349 = vmul.f32 %v3348, %v2491
      %v3350 = vmul.f32 %v3349, %v3348
      %v3351 = vmul.f32 0.5, %v3350
      %v3352 = vsub.f32 1.5, %v3351
      %v3353 = vmul.f32 %v3348, %v3352
      %vm3354 = vweird.f32 %v2491
      %vm3355 = vweird.f32 %v3348
      %vm3356 = vmor %vm3354, %vm3355
      %v3357 = vsel %vm3356, %v3348, %v3353
      %v3358 = vrsqrt.pop %v2492
      %v3359 = vmul.f32 %v3358, %v2492
      %v3360 = vmul.f32 %v3359, %v3358
      %v3361 = vmul.f32 0.5, %v3360
      %v3362 = vsub.f32 1.5, %v3361
      %v3363 = vmul.f32 %v3358, %v3362
      %vm3364 = vweird.f32 %v2492
      %vm3365 = vweird.f32 %v3358
      %vm3366 = vmor %vm3364, %vm3365
      %v3367 = vsel %vm3366, %v3358, %v3363
      %v3368 = vrsqrt.pop %v2493
      %v3369 = vmul.f32 %v3368, %v2493
      %v3370 = vmul.f32 %v3369, %v3368
      %v3371 = vmul.f32 0.5, %v3370
      %v3372 = vsub.f32 1.5, %v3371
      %v3373 = vmul.f32 %v3368, %v3372
      %vm3374 = vweird.f32 %v2493
      %vm3375 = vweird.f32 %v3368
      %vm3376 = vmor %vm3374, %vm3375
      %v3377 = vsel %vm3376, %v3368, %v3373
      %v3378 = vrsqrt.pop %v2494
      %v3379 = vmul.f32 %v3378, %v2494
      %v3380 = vmul.f32 %v3379, %v3378
      %v3381 = vmul.f32 0.5, %v3380
      %v3382 = vsub.f32 1.5, %v3381
      %v3383 = vmul.f32 %v3378, %v3382
      %vm3384 = vweird.f32 %v2494
      %vm3385 = vweird.f32 %v3378
      %vm3386 = vmor %vm3384, %vm3385
      %v3387 = vsel %vm3386, %v3378, %v3383
      %v3388 = vrsqrt.pop %v2495
      %v3389 = vmul.f32 %v3388, %v2495
      %v3390 = vmul.f32 %v3389, %v3388
      %v3391 = vmul.f32 0.5, %v3390
      %v3392 = vsub.f32 1.5, %v3391
      %v3393 = vmul.f32 %v3388, %v3392
      %vm3394 = vweird.f32 %v2495
      %vm3395 = vweird.f32 %v3388
      %vm3396 = vmor %vm3394, %vm3395
      %v3397 = vsel %vm3396, %v3388, %v3393
      %v3398 = vrsqrt.pop %v2496
      %v3399 = vmul.f32 %v3398, %v2496
      %v3400 = vmul.f32 %v3399, %v3398
      %v3401 = vmul.f32 0.5, %v3400
      %v3402 = vsub.f32 1.5, %v3401
      %v3403 = vmul.f32 %v3398, %v3402
      %vm3404 = vweird.f32 %v2496
      %vm3405 = vweird.f32 %v3398
      %vm3406 = vmor %vm3404, %vm3405
      %v3407 = vsel %vm3406, %v3398, %v3403
      %v3408 = vrsqrt.pop %v2497
      %v3409 = vmul.f32 %v3408, %v2497
      %v3410 = vmul.f32 %v3409, %v3408
      %v3411 = vmul.f32 0.5, %v3410
      %v3412 = vsub.f32 1.5, %v3411
      %v3413 = vmul.f32 %v3408, %v3412
      %vm3414 = vweird.f32 %v2497
      %vm3415 = vweird.f32 %v3408
      %vm3416 = vmor %vm3414, %vm3415
      %v3417 = vsel %vm3416, %v3408, %v3413
      %v3418 = vrsqrt.pop %v2498
      %v3419 = vmul.f32 %v3418, %v2498
      %v3420 = vmul.f32 %v3419, %v3418
      %v3421 = vmul.f32 0.5, %v3420
      %v3422 = vsub.f32 1.5, %v3421
      %v3423 = vmul.f32 %v3418, %v3422
      %vm3424 = vweird.f32 %v2498
      %vm3425 = vweird.f32 %v3418
      %vm3426 = vmor %vm3424, %vm3425
      %v3427 = vsel %vm3426, %v3418, %v3423
      %v3428 = vrsqrt.pop %v2499
      %v3429 = vmul.f32 %v3428, %v2499
      %v3430 = vmul.f32 %v3429, %v3428
      %v3431 = vmul.f32 0.5, %v3430
      %v3432 = vsub.f32 1.5, %v3431
      %v3433 = vmul.f32 %v3428, %v3432
      %vm3434 = vweird.f32 %v2499
      %vm3435 = vweird.f32 %v3428
      %vm3436 = vmor %vm3434, %vm3435
      %v3437 = vsel %vm3436, %v3428, %v3433
      %v3438 = vrsqrt.pop %v2500
      %v3439 = vmul.f32 %v3438, %v2500
      %v3440 = vmul.f32 %v3439, %v3438
      %v3441 = vmul.f32 0.5, %v3440
      %v3442 = vsub.f32 1.5, %v3441
      %v3443 = vmul.f32 %v3438, %v3442
      %vm3444 = vweird.f32 %v2500
      %vm3445 = vweird.f32 %v3438
      %vm3446 = vmor %vm3444, %vm3445
      %v3447 = vsel %vm3446, %v3438, %v3443
      %v3448 = vrsqrt.pop %v2501
      %v3449 = vmul.f32 %v3448, %v2501
      %v3450 = vmul.f32 %v3449, %v3448
      %v3451 = vmul.f32 0.5, %v3450
      %v3452 = vsub.f32 1.5, %v3451
      %v3453 = vmul.f32 %v3448, %v3452
      %vm3454 = vweird.f32 %v2501
      %vm3455 = vweird.f32 %v3448
      %vm3456 = vmor %vm3454, %vm3455
      %v3457 = vsel %vm3456, %v3448, %v3453
      %v3458 = vrsqrt.pop %v2502
      %v3459 = vmul.f32 %v3458, %v2502
      %v3460 = vmul.f32 %v3459, %v3458
      %v3461 = vmul.f32 0.5, %v3460
      %v3462 = vsub.f32 1.5, %v3461
      %v3463 = vmul.f32 %v3458, %v3462
      %vm3464 = vweird.f32 %v2502
      %vm3465 = vweird.f32 %v3458
      %vm3466 = vmor %vm3464, %vm3465
      %v3467 = vsel %vm3466, %v3458, %v3463
      %v3468 = vrsqrt.pop %v2503
      %v3469 = vmul.f32 %v3468, %v2503
      %v3470 = vmul.f32 %v3469, %v3468
      %v3471 = vmul.f32 0.5, %v3470
      %v3472 = vsub.f32 1.5, %v3471
      %v3473 = vmul.f32 %v3468, %v3472
      %vm3474 = vweird.f32 %v2503
      %vm3475 = vweird.f32 %v3468
      %vm3476 = vmor %vm3474, %vm3475
      %v3477 = vsel %vm3476, %v3468, %v3473
      %v3478 = vrsqrt.pop %v2504
      %v3479 = vmul.f32 %v3478, %v2504
      %v3480 = vmul.f32 %v3479, %v3478
      %v3481 = vmul.f32 0.5, %v3480
      %v3482 = vsub.f32 1.5, %v3481
      %v3483 = vmul.f32 %v3478, %v3482
      %vm3484 = vweird.f32 %v2504
      %vm3485 = vweird.f32 %v3478
      %vm3486 = vmor %vm3484, %vm3485
      %v3487 = vsel %vm3486, %v3478, %v3483
      %v3488 = vrsqrt.pop %v2505
      %v3489 = vmul.f32 %v3488, %v2505
      %v3490 = vmul.f32 %v3489, %v3488
      %v3491 = vmul.f32 0.5, %v3490
      %v3492 = vsub.f32 1.5, %v3491
      %v3493 = vmul.f32 %v3488, %v3492
      %vm3494 = vweird.f32 %v2505
      %vm3495 = vweird.f32 %v3488
      %vm3496 = vmor %vm3494, %vm3495
      %v3497 = vsel %vm3496, %v3488, %v3493
      %v3498 = vrsqrt.pop %v2506
      %v3499 = vmul.f32 %v3498, %v2506
      %v3500 = vmul.f32 %v3499, %v3498
      %v3501 = vmul.f32 0.5, %v3500
      %v3502 = vsub.f32 1.5, %v3501
      %v3503 = vmul.f32 %v3498, %v3502
      %vm3504 = vweird.f32 %v2506
      %vm3505 = vweird.f32 %v3498
      %vm3506 = vmor %vm3504, %vm3505
      %v3507 = vsel %vm3506, %v3498, %v3503
      %v3508 = vrsqrt.pop %v2507
      %v3509 = vmul.f32 %v3508, %v2507
      %v3510 = vmul.f32 %v3509, %v3508
      %v3511 = vmul.f32 0.5, %v3510
      %v3512 = vsub.f32 1.5, %v3511
      %v3513 = vmul.f32 %v3508, %v3512
      %vm3514 = vweird.f32 %v2507
      %vm3515 = vweird.f32 %v3508
      %vm3516 = vmor %vm3514, %vm3515
      %v3517 = vsel %vm3516, %v3508, %v3513
      %v3518 = vrsqrt.pop %v2508
      %v3519 = vmul.f32 %v3518, %v2508
      %v3520 = vmul.f32 %v3519, %v3518
      %v3521 = vmul.f32 0.5, %v3520
      %v3522 = vsub.f32 1.5, %v3521
      %v3523 = vmul.f32 %v3518, %v3522
      %vm3524 = vweird.f32 %v2508
      %vm3525 = vweird.f32 %v3518
      %vm3526 = vmor %vm3524, %vm3525
      %v3527 = vsel %vm3526, %v3518, %v3523
      %v3528 = vrsqrt.pop %v2509
      %v3529 = vmul.f32 %v3528, %v2509
      %v3530 = vmul.f32 %v3529, %v3528
      %v3531 = vmul.f32 0.5, %v3530
      %v3532 = vsub.f32 1.5, %v3531
      %v3533 = vmul.f32 %v3528, %v3532
      %vm3534 = vweird.f32 %v2509
      %vm3535 = vweird.f32 %v3528
      %vm3536 = vmor %vm3534, %vm3535
      %v3537 = vsel %vm3536, %v3528, %v3533
      %v3538 = vrsqrt.pop %v2510
      %v3539 = vmul.f32 %v3538, %v2510
      %v3540 = vmul.f32 %v3539, %v3538
      %v3541 = vmul.f32 0.5, %v3540
      %v3542 = vsub.f32 1.5, %v3541
      %v3543 = vmul.f32 %v3538, %v3542
      %vm3544 = vweird.f32 %v2510
      %vm3545 = vweird.f32 %v3538
      %vm3546 = vmor %vm3544, %vm3545
      %v3547 = vsel %vm3546, %v3538, %v3543
      %v3548 = vrsqrt.pop %v2511
      %v3549 = vmul.f32 %v3548, %v2511
      %v3550 = vmul.f32 %v3549, %v3548
      %v3551 = vmul.f32 0.5, %v3550
      %v3552 = vsub.f32 1.5, %v3551
      %v3553 = vmul.f32 %v3548, %v3552
      %vm3554 = vweird.f32 %v2511
      %vm3555 = vweird.f32 %v3548
      %vm3556 = vmor %vm3554, %vm3555
      %v3557 = vsel %vm3556, %v3548, %v3553
      %v3558 = vrsqrt.pop %v2512
      %v3559 = vmul.f32 %v3558, %v2512
      %v3560 = vmul.f32 %v3559, %v3558
      %v3561 = vmul.f32 0.5, %v3560
      %v3562 = vsub.f32 1.5, %v3561
      %v3563 = vmul.f32 %v3558, %v3562
      %vm3564 = vweird.f32 %v2512
      %vm3565 = vweird.f32 %v3558
      %vm3566 = vmor %vm3564, %vm3565
      %v3567 = vsel %vm3566, %v3558, %v3563
      %v3568 = vrsqrt.pop %v2513
      %v3569 = vmul.f32 %v3568, %v2513
      %v3570 = vmul.f32 %v3569, %v3568
      %v3571 = vmul.f32 0.5, %v3570
      %v3572 = vsub.f32 1.5, %v3571
      %v3573 = vmul.f32 %v3568, %v3572
      %vm3574 = vweird.f32 %v2513
      %vm3575 = vweird.f32 %v3568
      %vm3576 = vmor %vm3574, %vm3575
      %v3577 = vsel %vm3576, %v3568, %v3573
      %v3578 = vrsqrt.pop %v2514
      %v3579 = vmul.f32 %v3578, %v2514
      %v3580 = vmul.f32 %v3579, %v3578
      %v3581 = vmul.f32 0.5, %v3580
      %v3582 = vsub.f32 1.5, %v3581
      %v3583 = vmul.f32 %v3578, %v3582
      %vm3584 = vweird.f32 %v2514
      %vm3585 = vweird.f32 %v3578
      %vm3586 = vmor %vm3584, %vm3585
      %v3587 = vsel %vm3586, %v3578, %v3583
      %v3588 = vrsqrt.pop %v2515
      %v3589 = vmul.f32 %v3588, %v2515
      %v3590 = vmul.f32 %v3589, %v3588
      %v3591 = vmul.f32 0.5, %v3590
      %v3592 = vsub.f32 1.5, %v3591
      %v3593 = vmul.f32 %v3588, %v3592
      %vm3594 = vweird.f32 %v2515
      %vm3595 = vweird.f32 %v3588
      %vm3596 = vmor %vm3594, %vm3595
      %v3597 = vsel %vm3596, %v3588, %v3593
      %v3598 = vrsqrt.pop %v2516
      %v3599 = vmul.f32 %v3598, %v2516
      %v3600 = vmul.f32 %v3599, %v3598
      %v3601 = vmul.f32 0.5, %v3600
      %v3602 = vsub.f32 1.5, %v3601
      %v3603 = vmul.f32 %v3598, %v3602
      %vm3604 = vweird.f32 %v2516
      %vm3605 = vweird.f32 %v3598
      %vm3606 = vmor %vm3604, %vm3605
      %v3607 = vsel %vm3606, %v3598, %v3603
      %v3608 = vrsqrt.pop %v2517
      %v3609 = vmul.f32 %v3608, %v2517
      %v3610 = vmul.f32 %v3609, %v3608
      %v3611 = vmul.f32 0.5, %v3610
      %v3612 = vsub.f32 1.5, %v3611
      %v3613 = vmul.f32 %v3608, %v3612
      %vm3614 = vweird.f32 %v2517
      %vm3615 = vweird.f32 %v3608
      %vm3616 = vmor %vm3614, %vm3615
      %v3617 = vsel %vm3616, %v3608, %v3613
      %v3618 = vrsqrt.pop %v2518
      %v3619 = vmul.f32 %v3618, %v2518
      %v3620 = vmul.f32 %v3619, %v3618
      %v3621 = vmul.f32 0.5, %v3620
      %v3622 = vsub.f32 1.5, %v3621
      %v3623 = vmul.f32 %v3618, %v3622
      %vm3624 = vweird.f32 %v2518
      %vm3625 = vweird.f32 %v3618
      %vm3626 = vmor %vm3624, %vm3625
      %v3627 = vsel %vm3626, %v3618, %v3623
      %v3628 = vrsqrt.pop %v2519
      %v3629 = vmul.f32 %v3628, %v2519
      %v3630 = vmul.f32 %v3629, %v3628
      %v3631 = vmul.f32 0.5, %v3630
      %v3632 = vsub.f32 1.5, %v3631
      %v3633 = vmul.f32 %v3628, %v3632
      %vm3634 = vweird.f32 %v2519
      %vm3635 = vweird.f32 %v3628
      %vm3636 = vmor %vm3634, %vm3635
      %v3637 = vsel %vm3636, %v3628, %v3633
      %v3638 = vrsqrt.pop %v2520
      %v3639 = vmul.f32 %v3638, %v2520
      %v3640 = vmul.f32 %v3639, %v3638
      %v3641 = vmul.f32 0.5, %v3640
      %v3642 = vsub.f32 1.5, %v3641
      %v3643 = vmul.f32 %v3638, %v3642
      %vm3644 = vweird.f32 %v2520
      %vm3645 = vweird.f32 %v3638
      %vm3646 = vmor %vm3644, %vm3645
      %v3647 = vsel %vm3646, %v3638, %v3643
      %v3648 = vrsqrt.pop %v2521
      %v3649 = vmul.f32 %v3648, %v2521
      %v3650 = vmul.f32 %v3649, %v3648
      %v3651 = vmul.f32 0.5, %v3650
      %v3652 = vsub.f32 1.5, %v3651
      %v3653 = vmul.f32 %v3648, %v3652
      %vm3654 = vweird.f32 %v2521
      %vm3655 = vweird.f32 %v3648
      %vm3656 = vmor %vm3654, %vm3655
      %v3657 = vsel %vm3656, %v3648, %v3653
      %v3658 = vrsqrt.pop %v2522
      %v3659 = vmul.f32 %v3658, %v2522
      %v3660 = vmul.f32 %v3659, %v3658
      %v3661 = vmul.f32 0.5, %v3660
      %v3662 = vsub.f32 1.5, %v3661
      %v3663 = vmul.f32 %v3658, %v3662
      %vm3664 = vweird.f32 %v2522
      %vm3665 = vweird.f32 %v3658
      %vm3666 = vmor %vm3664, %vm3665
      %v3667 = vsel %vm3666, %v3658, %v3663
      %v3668 = vrsqrt.pop %v2523
      %v3669 = vmul.f32 %v3668, %v2523
      %v3670 = vmul.f32 %v3669, %v3668
      %v3671 = vmul.f32 0.5, %v3670
      %v3672 = vsub.f32 1.5, %v3671
      %v3673 = vmul.f32 %v3668, %v3672
      %vm3674 = vweird.f32 %v2523
      %vm3675 = vweird.f32 %v3668
      %vm3676 = vmor %vm3674, %vm3675
      %v3677 = vsel %vm3676, %v3668, %v3673
      %v3678 = vrsqrt.pop %v2524
      %v3679 = vmul.f32 %v3678, %v2524
      %v3680 = vmul.f32 %v3679, %v3678
      %v3681 = vmul.f32 0.5, %v3680
      %v3682 = vsub.f32 1.5, %v3681
      %v3683 = vmul.f32 %v3678, %v3682
      %vm3684 = vweird.f32 %v2524
      %vm3685 = vweird.f32 %v3678
      %vm3686 = vmor %vm3684, %vm3685
      %v3687 = vsel %vm3686, %v3678, %v3683
      %v3688 = vrsqrt.pop %v2525
      %v3689 = vmul.f32 %v3688, %v2525
      %v3690 = vmul.f32 %v3689, %v3688
      %v3691 = vmul.f32 0.5, %v3690
      %v3692 = vsub.f32 1.5, %v3691
      %v3693 = vmul.f32 %v3688, %v3692
      %vm3694 = vweird.f32 %v2525
      %vm3695 = vweird.f32 %v3688
      %vm3696 = vmor %vm3694, %vm3695
      %v3697 = vsel %vm3696, %v3688, %v3693
      %v3698 = vrsqrt.pop %v2526
      %v3699 = vmul.f32 %v3698, %v2526
      %v3700 = vmul.f32 %v3699, %v3698
      %v3701 = vmul.f32 0.5, %v3700
      %v3702 = vsub.f32 1.5, %v3701
      %v3703 = vmul.f32 %v3698, %v3702
      %vm3704 = vweird.f32 %v2526
      %vm3705 = vweird.f32 %v3698
      %vm3706 = vmor %vm3704, %vm3705
      %v3707 = vsel %vm3706, %v3698, %v3703
      %v3708 = vrsqrt.pop %v2527
      %v3709 = vmul.f32 %v3708, %v2527
      %v3710 = vmul.f32 %v3709, %v3708
      %v3711 = vmul.f32 0.5, %v3710
      %v3712 = vsub.f32 1.5, %v3711
      %v3713 = vmul.f32 %v3708, %v3712
      %vm3714 = vweird.f32 %v2527
      %vm3715 = vweird.f32 %v3708
      %vm3716 = vmor %vm3714, %vm3715
      %v3717 = vsel %vm3716, %v3708, %v3713
      %v3718 = vrsqrt.pop %v2528
      %v3719 = vmul.f32 %v3718, %v2528
      %v3720 = vmul.f32 %v3719, %v3718
      %v3721 = vmul.f32 0.5, %v3720
      %v3722 = vsub.f32 1.5, %v3721
      %v3723 = vmul.f32 %v3718, %v3722
      %vm3724 = vweird.f32 %v2528
      %vm3725 = vweird.f32 %v3718
      %vm3726 = vmor %vm3724, %vm3725
      %v3727 = vsel %vm3726, %v3718, %v3723
      %v3728 = vrsqrt.pop %v2529
      %v3729 = vmul.f32 %v3728, %v2529
      %v3730 = vmul.f32 %v3729, %v3728
      %v3731 = vmul.f32 0.5, %v3730
      %v3732 = vsub.f32 1.5, %v3731
      %v3733 = vmul.f32 %v3728, %v3732
      %vm3734 = vweird.f32 %v2529
      %vm3735 = vweird.f32 %v3728
      %vm3736 = vmor %vm3734, %vm3735
      %v3737 = vsel %vm3736, %v3728, %v3733
      %v3738 = vrsqrt.pop %v2530
      %v3739 = vmul.f32 %v3738, %v2530
      %v3740 = vmul.f32 %v3739, %v3738
      %v3741 = vmul.f32 0.5, %v3740
      %v3742 = vsub.f32 1.5, %v3741
      %v3743 = vmul.f32 %v3738, %v3742
      %vm3744 = vweird.f32 %v2530
      %vm3745 = vweird.f32 %v3738
      %vm3746 = vmor %vm3744, %vm3745
      %v3747 = vsel %vm3746, %v3738, %v3743
      %v3748 = vrsqrt.pop %v2531
      %v3749 = vmul.f32 %v3748, %v2531
      %v3750 = vmul.f32 %v3749, %v3748
      %v3751 = vmul.f32 0.5, %v3750
      %v3752 = vsub.f32 1.5, %v3751
      %v3753 = vmul.f32 %v3748, %v3752
      %vm3754 = vweird.f32 %v2531
      %vm3755 = vweird.f32 %v3748
      %vm3756 = vmor %vm3754, %vm3755
      %v3757 = vsel %vm3756, %v3748, %v3753
      %v3758 = vrsqrt.pop %v2532
      %v3759 = vmul.f32 %v3758, %v2532
      %v3760 = vmul.f32 %v3759, %v3758
      %v3761 = vmul.f32 0.5, %v3760
      %v3762 = vsub.f32 1.5, %v3761
      %v3763 = vmul.f32 %v3758, %v3762
      %vm3764 = vweird.f32 %v2532
      %vm3765 = vweird.f32 %v3758
      %vm3766 = vmor %vm3764, %vm3765
      %v3767 = vsel %vm3766, %v3758, %v3763
      %v3768 = vrsqrt.pop %v2533
      %v3769 = vmul.f32 %v3768, %v2533
      %v3770 = vmul.f32 %v3769, %v3768
      %v3771 = vmul.f32 0.5, %v3770
      %v3772 = vsub.f32 1.5, %v3771
      %v3773 = vmul.f32 %v3768, %v3772
      %vm3774 = vweird.f32 %v2533
      %vm3775 = vweird.f32 %v3768
      %vm3776 = vmor %vm3774, %vm3775
      %v3777 = vsel %vm3776, %v3768, %v3773
      %v3778 = vrsqrt.pop %v2534
      %v3779 = vmul.f32 %v3778, %v2534
      %v3780 = vmul.f32 %v3779, %v3778
      %v3781 = vmul.f32 0.5, %v3780
      %v3782 = vsub.f32 1.5, %v3781
      %v3783 = vmul.f32 %v3778, %v3782
      %vm3784 = vweird.f32 %v2534
      %vm3785 = vweird.f32 %v3778
      %vm3786 = vmor %vm3784, %vm3785
      %v3787 = vsel %vm3786, %v3778, %v3783
      %v3788 = vrsqrt.pop %v2535
      %v3789 = vmul.f32 %v3788, %v2535
      %v3790 = vmul.f32 %v3789, %v3788
      %v3791 = vmul.f32 0.5, %v3790
      %v3792 = vsub.f32 1.5, %v3791
      %v3793 = vmul.f32 %v3788, %v3792
      %vm3794 = vweird.f32 %v2535
      %vm3795 = vweird.f32 %v3788
      %vm3796 = vmor %vm3794, %vm3795
      %v3797 = vsel %vm3796, %v3788, %v3793
      %v3798 = vrsqrt.pop %v2536
      %v3799 = vmul.f32 %v3798, %v2536
      %v3800 = vmul.f32 %v3799, %v3798
      %v3801 = vmul.f32 0.5, %v3800
      %v3802 = vsub.f32 1.5, %v3801
      %v3803 = vmul.f32 %v3798, %v3802
      %vm3804 = vweird.f32 %v2536
      %vm3805 = vweird.f32 %v3798
      %vm3806 = vmor %vm3804, %vm3805
      %v3807 = vsel %vm3806, %v3798, %v3803
      %v3808 = vrsqrt.pop %v2537
      %v3809 = vmul.f32 %v3808, %v2537
      %v3810 = vmul.f32 %v3809, %v3808
      %v3811 = vmul.f32 0.5, %v3810
      %v3812 = vsub.f32 1.5, %v3811
      %v3813 = vmul.f32 %v3808, %v3812
      %vm3814 = vweird.f32 %v2537
      %vm3815 = vweird.f32 %v3808
      %vm3816 = vmor %vm3814, %vm3815
      %v3817 = vsel %vm3816, %v3808, %v3813
      %v3818 = vmul.f32 %v2282, %v2547
      %v3819 = vmul.f32 %v2283, %v2557
      %v3820 = vmul.f32 %v2284, %v2567
      %v3821 = vmul.f32 %v2285, %v2577
      %v3822 = vmul.f32 %v2286, %v2587
      %v3823 = vmul.f32 %v2287, %v2597
      %v3824 = vmul.f32 %v2288, %v2607
      %v3825 = vmul.f32 %v2289, %v2617
      %v3826 = vmul.f32 %v2290, %v2627
      %v3827 = vmul.f32 %v2291, %v2637
      %v3828 = vmul.f32 %v2292, %v2647
      %v3829 = vmul.f32 %v2293, %v2657
      %v3830 = vmul.f32 %v2294, %v2667
      %v3831 = vmul.f32 %v2295, %v2677
      %v3832 = vmul.f32 %v2296, %v2687
      %v3833 = vmul.f32 %v2297, %v2697
      %v3834 = vmul.f32 %v2298, %v2707
      %v3835 = vmul.f32 %v2299, %v2717
      %v3836 = vmul.f32 %v2300, %v2727
      %v3837 = vmul.f32 %v2301, %v2737
      %v3838 = vmul.f32 %v2302, %v2747
      %v3839 = vmul.f32 %v2303, %v2757
      %v3840 = vmul.f32 %v2304, %v2767
      %v3841 = vmul.f32 %v2305, %v2777
      %v3842 = vmul.f32 %v2306, %v2787
      %v3843 = vmul.f32 %v2307, %v2797
      %v3844 = vmul.f32 %v2308, %v2807
      %v3845 = vmul.f32 %v2309, %v2817
      %v3846 = vmul.f32 %v2310, %v2827
      %v3847 = vmul.f32 %v2311, %v2837
      %v3848 = vmul.f32 %v2312, %v2847
      %v3849 = vmul.f32 %v2313, %v2857
      %v3850 = vmul.f32 %v2314, %v2867
      %v3851 = vmul.f32 %v2315, %v2877
      %v3852 = vmul.f32 %v2316, %v2887
      %v3853 = vmul.f32 %v2317, %v2897
      %v3854 = vmul.f32 %v2318, %v2907
      %v3855 = vmul.f32 %v2319, %v2917
      %v3856 = vmul.f32 %v2320, %v2927
      %v3857 = vmul.f32 %v2321, %v2937
      %v3858 = vmul.f32 %v2322, %v2947
      %v3859 = vmul.f32 %v2323, %v2957
      %v3860 = vmul.f32 %v2324, %v2967
      %v3861 = vmul.f32 %v2325, %v2977
      %v3862 = vmul.f32 %v2326, %v2987
      %v3863 = vmul.f32 %v2327, %v2997
      %v3864 = vmul.f32 %v2328, %v3007
      %v3865 = vmul.f32 %v2329, %v3017
      %v3866 = vmul.f32 %v2330, %v3027
      %v3867 = vmul.f32 %v2331, %v3037
      %v3868 = vmul.f32 %v2332, %v3047
      %v3869 = vmul.f32 %v2333, %v3057
      %v3870 = vmul.f32 %v2334, %v3067
      %v3871 = vmul.f32 %v2335, %v3077
      %v3872 = vmul.f32 %v2336, %v3087
      %v3873 = vmul.f32 %v2337, %v3097
      %v3874 = vmul.f32 %v2338, %v3107
      %v3875 = vmul.f32 %v2339, %v3117
      %v3876 = vmul.f32 %v2340, %v3127
      %v3877 = vmul.f32 %v2341, %v3137
      %v3878 = vmul.f32 %v2342, %v3147
      %v3879 = vmul.f32 %v2343, %v3157
      %v3880 = vmul.f32 %v2344, %v3167
      %v3881 = vmul.f32 %v2345, %v3177
      %v3882 = vmul.f32 %v2346, %v3187
      %v3883 = vmul.f32 %v2347, %v3197
      %v3884 = vmul.f32 %v2348, %v3207
      %v3885 = vmul.f32 %v2349, %v3217
      %v3886 = vmul.f32 %v2350, %v3227
      %v3887 = vmul.f32 %v2351, %v3237
      %v3888 = vmul.f32 %v2352, %v3247
      %v3889 = vmul.f32 %v2353, %v3257
      %v3890 = vmul.f32 %v2354, %v3267
      %v3891 = vmul.f32 %v2355, %v3277
      %v3892 = vmul.f32 %v2356, %v3287
      %v3893 = vmul.f32 %v2357, %v3297
      %v3894 = vmul.f32 %v2358, %v3307
      %v3895 = vmul.f32 %v2359, %v3317
      %v3896 = vmul.f32 %v2360, %v3327
      %v3897 = vmul.f32 %v2361, %v3337
      %v3898 = vmul.f32 %v2362, %v3347
      %v3899 = vmul.f32 %v2363, %v3357
      %v3900 = vmul.f32 %v2364, %v3367
      %v3901 = vmul.f32 %v2365, %v3377
      %v3902 = vmul.f32 %v2366, %v3387
      %v3903 = vmul.f32 %v2367, %v3397
      %v3904 = vmul.f32 %v2368, %v3407
      %v3905 = vmul.f32 %v2369, %v3417
      %v3906 = vmul.f32 %v2370, %v3427
      %v3907 = vmul.f32 %v2371, %v3437
      %v3908 = vmul.f32 %v2372, %v3447
      %v3909 = vmul.f32 %v2373, %v3457
      %v3910 = vmul.f32 %v2374, %v3467
      %v3911 = vmul.f32 %v2375, %v3477
      %v3912 = vmul.f32 %v2376, %v3487
      %v3913 = vmul.f32 %v2377, %v3497
      %v3914 = vmul.f32 %v2378, %v3507
      %v3915 = vmul.f32 %v2379, %v3517
      %v3916 = vmul.f32 %v2380, %v3527
      %v3917 = vmul.f32 %v2381, %v3537
      %v3918 = vmul.f32 %v2382, %v3547
      %v3919 = vmul.f32 %v2383, %v3557
      %v3920 = vmul.f32 %v2384, %v3567
      %v3921 = vmul.f32 %v2385, %v3577
      %v3922 = vmul.f32 %v2386, %v3587
      %v3923 = vmul.f32 %v2387, %v3597
      %v3924 = vmul.f32 %v2388, %v3607
      %v3925 = vmul.f32 %v2389, %v3617
      %v3926 = vmul.f32 %v2390, %v3627
      %v3927 = vmul.f32 %v2391, %v3637
      %v3928 = vmul.f32 %v2392, %v3647
      %v3929 = vmul.f32 %v2393, %v3657
      %v3930 = vmul.f32 %v2394, %v3667
      %v3931 = vmul.f32 %v2395, %v3677
      %v3932 = vmul.f32 %v2396, %v3687
      %v3933 = vmul.f32 %v2397, %v3697
      %v3934 = vmul.f32 %v2398, %v3707
      %v3935 = vmul.f32 %v2399, %v3717
      %v3936 = vmul.f32 %v2400, %v3727
      %v3937 = vmul.f32 %v2401, %v3737
      %v3938 = vmul.f32 %v2402, %v3747
      %v3939 = vmul.f32 %v2403, %v3757
      %v3940 = vmul.f32 %v2404, %v3767
      %v3941 = vmul.f32 %v2405, %v3777
      %v3942 = vmul.f32 %v2406, %v3787
      %v3943 = vmul.f32 %v2407, %v3797
      %v3944 = vmul.f32 %v2408, %v3807
      %v3945 = vmul.f32 %v2409, %v3817
      %v3946 = vld [vmem:[%s3] sm:$0xff]
      %v3947 = vld [vmem:[%s3 + $0x8] sm:$0xff]
      %v3948 = vld [vmem:[%s3 + $0x10] sm:$0xff]
      %v3949 = vld [vmem:[%s3 + $0x18] sm:$0xff]
      %v3950 = vld [vmem:[%s3 + $0x20] sm:$0xff]
      %v3951 = vld [vmem:[%s3 + $0x28] sm:$0xff]
      %v3952 = vld [vmem:[%s3 + $0x30] sm:$0xff]
      %v3953 = vld [vmem:[%s3 + $0x38] sm:$0xff]
      %v3954 = vld [vmem:[%s3 + $0x40] sm:$0xff]
      %v3955 = vld [vmem:[%s3 + $0x48] sm:$0xff]
      %v3956 = vld [vmem:[%s3 + $0x50] sm:$0xff]
      %v3957 = vld [vmem:[%s3 + $0x58] sm:$0xff]
      %v3958 = vld [vmem:[%s3 + $0x60] sm:$0xff]
      %v3959 = vld [vmem:[%s3 + $0x68] sm:$0xff]
      %v3960 = vld [vmem:[%s3 + $0x70] sm:$0xff]
      %v3961 = vld [vmem:[%s3 + $0x78] sm:$0xff]
      %v3962 = vld [vmem:[%s3 + $0x80] sm:$0xff]
      %v3963 = vld [vmem:[%s3 + $0x88] sm:$0xff]
      %v3964 = vld [vmem:[%s3 + $0x90] sm:$0xff]
      %v3965 = vld [vmem:[%s3 + $0x98] sm:$0xff]
      %v3966 = vld [vmem:[%s3 + $0xa0] sm:$0xff]
      %v3967 = vld [vmem:[%s3 + $0xa8] sm:$0xff]
      %v3968 = vld [vmem:[%s3 + $0xb0] sm:$0xff]
      %v3969 = vld [vmem:[%s3 + $0xb8] sm:$0xff]
      %v3970 = vld [vmem:[%s3 + $0xc0] sm:$0xff]
      %v3971 = vld [vmem:[%s3 + $0xc8] sm:$0xff]
      %v3972 = vld [vmem:[%s3 + $0xd0] sm:$0xff]
      %v3973 = vld [vmem:[%s3 + $0xd8] sm:$0xff]
      %v3974 = vld [vmem:[%s3 + $0xe0] sm:$0xff]
      %v3975 = vld [vmem:[%s3 + $0xe8] sm:$0xff]
      %v3976 = vld [vmem:[%s3 + $0xf0] sm:$0xff]
      %v3977 = vld [vmem:[%s3 + $0xf8] sm:$0xff]
      %v3978 = vld [vmem:[%s3 + $0x100] sm:$0xff]
      %v3979 = vld [vmem:[%s3 + $0x108] sm:$0xff]
      %v3980 = vld [vmem:[%s3 + $0x110] sm:$0xff]
      %v3981 = vld [vmem:[%s3 + $0x118] sm:$0xff]
      %v3982 = vld [vmem:[%s3 + $0x120] sm:$0xff]
      %v3983 = vld [vmem:[%s3 + $0x128] sm:$0xff]
      %v3984 = vld [vmem:[%s3 + $0x130] sm:$0xff]
      %v3985 = vld [vmem:[%s3 + $0x138] sm:$0xff]
      %v3986 = vld [vmem:[%s3 + $0x140] sm:$0xff]
      %v3987 = vld [vmem:[%s3 + $0x148] sm:$0xff]
      %v3988 = vld [vmem:[%s3 + $0x150] sm:$0xff]
      %v3989 = vld [vmem:[%s3 + $0x158] sm:$0xff]
      %v3990 = vld [vmem:[%s3 + $0x160] sm:$0xff]
      %v3991 = vld [vmem:[%s3 + $0x168] sm:$0xff]
      %v3992 = vld [vmem:[%s3 + $0x170] sm:$0xff]
      %v3993 = vld [vmem:[%s3 + $0x178] sm:$0xff]
      %v3994 = vld [vmem:[%s3 + $0x180] sm:$0xff]
      %v3995 = vld [vmem:[%s3 + $0x188] sm:$0xff]
      %v3996 = vld [vmem:[%s3 + $0x190] sm:$0xff]
      %v3997 = vld [vmem:[%s3 + $0x198] sm:$0xff]
      %v3998 = vld [vmem:[%s3 + $0x1a0] sm:$0xff]
      %v3999 = vld [vmem:[%s3 + $0x1a8] sm:$0xff]
      %v4000 = vld [vmem:[%s3 + $0x1b0] sm:$0xff]
      %v4001 = vld [vmem:[%s3 + $0x1b8] sm:$0xff]
      %v4002 = vld [vmem:[%s3 + $0x1c0] sm:$0xff]
      %v4003 = vld [vmem:[%s3 + $0x1c8] sm:$0xff]
      %v4004 = vld [vmem:[%s3 + $0x1d0] sm:$0xff]
      %v4005 = vld [vmem:[%s3 + $0x1d8] sm:$0xff]
      %v4006 = vld [vmem:[%s3 + $0x1e0] sm:$0xff]
      %v4007 = vld [vmem:[%s3 + $0x1e8] sm:$0xff]
      %v4008 = vld [vmem:[%s3 + $0x1f0] sm:$0xff]
      %v4009 = vld [vmem:[%s3 + $0x1f8] sm:$0xff]
      %v4010 = vld [vmem:[%s3 + $0x200] sm:$0xff]
      %v4011 = vld [vmem:[%s3 + $0x208] sm:$0xff]
      %v4012 = vld [vmem:[%s3 + $0x210] sm:$0xff]
      %v4013 = vld [vmem:[%s3 + $0x218] sm:$0xff]
      %v4014 = vld [vmem:[%s3 + $0x220] sm:$0xff]
      %v4015 = vld [vmem:[%s3 + $0x228] sm:$0xff]
      %v4016 = vld [vmem:[%s3 + $0x230] sm:$0xff]
      %v4017 = vld [vmem:[%s3 + $0x238] sm:$0xff]
      %v4018 = vld [vmem:[%s3 + $0x240] sm:$0xff]
      %v4019 = vld [vmem:[%s3 + $0x248] sm:$0xff]
      %v4020 = vld [vmem:[%s3 + $0x250] sm:$0xff]
      %v4021 = vld [vmem:[%s3 + $0x258] sm:$0xff]
      %v4022 = vld [vmem:[%s3 + $0x260] sm:$0xff]
      %v4023 = vld [vmem:[%s3 + $0x268] sm:$0xff]
      %v4024 = vld [vmem:[%s3 + $0x270] sm:$0xff]
      %v4025 = vld [vmem:[%s3 + $0x278] sm:$0xff]
      %v4026 = vld [vmem:[%s3 + $0x280] sm:$0xff]
      %v4027 = vld [vmem:[%s3 + $0x288] sm:$0xff]
      %v4028 = vld [vmem:[%s3 + $0x290] sm:$0xff]
      %v4029 = vld [vmem:[%s3 + $0x298] sm:$0xff]
      %v4030 = vld [vmem:[%s3 + $0x2a0] sm:$0xff]
      %v4031 = vld [vmem:[%s3 + $0x2a8] sm:$0xff]
      %v4032 = vld [vmem:[%s3 + $0x2b0] sm:$0xff]
      %v4033 = vld [vmem:[%s3 + $0x2b8] sm:$0xff]
      %v4034 = vld [vmem:[%s3 + $0x2c0] sm:$0xff]
      %v4035 = vld [vmem:[%s3 + $0x2c8] sm:$0xff]
      %v4036 = vld [vmem:[%s3 + $0x2d0] sm:$0xff]
      %v4037 = vld [vmem:[%s3 + $0x2d8] sm:$0xff]
      %v4038 = vld [vmem:[%s3 + $0x2e0] sm:$0xff]
      %v4039 = vld [vmem:[%s3 + $0x2e8] sm:$0xff]
      %v4040 = vld [vmem:[%s3 + $0x2f0] sm:$0xff]
      %v4041 = vld [vmem:[%s3 + $0x2f8] sm:$0xff]
      %v4042 = vld [vmem:[%s3 + $0x300] sm:$0xff]
      %v4043 = vld [vmem:[%s3 + $0x308] sm:$0xff]
      %v4044 = vld [vmem:[%s3 + $0x310] sm:$0xff]
      %v4045 = vld [vmem:[%s3 + $0x318] sm:$0xff]
      %v4046 = vld [vmem:[%s3 + $0x320] sm:$0xff]
      %v4047 = vld [vmem:[%s3 + $0x328] sm:$0xff]
      %v4048 = vld [vmem:[%s3 + $0x330] sm:$0xff]
      %v4049 = vld [vmem:[%s3 + $0x338] sm:$0xff]
      %v4050 = vld [vmem:[%s3 + $0x340] sm:$0xff]
      %v4051 = vld [vmem:[%s3 + $0x348] sm:$0xff]
      %v4052 = vld [vmem:[%s3 + $0x350] sm:$0xff]
      %v4053 = vld [vmem:[%s3 + $0x358] sm:$0xff]
      %v4054 = vld [vmem:[%s3 + $0x360] sm:$0xff]
      %v4055 = vld [vmem:[%s3 + $0x368] sm:$0xff]
      %v4056 = vld [vmem:[%s3 + $0x370] sm:$0xff]
      %v4057 = vld [vmem:[%s3 + $0x378] sm:$0xff]
      %v4058 = vld [vmem:[%s3 + $0x380] sm:$0xff]
      %v4059 = vld [vmem:[%s3 + $0x388] sm:$0xff]
      %v4060 = vld [vmem:[%s3 + $0x390] sm:$0xff]
      %v4061 = vld [vmem:[%s3 + $0x398] sm:$0xff]
      %v4062 = vld [vmem:[%s3 + $0x3a0] sm:$0xff]
      %v4063 = vld [vmem:[%s3 + $0x3a8] sm:$0xff]
      %v4064 = vld [vmem:[%s3 + $0x3b0] sm:$0xff]
      %v4065 = vld [vmem:[%s3 + $0x3b8] sm:$0xff]
      %v4066 = vld [vmem:[%s3 + $0x3c0] sm:$0xff]
      %v4067 = vld [vmem:[%s3 + $0x3c8] sm:$0xff]
      %v4068 = vld [vmem:[%s3 + $0x3d0] sm:$0xff]
      %v4069 = vld [vmem:[%s3 + $0x3d8] sm:$0xff]
      %v4070 = vld [vmem:[%s3 + $0x3e0] sm:$0xff]
      %v4071 = vld [vmem:[%s3 + $0x3e8] sm:$0xff]
      %v4072 = vld [vmem:[%s3 + $0x3f0] sm:$0xff]
      %v4073 = vld [vmem:[%s3 + $0x3f8] sm:$0xff]
      %v4074 = vmul.f32 %v1770, %v3818
      %v4075 = vmul.f32 %v1771, %v3819
      %v4076 = vmul.f32 %v1772, %v3820
      %v4077 = vmul.f32 %v1773, %v3821
      %v4078 = vmul.f32 %v1774, %v3822
      %v4079 = vmul.f32 %v1775, %v3823
      %v4080 = vmul.f32 %v1776, %v3824
      %v4081 = vmul.f32 %v1777, %v3825
      %v4082 = vmul.f32 %v1778, %v3826
      %v4083 = vmul.f32 %v1779, %v3827
      %v4084 = vmul.f32 %v1780, %v3828
      %v4085 = vmul.f32 %v1781, %v3829
      %v4086 = vmul.f32 %v1782, %v3830
      %v4087 = vmul.f32 %v1783, %v3831
      %v4088 = vmul.f32 %v1784, %v3832
      %v4089 = vmul.f32 %v1785, %v3833
      %v4090 = vmul.f32 %v1786, %v3834
      %v4091 = vmul.f32 %v1787, %v3835
      %v4092 = vmul.f32 %v1788, %v3836
      %v4093 = vmul.f32 %v1789, %v3837
      %v4094 = vmul.f32 %v1790, %v3838
      %v4095 = vmul.f32 %v1791, %v3839
      %v4096 = vmul.f32 %v1792, %v3840
      %v4097 = vmul.f32 %v1793, %v3841
      %v4098 = vmul.f32 %v1794, %v3842
      %v4099 = vmul.f32 %v1795, %v3843
      %v4100 = vmul.f32 %v1796, %v3844
      %v4101 = vmul.f32 %v1797, %v3845
      %v4102 = vmul.f32 %v1798, %v3846
      %v4103 = vmul.f32 %v1799, %v3847
      %v4104 = vmul.f32 %v1800, %v3848
      %v4105 = vmul.f32 %v1801, %v3849
      %v4106 = vmul.f32 %v1802, %v3850
      %v4107 = vmul.f32 %v1803, %v3851
      %v4108 = vmul.f32 %v1804, %v3852
      %v4109 = vmul.f32 %v1805, %v3853
      %v4110 = vmul.f32 %v1806, %v3854
      %v4111 = vmul.f32 %v1807, %v3855
      %v4112 = vmul.f32 %v1808, %v3856
      %v4113 = vmul.f32 %v1809, %v3857
      %v4114 = vmul.f32 %v1810, %v3858
      %v4115 = vmul.f32 %v1811, %v3859
      %v4116 = vmul.f32 %v1812, %v3860
      %v4117 = vmul.f32 %v1813, %v3861
      %v4118 = vmul.f32 %v1814, %v3862
      %v4119 = vmul.f32 %v1815, %v3863
      %v4120 = vmul.f32 %v1816, %v3864
      %v4121 = vmul.f32 %v1817, %v3865
      %v4122 = vmul.f32 %v1818, %v3866
      %v4123 = vmul.f32 %v1819, %v3867
      %v4124 = vmul.f32 %v1820, %v3868
      %v4125 = vmul.f32 %v1821, %v3869
      %v4126 = vmul.f32 %v1822, %v3870
      %v4127 = vmul.f32 %v1823, %v3871
      %v4128 = vmul.f32 %v1824, %v3872
      %v4129 = vmul.f32 %v1825, %v3873
      %v4130 = vmul.f32 %v1826, %v3874
      %v4131 = vmul.f32 %v1827, %v3875
      %v4132 = vmul.f32 %v1828, %v3876
      %v4133 = vmul.f32 %v1829, %v3877
      %v4134 = vmul.f32 %v1830, %v3878
      %v4135 = vmul.f32 %v1831, %v3879
      %v4136 = vmul.f32 %v1832, %v3880
      %v4137 = vmul.f32 %v1833, %v3881
      %v4138 = vmul.f32 %v1834, %v3882
      %v4139 = vmul.f32 %v1835, %v3883
      %v4140 = vmul.f32 %v1836, %v3884
      %v4141 = vmul.f32 %v1837, %v3885
      %v4142 = vmul.f32 %v1838, %v3886
      %v4143 = vmul.f32 %v1839, %v3887
      %v4144 = vmul.f32 %v1840, %v3888
      %v4145 = vmul.f32 %v1841, %v3889
      %v4146 = vmul.f32 %v1842, %v3890
      %v4147 = vmul.f32 %v1843, %v3891
      %v4148 = vmul.f32 %v1844, %v3892
      %v4149 = vmul.f32 %v1845, %v3893
      %v4150 = vmul.f32 %v1846, %v3894
      %v4151 = vmul.f32 %v1847, %v3895
      %v4152 = vmul.f32 %v1848, %v3896
      %v4153 = vmul.f32 %v1849, %v3897
      %v4154 = vmul.f32 %v1850, %v3898
      %v4155 = vmul.f32 %v1851, %v3899
      %v4156 = vmul.f32 %v1852, %v3900
      %v4157 = vmul.f32 %v1853, %v3901
      %v4158 = vmul.f32 %v1854, %v3902
      %v4159 = vmul.f32 %v1855, %v3903
      %v4160 = vmul.f32 %v1856, %v3904
      %v4161 = vmul.f32 %v1857, %v3905
      %v4162 = vmul.f32 %v1858, %v3906
      %v4163 = vmul.f32 %v1859, %v3907
      %v4164 = vmul.f32 %v1860, %v3908
      %v4165 = vmul.f32 %v1861, %v3909
      %v4166 = vmul.f32 %v1862, %v3910
      %v4167 = vmul.f32 %v1863, %v3911
      %v4168 = vmul.f32 %v1864, %v3912
      %v4169 = vmul.f32 %v1865, %v3913
      %v4170 = vmul.f32 %v1866, %v3914
      %v4171 = vmul.f32 %v1867, %v3915
      %v4172 = vmul.f32 %v1868, %v3916
      %v4173 = vmul.f32 %v1869, %v3917
      %v4174 = vmul.f32 %v1870, %v3918
      %v4175 = vmul.f32 %v1871, %v3919
      %v4176 = vmul.f32 %v1872, %v3920
      %v4177 = vmul.f32 %v1873, %v3921
      %v4178 = vmul.f32 %v1874, %v3922
      %v4179 = vmul.f32 %v1875, %v3923
      %v4180 = vmul.f32 %v1876, %v3924
      %v4181 = vmul.f32 %v1877, %v3925
      %v4182 = vmul.f32 %v1878, %v3926
      %v4183 = vmul.f32 %v1879, %v3927
      %v4184 = vmul.f32 %v1880, %v3928
      %v4185 = vmul.f32 %v1881, %v3929
      %v4186 = vmul.f32 %v1882, %v3930
      %v4187 = vmul.f32 %v1883, %v3931
      %v4188 = vmul.f32 %v1884, %v3932
      %v4189 = vmul.f32 %v1885, %v3933
      %v4190 = vmul.f32 %v1886, %v3934
      %v4191 = vmul.f32 %v1887, %v3935
      %v4192 = vmul.f32 %v1888, %v3936
      %v4193 = vmul.f32 %v1889, %v3937
      %v4194 = vmul.f32 %v1890, %v3938
      %v4195 = vmul.f32 %v1891, %v3939
      %v4196 = vmul.f32 %v1892, %v3940
      %v4197 = vmul.f32 %v1893, %v3941
      %v4198 = vmul.f32 %v1894, %v3942
      %v4199 = vmul.f32 %v1895, %v3943
      %v4200 = vmul.f32 %v1896, %v3944
      %v4201 = vmul.f32 %v1897, %v3945
      %v4202 = vsub.f32 %v3946, %v4074
      %v4203 = vsub.f32 %v3947, %v4075
      %v4204 = vsub.f32 %v3948, %v4076
      %v4205 = vsub.f32 %v3949, %v4077
      %v4206 = vsub.f32 %v3950, %v4078
      %v4207 = vsub.f32 %v3951, %v4079
      %v4208 = vsub.f32 %v3952, %v4080
      %v4209 = vsub.f32 %v3953, %v4081
      %v4210 = vsub.f32 %v3954, %v4082
      %v4211 = vsub.f32 %v3955, %v4083
      %v4212 = vsub.f32 %v3956, %v4084
      %v4213 = vsub.f32 %v3957, %v4085
      %v4214 = vsub.f32 %v3958, %v4086
      %v4215 = vsub.f32 %v3959, %v4087
      %v4216 = vsub.f32 %v3960, %v4088
      %v4217 = vsub.f32 %v3961, %v4089
      %v4218 = vsub.f32 %v3962, %v4090
      %v4219 = vsub.f32 %v3963, %v4091
      %v4220 = vsub.f32 %v3964, %v4092
      %v4221 = vsub.f32 %v3965, %v4093
      %v4222 = vsub.f32 %v3966, %v4094
      %v4223 = vsub.f32 %v3967, %v4095
      %v4224 = vsub.f32 %v3968, %v4096
      %v4225 = vsub.f32 %v3969, %v4097
      %v4226 = vsub.f32 %v3970, %v4098
      %v4227 = vsub.f32 %v3971, %v4099
      %v4228 = vsub.f32 %v3972, %v4100
      %v4229 = vsub.f32 %v3973, %v4101
      %v4230 = vsub.f32 %v3974, %v4102
      %v4231 = vsub.f32 %v3975, %v4103
      %v4232 = vsub.f32 %v3976, %v4104
      %v4233 = vsub.f32 %v3977, %v4105
      %v4234 = vsub.f32 %v3978, %v4106
      %v4235 = vsub.f32 %v3979, %v4107
      %v4236 = vsub.f32 %v3980, %v4108
      %v4237 = vsub.f32 %v3981, %v4109
      %v4238 = vsub.f32 %v3982, %v4110
      %v4239 = vsub.f32 %v3983, %v4111
      %v4240 = vsub.f32 %v3984, %v4112
      %v4241 = vsub.f32 %v3985, %v4113
      %v4242 = vsub.f32 %v3986, %v4114
      %v4243 = vsub.f32 %v3987, %v4115
      %v4244 = vsub.f32 %v3988, %v4116
      %v4245 = vsub.f32 %v3989, %v4117
      %v4246 = vsub.f32 %v3990, %v4118
      %v4247 = vsub.f32 %v3991, %v4119
      %v4248 = vsub.f32 %v3992, %v4120
      %v4249 = vsub.f32 %v3993, %v4121
      %v4250 = vsub.f32 %v3994, %v4122
      %v4251 = vsub.f32 %v3995, %v4123
      %v4252 = vsub.f32 %v3996, %v4124
      %v4253 = vsub.f32 %v3997, %v4125
      %v4254 = vsub.f32 %v3998, %v4126
      %v4255 = vsub.f32 %v3999, %v4127
      %v4256 = vsub.f32 %v4000, %v4128
      %v4257 = vsub.f32 %v4001, %v4129
      %v4258 = vsub.f32 %v4002, %v4130
      %v4259 = vsub.f32 %v4003, %v4131
      %v4260 = vsub.f32 %v4004, %v4132
      %v4261 = vsub.f32 %v4005, %v4133
      %v4262 = vsub.f32 %v4006, %v4134
      %v4263 = vsub.f32 %v4007, %v4135
      %v4264 = vsub.f32 %v4008, %v4136
      %v4265 = vsub.f32 %v4009, %v4137
      %v4266 = vsub.f32 %v4010, %v4138
      %v4267 = vsub.f32 %v4011, %v4139
      %v4268 = vsub.f32 %v4012, %v4140
      %v4269 = vsub.f32 %v4013, %v4141
      %v4270 = vsub.f32 %v4014, %v4142
      %v4271 = vsub.f32 %v4015, %v4143
      %v4272 = vsub.f32 %v4016, %v4144
      %v4273 = vsub.f32 %v4017, %v4145
      %v4274 = vsub.f32 %v4018, %v4146
      %v4275 = vsub.f32 %v4019, %v4147
      %v4276 = vsub.f32 %v4020, %v4148
      %v4277 = vsub.f32 %v4021, %v4149
      %v4278 = vsub.f32 %v4022, %v4150
      %v4279 = vsub.f32 %v4023, %v4151
      %v4280 = vsub.f32 %v4024, %v4152
      %v4281 = vsub.f32 %v4025, %v4153
      %v4282 = vsub.f32 %v4026, %v4154
      %v4283 = vsub.f32 %v4027, %v4155
      %v4284 = vsub.f32 %v4028, %v4156
      %v4285 = vsub.f32 %v4029, %v4157
      %v4286 = vsub.f32 %v4030, %v4158
      %v4287 = vsub.f32 %v4031, %v4159
      %v4288 = vsub.f32 %v4032, %v4160
      %v4289 = vsub.f32 %v4033, %v4161
      %v4290 = vsub.f32 %v4034, %v4162
      %v4291 = vsub.f32 %v4035, %v4163
      %v4292 = vsub.f32 %v4036, %v4164
      %v4293 = vsub.f32 %v4037, %v4165
      %v4294 = vsub.f32 %v4038, %v4166
      %v4295 = vsub.f32 %v4039, %v4167
      %v4296 = vsub.f32 %v4040, %v4168
      %v4297 = vsub.f32 %v4041, %v4169
      %v4298 = vsub.f32 %v4042, %v4170
      %v4299 = vsub.f32 %v4043, %v4171
      %v4300 = vsub.f32 %v4044, %v4172
      %v4301 = vsub.f32 %v4045, %v4173
      %v4302 = vsub.f32 %v4046, %v4174
      %v4303 = vsub.f32 %v4047, %v4175
      %v4304 = vsub.f32 %v4048, %v4176
      %v4305 = vsub.f32 %v4049, %v4177
      %v4306 = vsub.f32 %v4050, %v4178
      %v4307 = vsub.f32 %v4051, %v4179
      %v4308 = vsub.f32 %v4052, %v4180
      %v4309 = vsub.f32 %v4053, %v4181
      %v4310 = vsub.f32 %v4054, %v4182
      %v4311 = vsub.f32 %v4055, %v4183
      %v4312 = vsub.f32 %v4056, %v4184
      %v4313 = vsub.f32 %v4057, %v4185
      %v4314 = vsub.f32 %v4058, %v4186
      %v4315 = vsub.f32 %v4059, %v4187
      %v4316 = vsub.f32 %v4060, %v4188
      %v4317 = vsub.f32 %v4061, %v4189
      %v4318 = vsub.f32 %v4062, %v4190
      %v4319 = vsub.f32 %v4063, %v4191
      %v4320 = vsub.f32 %v4064, %v4192
      %v4321 = vsub.f32 %v4065, %v4193
      %v4322 = vsub.f32 %v4066, %v4194
      %v4323 = vsub.f32 %v4067, %v4195
      %v4324 = vsub.f32 %v4068, %v4196
      %v4325 = vsub.f32 %v4069, %v4197
      %v4326 = vsub.f32 %v4070, %v4198
      %v4327 = vsub.f32 %v4071, %v4199
      %v4328 = vsub.f32 %v4072, %v4200
      %v4329 = vsub.f32 %v4073, %v4201
      %4331 = vset.pattern.permute.xlu0 0
      %4332 = vperm.xlu0 %4331, %v3818
      %v4333 = vpop.permute.xlu0 %4332
      %4336 = vset.pattern.permute.xlu0 0
      %4337 = vperm.xlu0 %4336, %v3819
      %v4338 = vpop.permute.xlu0 %4337
      %4341 = vset.pattern.permute.xlu0 0
      %4342 = vperm.xlu0 %4341, %v3820
      %v4343 = vpop.permute.xlu0 %4342
      %4346 = vset.pattern.permute.xlu0 0
      %4347 = vperm.xlu0 %4346, %v3821
      %v4348 = vpop.permute.xlu0 %4347
      %4351 = vset.pattern.permute.xlu0 0
      %4352 = vperm.xlu0 %4351, %v3822
      %v4353 = vpop.permute.xlu0 %4352
      %4356 = vset.pattern.permute.xlu0 0
      %4357 = vperm.xlu0 %4356, %v3823
      %v4358 = vpop.permute.xlu0 %4357
      %4361 = vset.pattern.permute.xlu0 0
      %4362 = vperm.xlu0 %4361, %v3824
      %v4363 = vpop.permute.xlu0 %4362
      %4366 = vset.pattern.permute.xlu0 0
      %4367 = vperm.xlu0 %4366, %v3825
      %v4368 = vpop.permute.xlu0 %4367
      %4371 = vset.pattern.permute.xlu0 0
      %4372 = vperm.xlu0 %4371, %v3826
      %v4373 = vpop.permute.xlu0 %4372
      %4376 = vset.pattern.permute.xlu0 0
      %4377 = vperm.xlu0 %4376, %v3827
      %v4378 = vpop.permute.xlu0 %4377
      %4381 = vset.pattern.permute.xlu0 0
      %4382 = vperm.xlu0 %4381, %v3828
      %v4383 = vpop.permute.xlu0 %4382
      %4386 = vset.pattern.permute.xlu0 0
      %4387 = vperm.xlu0 %4386, %v3829
      %v4388 = vpop.permute.xlu0 %4387
      %4391 = vset.pattern.permute.xlu0 0
      %4392 = vperm.xlu0 %4391, %v3830
      %v4393 = vpop.permute.xlu0 %4392
      %4396 = vset.pattern.permute.xlu0 0
      %4397 = vperm.xlu0 %4396, %v3831
      %v4398 = vpop.permute.xlu0 %4397
      %4401 = vset.pattern.permute.xlu0 0
      %4402 = vperm.xlu0 %4401, %v3832
      %v4403 = vpop.permute.xlu0 %4402
      %4406 = vset.pattern.permute.xlu0 0
      %4407 = vperm.xlu0 %4406, %v3833
      %v4408 = vpop.permute.xlu0 %4407
      %4411 = vset.pattern.permute.xlu0 0
      %4412 = vperm.xlu0 %4411, %v3834
      %v4413 = vpop.permute.xlu0 %4412
      %4416 = vset.pattern.permute.xlu0 0
      %4417 = vperm.xlu0 %4416, %v3835
      %v4418 = vpop.permute.xlu0 %4417
      %4421 = vset.pattern.permute.xlu0 0
      %4422 = vperm.xlu0 %4421, %v3836
      %v4423 = vpop.permute.xlu0 %4422
      %4426 = vset.pattern.permute.xlu0 0
      %4427 = vperm.xlu0 %4426, %v3837
      %v4428 = vpop.permute.xlu0 %4427
      %4431 = vset.pattern.permute.xlu0 0
      %4432 = vperm.xlu0 %4431, %v3838
      %v4433 = vpop.permute.xlu0 %4432
      %4436 = vset.pattern.permute.xlu0 0
      %4437 = vperm.xlu0 %4436, %v3839
      %v4438 = vpop.permute.xlu0 %4437
      %4441 = vset.pattern.permute.xlu0 0
      %4442 = vperm.xlu0 %4441, %v3840
      %v4443 = vpop.permute.xlu0 %4442
      %4446 = vset.pattern.permute.xlu0 0
      %4447 = vperm.xlu0 %4446, %v3841
      %v4448 = vpop.permute.xlu0 %4447
      %4451 = vset.pattern.permute.xlu0 0
      %4452 = vperm.xlu0 %4451, %v3842
      %v4453 = vpop.permute.xlu0 %4452
      %4456 = vset.pattern.permute.xlu0 0
      %4457 = vperm.xlu0 %4456, %v3843
      %v4458 = vpop.permute.xlu0 %4457
      %4461 = vset.pattern.permute.xlu0 0
      %4462 = vperm.xlu0 %4461, %v3844
      %v4463 = vpop.permute.xlu0 %4462
      %4466 = vset.pattern.permute.xlu0 0
      %4467 = vperm.xlu0 %4466, %v3845
      %v4468 = vpop.permute.xlu0 %4467
      %4471 = vset.pattern.permute.xlu0 0
      %4472 = vperm.xlu0 %4471, %v3846
      %v4473 = vpop.permute.xlu0 %4472
      %4476 = vset.pattern.permute.xlu0 0
      %4477 = vperm.xlu0 %4476, %v3847
      %v4478 = vpop.permute.xlu0 %4477
      %4481 = vset.pattern.permute.xlu0 0
      %4482 = vperm.xlu0 %4481, %v3848
      %v4483 = vpop.permute.xlu0 %4482
      %4486 = vset.pattern.permute.xlu0 0
      %4487 = vperm.xlu0 %4486, %v3849
      %v4488 = vpop.permute.xlu0 %4487
      %4491 = vset.pattern.permute.xlu0 0
      %4492 = vperm.xlu0 %4491, %v3850
      %v4493 = vpop.permute.xlu0 %4492
      %4496 = vset.pattern.permute.xlu0 0
      %4497 = vperm.xlu0 %4496, %v3851
      %v4498 = vpop.permute.xlu0 %4497
      %4501 = vset.pattern.permute.xlu0 0
      %4502 = vperm.xlu0 %4501, %v3852
      %v4503 = vpop.permute.xlu0 %4502
      %4506 = vset.pattern.permute.xlu0 0
      %4507 = vperm.xlu0 %4506, %v3853
      %v4508 = vpop.permute.xlu0 %4507
      %4511 = vset.pattern.permute.xlu0 0
      %4512 = vperm.xlu0 %4511, %v3854
      %v4513 = vpop.permute.xlu0 %4512
      %4516 = vset.pattern.permute.xlu0 0
      %4517 = vperm.xlu0 %4516, %v3855
      %v4518 = vpop.permute.xlu0 %4517
      %4521 = vset.pattern.permute.xlu0 0
      %4522 = vperm.xlu0 %4521, %v3856
      %v4523 = vpop.permute.xlu0 %4522
      %4526 = vset.pattern.permute.xlu0 0
      %4527 = vperm.xlu0 %4526, %v3857
      %v4528 = vpop.permute.xlu0 %4527
      %4531 = vset.pattern.permute.xlu0 0
      %4532 = vperm.xlu0 %4531, %v3858
      %v4533 = vpop.permute.xlu0 %4532
      %4536 = vset.pattern.permute.xlu0 0
      %4537 = vperm.xlu0 %4536, %v3859
      %v4538 = vpop.permute.xlu0 %4537
      %4541 = vset.pattern.permute.xlu0 0
      %4542 = vperm.xlu0 %4541, %v3860
      %v4543 = vpop.permute.xlu0 %4542
      %4546 = vset.pattern.permute.xlu0 0
      %4547 = vperm.xlu0 %4546, %v3861
      %v4548 = vpop.permute.xlu0 %4547
      %4551 = vset.pattern.permute.xlu0 0
      %4552 = vperm.xlu0 %4551, %v3862
      %v4553 = vpop.permute.xlu0 %4552
      %4556 = vset.pattern.permute.xlu0 0
      %4557 = vperm.xlu0 %4556, %v3863
      %v4558 = vpop.permute.xlu0 %4557
      %4561 = vset.pattern.permute.xlu0 0
      %4562 = vperm.xlu0 %4561, %v3864
      %v4563 = vpop.permute.xlu0 %4562
      %4566 = vset.pattern.permute.xlu0 0
      %4567 = vperm.xlu0 %4566, %v3865
      %v4568 = vpop.permute.xlu0 %4567
      %4571 = vset.pattern.permute.xlu0 0
      %4572 = vperm.xlu0 %4571, %v3866
      %v4573 = vpop.permute.xlu0 %4572
      %4576 = vset.pattern.permute.xlu0 0
      %4577 = vperm.xlu0 %4576, %v3867
      %v4578 = vpop.permute.xlu0 %4577
      %4581 = vset.pattern.permute.xlu0 0
      %4582 = vperm.xlu0 %4581, %v3868
      %v4583 = vpop.permute.xlu0 %4582
      %4586 = vset.pattern.permute.xlu0 0
      %4587 = vperm.xlu0 %4586, %v3869
      %v4588 = vpop.permute.xlu0 %4587
      %4591 = vset.pattern.permute.xlu0 0
      %4592 = vperm.xlu0 %4591, %v3870
      %v4593 = vpop.permute.xlu0 %4592
      %4596 = vset.pattern.permute.xlu0 0
      %4597 = vperm.xlu0 %4596, %v3871
      %v4598 = vpop.permute.xlu0 %4597
      %4601 = vset.pattern.permute.xlu0 0
      %4602 = vperm.xlu0 %4601, %v3872
      %v4603 = vpop.permute.xlu0 %4602
      %4606 = vset.pattern.permute.xlu0 0
      %4607 = vperm.xlu0 %4606, %v3873
      %v4608 = vpop.permute.xlu0 %4607
      %4611 = vset.pattern.permute.xlu0 0
      %4612 = vperm.xlu0 %4611, %v3874
      %v4613 = vpop.permute.xlu0 %4612
      %4616 = vset.pattern.permute.xlu0 0
      %4617 = vperm.xlu0 %4616, %v3875
      %v4618 = vpop.permute.xlu0 %4617
      %4621 = vset.pattern.permute.xlu0 0
      %4622 = vperm.xlu0 %4621, %v3876
      %v4623 = vpop.permute.xlu0 %4622
      %4626 = vset.pattern.permute.xlu0 0
      %4627 = vperm.xlu0 %4626, %v3877
      %v4628 = vpop.permute.xlu0 %4627
      %4631 = vset.pattern.permute.xlu0 0
      %4632 = vperm.xlu0 %4631, %v3878
      %v4633 = vpop.permute.xlu0 %4632
      %4636 = vset.pattern.permute.xlu0 0
      %4637 = vperm.xlu0 %4636, %v3879
      %v4638 = vpop.permute.xlu0 %4637
      %4641 = vset.pattern.permute.xlu0 0
      %4642 = vperm.xlu0 %4641, %v3880
      %v4643 = vpop.permute.xlu0 %4642
      %4646 = vset.pattern.permute.xlu0 0
      %4647 = vperm.xlu0 %4646, %v3881
      %v4648 = vpop.permute.xlu0 %4647
      %4651 = vset.pattern.permute.xlu0 0
      %4652 = vperm.xlu0 %4651, %v3882
      %v4653 = vpop.permute.xlu0 %4652
      %4656 = vset.pattern.permute.xlu0 0
      %4657 = vperm.xlu0 %4656, %v3883
      %v4658 = vpop.permute.xlu0 %4657
      %4661 = vset.pattern.permute.xlu0 0
      %4662 = vperm.xlu0 %4661, %v3884
      %v4663 = vpop.permute.xlu0 %4662
      %4666 = vset.pattern.permute.xlu0 0
      %4667 = vperm.xlu0 %4666, %v3885
      %v4668 = vpop.permute.xlu0 %4667
      %4671 = vset.pattern.permute.xlu0 0
      %4672 = vperm.xlu0 %4671, %v3886
      %v4673 = vpop.permute.xlu0 %4672
      %4676 = vset.pattern.permute.xlu0 0
      %4677 = vperm.xlu0 %4676, %v3887
      %v4678 = vpop.permute.xlu0 %4677
      %4681 = vset.pattern.permute.xlu0 0
      %4682 = vperm.xlu0 %4681, %v3888
      %v4683 = vpop.permute.xlu0 %4682
      %4686 = vset.pattern.permute.xlu0 0
      %4687 = vperm.xlu0 %4686, %v3889
      %v4688 = vpop.permute.xlu0 %4687
      %4691 = vset.pattern.permute.xlu0 0
      %4692 = vperm.xlu0 %4691, %v3890
      %v4693 = vpop.permute.xlu0 %4692
      %4696 = vset.pattern.permute.xlu0 0
      %4697 = vperm.xlu0 %4696, %v3891
      %v4698 = vpop.permute.xlu0 %4697
      %4701 = vset.pattern.permute.xlu0 0
      %4702 = vperm.xlu0 %4701, %v3892
      %v4703 = vpop.permute.xlu0 %4702
      %4706 = vset.pattern.permute.xlu0 0
      %4707 = vperm.xlu0 %4706, %v3893
      %v4708 = vpop.permute.xlu0 %4707
      %4711 = vset.pattern.permute.xlu0 0
      %4712 = vperm.xlu0 %4711, %v3894
      %v4713 = vpop.permute.xlu0 %4712
      %4716 = vset.pattern.permute.xlu0 0
      %4717 = vperm.xlu0 %4716, %v3895
      %v4718 = vpop.permute.xlu0 %4717
      %4721 = vset.pattern.permute.xlu0 0
      %4722 = vperm.xlu0 %4721, %v3896
      %v4723 = vpop.permute.xlu0 %4722
      %4726 = vset.pattern.permute.xlu0 0
      %4727 = vperm.xlu0 %4726, %v3897
      %v4728 = vpop.permute.xlu0 %4727
      %4731 = vset.pattern.permute.xlu0 0
      %4732 = vperm.xlu0 %4731, %v3898
      %v4733 = vpop.permute.xlu0 %4732
      %4736 = vset.pattern.permute.xlu0 0
      %4737 = vperm.xlu0 %4736, %v3899
      %v4738 = vpop.permute.xlu0 %4737
      %4741 = vset.pattern.permute.xlu0 0
      %4742 = vperm.xlu0 %4741, %v3900
      %v4743 = vpop.permute.xlu0 %4742
      %4746 = vset.pattern.permute.xlu0 0
      %4747 = vperm.xlu0 %4746, %v3901
      %v4748 = vpop.permute.xlu0 %4747
      %4751 = vset.pattern.permute.xlu0 0
      %4752 = vperm.xlu0 %4751, %v3902
      %v4753 = vpop.permute.xlu0 %4752
      %4756 = vset.pattern.permute.xlu0 0
      %4757 = vperm.xlu0 %4756, %v3903
      %v4758 = vpop.permute.xlu0 %4757
      %4761 = vset.pattern.permute.xlu0 0
      %4762 = vperm.xlu0 %4761, %v3904
      %v4763 = vpop.permute.xlu0 %4762
      %4766 = vset.pattern.permute.xlu0 0
      %4767 = vperm.xlu0 %4766, %v3905
      %v4768 = vpop.permute.xlu0 %4767
      %4771 = vset.pattern.permute.xlu0 0
      %4772 = vperm.xlu0 %4771, %v3906
      %v4773 = vpop.permute.xlu0 %4772
      %4776 = vset.pattern.permute.xlu0 0
      %4777 = vperm.xlu0 %4776, %v3907
      %v4778 = vpop.permute.xlu0 %4777
      %4781 = vset.pattern.permute.xlu0 0
      %4782 = vperm.xlu0 %4781, %v3908
      %v4783 = vpop.permute.xlu0 %4782
      %4786 = vset.pattern.permute.xlu0 0
      %4787 = vperm.xlu0 %4786, %v3909
      %v4788 = vpop.permute.xlu0 %4787
      %4791 = vset.pattern.permute.xlu0 0
      %4792 = vperm.xlu0 %4791, %v3910
      %v4793 = vpop.permute.xlu0 %4792
      %4796 = vset.pattern.permute.xlu0 0
      %4797 = vperm.xlu0 %4796, %v3911
      %v4798 = vpop.permute.xlu0 %4797
      %4801 = vset.pattern.permute.xlu0 0
      %4802 = vperm.xlu0 %4801, %v3912
      %v4803 = vpop.permute.xlu0 %4802
      %4806 = vset.pattern.permute.xlu0 0
      %4807 = vperm.xlu0 %4806, %v3913
      %v4808 = vpop.permute.xlu0 %4807
      %4811 = vset.pattern.permute.xlu0 0
      %4812 = vperm.xlu0 %4811, %v3914
      %v4813 = vpop.permute.xlu0 %4812
      %4816 = vset.pattern.permute.xlu0 0
      %4817 = vperm.xlu0 %4816, %v3915
      %v4818 = vpop.permute.xlu0 %4817
      %4821 = vset.pattern.permute.xlu0 0
      %4822 = vperm.xlu0 %4821, %v3916
      %v4823 = vpop.permute.xlu0 %4822
      %4826 = vset.pattern.permute.xlu0 0
      %4827 = vperm.xlu0 %4826, %v3917
      %v4828 = vpop.permute.xlu0 %4827
      %4831 = vset.pattern.permute.xlu0 0
      %4832 = vperm.xlu0 %4831, %v3918
      %v4833 = vpop.permute.xlu0 %4832
      %4836 = vset.pattern.permute.xlu0 0
      %4837 = vperm.xlu0 %4836, %v3919
      %v4838 = vpop.permute.xlu0 %4837
      %4841 = vset.pattern.permute.xlu0 0
      %4842 = vperm.xlu0 %4841, %v3920
      %v4843 = vpop.permute.xlu0 %4842
      %4846 = vset.pattern.permute.xlu0 0
      %4847 = vperm.xlu0 %4846, %v3921
      %v4848 = vpop.permute.xlu0 %4847
      %4851 = vset.pattern.permute.xlu0 0
      %4852 = vperm.xlu0 %4851, %v3922
      %v4853 = vpop.permute.xlu0 %4852
      %4856 = vset.pattern.permute.xlu0 0
      %4857 = vperm.xlu0 %4856, %v3923
      %v4858 = vpop.permute.xlu0 %4857
      %4861 = vset.pattern.permute.xlu0 0
      %4862 = vperm.xlu0 %4861, %v3924
      %v4863 = vpop.permute.xlu0 %4862
      %4866 = vset.pattern.permute.xlu0 0
      %4867 = vperm.xlu0 %4866, %v3925
      %v4868 = vpop.permute.xlu0 %4867
      %4871 = vset.pattern.permute.xlu0 0
      %4872 = vperm.xlu0 %4871, %v3926
      %v4873 = vpop.permute.xlu0 %4872
      %4876 = vset.pattern.permute.xlu0 0
      %4877 = vperm.xlu0 %4876, %v3927
      %v4878 = vpop.permute.xlu0 %4877
      %4881 = vset.pattern.permute.xlu0 0
      %4882 = vperm.xlu0 %4881, %v3928
      %v4883 = vpop.permute.xlu0 %4882
      %4886 = vset.pattern.permute.xlu0 0
      %4887 = vperm.xlu0 %4886, %v3929
      %v4888 = vpop.permute.xlu0 %4887
      %4891 = vset.pattern.permute.xlu0 0
      %4892 = vperm.xlu0 %4891, %v3930
      %v4893 = vpop.permute.xlu0 %4892
      %4896 = vset.pattern.permute.xlu0 0
      %4897 = vperm.xlu0 %4896, %v3931
      %v4898 = vpop.permute.xlu0 %4897
      %4901 = vset.pattern.permute.xlu0 0
      %4902 = vperm.xlu0 %4901, %v3932
      %v4903 = vpop.permute.xlu0 %4902
      %4906 = vset.pattern.permute.xlu0 0
      %4907 = vperm.xlu0 %4906, %v3933
      %v4908 = vpop.permute.xlu0 %4907
      %4911 = vset.pattern.permute.xlu0 0
      %4912 = vperm.xlu0 %4911, %v3934
      %v4913 = vpop.permute.xlu0 %4912
      %4916 = vset.pattern.permute.xlu0 0
      %4917 = vperm.xlu0 %4916, %v3935
      %v4918 = vpop.permute.xlu0 %4917
      %4921 = vset.pattern.permute.xlu0 0
      %4922 = vperm.xlu0 %4921, %v3936
      %v4923 = vpop.permute.xlu0 %4922
      %4926 = vset.pattern.permute.xlu0 0
      %4927 = vperm.xlu0 %4926, %v3937
      %v4928 = vpop.permute.xlu0 %4927
      %4931 = vset.pattern.permute.xlu0 0
      %4932 = vperm.xlu0 %4931, %v3938
      %v4933 = vpop.permute.xlu0 %4932
      %4936 = vset.pattern.permute.xlu0 0
      %4937 = vperm.xlu0 %4936, %v3939
      %v4938 = vpop.permute.xlu0 %4937
      %4941 = vset.pattern.permute.xlu0 0
      %4942 = vperm.xlu0 %4941, %v3940
      %v4943 = vpop.permute.xlu0 %4942
      %4946 = vset.pattern.permute.xlu0 0
      %4947 = vperm.xlu0 %4946, %v3941
      %v4948 = vpop.permute.xlu0 %4947
      %4951 = vset.pattern.permute.xlu0 0
      %4952 = vperm.xlu0 %4951, %v3942
      %v4953 = vpop.permute.xlu0 %4952
      %4956 = vset.pattern.permute.xlu0 0
      %4957 = vperm.xlu0 %4956, %v3943
      %v4958 = vpop.permute.xlu0 %4957
      %4961 = vset.pattern.permute.xlu0 0
      %4962 = vperm.xlu0 %4961, %v3944
      %v4963 = vpop.permute.xlu0 %4962
      %4966 = vset.pattern.permute.xlu0 0
      %4967 = vperm.xlu0 %4966, %v3945
      %v4968 = vpop.permute.xlu0 %4967
      %v4970 = vmul.f32 %v233, %v4333
      %v4971 = vmul.f32 %v234, %v4333
      %v4972 = vmul.f32 %v235, %v4338
      %v4973 = vmul.f32 %v236, %v4338
      %v4974 = vmul.f32 %v237, %v4343
      %v4975 = vmul.f32 %v238, %v4343
      %v4976 = vmul.f32 %v239, %v4348
      %v4977 = vmul.f32 %v240, %v4348
      %v4978 = vmul.f32 %v241, %v4353
      %v4979 = vmul.f32 %v242, %v4353
      %v4980 = vmul.f32 %v243, %v4358
      %v4981 = vmul.f32 %v244, %v4358
      %v4982 = vmul.f32 %v245, %v4363
      %v4983 = vmul.f32 %v246, %v4363
      %v4984 = vmul.f32 %v247, %v4368
      %v4985 = vmul.f32 %v248, %v4368
      %v4986 = vmul.f32 %v249, %v4373
      %v4987 = vmul.f32 %v250, %v4373
      %v4988 = vmul.f32 %v251, %v4378
      %v4989 = vmul.f32 %v252, %v4378
      %v4990 = vmul.f32 %v253, %v4383
      %v4991 = vmul.f32 %v254, %v4383
      %v4992 = vmul.f32 %v255, %v4388
      %v4993 = vmul.f32 %v256, %v4388
      %v4994 = vmul.f32 %v257, %v4393
      %v4995 = vmul.f32 %v258, %v4393
      %v4996 = vmul.f32 %v259, %v4398
      %v4997 = vmul.f32 %v260, %v4398
      %v4998 = vmul.f32 %v261, %v4403
      %v4999 = vmul.f32 %v262, %v4403
      %v5000 = vmul.f32 %v263, %v4408
      %v5001 = vmul.f32 %v264, %v4408
      %v5002 = vmul.f32 %v265, %v4413
      %v5003 = vmul.f32 %v266, %v4413
      %v5004 = vmul.f32 %v267, %v4418
      %v5005 = vmul.f32 %v268, %v4418
      %v5006 = vmul.f32 %v269, %v4423
      %v5007 = vmul.f32 %v270, %v4423
      %v5008 = vmul.f32 %v271, %v4428
      %v5009 = vmul.f32 %v272, %v4428
      %v5010 = vmul.f32 %v273, %v4433
      %v5011 = vmul.f32 %v274, %v4433
      %v5012 = vmul.f32 %v275, %v4438
      %v5013 = vmul.f32 %v276, %v4438
      %v5014 = vmul.f32 %v277, %v4443
      %v5015 = vmul.f32 %v278, %v4443
      %v5016 = vmul.f32 %v279, %v4448
      %v5017 = vmul.f32 %v280, %v4448
      %v5018 = vmul.f32 %v281, %v4453
      %v5019 = vmul.f32 %v282, %v4453
      %v5020 = vmul.f32 %v283, %v4458
      %v5021 = vmul.f32 %v284, %v4458
      %v5022 = vmul.f32 %v285, %v4463
      %v5023 = vmul.f32 %v286, %v4463
      %v5024 = vmul.f32 %v287, %v4468
      %v5025 = vmul.f32 %v288, %v4468
      %v5026 = vmul.f32 %v289, %v4473
      %v5027 = vmul.f32 %v290, %v4473
      %v5028 = vmul.f32 %v291, %v4478
      %v5029 = vmul.f32 %v292, %v4478
      %v5030 = vmul.f32 %v293, %v4483
      %v5031 = vmul.f32 %v294, %v4483
      %v5032 = vmul.f32 %v295, %v4488
      %v5033 = vmul.f32 %v296, %v4488
      %v5034 = vmul.f32 %v297, %v4493
      %v5035 = vmul.f32 %v298, %v4493
      %v5036 = vmul.f32 %v299, %v4498
      %v5037 = vmul.f32 %v300, %v4498
      %v5038 = vmul.f32 %v301, %v4503
      %v5039 = vmul.f32 %v302, %v4503
      %v5040 = vmul.f32 %v303, %v4508
      %v5041 = vmul.f32 %v304, %v4508
      %v5042 = vmul.f32 %v305, %v4513
      %v5043 = vmul.f32 %v306, %v4513
      %v5044 = vmul.f32 %v307, %v4518
      %v5045 = vmul.f32 %v308, %v4518
      %v5046 = vmul.f32 %v309, %v4523
      %v5047 = vmul.f32 %v310, %v4523
      %v5048 = vmul.f32 %v311, %v4528
      %v5049 = vmul.f32 %v312, %v4528
      %v5050 = vmul.f32 %v313, %v4533
      %v5051 = vmul.f32 %v314, %v4533
      %v5052 = vmul.f32 %v315, %v4538
      %v5053 = vmul.f32 %v316, %v4538
      %v5054 = vmul.f32 %v317, %v4543
      %v5055 = vmul.f32 %v318, %v4543
      %v5056 = vmul.f32 %v319, %v4548
      %v5057 = vmul.f32 %v320, %v4548
      %v5058 = vmul.f32 %v321, %v4553
      %v5059 = vmul.f32 %v322, %v4553
      %v5060 = vmul.f32 %v323, %v4558
      %v5061 = vmul.f32 %v324, %v4558
      %v5062 = vmul.f32 %v325, %v4563
      %v5063 = vmul.f32 %v326, %v4563
      %v5064 = vmul.f32 %v327, %v4568
      %v5065 = vmul.f32 %v328, %v4568
      %v5066 = vmul.f32 %v329, %v4573
      %v5067 = vmul.f32 %v330, %v4573
      %v5068 = vmul.f32 %v331, %v4578
      %v5069 = vmul.f32 %v332, %v4578
      %v5070 = vmul.f32 %v333, %v4583
      %v5071 = vmul.f32 %v334, %v4583
      %v5072 = vmul.f32 %v335, %v4588
      %v5073 = vmul.f32 %v336, %v4588
      %v5074 = vmul.f32 %v337, %v4593
      %v5075 = vmul.f32 %v338, %v4593
      %v5076 = vmul.f32 %v339, %v4598
      %v5077 = vmul.f32 %v340, %v4598
      %v5078 = vmul.f32 %v341, %v4603
      %v5079 = vmul.f32 %v342, %v4603
      %v5080 = vmul.f32 %v343, %v4608
      %v5081 = vmul.f32 %v344, %v4608
      %v5082 = vmul.f32 %v345, %v4613
      %v5083 = vmul.f32 %v346, %v4613
      %v5084 = vmul.f32 %v347, %v4618
      %v5085 = vmul.f32 %v348, %v4618
      %v5086 = vmul.f32 %v349, %v4623
      %v5087 = vmul.f32 %v350, %v4623
      %v5088 = vmul.f32 %v351, %v4628
      %v5089 = vmul.f32 %v352, %v4628
      %v5090 = vmul.f32 %v353, %v4633
      %v5091 = vmul.f32 %v354, %v4633
      %v5092 = vmul.f32 %v355, %v4638
      %v5093 = vmul.f32 %v356, %v4638
      %v5094 = vmul.f32 %v357, %v4643
      %v5095 = vmul.f32 %v358, %v4643
      %v5096 = vmul.f32 %v359, %v4648
      %v5097 = vmul.f32 %v360, %v4648
      %v5098 = vmul.f32 %v361, %v4653
      %v5099 = vmul.f32 %v362, %v4653
      %v5100 = vmul.f32 %v363, %v4658
      %v5101 = vmul.f32 %v364, %v4658
      %v5102 = vmul.f32 %v365, %v4663
      %v5103 = vmul.f32 %v366, %v4663
      %v5104 = vmul.f32 %v367, %v4668
      %v5105 = vmul.f32 %v368, %v4668
      %v5106 = vmul.f32 %v369, %v4673
      %v5107 = vmul.f32 %v370, %v4673
      %v5108 = vmul.f32 %v371, %v4678
      %v5109 = vmul.f32 %v372, %v4678
      %v5110 = vmul.f32 %v373, %v4683
      %v5111 = vmul.f32 %v374, %v4683
      %v5112 = vmul.f32 %v375, %v4688
      %v5113 = vmul.f32 %v376, %v4688
      %v5114 = vmul.f32 %v377, %v4693
      %v5115 = vmul.f32 %v378, %v4693
      %v5116 = vmul.f32 %v379, %v4698
      %v5117 = vmul.f32 %v380, %v4698
      %v5118 = vmul.f32 %v381, %v4703
      %v5119 = vmul.f32 %v382, %v4703
      %v5120 = vmul.f32 %v383, %v4708
      %v5121 = vmul.f32 %v384, %v4708
      %v5122 = vmul.f32 %v385, %v4713
      %v5123 = vmul.f32 %v386, %v4713
      %v5124 = vmul.f32 %v387, %v4718
      %v5125 = vmul.f32 %v388, %v4718
      %v5126 = vmul.f32 %v389, %v4723
      %v5127 = vmul.f32 %v390, %v4723
      %v5128 = vmul.f32 %v391, %v4728
      %v5129 = vmul.f32 %v392, %v4728
      %v5130 = vmul.f32 %v393, %v4733
      %v5131 = vmul.f32 %v394, %v4733
      %v5132 = vmul.f32 %v395, %v4738
      %v5133 = vmul.f32 %v396, %v4738
      %v5134 = vmul.f32 %v397, %v4743
      %v5135 = vmul.f32 %v398, %v4743
      %v5136 = vmul.f32 %v399, %v4748
      %v5137 = vmul.f32 %v400, %v4748
      %v5138 = vmul.f32 %v401, %v4753
      %v5139 = vmul.f32 %v402, %v4753
      %v5140 = vmul.f32 %v403, %v4758
      %v5141 = vmul.f32 %v404, %v4758
      %v5142 = vmul.f32 %v405, %v4763
      %v5143 = vmul.f32 %v406, %v4763
      %v5144 = vmul.f32 %v407, %v4768
      %v5145 = vmul.f32 %v408, %v4768
      %v5146 = vmul.f32 %v409, %v4773
      %v5147 = vmul.f32 %v410, %v4773
      %v5148 = vmul.f32 %v411, %v4778
      %v5149 = vmul.f32 %v412, %v4778
      %v5150 = vmul.f32 %v413, %v4783
      %v5151 = vmul.f32 %v414, %v4783
      %v5152 = vmul.f32 %v415, %v4788
      %v5153 = vmul.f32 %v416, %v4788
      %v5154 = vmul.f32 %v417, %v4793
      %v5155 = vmul.f32 %v418, %v4793
      %v5156 = vmul.f32 %v419, %v4798
      %v5157 = vmul.f32 %v420, %v4798
      %v5158 = vmul.f32 %v421, %v4803
      %v5159 = vmul.f32 %v422, %v4803
      %v5160 = vmul.f32 %v423, %v4808
      %v5161 = vmul.f32 %v424, %v4808
      %v5162 = vmul.f32 %v425, %v4813
      %v5163 = vmul.f32 %v426, %v4813
      %v5164 = vmul.f32 %v427, %v4818
      %v5165 = vmul.f32 %v428, %v4818
      %v5166 = vmul.f32 %v429, %v4823
      %v5167 = vmul.f32 %v430, %v4823
      %v5168 = vmul.f32 %v431, %v4828
      %v5169 = vmul.f32 %v432, %v4828
      %v5170 = vmul.f32 %v433, %v4833
      %v5171 = vmul.f32 %v434, %v4833
      %v5172 = vmul.f32 %v435, %v4838
      %v5173 = vmul.f32 %v436, %v4838
      %v5174 = vmul.f32 %v437, %v4843
      %v5175 = vmul.f32 %v438, %v4843
      %v5176 = vmul.f32 %v439, %v4848
      %v5177 = vmul.f32 %v440, %v4848
      %v5178 = vmul.f32 %v441, %v4853
      %v5179 = vmul.f32 %v442, %v4853
      %v5180 = vmul.f32 %v443, %v4858
      %v5181 = vmul.f32 %v444, %v4858
      %v5182 = vmul.f32 %v445, %v4863
      %v5183 = vmul.f32 %v446, %v4863
      %v5184 = vmul.f32 %v447, %v4868
      %v5185 = vmul.f32 %v448, %v4868
      %v5186 = vmul.f32 %v449, %v4873
      %v5187 = vmul.f32 %v450, %v4873
      %v5188 = vmul.f32 %v451, %v4878
      %v5189 = vmul.f32 %v452, %v4878
      %v5190 = vmul.f32 %v453, %v4883
      %v5191 = vmul.f32 %v454, %v4883
      %v5192 = vmul.f32 %v455, %v4888
      %v5193 = vmul.f32 %v456, %v4888
      %v5194 = vmul.f32 %v457, %v4893
      %v5195 = vmul.f32 %v458, %v4893
      %v5196 = vmul.f32 %v459, %v4898
      %v5197 = vmul.f32 %v460, %v4898
      %v5198 = vmul.f32 %v461, %v4903
      %v5199 = vmul.f32 %v462, %v4903
      %v5200 = vmul.f32 %v463, %v4908
      %v5201 = vmul.f32 %v464, %v4908
      %v5202 = vmul.f32 %v465, %v4913
      %v5203 = vmul.f32 %v466, %v4913
      %v5204 = vmul.f32 %v467, %v4918
      %v5205 = vmul.f32 %v468, %v4918
      %v5206 = vmul.f32 %v469, %v4923
      %v5207 = vmul.f32 %v470, %v4923
      %v5208 = vmul.f32 %v471, %v4928
      %v5209 = vmul.f32 %v472, %v4928
      %v5210 = vmul.f32 %v473, %v4933
      %v5211 = vmul.f32 %v474, %v4933
      %v5212 = vmul.f32 %v475, %v4938
      %v5213 = vmul.f32 %v476, %v4938
      %v5214 = vmul.f32 %v477, %v4943
      %v5215 = vmul.f32 %v478, %v4943
      %v5216 = vmul.f32 %v479, %v4948
      %v5217 = vmul.f32 %v480, %v4948
      %v5218 = vmul.f32 %v481, %v4953
      %v5219 = vmul.f32 %v482, %v4953
      %v5220 = vmul.f32 %v483, %v4958
      %v5221 = vmul.f32 %v484, %v4958
      %v5222 = vmul.f32 %v485, %v4963
      %v5223 = vmul.f32 %v486, %v4963
      %v5224 = vmul.f32 %v487, %v4968
      %v5225 = vmul.f32 %v488, %v4968
      %5227 = vset.pattern.permute.xlu0 0
      %5228 = vperm.xlu0 %5227, %v4202
      %v5229 = vpop.permute.xlu0 %5228
      %5232 = vset.pattern.permute.xlu0 0
      %5233 = vperm.xlu0 %5232, %v4203
      %v5234 = vpop.permute.xlu0 %5233
      %5237 = vset.pattern.permute.xlu0 0
      %5238 = vperm.xlu0 %5237, %v4204
      %v5239 = vpop.permute.xlu0 %5238
      %5242 = vset.pattern.permute.xlu0 0
      %5243 = vperm.xlu0 %5242, %v4205
      %v5244 = vpop.permute.xlu0 %5243
      %5247 = vset.pattern.permute.xlu0 0
      %5248 = vperm.xlu0 %5247, %v4206
      %v5249 = vpop.permute.xlu0 %5248
      %5252 = vset.pattern.permute.xlu0 0
      %5253 = vperm.xlu0 %5252, %v4207
      %v5254 = vpop.permute.xlu0 %5253
      %5257 = vset.pattern.permute.xlu0 0
      %5258 = vperm.xlu0 %5257, %v4208
      %v5259 = vpop.permute.xlu0 %5258
      %5262 = vset.pattern.permute.xlu0 0
      %5263 = vperm.xlu0 %5262, %v4209
      %v5264 = vpop.permute.xlu0 %5263
      %5267 = vset.pattern.permute.xlu0 0
      %5268 = vperm.xlu0 %5267, %v4210
      %v5269 = vpop.permute.xlu0 %5268
      %5272 = vset.pattern.permute.xlu0 0
      %5273 = vperm.xlu0 %5272, %v4211
      %v5274 = vpop.permute.xlu0 %5273
      %5277 = vset.pattern.permute.xlu0 0
      %5278 = vperm.xlu0 %5277, %v4212
      %v5279 = vpop.permute.xlu0 %5278
      %5282 = vset.pattern.permute.xlu0 0
      %5283 = vperm.xlu0 %5282, %v4213
      %v5284 = vpop.permute.xlu0 %5283
      %5287 = vset.pattern.permute.xlu0 0
      %5288 = vperm.xlu0 %5287, %v4214
      %v5289 = vpop.permute.xlu0 %5288
      %5292 = vset.pattern.permute.xlu0 0
      %5293 = vperm.xlu0 %5292, %v4215
      %v5294 = vpop.permute.xlu0 %5293
      %5297 = vset.pattern.permute.xlu0 0
      %5298 = vperm.xlu0 %5297, %v4216
      %v5299 = vpop.permute.xlu0 %5298
      %5302 = vset.pattern.permute.xlu0 0
      %5303 = vperm.xlu0 %5302, %v4217
      %v5304 = vpop.permute.xlu0 %5303
      %5307 = vset.pattern.permute.xlu0 0
      %5308 = vperm.xlu0 %5307, %v4218
      %v5309 = vpop.permute.xlu0 %5308
      %5312 = vset.pattern.permute.xlu0 0
      %5313 = vperm.xlu0 %5312, %v4219
      %v5314 = vpop.permute.xlu0 %5313
      %5317 = vset.pattern.permute.xlu0 0
      %5318 = vperm.xlu0 %5317, %v4220
      %v5319 = vpop.permute.xlu0 %5318
      %5322 = vset.pattern.permute.xlu0 0
      %5323 = vperm.xlu0 %5322, %v4221
      %v5324 = vpop.permute.xlu0 %5323
      %5327 = vset.pattern.permute.xlu0 0
      %5328 = vperm.xlu0 %5327, %v4222
      %v5329 = vpop.permute.xlu0 %5328
      %5332 = vset.pattern.permute.xlu0 0
      %5333 = vperm.xlu0 %5332, %v4223
      %v5334 = vpop.permute.xlu0 %5333
      %5337 = vset.pattern.permute.xlu0 0
      %5338 = vperm.xlu0 %5337, %v4224
      %v5339 = vpop.permute.xlu0 %5338
      %5342 = vset.pattern.permute.xlu0 0
      %5343 = vperm.xlu0 %5342, %v4225
      %v5344 = vpop.permute.xlu0 %5343
      %5347 = vset.pattern.permute.xlu0 0
      %5348 = vperm.xlu0 %5347, %v4226
      %v5349 = vpop.permute.xlu0 %5348
      %5352 = vset.pattern.permute.xlu0 0
      %5353 = vperm.xlu0 %5352, %v4227
      %v5354 = vpop.permute.xlu0 %5353
      %5357 = vset.pattern.permute.xlu0 0
      %5358 = vperm.xlu0 %5357, %v4228
      %v5359 = vpop.permute.xlu0 %5358
      %5362 = vset.pattern.permute.xlu0 0
      %5363 = vperm.xlu0 %5362, %v4229
      %v5364 = vpop.permute.xlu0 %5363
      %5367 = vset.pattern.permute.xlu0 0
      %5368 = vperm.xlu0 %5367, %v4230
      %v5369 = vpop.permute.xlu0 %5368
      %5372 = vset.pattern.permute.xlu0 0
      %5373 = vperm.xlu0 %5372, %v4231
      %v5374 = vpop.permute.xlu0 %5373
      %5377 = vset.pattern.permute.xlu0 0
      %5378 = vperm.xlu0 %5377, %v4232
      %v5379 = vpop.permute.xlu0 %5378
      %5382 = vset.pattern.permute.xlu0 0
      %5383 = vperm.xlu0 %5382, %v4233
      %v5384 = vpop.permute.xlu0 %5383
      %5387 = vset.pattern.permute.xlu0 0
      %5388 = vperm.xlu0 %5387, %v4234
      %v5389 = vpop.permute.xlu0 %5388
      %5392 = vset.pattern.permute.xlu0 0
      %5393 = vperm.xlu0 %5392, %v4235
      %v5394 = vpop.permute.xlu0 %5393
      %5397 = vset.pattern.permute.xlu0 0
      %5398 = vperm.xlu0 %5397, %v4236
      %v5399 = vpop.permute.xlu0 %5398
      %5402 = vset.pattern.permute.xlu0 0
      %5403 = vperm.xlu0 %5402, %v4237
      %v5404 = vpop.permute.xlu0 %5403
      %5407 = vset.pattern.permute.xlu0 0
      %5408 = vperm.xlu0 %5407, %v4238
      %v5409 = vpop.permute.xlu0 %5408
      %5412 = vset.pattern.permute.xlu0 0
      %5413 = vperm.xlu0 %5412, %v4239
      %v5414 = vpop.permute.xlu0 %5413
      %5417 = vset.pattern.permute.xlu0 0
      %5418 = vperm.xlu0 %5417, %v4240
      %v5419 = vpop.permute.xlu0 %5418
      %5422 = vset.pattern.permute.xlu0 0
      %5423 = vperm.xlu0 %5422, %v4241
      %v5424 = vpop.permute.xlu0 %5423
      %5427 = vset.pattern.permute.xlu0 0
      %5428 = vperm.xlu0 %5427, %v4242
      %v5429 = vpop.permute.xlu0 %5428
      %5432 = vset.pattern.permute.xlu0 0
      %5433 = vperm.xlu0 %5432, %v4243
      %v5434 = vpop.permute.xlu0 %5433
      %5437 = vset.pattern.permute.xlu0 0
      %5438 = vperm.xlu0 %5437, %v4244
      %v5439 = vpop.permute.xlu0 %5438
      %5442 = vset.pattern.permute.xlu0 0
      %5443 = vperm.xlu0 %5442, %v4245
      %v5444 = vpop.permute.xlu0 %5443
      %5447 = vset.pattern.permute.xlu0 0
      %5448 = vperm.xlu0 %5447, %v4246
      %v5449 = vpop.permute.xlu0 %5448
      %5452 = vset.pattern.permute.xlu0 0
      %5453 = vperm.xlu0 %5452, %v4247
      %v5454 = vpop.permute.xlu0 %5453
      %5457 = vset.pattern.permute.xlu0 0
      %5458 = vperm.xlu0 %5457, %v4248
      %v5459 = vpop.permute.xlu0 %5458
      %5462 = vset.pattern.permute.xlu0 0
      %5463 = vperm.xlu0 %5462, %v4249
      %v5464 = vpop.permute.xlu0 %5463
      %5467 = vset.pattern.permute.xlu0 0
      %5468 = vperm.xlu0 %5467, %v4250
      %v5469 = vpop.permute.xlu0 %5468
      %5472 = vset.pattern.permute.xlu0 0
      %5473 = vperm.xlu0 %5472, %v4251
      %v5474 = vpop.permute.xlu0 %5473
      %5477 = vset.pattern.permute.xlu0 0
      %5478 = vperm.xlu0 %5477, %v4252
      %v5479 = vpop.permute.xlu0 %5478
      %5482 = vset.pattern.permute.xlu0 0
      %5483 = vperm.xlu0 %5482, %v4253
      %v5484 = vpop.permute.xlu0 %5483
      %5487 = vset.pattern.permute.xlu0 0
      %5488 = vperm.xlu0 %5487, %v4254
      %v5489 = vpop.permute.xlu0 %5488
      %5492 = vset.pattern.permute.xlu0 0
      %5493 = vperm.xlu0 %5492, %v4255
      %v5494 = vpop.permute.xlu0 %5493
      %5497 = vset.pattern.permute.xlu0 0
      %5498 = vperm.xlu0 %5497, %v4256
      %v5499 = vpop.permute.xlu0 %5498
      %5502 = vset.pattern.permute.xlu0 0
      %5503 = vperm.xlu0 %5502, %v4257
      %v5504 = vpop.permute.xlu0 %5503
      %5507 = vset.pattern.permute.xlu0 0
      %5508 = vperm.xlu0 %5507, %v4258
      %v5509 = vpop.permute.xlu0 %5508
      %5512 = vset.pattern.permute.xlu0 0
      %5513 = vperm.xlu0 %5512, %v4259
      %v5514 = vpop.permute.xlu0 %5513
      %5517 = vset.pattern.permute.xlu0 0
      %5518 = vperm.xlu0 %5517, %v4260
      %v5519 = vpop.permute.xlu0 %5518
      %5522 = vset.pattern.permute.xlu0 0
      %5523 = vperm.xlu0 %5522, %v4261
      %v5524 = vpop.permute.xlu0 %5523
      %5527 = vset.pattern.permute.xlu0 0
      %5528 = vperm.xlu0 %5527, %v4262
      %v5529 = vpop.permute.xlu0 %5528
      %5532 = vset.pattern.permute.xlu0 0
      %5533 = vperm.xlu0 %5532, %v4263
      %v5534 = vpop.permute.xlu0 %5533
      %5537 = vset.pattern.permute.xlu0 0
      %5538 = vperm.xlu0 %5537, %v4264
      %v5539 = vpop.permute.xlu0 %5538
      %5542 = vset.pattern.permute.xlu0 0
      %5543 = vperm.xlu0 %5542, %v4265
      %v5544 = vpop.permute.xlu0 %5543
      %5547 = vset.pattern.permute.xlu0 0
      %5548 = vperm.xlu0 %5547, %v4266
      %v5549 = vpop.permute.xlu0 %5548
      %5552 = vset.pattern.permute.xlu0 0
      %5553 = vperm.xlu0 %5552, %v4267
      %v5554 = vpop.permute.xlu0 %5553
      %5557 = vset.pattern.permute.xlu0 0
      %5558 = vperm.xlu0 %5557, %v4268
      %v5559 = vpop.permute.xlu0 %5558
      %5562 = vset.pattern.permute.xlu0 0
      %5563 = vperm.xlu0 %5562, %v4269
      %v5564 = vpop.permute.xlu0 %5563
      %5567 = vset.pattern.permute.xlu0 0
      %5568 = vperm.xlu0 %5567, %v4270
      %v5569 = vpop.permute.xlu0 %5568
      %5572 = vset.pattern.permute.xlu0 0
      %5573 = vperm.xlu0 %5572, %v4271
      %v5574 = vpop.permute.xlu0 %5573
      %5577 = vset.pattern.permute.xlu0 0
      %5578 = vperm.xlu0 %5577, %v4272
      %v5579 = vpop.permute.xlu0 %5578
      %5582 = vset.pattern.permute.xlu0 0
      %5583 = vperm.xlu0 %5582, %v4273
      %v5584 = vpop.permute.xlu0 %5583
      %5587 = vset.pattern.permute.xlu0 0
      %5588 = vperm.xlu0 %5587, %v4274
      %v5589 = vpop.permute.xlu0 %5588
      %5592 = vset.pattern.permute.xlu0 0
      %5593 = vperm.xlu0 %5592, %v4275
      %v5594 = vpop.permute.xlu0 %5593
      %5597 = vset.pattern.permute.xlu0 0
      %5598 = vperm.xlu0 %5597, %v4276
      %v5599 = vpop.permute.xlu0 %5598
      %5602 = vset.pattern.permute.xlu0 0
      %5603 = vperm.xlu0 %5602, %v4277
      %v5604 = vpop.permute.xlu0 %5603
      %5607 = vset.pattern.permute.xlu0 0
      %5608 = vperm.xlu0 %5607, %v4278
      %v5609 = vpop.permute.xlu0 %5608
      %5612 = vset.pattern.permute.xlu0 0
      %5613 = vperm.xlu0 %5612, %v4279
      %v5614 = vpop.permute.xlu0 %5613
      %5617 = vset.pattern.permute.xlu0 0
      %5618 = vperm.xlu0 %5617, %v4280
      %v5619 = vpop.permute.xlu0 %5618
      %5622 = vset.pattern.permute.xlu0 0
      %5623 = vperm.xlu0 %5622, %v4281
      %v5624 = vpop.permute.xlu0 %5623
      %5627 = vset.pattern.permute.xlu0 0
      %5628 = vperm.xlu0 %5627, %v4282
      %v5629 = vpop.permute.xlu0 %5628
      %5632 = vset.pattern.permute.xlu0 0
      %5633 = vperm.xlu0 %5632, %v4283
      %v5634 = vpop.permute.xlu0 %5633
      %5637 = vset.pattern.permute.xlu0 0
      %5638 = vperm.xlu0 %5637, %v4284
      %v5639 = vpop.permute.xlu0 %5638
      %5642 = vset.pattern.permute.xlu0 0
      %5643 = vperm.xlu0 %5642, %v4285
      %v5644 = vpop.permute.xlu0 %5643
      %5647 = vset.pattern.permute.xlu0 0
      %5648 = vperm.xlu0 %5647, %v4286
      %v5649 = vpop.permute.xlu0 %5648
      %5652 = vset.pattern.permute.xlu0 0
      %5653 = vperm.xlu0 %5652, %v4287
      %v5654 = vpop.permute.xlu0 %5653
      %5657 = vset.pattern.permute.xlu0 0
      %5658 = vperm.xlu0 %5657, %v4288
      %v5659 = vpop.permute.xlu0 %5658
      %5662 = vset.pattern.permute.xlu0 0
      %5663 = vperm.xlu0 %5662, %v4289
      %v5664 = vpop.permute.xlu0 %5663
      %5667 = vset.pattern.permute.xlu0 0
      %5668 = vperm.xlu0 %5667, %v4290
      %v5669 = vpop.permute.xlu0 %5668
      %5672 = vset.pattern.permute.xlu0 0
      %5673 = vperm.xlu0 %5672, %v4291
      %v5674 = vpop.permute.xlu0 %5673
      %5677 = vset.pattern.permute.xlu0 0
      %5678 = vperm.xlu0 %5677, %v4292
      %v5679 = vpop.permute.xlu0 %5678
      %5682 = vset.pattern.permute.xlu0 0
      %5683 = vperm.xlu0 %5682, %v4293
      %v5684 = vpop.permute.xlu0 %5683
      %5687 = vset.pattern.permute.xlu0 0
      %5688 = vperm.xlu0 %5687, %v4294
      %v5689 = vpop.permute.xlu0 %5688
      %5692 = vset.pattern.permute.xlu0 0
      %5693 = vperm.xlu0 %5692, %v4295
      %v5694 = vpop.permute.xlu0 %5693
      %5697 = vset.pattern.permute.xlu0 0
      %5698 = vperm.xlu0 %5697, %v4296
      %v5699 = vpop.permute.xlu0 %5698
      %5702 = vset.pattern.permute.xlu0 0
      %5703 = vperm.xlu0 %5702, %v4297
      %v5704 = vpop.permute.xlu0 %5703
      %5707 = vset.pattern.permute.xlu0 0
      %5708 = vperm.xlu0 %5707, %v4298
      %v5709 = vpop.permute.xlu0 %5708
      %5712 = vset.pattern.permute.xlu0 0
      %5713 = vperm.xlu0 %5712, %v4299
      %v5714 = vpop.permute.xlu0 %5713
      %5717 = vset.pattern.permute.xlu0 0
      %5718 = vperm.xlu0 %5717, %v4300
      %v5719 = vpop.permute.xlu0 %5718
      %5722 = vset.pattern.permute.xlu0 0
      %5723 = vperm.xlu0 %5722, %v4301
      %v5724 = vpop.permute.xlu0 %5723
      %5727 = vset.pattern.permute.xlu0 0
      %5728 = vperm.xlu0 %5727, %v4302
      %v5729 = vpop.permute.xlu0 %5728
      %5732 = vset.pattern.permute.xlu0 0
      %5733 = vperm.xlu0 %5732, %v4303
      %v5734 = vpop.permute.xlu0 %5733
      %5737 = vset.pattern.permute.xlu0 0
      %5738 = vperm.xlu0 %5737, %v4304
      %v5739 = vpop.permute.xlu0 %5738
      %5742 = vset.pattern.permute.xlu0 0
      %5743 = vperm.xlu0 %5742, %v4305
      %v5744 = vpop.permute.xlu0 %5743
      %5747 = vset.pattern.permute.xlu0 0
      %5748 = vperm.xlu0 %5747, %v4306
      %v5749 = vpop.permute.xlu0 %5748
      %5752 = vset.pattern.permute.xlu0 0
      %5753 = vperm.xlu0 %5752, %v4307
      %v5754 = vpop.permute.xlu0 %5753
      %5757 = vset.pattern.permute.xlu0 0
      %5758 = vperm.xlu0 %5757, %v4308
      %v5759 = vpop.permute.xlu0 %5758
      %5762 = vset.pattern.permute.xlu0 0
      %5763 = vperm.xlu0 %5762, %v4309
      %v5764 = vpop.permute.xlu0 %5763
      %5767 = vset.pattern.permute.xlu0 0
      %5768 = vperm.xlu0 %5767, %v4310
      %v5769 = vpop.permute.xlu0 %5768
      %5772 = vset.pattern.permute.xlu0 0
      %5773 = vperm.xlu0 %5772, %v4311
      %v5774 = vpop.permute.xlu0 %5773
      %5777 = vset.pattern.permute.xlu0 0
      %5778 = vperm.xlu0 %5777, %v4312
      %v5779 = vpop.permute.xlu0 %5778
      %5782 = vset.pattern.permute.xlu0 0
      %5783 = vperm.xlu0 %5782, %v4313
      %v5784 = vpop.permute.xlu0 %5783
      %5787 = vset.pattern.permute.xlu0 0
      %5788 = vperm.xlu0 %5787, %v4314
      %v5789 = vpop.permute.xlu0 %5788
      %5792 = vset.pattern.permute.xlu0 0
      %5793 = vperm.xlu0 %5792, %v4315
      %v5794 = vpop.permute.xlu0 %5793
      %5797 = vset.pattern.permute.xlu0 0
      %5798 = vperm.xlu0 %5797, %v4316
      %v5799 = vpop.permute.xlu0 %5798
      %5802 = vset.pattern.permute.xlu0 0
      %5803 = vperm.xlu0 %5802, %v4317
      %v5804 = vpop.permute.xlu0 %5803
      %5807 = vset.pattern.permute.xlu0 0
      %5808 = vperm.xlu0 %5807, %v4318
      %v5809 = vpop.permute.xlu0 %5808
      %5812 = vset.pattern.permute.xlu0 0
      %5813 = vperm.xlu0 %5812, %v4319
      %v5814 = vpop.permute.xlu0 %5813
      %5817 = vset.pattern.permute.xlu0 0
      %5818 = vperm.xlu0 %5817, %v4320
      %v5819 = vpop.permute.xlu0 %5818
      %5822 = vset.pattern.permute.xlu0 0
      %5823 = vperm.xlu0 %5822, %v4321
      %v5824 = vpop.permute.xlu0 %5823
      %5827 = vset.pattern.permute.xlu0 0
      %5828 = vperm.xlu0 %5827, %v4322
      %v5829 = vpop.permute.xlu0 %5828
      %5832 = vset.pattern.permute.xlu0 0
      %5833 = vperm.xlu0 %5832, %v4323
      %v5834 = vpop.permute.xlu0 %5833
      %5837 = vset.pattern.permute.xlu0 0
      %5838 = vperm.xlu0 %5837, %v4324
      %v5839 = vpop.permute.xlu0 %5838
      %5842 = vset.pattern.permute.xlu0 0
      %5843 = vperm.xlu0 %5842, %v4325
      %v5844 = vpop.permute.xlu0 %5843
      %5847 = vset.pattern.permute.xlu0 0
      %5848 = vperm.xlu0 %5847, %v4326
      %v5849 = vpop.permute.xlu0 %5848
      %5852 = vset.pattern.permute.xlu0 0
      %5853 = vperm.xlu0 %5852, %v4327
      %v5854 = vpop.permute.xlu0 %5853
      %5857 = vset.pattern.permute.xlu0 0
      %5858 = vperm.xlu0 %5857, %v4328
      %v5859 = vpop.permute.xlu0 %5858
      %5862 = vset.pattern.permute.xlu0 0
      %5863 = vperm.xlu0 %5862, %v4329
      %v5864 = vpop.permute.xlu0 %5863
      %v5866 = vadd.f32 %v4970, %v5229
      %v5867 = vadd.f32 %v4971, %v5229
      %v5868 = vadd.f32 %v4972, %v5234
      %v5869 = vadd.f32 %v4973, %v5234
      %v5870 = vadd.f32 %v4974, %v5239
      %v5871 = vadd.f32 %v4975, %v5239
      %v5872 = vadd.f32 %v4976, %v5244
      %v5873 = vadd.f32 %v4977, %v5244
      %v5874 = vadd.f32 %v4978, %v5249
      %v5875 = vadd.f32 %v4979, %v5249
      %v5876 = vadd.f32 %v4980, %v5254
      %v5877 = vadd.f32 %v4981, %v5254
      %v5878 = vadd.f32 %v4982, %v5259
      %v5879 = vadd.f32 %v4983, %v5259
      %v5880 = vadd.f32 %v4984, %v5264
      %v5881 = vadd.f32 %v4985, %v5264
      %v5882 = vadd.f32 %v4986, %v5269
      %v5883 = vadd.f32 %v4987, %v5269
      %v5884 = vadd.f32 %v4988, %v5274
      %v5885 = vadd.f32 %v4989, %v5274
      %v5886 = vadd.f32 %v4990, %v5279
      %v5887 = vadd.f32 %v4991, %v5279
      %v5888 = vadd.f32 %v4992, %v5284
      %v5889 = vadd.f32 %v4993, %v5284
      %v5890 = vadd.f32 %v4994, %v5289
      %v5891 = vadd.f32 %v4995, %v5289
      %v5892 = vadd.f32 %v4996, %v5294
      %v5893 = vadd.f32 %v4997, %v5294
      %v5894 = vadd.f32 %v4998, %v5299
      %v5895 = vadd.f32 %v4999, %v5299
      %v5896 = vadd.f32 %v5000, %v5304
      %v5897 = vadd.f32 %v5001, %v5304
      %v5898 = vadd.f32 %v5002, %v5309
      %v5899 = vadd.f32 %v5003, %v5309
      %v5900 = vadd.f32 %v5004, %v5314
      %v5901 = vadd.f32 %v5005, %v5314
      %v5902 = vadd.f32 %v5006, %v5319
      %v5903 = vadd.f32 %v5007, %v5319
      %v5904 = vadd.f32 %v5008, %v5324
      %v5905 = vadd.f32 %v5009, %v5324
      %v5906 = vadd.f32 %v5010, %v5329
      %v5907 = vadd.f32 %v5011, %v5329
      %v5908 = vadd.f32 %v5012, %v5334
      %v5909 = vadd.f32 %v5013, %v5334
      %v5910 = vadd.f32 %v5014, %v5339
      %v5911 = vadd.f32 %v5015, %v5339
      %v5912 = vadd.f32 %v5016, %v5344
      %v5913 = vadd.f32 %v5017, %v5344
      %v5914 = vadd.f32 %v5018, %v5349
      %v5915 = vadd.f32 %v5019, %v5349
      %v5916 = vadd.f32 %v5020, %v5354
      %v5917 = vadd.f32 %v5021, %v5354
      %v5918 = vadd.f32 %v5022, %v5359
      %v5919 = vadd.f32 %v5023, %v5359
      %v5920 = vadd.f32 %v5024, %v5364
      %v5921 = vadd.f32 %v5025, %v5364
      %v5922 = vadd.f32 %v5026, %v5369
      %v5923 = vadd.f32 %v5027, %v5369
      %v5924 = vadd.f32 %v5028, %v5374
      %v5925 = vadd.f32 %v5029, %v5374
      %v5926 = vadd.f32 %v5030, %v5379
      %v5927 = vadd.f32 %v5031, %v5379
      %v5928 = vadd.f32 %v5032, %v5384
      %v5929 = vadd.f32 %v5033, %v5384
      %v5930 = vadd.f32 %v5034, %v5389
      %v5931 = vadd.f32 %v5035, %v5389
      %v5932 = vadd.f32 %v5036, %v5394
      %v5933 = vadd.f32 %v5037, %v5394
      %v5934 = vadd.f32 %v5038, %v5399
      %v5935 = vadd.f32 %v5039, %v5399
      %v5936 = vadd.f32 %v5040, %v5404
      %v5937 = vadd.f32 %v5041, %v5404
      %v5938 = vadd.f32 %v5042, %v5409
      %v5939 = vadd.f32 %v5043, %v5409
      %v5940 = vadd.f32 %v5044, %v5414
      %v5941 = vadd.f32 %v5045, %v5414
      %v5942 = vadd.f32 %v5046, %v5419
      %v5943 = vadd.f32 %v5047, %v5419
      %v5944 = vadd.f32 %v5048, %v5424
      %v5945 = vadd.f32 %v5049, %v5424
      %v5946 = vadd.f32 %v5050, %v5429
      %v5947 = vadd.f32 %v5051, %v5429
      %v5948 = vadd.f32 %v5052, %v5434
      %v5949 = vadd.f32 %v5053, %v5434
      %v5950 = vadd.f32 %v5054, %v5439
      %v5951 = vadd.f32 %v5055, %v5439
      %v5952 = vadd.f32 %v5056, %v5444
      %v5953 = vadd.f32 %v5057, %v5444
      %v5954 = vadd.f32 %v5058, %v5449
      %v5955 = vadd.f32 %v5059, %v5449
      %v5956 = vadd.f32 %v5060, %v5454
      %v5957 = vadd.f32 %v5061, %v5454
      %v5958 = vadd.f32 %v5062, %v5459
      %v5959 = vadd.f32 %v5063, %v5459
      %v5960 = vadd.f32 %v5064, %v5464
      %v5961 = vadd.f32 %v5065, %v5464
      %v5962 = vadd.f32 %v5066, %v5469
      %v5963 = vadd.f32 %v5067, %v5469
      %v5964 = vadd.f32 %v5068, %v5474
      %v5965 = vadd.f32 %v5069, %v5474
      %v5966 = vadd.f32 %v5070, %v5479
      %v5967 = vadd.f32 %v5071, %v5479
      %v5968 = vadd.f32 %v5072, %v5484
      %v5969 = vadd.f32 %v5073, %v5484
      %v5970 = vadd.f32 %v5074, %v5489
      %v5971 = vadd.f32 %v5075, %v5489
      %v5972 = vadd.f32 %v5076, %v5494
      %v5973 = vadd.f32 %v5077, %v5494
      %v5974 = vadd.f32 %v5078, %v5499
      %v5975 = vadd.f32 %v5079, %v5499
      %v5976 = vadd.f32 %v5080, %v5504
      %v5977 = vadd.f32 %v5081, %v5504
      %v5978 = vadd.f32 %v5082, %v5509
      %v5979 = vadd.f32 %v5083, %v5509
      %v5980 = vadd.f32 %v5084, %v5514
      %v5981 = vadd.f32 %v5085, %v5514
      %v5982 = vadd.f32 %v5086, %v5519
      %v5983 = vadd.f32 %v5087, %v5519
      %v5984 = vadd.f32 %v5088, %v5524
      %v5985 = vadd.f32 %v5089, %v5524
      %v5986 = vadd.f32 %v5090, %v5529
      %v5987 = vadd.f32 %v5091, %v5529
      %v5988 = vadd.f32 %v5092, %v5534
      %v5989 = vadd.f32 %v5093, %v5534
      %v5990 = vadd.f32 %v5094, %v5539
      %v5991 = vadd.f32 %v5095, %v5539
      %v5992 = vadd.f32 %v5096, %v5544
      %v5993 = vadd.f32 %v5097, %v5544
      %v5994 = vadd.f32 %v5098, %v5549
      %v5995 = vadd.f32 %v5099, %v5549
      %v5996 = vadd.f32 %v5100, %v5554
      %v5997 = vadd.f32 %v5101, %v5554
      %v5998 = vadd.f32 %v5102, %v5559
      %v5999 = vadd.f32 %v5103, %v5559
      %v6000 = vadd.f32 %v5104, %v5564
      %v6001 = vadd.f32 %v5105, %v5564
      %v6002 = vadd.f32 %v5106, %v5569
      %v6003 = vadd.f32 %v5107, %v5569
      %v6004 = vadd.f32 %v5108, %v5574
      %v6005 = vadd.f32 %v5109, %v5574
      %v6006 = vadd.f32 %v5110, %v5579
      %v6007 = vadd.f32 %v5111, %v5579
      %v6008 = vadd.f32 %v5112, %v5584
      %v6009 = vadd.f32 %v5113, %v5584
      %v6010 = vadd.f32 %v5114, %v5589
      %v6011 = vadd.f32 %v5115, %v5589
      %v6012 = vadd.f32 %v5116, %v5594
      %v6013 = vadd.f32 %v5117, %v5594
      %v6014 = vadd.f32 %v5118, %v5599
      %v6015 = vadd.f32 %v5119, %v5599
      %v6016 = vadd.f32 %v5120, %v5604
      %v6017 = vadd.f32 %v5121, %v5604
      %v6018 = vadd.f32 %v5122, %v5609
      %v6019 = vadd.f32 %v5123, %v5609
      %v6020 = vadd.f32 %v5124, %v5614
      %v6021 = vadd.f32 %v5125, %v5614
      %v6022 = vadd.f32 %v5126, %v5619
      %v6023 = vadd.f32 %v5127, %v5619
      %v6024 = vadd.f32 %v5128, %v5624
      %v6025 = vadd.f32 %v5129, %v5624
      %v6026 = vadd.f32 %v5130, %v5629
      %v6027 = vadd.f32 %v5131, %v5629
      %v6028 = vadd.f32 %v5132, %v5634
      %v6029 = vadd.f32 %v5133, %v5634
      %v6030 = vadd.f32 %v5134, %v5639
      %v6031 = vadd.f32 %v5135, %v5639
      %v6032 = vadd.f32 %v5136, %v5644
      %v6033 = vadd.f32 %v5137, %v5644
      %v6034 = vadd.f32 %v5138, %v5649
      %v6035 = vadd.f32 %v5139, %v5649
      %v6036 = vadd.f32 %v5140, %v5654
      %v6037 = vadd.f32 %v5141, %v5654
      %v6038 = vadd.f32 %v5142, %v5659
      %v6039 = vadd.f32 %v5143, %v5659
      %v6040 = vadd.f32 %v5144, %v5664
      %v6041 = vadd.f32 %v5145, %v5664
      %v6042 = vadd.f32 %v5146, %v5669
      %v6043 = vadd.f32 %v5147, %v5669
      %v6044 = vadd.f32 %v5148, %v5674
      %v6045 = vadd.f32 %v5149, %v5674
      %v6046 = vadd.f32 %v5150, %v5679
      %v6047 = vadd.f32 %v5151, %v5679
      %v6048 = vadd.f32 %v5152, %v5684
      %v6049 = vadd.f32 %v5153, %v5684
      %v6050 = vadd.f32 %v5154, %v5689
      %v6051 = vadd.f32 %v5155, %v5689
      %v6052 = vadd.f32 %v5156, %v5694
      %v6053 = vadd.f32 %v5157, %v5694
      %v6054 = vadd.f32 %v5158, %v5699
      %v6055 = vadd.f32 %v5159, %v5699
      %v6056 = vadd.f32 %v5160, %v5704
      %v6057 = vadd.f32 %v5161, %v5704
      %v6058 = vadd.f32 %v5162, %v5709
      %v6059 = vadd.f32 %v5163, %v5709
      %v6060 = vadd.f32 %v5164, %v5714
      %v6061 = vadd.f32 %v5165, %v5714
      %v6062 = vadd.f32 %v5166, %v5719
      %v6063 = vadd.f32 %v5167, %v5719
      %v6064 = vadd.f32 %v5168, %v5724
      %v6065 = vadd.f32 %v5169, %v5724
      %v6066 = vadd.f32 %v5170, %v5729
      %v6067 = vadd.f32 %v5171, %v5729
      %v6068 = vadd.f32 %v5172, %v5734
      %v6069 = vadd.f32 %v5173, %v5734
      %v6070 = vadd.f32 %v5174, %v5739
      %v6071 = vadd.f32 %v5175, %v5739
      %v6072 = vadd.f32 %v5176, %v5744
      %v6073 = vadd.f32 %v5177, %v5744
      %v6074 = vadd.f32 %v5178, %v5749
      %v6075 = vadd.f32 %v5179, %v5749
      %v6076 = vadd.f32 %v5180, %v5754
      %v6077 = vadd.f32 %v5181, %v5754
      %v6078 = vadd.f32 %v5182, %v5759
      %v6079 = vadd.f32 %v5183, %v5759
      %v6080 = vadd.f32 %v5184, %v5764
      %v6081 = vadd.f32 %v5185, %v5764
      %v6082 = vadd.f32 %v5186, %v5769
      %v6083 = vadd.f32 %v5187, %v5769
      %v6084 = vadd.f32 %v5188, %v5774
      %v6085 = vadd.f32 %v5189, %v5774
      %v6086 = vadd.f32 %v5190, %v5779
      %v6087 = vadd.f32 %v5191, %v5779
      %v6088 = vadd.f32 %v5192, %v5784
      %v6089 = vadd.f32 %v5193, %v5784
      %v6090 = vadd.f32 %v5194, %v5789
      %v6091 = vadd.f32 %v5195, %v5789
      %v6092 = vadd.f32 %v5196, %v5794
      %v6093 = vadd.f32 %v5197, %v5794
      %v6094 = vadd.f32 %v5198, %v5799
      %v6095 = vadd.f32 %v5199, %v5799
      %v6096 = vadd.f32 %v5200, %v5804
      %v6097 = vadd.f32 %v5201, %v5804
      %v6098 = vadd.f32 %v5202, %v5809
      %v6099 = vadd.f32 %v5203, %v5809
      %v6100 = vadd.f32 %v5204, %v5814
      %v6101 = vadd.f32 %v5205, %v5814
      %v6102 = vadd.f32 %v5206, %v5819
      %v6103 = vadd.f32 %v5207, %v5819
      %v6104 = vadd.f32 %v5208, %v5824
      %v6105 = vadd.f32 %v5209, %v5824
      %v6106 = vadd.f32 %v5210, %v5829
      %v6107 = vadd.f32 %v5211, %v5829
      %v6108 = vadd.f32 %v5212, %v5834
      %v6109 = vadd.f32 %v5213, %v5834
      %v6110 = vadd.f32 %v5214, %v5839
      %v6111 = vadd.f32 %v5215, %v5839
      %v6112 = vadd.f32 %v5216, %v5844
      %v6113 = vadd.f32 %v5217, %v5844
      %v6114 = vadd.f32 %v5218, %v5849
      %v6115 = vadd.f32 %v5219, %v5849
      %v6116 = vadd.f32 %v5220, %v5854
      %v6117 = vadd.f32 %v5221, %v5854
      %v6118 = vadd.f32 %v5222, %v5859
      %v6119 = vadd.f32 %v5223, %v5859
      %v6120 = vadd.f32 %v5224, %v5864
      %v6121 = vadd.f32 %v5225, %v5864
      %v6122 = vld [vmem:[%s1] sm:$0xff]
      %v6123 = vld [vmem:[%s1 + $0x8] sm:$0xff]
      %v6124 = vld [vmem:[%s1 + $0x10] sm:$0xff]
      %v6125 = vld [vmem:[%s1 + $0x18] sm:$0xff]
      %v6126 = vld [vmem:[%s1 + $0x20] sm:$0xff]
      %v6127 = vld [vmem:[%s1 + $0x28] sm:$0xff]
      %v6128 = vld [vmem:[%s1 + $0x30] sm:$0xff]
      %v6129 = vld [vmem:[%s1 + $0x38] sm:$0xff]
      %v6130 = vld [vmem:[%s1 + $0x40] sm:$0xff]
      %v6131 = vld [vmem:[%s1 + $0x48] sm:$0xff]
      %v6132 = vld [vmem:[%s1 + $0x50] sm:$0xff]
      %v6133 = vld [vmem:[%s1 + $0x58] sm:$0xff]
      %v6134 = vld [vmem:[%s1 + $0x60] sm:$0xff]
      %v6135 = vld [vmem:[%s1 + $0x68] sm:$0xff]
      %v6136 = vld [vmem:[%s1 + $0x70] sm:$0xff]
      %v6137 = vld [vmem:[%s1 + $0x78] sm:$0xff]
      %v6138 = vld [vmem:[%s1 + $0x80] sm:$0xff]
      %v6139 = vld [vmem:[%s1 + $0x88] sm:$0xff]
      %v6140 = vld [vmem:[%s1 + $0x90] sm:$0xff]
      %v6141 = vld [vmem:[%s1 + $0x98] sm:$0xff]
      %v6142 = vld [vmem:[%s1 + $0xa0] sm:$0xff]
      %v6143 = vld [vmem:[%s1 + $0xa8] sm:$0xff]
      %v6144 = vld [vmem:[%s1 + $0xb0] sm:$0xff]
      %v6145 = vld [vmem:[%s1 + $0xb8] sm:$0xff]
      %v6146 = vld [vmem:[%s1 + $0xc0] sm:$0xff]
      %v6147 = vld [vmem:[%s1 + $0xc8] sm:$0xff]
      %v6148 = vld [vmem:[%s1 + $0xd0] sm:$0xff]
      %v6149 = vld [vmem:[%s1 + $0xd8] sm:$0xff]
      %v6150 = vld [vmem:[%s1 + $0xe0] sm:$0xff]
      %v6151 = vld [vmem:[%s1 + $0xe8] sm:$0xff]
      %v6152 = vld [vmem:[%s1 + $0xf0] sm:$0xff]
      %v6153 = vld [vmem:[%s1 + $0xf8] sm:$0xff]
      %v6154 = vld [vmem:[%s1 + $0x100] sm:$0xff]
      %v6155 = vld [vmem:[%s1 + $0x108] sm:$0xff]
      %v6156 = vld [vmem:[%s1 + $0x110] sm:$0xff]
      %v6157 = vld [vmem:[%s1 + $0x118] sm:$0xff]
      %v6158 = vld [vmem:[%s1 + $0x120] sm:$0xff]
      %v6159 = vld [vmem:[%s1 + $0x128] sm:$0xff]
      %v6160 = vld [vmem:[%s1 + $0x130] sm:$0xff]
      %v6161 = vld [vmem:[%s1 + $0x138] sm:$0xff]
      %v6162 = vld [vmem:[%s1 + $0x140] sm:$0xff]
      %v6163 = vld [vmem:[%s1 + $0x148] sm:$0xff]
      %v6164 = vld [vmem:[%s1 + $0x150] sm:$0xff]
      %v6165 = vld [vmem:[%s1 + $0x158] sm:$0xff]
      %v6166 = vld [vmem:[%s1 + $0x160] sm:$0xff]
      %v6167 = vld [vmem:[%s1 + $0x168] sm:$0xff]
      %v6168 = vld [vmem:[%s1 + $0x170] sm:$0xff]
      %v6169 = vld [vmem:[%s1 + $0x178] sm:$0xff]
      %v6170 = vld [vmem:[%s1 + $0x180] sm:$0xff]
      %v6171 = vld [vmem:[%s1 + $0x188] sm:$0xff]
      %v6172 = vld [vmem:[%s1 + $0x190] sm:$0xff]
      %v6173 = vld [vmem:[%s1 + $0x198] sm:$0xff]
      %v6174 = vld [vmem:[%s1 + $0x1a0] sm:$0xff]
      %v6175 = vld [vmem:[%s1 + $0x1a8] sm:$0xff]
      %v6176 = vld [vmem:[%s1 + $0x1b0] sm:$0xff]
      %v6177 = vld [vmem:[%s1 + $0x1b8] sm:$0xff]
      %v6178 = vld [vmem:[%s1 + $0x1c0] sm:$0xff]
      %v6179 = vld [vmem:[%s1 + $0x1c8] sm:$0xff]
      %v6180 = vld [vmem:[%s1 + $0x1d0] sm:$0xff]
      %v6181 = vld [vmem:[%s1 + $0x1d8] sm:$0xff]
      %v6182 = vld [vmem:[%s1 + $0x1e0] sm:$0xff]
      %v6183 = vld [vmem:[%s1 + $0x1e8] sm:$0xff]
      %v6184 = vld [vmem:[%s1 + $0x1f0] sm:$0xff]
      %v6185 = vld [vmem:[%s1 + $0x1f8] sm:$0xff]
      %v6186 = vld [vmem:[%s1 + $0x200] sm:$0xff]
      %v6187 = vld [vmem:[%s1 + $0x208] sm:$0xff]
      %v6188 = vld [vmem:[%s1 + $0x210] sm:$0xff]
      %v6189 = vld [vmem:[%s1 + $0x218] sm:$0xff]
      %v6190 = vld [vmem:[%s1 + $0x220] sm:$0xff]
      %v6191 = vld [vmem:[%s1 + $0x228] sm:$0xff]
      %v6192 = vld [vmem:[%s1 + $0x230] sm:$0xff]
      %v6193 = vld [vmem:[%s1 + $0x238] sm:$0xff]
      %v6194 = vld [vmem:[%s1 + $0x240] sm:$0xff]
      %v6195 = vld [vmem:[%s1 + $0x248] sm:$0xff]
      %v6196 = vld [vmem:[%s1 + $0x250] sm:$0xff]
      %v6197 = vld [vmem:[%s1 + $0x258] sm:$0xff]
      %v6198 = vld [vmem:[%s1 + $0x260] sm:$0xff]
      %v6199 = vld [vmem:[%s1 + $0x268] sm:$0xff]
      %v6200 = vld [vmem:[%s1 + $0x270] sm:$0xff]
      %v6201 = vld [vmem:[%s1 + $0x278] sm:$0xff]
      %v6202 = vld [vmem:[%s1 + $0x280] sm:$0xff]
      %v6203 = vld [vmem:[%s1 + $0x288] sm:$0xff]
      %v6204 = vld [vmem:[%s1 + $0x290] sm:$0xff]
      %v6205 = vld [vmem:[%s1 + $0x298] sm:$0xff]
      %v6206 = vld [vmem:[%s1 + $0x2a0] sm:$0xff]
      %v6207 = vld [vmem:[%s1 + $0x2a8] sm:$0xff]
      %v6208 = vld [vmem:[%s1 + $0x2b0] sm:$0xff]
      %v6209 = vld [vmem:[%s1 + $0x2b8] sm:$0xff]
      %v6210 = vld [vmem:[%s1 + $0x2c0] sm:$0xff]
      %v6211 = vld [vmem:[%s1 + $0x2c8] sm:$0xff]
      %v6212 = vld [vmem:[%s1 + $0x2d0] sm:$0xff]
      %v6213 = vld [vmem:[%s1 + $0x2d8] sm:$0xff]
      %v6214 = vld [vmem:[%s1 + $0x2e0] sm:$0xff]
      %v6215 = vld [vmem:[%s1 + $0x2e8] sm:$0xff]
      %v6216 = vld [vmem:[%s1 + $0x2f0] sm:$0xff]
      %v6217 = vld [vmem:[%s1 + $0x2f8] sm:$0xff]
      %v6218 = vld [vmem:[%s1 + $0x300] sm:$0xff]
      %v6219 = vld [vmem:[%s1 + $0x308] sm:$0xff]
      %v6220 = vld [vmem:[%s1 + $0x310] sm:$0xff]
      %v6221 = vld [vmem:[%s1 + $0x318] sm:$0xff]
      %v6222 = vld [vmem:[%s1 + $0x320] sm:$0xff]
      %v6223 = vld [vmem:[%s1 + $0x328] sm:$0xff]
      %v6224 = vld [vmem:[%s1 + $0x330] sm:$0xff]
      %v6225 = vld [vmem:[%s1 + $0x338] sm:$0xff]
      %v6226 = vld [vmem:[%s1 + $0x340] sm:$0xff]
      %v6227 = vld [vmem:[%s1 + $0x348] sm:$0xff]
      %v6228 = vld [vmem:[%s1 + $0x350] sm:$0xff]
      %v6229 = vld [vmem:[%s1 + $0x358] sm:$0xff]
      %v6230 = vld [vmem:[%s1 + $0x360] sm:$0xff]
      %v6231 = vld [vmem:[%s1 + $0x368] sm:$0xff]
      %v6232 = vld [vmem:[%s1 + $0x370] sm:$0xff]
      %v6233 = vld [vmem:[%s1 + $0x378] sm:$0xff]
      %v6234 = vld [vmem:[%s1 + $0x380] sm:$0xff]
      %v6235 = vld [vmem:[%s1 + $0x388] sm:$0xff]
      %v6236 = vld [vmem:[%s1 + $0x390] sm:$0xff]
      %v6237 = vld [vmem:[%s1 + $0x398] sm:$0xff]
      %v6238 = vld [vmem:[%s1 + $0x3a0] sm:$0xff]
      %v6239 = vld [vmem:[%s1 + $0x3a8] sm:$0xff]
      %v6240 = vld [vmem:[%s1 + $0x3b0] sm:$0xff]
      %v6241 = vld [vmem:[%s1 + $0x3b8] sm:$0xff]
      %v6242 = vld [vmem:[%s1 + $0x3c0] sm:$0xff]
      %v6243 = vld [vmem:[%s1 + $0x3c8] sm:$0xff]
      %v6244 = vld [vmem:[%s1 + $0x3d0] sm:$0xff]
      %v6245 = vld [vmem:[%s1 + $0x3d8] sm:$0xff]
      %v6246 = vld [vmem:[%s1 + $0x3e0] sm:$0xff]
      %v6247 = vld [vmem:[%s1 + $0x3e8] sm:$0xff]
      %v6248 = vld [vmem:[%s1 + $0x3f0] sm:$0xff]
      %v6249 = vld [vmem:[%s1 + $0x3f8] sm:$0xff]
      %v6250 = vld [vmem:[%s1 + $0x400] sm:$0xff]
      %v6251 = vld [vmem:[%s1 + $0x408] sm:$0xff]
      %v6252 = vld [vmem:[%s1 + $0x410] sm:$0xff]
      %v6253 = vld [vmem:[%s1 + $0x418] sm:$0xff]
      %v6254 = vld [vmem:[%s1 + $0x420] sm:$0xff]
      %v6255 = vld [vmem:[%s1 + $0x428] sm:$0xff]
      %v6256 = vld [vmem:[%s1 + $0x430] sm:$0xff]
      %v6257 = vld [vmem:[%s1 + $0x438] sm:$0xff]
      %v6258 = vld [vmem:[%s1 + $0x440] sm:$0xff]
      %v6259 = vld [vmem:[%s1 + $0x448] sm:$0xff]
      %v6260 = vld [vmem:[%s1 + $0x450] sm:$0xff]
      %v6261 = vld [vmem:[%s1 + $0x458] sm:$0xff]
      %v6262 = vld [vmem:[%s1 + $0x460] sm:$0xff]
      %v6263 = vld [vmem:[%s1 + $0x468] sm:$0xff]
      %v6264 = vld [vmem:[%s1 + $0x470] sm:$0xff]
      %v6265 = vld [vmem:[%s1 + $0x478] sm:$0xff]
      %v6266 = vld [vmem:[%s1 + $0x480] sm:$0xff]
      %v6267 = vld [vmem:[%s1 + $0x488] sm:$0xff]
      %v6268 = vld [vmem:[%s1 + $0x490] sm:$0xff]
      %v6269 = vld [vmem:[%s1 + $0x498] sm:$0xff]
      %v6270 = vld [vmem:[%s1 + $0x4a0] sm:$0xff]
      %v6271 = vld [vmem:[%s1 + $0x4a8] sm:$0xff]
      %v6272 = vld [vmem:[%s1 + $0x4b0] sm:$0xff]
      %v6273 = vld [vmem:[%s1 + $0x4b8] sm:$0xff]
      %v6274 = vld [vmem:[%s1 + $0x4c0] sm:$0xff]
      %v6275 = vld [vmem:[%s1 + $0x4c8] sm:$0xff]
      %v6276 = vld [vmem:[%s1 + $0x4d0] sm:$0xff]
      %v6277 = vld [vmem:[%s1 + $0x4d8] sm:$0xff]
      %v6278 = vld [vmem:[%s1 + $0x4e0] sm:$0xff]
      %v6279 = vld [vmem:[%s1 + $0x4e8] sm:$0xff]
      %v6280 = vld [vmem:[%s1 + $0x4f0] sm:$0xff]
      %v6281 = vld [vmem:[%s1 + $0x4f8] sm:$0xff]
      %v6282 = vld [vmem:[%s1 + $0x500] sm:$0xff]
      %v6283 = vld [vmem:[%s1 + $0x508] sm:$0xff]
      %v6284 = vld [vmem:[%s1 + $0x510] sm:$0xff]
      %v6285 = vld [vmem:[%s1 + $0x518] sm:$0xff]
      %v6286 = vld [vmem:[%s1 + $0x520] sm:$0xff]
      %v6287 = vld [vmem:[%s1 + $0x528] sm:$0xff]
      %v6288 = vld [vmem:[%s1 + $0x530] sm:$0xff]
      %v6289 = vld [vmem:[%s1 + $0x538] sm:$0xff]
      %v6290 = vld [vmem:[%s1 + $0x540] sm:$0xff]
      %v6291 = vld [vmem:[%s1 + $0x548] sm:$0xff]
      %v6292 = vld [vmem:[%s1 + $0x550] sm:$0xff]
      %v6293 = vld [vmem:[%s1 + $0x558] sm:$0xff]
      %v6294 = vld [vmem:[%s1 + $0x560] sm:$0xff]
      %v6295 = vld [vmem:[%s1 + $0x568] sm:$0xff]
      %v6296 = vld [vmem:[%s1 + $0x570] sm:$0xff]
      %v6297 = vld [vmem:[%s1 + $0x578] sm:$0xff]
      %v6298 = vld [vmem:[%s1 + $0x580] sm:$0xff]
      %v6299 = vld [vmem:[%s1 + $0x588] sm:$0xff]
      %v6300 = vld [vmem:[%s1 + $0x590] sm:$0xff]
      %v6301 = vld [vmem:[%s1 + $0x598] sm:$0xff]
      %v6302 = vld [vmem:[%s1 + $0x5a0] sm:$0xff]
      %v6303 = vld [vmem:[%s1 + $0x5a8] sm:$0xff]
      %v6304 = vld [vmem:[%s1 + $0x5b0] sm:$0xff]
      %v6305 = vld [vmem:[%s1 + $0x5b8] sm:$0xff]
      %v6306 = vld [vmem:[%s1 + $0x5c0] sm:$0xff]
      %v6307 = vld [vmem:[%s1 + $0x5c8] sm:$0xff]
      %v6308 = vld [vmem:[%s1 + $0x5d0] sm:$0xff]
      %v6309 = vld [vmem:[%s1 + $0x5d8] sm:$0xff]
      %v6310 = vld [vmem:[%s1 + $0x5e0] sm:$0xff]
      %v6311 = vld [vmem:[%s1 + $0x5e8] sm:$0xff]
      %v6312 = vld [vmem:[%s1 + $0x5f0] sm:$0xff]
      %v6313 = vld [vmem:[%s1 + $0x5f8] sm:$0xff]
      %v6314 = vld [vmem:[%s1 + $0x600] sm:$0xff]
      %v6315 = vld [vmem:[%s1 + $0x608] sm:$0xff]
      %v6316 = vld [vmem:[%s1 + $0x610] sm:$0xff]
      %v6317 = vld [vmem:[%s1 + $0x618] sm:$0xff]
      %v6318 = vld [vmem:[%s1 + $0x620] sm:$0xff]
      %v6319 = vld [vmem:[%s1 + $0x628] sm:$0xff]
      %v6320 = vld [vmem:[%s1 + $0x630] sm:$0xff]
      %v6321 = vld [vmem:[%s1 + $0x638] sm:$0xff]
      %v6322 = vld [vmem:[%s1 + $0x640] sm:$0xff]
      %v6323 = vld [vmem:[%s1 + $0x648] sm:$0xff]
      %v6324 = vld [vmem:[%s1 + $0x650] sm:$0xff]
      %v6325 = vld [vmem:[%s1 + $0x658] sm:$0xff]
      %v6326 = vld [vmem:[%s1 + $0x660] sm:$0xff]
      %v6327 = vld [vmem:[%s1 + $0x668] sm:$0xff]
      %v6328 = vld [vmem:[%s1 + $0x670] sm:$0xff]
      %v6329 = vld [vmem:[%s1 + $0x678] sm:$0xff]
      %v6330 = vld [vmem:[%s1 + $0x680] sm:$0xff]
      %v6331 = vld [vmem:[%s1 + $0x688] sm:$0xff]
      %v6332 = vld [vmem:[%s1 + $0x690] sm:$0xff]
      %v6333 = vld [vmem:[%s1 + $0x698] sm:$0xff]
      %v6334 = vld [vmem:[%s1 + $0x6a0] sm:$0xff]
      %v6335 = vld [vmem:[%s1 + $0x6a8] sm:$0xff]
      %v6336 = vld [vmem:[%s1 + $0x6b0] sm:$0xff]
      %v6337 = vld [vmem:[%s1 + $0x6b8] sm:$0xff]
      %v6338 = vld [vmem:[%s1 + $0x6c0] sm:$0xff]
      %v6339 = vld [vmem:[%s1 + $0x6c8] sm:$0xff]
      %v6340 = vld [vmem:[%s1 + $0x6d0] sm:$0xff]
      %v6341 = vld [vmem:[%s1 + $0x6d8] sm:$0xff]
      %v6342 = vld [vmem:[%s1 + $0x6e0] sm:$0xff]
      %v6343 = vld [vmem:[%s1 + $0x6e8] sm:$0xff]
      %v6344 = vld [vmem:[%s1 + $0x6f0] sm:$0xff]
      %v6345 = vld [vmem:[%s1 + $0x6f8] sm:$0xff]
      %v6346 = vld [vmem:[%s1 + $0x700] sm:$0xff]
      %v6347 = vld [vmem:[%s1 + $0x708] sm:$0xff]
      %v6348 = vld [vmem:[%s1 + $0x710] sm:$0xff]
      %v6349 = vld [vmem:[%s1 + $0x718] sm:$0xff]
      %v6350 = vld [vmem:[%s1 + $0x720] sm:$0xff]
      %v6351 = vld [vmem:[%s1 + $0x728] sm:$0xff]
      %v6352 = vld [vmem:[%s1 + $0x730] sm:$0xff]
      %v6353 = vld [vmem:[%s1 + $0x738] sm:$0xff]
      %v6354 = vld [vmem:[%s1 + $0x740] sm:$0xff]
      %v6355 = vld [vmem:[%s1 + $0x748] sm:$0xff]
      %v6356 = vld [vmem:[%s1 + $0x750] sm:$0xff]
      %v6357 = vld [vmem:[%s1 + $0x758] sm:$0xff]
      %v6358 = vld [vmem:[%s1 + $0x760] sm:$0xff]
      %v6359 = vld [vmem:[%s1 + $0x768] sm:$0xff]
      %v6360 = vld [vmem:[%s1 + $0x770] sm:$0xff]
      %v6361 = vld [vmem:[%s1 + $0x778] sm:$0xff]
      %v6362 = vld [vmem:[%s1 + $0x780] sm:$0xff]
      %v6363 = vld [vmem:[%s1 + $0x788] sm:$0xff]
      %v6364 = vld [vmem:[%s1 + $0x790] sm:$0xff]
      %v6365 = vld [vmem:[%s1 + $0x798] sm:$0xff]
      %v6366 = vld [vmem:[%s1 + $0x7a0] sm:$0xff]
      %v6367 = vld [vmem:[%s1 + $0x7a8] sm:$0xff]
      %v6368 = vld [vmem:[%s1 + $0x7b0] sm:$0xff]
      %v6369 = vld [vmem:[%s1 + $0x7b8] sm:$0xff]
      %v6370 = vld [vmem:[%s1 + $0x7c0] sm:$0xff]
      %v6371 = vld [vmem:[%s1 + $0x7c8] sm:$0xff]
      %v6372 = vld [vmem:[%s1 + $0x7d0] sm:$0xff]
      %v6373 = vld [vmem:[%s1 + $0x7d8] sm:$0xff]
      %v6374 = vld [vmem:[%s1 + $0x7e0] sm:$0xff]
      %v6375 = vld [vmem:[%s1 + $0x7e8] sm:$0xff]
      %v6376 = vld [vmem:[%s1 + $0x7f0] sm:$0xff]
      %v6377 = vld [vmem:[%s1 + $0x7f8] sm:$0xff]
      %v6378 = vadd.f32 %v5866, %v6122
      %v6379 = vadd.f32 %v5867, %v6123
      %v6380 = vadd.f32 %v5868, %v6124
      %v6381 = vadd.f32 %v5869, %v6125
      %v6382 = vadd.f32 %v5870, %v6126
      %v6383 = vadd.f32 %v5871, %v6127
      %v6384 = vadd.f32 %v5872, %v6128
      %v6385 = vadd.f32 %v5873, %v6129
      %v6386 = vadd.f32 %v5874, %v6130
      %v6387 = vadd.f32 %v5875, %v6131
      %v6388 = vadd.f32 %v5876, %v6132
      %v6389 = vadd.f32 %v5877, %v6133
      %v6390 = vadd.f32 %v5878, %v6134
      %v6391 = vadd.f32 %v5879, %v6135
      %v6392 = vadd.f32 %v5880, %v6136
      %v6393 = vadd.f32 %v5881, %v6137
      %v6394 = vadd.f32 %v5882, %v6138
      %v6395 = vadd.f32 %v5883, %v6139
      %v6396 = vadd.f32 %v5884, %v6140
      %v6397 = vadd.f32 %v5885, %v6141
      %v6398 = vadd.f32 %v5886, %v6142
      %v6399 = vadd.f32 %v5887, %v6143
      %v6400 = vadd.f32 %v5888, %v6144
      %v6401 = vadd.f32 %v5889, %v6145
      %v6402 = vadd.f32 %v5890, %v6146
      %v6403 = vadd.f32 %v5891, %v6147
      %v6404 = vadd.f32 %v5892, %v6148
      %v6405 = vadd.f32 %v5893, %v6149
      %v6406 = vadd.f32 %v5894, %v6150
      %v6407 = vadd.f32 %v5895, %v6151
      %v6408 = vadd.f32 %v5896, %v6152
      %v6409 = vadd.f32 %v5897, %v6153
      %v6410 = vadd.f32 %v5898, %v6154
      %v6411 = vadd.f32 %v5899, %v6155
      %v6412 = vadd.f32 %v5900, %v6156
      %v6413 = vadd.f32 %v5901, %v6157
      %v6414 = vadd.f32 %v5902, %v6158
      %v6415 = vadd.f32 %v5903, %v6159
      %v6416 = vadd.f32 %v5904, %v6160
      %v6417 = vadd.f32 %v5905, %v6161
      %v6418 = vadd.f32 %v5906, %v6162
      %v6419 = vadd.f32 %v5907, %v6163
      %v6420 = vadd.f32 %v5908, %v6164
      %v6421 = vadd.f32 %v5909, %v6165
      %v6422 = vadd.f32 %v5910, %v6166
      %v6423 = vadd.f32 %v5911, %v6167
      %v6424 = vadd.f32 %v5912, %v6168
      %v6425 = vadd.f32 %v5913, %v6169
      %v6426 = vadd.f32 %v5914, %v6170
      %v6427 = vadd.f32 %v5915, %v6171
      %v6428 = vadd.f32 %v5916, %v6172
      %v6429 = vadd.f32 %v5917, %v6173
      %v6430 = vadd.f32 %v5918, %v6174
      %v6431 = vadd.f32 %v5919, %v6175
      %v6432 = vadd.f32 %v5920, %v6176
      %v6433 = vadd.f32 %v5921, %v6177
      %v6434 = vadd.f32 %v5922, %v6178
      %v6435 = vadd.f32 %v5923, %v6179
      %v6436 = vadd.f32 %v5924, %v6180
      %v6437 = vadd.f32 %v5925, %v6181
      %v6438 = vadd.f32 %v5926, %v6182
      %v6439 = vadd.f32 %v5927, %v6183
      %v6440 = vadd.f32 %v5928, %v6184
      %v6441 = vadd.f32 %v5929, %v6185
      %v6442 = vadd.f32 %v5930, %v6186
      %v6443 = vadd.f32 %v5931, %v6187
      %v6444 = vadd.f32 %v5932, %v6188
      %v6445 = vadd.f32 %v5933, %v6189
      %v6446 = vadd.f32 %v5934, %v6190
      %v6447 = vadd.f32 %v5935, %v6191
      %v6448 = vadd.f32 %v5936, %v6192
      %v6449 = vadd.f32 %v5937, %v6193
      %v6450 = vadd.f32 %v5938, %v6194
      %v6451 = vadd.f32 %v5939, %v6195
      %v6452 = vadd.f32 %v5940, %v6196
      %v6453 = vadd.f32 %v5941, %v6197
      %v6454 = vadd.f32 %v5942, %v6198
      %v6455 = vadd.f32 %v5943, %v6199
      %v6456 = vadd.f32 %v5944, %v6200
      %v6457 = vadd.f32 %v5945, %v6201
      %v6458 = vadd.f32 %v5946, %v6202
      %v6459 = vadd.f32 %v5947, %v6203
      %v6460 = vadd.f32 %v5948, %v6204
      %v6461 = vadd.f32 %v5949, %v6205
      %v6462 = vadd.f32 %v5950, %v6206
      %v6463 = vadd.f32 %v5951, %v6207
      %v6464 = vadd.f32 %v5952, %v6208
      %v6465 = vadd.f32 %v5953, %v6209
      %v6466 = vadd.f32 %v5954, %v6210
      %v6467 = vadd.f32 %v5955, %v6211
      %v6468 = vadd.f32 %v5956, %v6212
      %v6469 = vadd.f32 %v5957, %v6213
      %v6470 = vadd.f32 %v5958, %v6214
      %v6471 = vadd.f32 %v5959, %v6215
      %v6472 = vadd.f32 %v5960, %v6216
      %v6473 = vadd.f32 %v5961, %v6217
      %v6474 = vadd.f32 %v5962, %v6218
      %v6475 = vadd.f32 %v5963, %v6219
      %v6476 = vadd.f32 %v5964, %v6220
      %v6477 = vadd.f32 %v5965, %v6221
      %v6478 = vadd.f32 %v5966, %v6222
      %v6479 = vadd.f32 %v5967, %v6223
      %v6480 = vadd.f32 %v5968, %v6224
      %v6481 = vadd.f32 %v5969, %v6225
      %v6482 = vadd.f32 %v5970, %v6226
      %v6483 = vadd.f32 %v5971, %v6227
      %v6484 = vadd.f32 %v5972, %v6228
      %v6485 = vadd.f32 %v5973, %v6229
      %v6486 = vadd.f32 %v5974, %v6230
      %v6487 = vadd.f32 %v5975, %v6231
      %v6488 = vadd.f32 %v5976, %v6232
      %v6489 = vadd.f32 %v5977, %v6233
      %v6490 = vadd.f32 %v5978, %v6234
      %v6491 = vadd.f32 %v5979, %v6235
      %v6492 = vadd.f32 %v5980, %v6236
      %v6493 = vadd.f32 %v5981, %v6237
      %v6494 = vadd.f32 %v5982, %v6238
      %v6495 = vadd.f32 %v5983, %v6239
      %v6496 = vadd.f32 %v5984, %v6240
      %v6497 = vadd.f32 %v5985, %v6241
      %v6498 = vadd.f32 %v5986, %v6242
      %v6499 = vadd.f32 %v5987, %v6243
      %v6500 = vadd.f32 %v5988, %v6244
      %v6501 = vadd.f32 %v5989, %v6245
      %v6502 = vadd.f32 %v5990, %v6246
      %v6503 = vadd.f32 %v5991, %v6247
      %v6504 = vadd.f32 %v5992, %v6248
      %v6505 = vadd.f32 %v5993, %v6249
      %v6506 = vadd.f32 %v5994, %v6250
      %v6507 = vadd.f32 %v5995, %v6251
      %v6508 = vadd.f32 %v5996, %v6252
      %v6509 = vadd.f32 %v5997, %v6253
      %v6510 = vadd.f32 %v5998, %v6254
      %v6511 = vadd.f32 %v5999, %v6255
      %v6512 = vadd.f32 %v6000, %v6256
      %v6513 = vadd.f32 %v6001, %v6257
      %v6514 = vadd.f32 %v6002, %v6258
      %v6515 = vadd.f32 %v6003, %v6259
      %v6516 = vadd.f32 %v6004, %v6260
      %v6517 = vadd.f32 %v6005, %v6261
      %v6518 = vadd.f32 %v6006, %v6262
      %v6519 = vadd.f32 %v6007, %v6263
      %v6520 = vadd.f32 %v6008, %v6264
      %v6521 = vadd.f32 %v6009, %v6265
      %v6522 = vadd.f32 %v6010, %v6266
      %v6523 = vadd.f32 %v6011, %v6267
      %v6524 = vadd.f32 %v6012, %v6268
      %v6525 = vadd.f32 %v6013, %v6269
      %v6526 = vadd.f32 %v6014, %v6270
      %v6527 = vadd.f32 %v6015, %v6271
      %v6528 = vadd.f32 %v6016, %v6272
      %v6529 = vadd.f32 %v6017, %v6273
      %v6530 = vadd.f32 %v6018, %v6274
      %v6531 = vadd.f32 %v6019, %v6275
      %v6532 = vadd.f32 %v6020, %v6276
      %v6533 = vadd.f32 %v6021, %v6277
      %v6534 = vadd.f32 %v6022, %v6278
      %v6535 = vadd.f32 %v6023, %v6279
      %v6536 = vadd.f32 %v6024, %v6280
      %v6537 = vadd.f32 %v6025, %v6281
      %v6538 = vadd.f32 %v6026, %v6282
      %v6539 = vadd.f32 %v6027, %v6283
      %v6540 = vadd.f32 %v6028, %v6284
      %v6541 = vadd.f32 %v6029, %v6285
      %v6542 = vadd.f32 %v6030, %v6286
      %v6543 = vadd.f32 %v6031, %v6287
      %v6544 = vadd.f32 %v6032, %v6288
      %v6545 = vadd.f32 %v6033, %v6289
      %v6546 = vadd.f32 %v6034, %v6290
      %v6547 = vadd.f32 %v6035, %v6291
      %v6548 = vadd.f32 %v6036, %v6292
      %v6549 = vadd.f32 %v6037, %v6293
      %v6550 = vadd.f32 %v6038, %v6294
      %v6551 = vadd.f32 %v6039, %v6295
      %v6552 = vadd.f32 %v6040, %v6296
      %v6553 = vadd.f32 %v6041, %v6297
      %v6554 = vadd.f32 %v6042, %v6298
      %v6555 = vadd.f32 %v6043, %v6299
      %v6556 = vadd.f32 %v6044, %v6300
      %v6557 = vadd.f32 %v6045, %v6301
      %v6558 = vadd.f32 %v6046, %v6302
      %v6559 = vadd.f32 %v6047, %v6303
      %v6560 = vadd.f32 %v6048, %v6304
      %v6561 = vadd.f32 %v6049, %v6305
      %v6562 = vadd.f32 %v6050, %v6306
      %v6563 = vadd.f32 %v6051, %v6307
      %v6564 = vadd.f32 %v6052, %v6308
      %v6565 = vadd.f32 %v6053, %v6309
      %v6566 = vadd.f32 %v6054, %v6310
      %v6567 = vadd.f32 %v6055, %v6311
      %v6568 = vadd.f32 %v6056, %v6312
      %v6569 = vadd.f32 %v6057, %v6313
      %v6570 = vadd.f32 %v6058, %v6314
      %v6571 = vadd.f32 %v6059, %v6315
      %v6572 = vadd.f32 %v6060, %v6316
      %v6573 = vadd.f32 %v6061, %v6317
      %v6574 = vadd.f32 %v6062, %v6318
      %v6575 = vadd.f32 %v6063, %v6319
      %v6576 = vadd.f32 %v6064, %v6320
      %v6577 = vadd.f32 %v6065, %v6321
      %v6578 = vadd.f32 %v6066, %v6322
      %v6579 = vadd.f32 %v6067, %v6323
      %v6580 = vadd.f32 %v6068, %v6324
      %v6581 = vadd.f32 %v6069, %v6325
      %v6582 = vadd.f32 %v6070, %v6326
      %v6583 = vadd.f32 %v6071, %v6327
      %v6584 = vadd.f32 %v6072, %v6328
      %v6585 = vadd.f32 %v6073, %v6329
      %v6586 = vadd.f32 %v6074, %v6330
      %v6587 = vadd.f32 %v6075, %v6331
      %v6588 = vadd.f32 %v6076, %v6332
      %v6589 = vadd.f32 %v6077, %v6333
      %v6590 = vadd.f32 %v6078, %v6334
      %v6591 = vadd.f32 %v6079, %v6335
      %v6592 = vadd.f32 %v6080, %v6336
      %v6593 = vadd.f32 %v6081, %v6337
      %v6594 = vadd.f32 %v6082, %v6338
      %v6595 = vadd.f32 %v6083, %v6339
      %v6596 = vadd.f32 %v6084, %v6340
      %v6597 = vadd.f32 %v6085, %v6341
      %v6598 = vadd.f32 %v6086, %v6342
      %v6599 = vadd.f32 %v6087, %v6343
      %v6600 = vadd.f32 %v6088, %v6344
      %v6601 = vadd.f32 %v6089, %v6345
      %v6602 = vadd.f32 %v6090, %v6346
      %v6603 = vadd.f32 %v6091, %v6347
      %v6604 = vadd.f32 %v6092, %v6348
      %v6605 = vadd.f32 %v6093, %v6349
      %v6606 = vadd.f32 %v6094, %v6350
      %v6607 = vadd.f32 %v6095, %v6351
      %v6608 = vadd.f32 %v6096, %v6352
      %v6609 = vadd.f32 %v6097, %v6353
      %v6610 = vadd.f32 %v6098, %v6354
      %v6611 = vadd.f32 %v6099, %v6355
      %v6612 = vadd.f32 %v6100, %v6356
      %v6613 = vadd.f32 %v6101, %v6357
      %v6614 = vadd.f32 %v6102, %v6358
      %v6615 = vadd.f32 %v6103, %v6359
      %v6616 = vadd.f32 %v6104, %v6360
      %v6617 = vadd.f32 %v6105, %v6361
      %v6618 = vadd.f32 %v6106, %v6362
      %v6619 = vadd.f32 %v6107, %v6363
      %v6620 = vadd.f32 %v6108, %v6364
      %v6621 = vadd.f32 %v6109, %v6365
      %v6622 = vadd.f32 %v6110, %v6366
      %v6623 = vadd.f32 %v6111, %v6367
      %v6624 = vadd.f32 %v6112, %v6368
      %v6625 = vadd.f32 %v6113, %v6369
      %v6626 = vadd.f32 %v6114, %v6370
      %v6627 = vadd.f32 %v6115, %v6371
      %v6628 = vadd.f32 %v6116, %v6372
      %v6629 = vadd.f32 %v6117, %v6373
      %v6630 = vadd.f32 %v6118, %v6374
      %v6631 = vadd.f32 %v6119, %v6375
      %v6632 = vadd.f32 %v6120, %v6376
      %v6633 = vadd.f32 %v6121, %v6377
      %v6634 = vmax.f32 %v6378, 0.0
      %v6635 = vmax.f32 %v6379, 0.0
      %v6636 = vmax.f32 %v6380, 0.0
      %v6637 = vmax.f32 %v6381, 0.0
      %v6638 = vmax.f32 %v6382, 0.0
      %v6639 = vmax.f32 %v6383, 0.0
      %v6640 = vmax.f32 %v6384, 0.0
      %v6641 = vmax.f32 %v6385, 0.0
      %v6642 = vmax.f32 %v6386, 0.0
      %v6643 = vmax.f32 %v6387, 0.0
      %v6644 = vmax.f32 %v6388, 0.0
      %v6645 = vmax.f32 %v6389, 0.0
      %v6646 = vmax.f32 %v6390, 0.0
      %v6647 = vmax.f32 %v6391, 0.0
      %v6648 = vmax.f32 %v6392, 0.0
      %v6649 = vmax.f32 %v6393, 0.0
      %v6650 = vmax.f32 %v6394, 0.0
      %v6651 = vmax.f32 %v6395, 0.0
      %v6652 = vmax.f32 %v6396, 0.0
      %v6653 = vmax.f32 %v6397, 0.0
      %v6654 = vmax.f32 %v6398, 0.0
      %v6655 = vmax.f32 %v6399, 0.0
      %v6656 = vmax.f32 %v6400, 0.0
      %v6657 = vmax.f32 %v6401, 0.0
      %v6658 = vmax.f32 %v6402, 0.0
      %v6659 = vmax.f32 %v6403, 0.0
      %v6660 = vmax.f32 %v6404, 0.0
      %v6661 = vmax.f32 %v6405, 0.0
      %v6662 = vmax.f32 %v6406, 0.0
      %v6663 = vmax.f32 %v6407, 0.0
      %v6664 = vmax.f32 %v6408, 0.0
      %v6665 = vmax.f32 %v6409, 0.0
      %v6666 = vmax.f32 %v6410, 0.0
      %v6667 = vmax.f32 %v6411, 0.0
      %v6668 = vmax.f32 %v6412, 0.0
      %v6669 = vmax.f32 %v6413, 0.0
      %v6670 = vmax.f32 %v6414, 0.0
      %v6671 = vmax.f32 %v6415, 0.0
      %v6672 = vmax.f32 %v6416, 0.0
      %v6673 = vmax.f32 %v6417, 0.0
      %v6674 = vmax.f32 %v6418, 0.0
      %v6675 = vmax.f32 %v6419, 0.0
      %v6676 = vmax.f32 %v6420, 0.0
      %v6677 = vmax.f32 %v6421, 0.0
      %v6678 = vmax.f32 %v6422, 0.0
      %v6679 = vmax.f32 %v6423, 0.0
      %v6680 = vmax.f32 %v6424, 0.0
      %v6681 = vmax.f32 %v6425, 0.0
      %v6682 = vmax.f32 %v6426, 0.0
      %v6683 = vmax.f32 %v6427, 0.0
      %v6684 = vmax.f32 %v6428, 0.0
      %v6685 = vmax.f32 %v6429, 0.0
      %v6686 = vmax.f32 %v6430, 0.0
      %v6687 = vmax.f32 %v6431, 0.0
      %v6688 = vmax.f32 %v6432, 0.0
      %v6689 = vmax.f32 %v6433, 0.0
      %v6690 = vmax.f32 %v6434, 0.0
      %v6691 = vmax.f32 %v6435, 0.0
      %v6692 = vmax.f32 %v6436, 0.0
      %v6693 = vmax.f32 %v6437, 0.0
      %v6694 = vmax.f32 %v6438, 0.0
      %v6695 = vmax.f32 %v6439, 0.0
      %v6696 = vmax.f32 %v6440, 0.0
      %v6697 = vmax.f32 %v6441, 0.0
      %v6698 = vmax.f32 %v6442, 0.0
      %v6699 = vmax.f32 %v6443, 0.0
      %v6700 = vmax.f32 %v6444, 0.0
      %v6701 = vmax.f32 %v6445, 0.0
      %v6702 = vmax.f32 %v6446, 0.0
      %v6703 = vmax.f32 %v6447, 0.0
      %v6704 = vmax.f32 %v6448, 0.0
      %v6705 = vmax.f32 %v6449, 0.0
      %v6706 = vmax.f32 %v6450, 0.0
      %v6707 = vmax.f32 %v6451, 0.0
      %v6708 = vmax.f32 %v6452, 0.0
      %v6709 = vmax.f32 %v6453, 0.0
      %v6710 = vmax.f32 %v6454, 0.0
      %v6711 = vmax.f32 %v6455, 0.0
      %v6712 = vmax.f32 %v6456, 0.0
      %v6713 = vmax.f32 %v6457, 0.0
      %v6714 = vmax.f32 %v6458, 0.0
      %v6715 = vmax.f32 %v6459, 0.0
      %v6716 = vmax.f32 %v6460, 0.0
      %v6717 = vmax.f32 %v6461, 0.0
      %v6718 = vmax.f32 %v6462, 0.0
      %v6719 = vmax.f32 %v6463, 0.0
      %v6720 = vmax.f32 %v6464, 0.0
      %v6721 = vmax.f32 %v6465, 0.0
      %v6722 = vmax.f32 %v6466, 0.0
      %v6723 = vmax.f32 %v6467, 0.0
      %v6724 = vmax.f32 %v6468, 0.0
      %v6725 = vmax.f32 %v6469, 0.0
      %v6726 = vmax.f32 %v6470, 0.0
      %v6727 = vmax.f32 %v6471, 0.0
      %v6728 = vmax.f32 %v6472, 0.0
      %v6729 = vmax.f32 %v6473, 0.0
      %v6730 = vmax.f32 %v6474, 0.0
      %v6731 = vmax.f32 %v6475, 0.0
      %v6732 = vmax.f32 %v6476, 0.0
      %v6733 = vmax.f32 %v6477, 0.0
      %v6734 = vmax.f32 %v6478, 0.0
      %v6735 = vmax.f32 %v6479, 0.0
      %v6736 = vmax.f32 %v6480, 0.0
      %v6737 = vmax.f32 %v6481, 0.0
      %v6738 = vmax.f32 %v6482, 0.0
      %v6739 = vmax.f32 %v6483, 0.0
      %v6740 = vmax.f32 %v6484, 0.0
      %v6741 = vmax.f32 %v6485, 0.0
      %v6742 = vmax.f32 %v6486, 0.0
      %v6743 = vmax.f32 %v6487, 0.0
      %v6744 = vmax.f32 %v6488, 0.0
      %v6745 = vmax.f32 %v6489, 0.0
      %v6746 = vmax.f32 %v6490, 0.0
      %v6747 = vmax.f32 %v6491, 0.0
      %v6748 = vmax.f32 %v6492, 0.0
      %v6749 = vmax.f32 %v6493, 0.0
      %v6750 = vmax.f32 %v6494, 0.0
      %v6751 = vmax.f32 %v6495, 0.0
      %v6752 = vmax.f32 %v6496, 0.0
      %v6753 = vmax.f32 %v6497, 0.0
      %v6754 = vmax.f32 %v6498, 0.0
      %v6755 = vmax.f32 %v6499, 0.0
      %v6756 = vmax.f32 %v6500, 0.0
      %v6757 = vmax.f32 %v6501, 0.0
      %v6758 = vmax.f32 %v6502, 0.0
      %v6759 = vmax.f32 %v6503, 0.0
      %v6760 = vmax.f32 %v6504, 0.0
      %v6761 = vmax.f32 %v6505, 0.0
      %v6762 = vmax.f32 %v6506, 0.0
      %v6763 = vmax.f32 %v6507, 0.0
      %v6764 = vmax.f32 %v6508, 0.0
      %v6765 = vmax.f32 %v6509, 0.0
      %v6766 = vmax.f32 %v6510, 0.0
      %v6767 = vmax.f32 %v6511, 0.0
      %v6768 = vmax.f32 %v6512, 0.0
      %v6769 = vmax.f32 %v6513, 0.0
      %v6770 = vmax.f32 %v6514, 0.0
      %v6771 = vmax.f32 %v6515, 0.0
      %v6772 = vmax.f32 %v6516, 0.0
      %v6773 = vmax.f32 %v6517, 0.0
      %v6774 = vmax.f32 %v6518, 0.0
      %v6775 = vmax.f32 %v6519, 0.0
      %v6776 = vmax.f32 %v6520, 0.0
      %v6777 = vmax.f32 %v6521, 0.0
      %v6778 = vmax.f32 %v6522, 0.0
      %v6779 = vmax.f32 %v6523, 0.0
      %v6780 = vmax.f32 %v6524, 0.0
      %v6781 = vmax.f32 %v6525, 0.0
      %v6782 = vmax.f32 %v6526, 0.0
      %v6783 = vmax.f32 %v6527, 0.0
      %v6784 = vmax.f32 %v6528, 0.0
      %v6785 = vmax.f32 %v6529, 0.0
      %v6786 = vmax.f32 %v6530, 0.0
      %v6787 = vmax.f32 %v6531, 0.0
      %v6788 = vmax.f32 %v6532, 0.0
      %v6789 = vmax.f32 %v6533, 0.0
      %v6790 = vmax.f32 %v6534, 0.0
      %v6791 = vmax.f32 %v6535, 0.0
      %v6792 = vmax.f32 %v6536, 0.0
      %v6793 = vmax.f32 %v6537, 0.0
      %v6794 = vmax.f32 %v6538, 0.0
      %v6795 = vmax.f32 %v6539, 0.0
      %v6796 = vmax.f32 %v6540, 0.0
      %v6797 = vmax.f32 %v6541, 0.0
      %v6798 = vmax.f32 %v6542, 0.0
      %v6799 = vmax.f32 %v6543, 0.0
      %v6800 = vmax.f32 %v6544, 0.0
      %v6801 = vmax.f32 %v6545, 0.0
      %v6802 = vmax.f32 %v6546, 0.0
      %v6803 = vmax.f32 %v6547, 0.0
      %v6804 = vmax.f32 %v6548, 0.0
      %v6805 = vmax.f32 %v6549, 0.0
      %v6806 = vmax.f32 %v6550, 0.0
      %v6807 = vmax.f32 %v6551, 0.0
      %v6808 = vmax.f32 %v6552, 0.0
      %v6809 = vmax.f32 %v6553, 0.0
      %v6810 = vmax.f32 %v6554, 0.0
      %v6811 = vmax.f32 %v6555, 0.0
      %v6812 = vmax.f32 %v6556, 0.0
      %v6813 = vmax.f32 %v6557, 0.0
      %v6814 = vmax.f32 %v6558, 0.0
      %v6815 = vmax.f32 %v6559, 0.0
      %v6816 = vmax.f32 %v6560, 0.0
      %v6817 = vmax.f32 %v6561, 0.0
      %v6818 = vmax.f32 %v6562, 0.0
      %v6819 = vmax.f32 %v6563, 0.0
      %v6820 = vmax.f32 %v6564, 0.0
      %v6821 = vmax.f32 %v6565, 0.0
      %v6822 = vmax.f32 %v6566, 0.0
      %v6823 = vmax.f32 %v6567, 0.0
      %v6824 = vmax.f32 %v6568, 0.0
      %v6825 = vmax.f32 %v6569, 0.0
      %v6826 = vmax.f32 %v6570, 0.0
      %v6827 = vmax.f32 %v6571, 0.0
      %v6828 = vmax.f32 %v6572, 0.0
      %v6829 = vmax.f32 %v6573, 0.0
      %v6830 = vmax.f32 %v6574, 0.0
      %v6831 = vmax.f32 %v6575, 0.0
      %v6832 = vmax.f32 %v6576, 0.0
      %v6833 = vmax.f32 %v6577, 0.0
      %v6834 = vmax.f32 %v6578, 0.0
      %v6835 = vmax.f32 %v6579, 0.0
      %v6836 = vmax.f32 %v6580, 0.0
      %v6837 = vmax.f32 %v6581, 0.0
      %v6838 = vmax.f32 %v6582, 0.0
      %v6839 = vmax.f32 %v6583, 0.0
      %v6840 = vmax.f32 %v6584, 0.0
      %v6841 = vmax.f32 %v6585, 0.0
      %v6842 = vmax.f32 %v6586, 0.0
      %v6843 = vmax.f32 %v6587, 0.0
      %v6844 = vmax.f32 %v6588, 0.0
      %v6845 = vmax.f32 %v6589, 0.0
      %v6846 = vmax.f32 %v6590, 0.0
      %v6847 = vmax.f32 %v6591, 0.0
      %v6848 = vmax.f32 %v6592, 0.0
      %v6849 = vmax.f32 %v6593, 0.0
      %v6850 = vmax.f32 %v6594, 0.0
      %v6851 = vmax.f32 %v6595, 0.0
      %v6852 = vmax.f32 %v6596, 0.0
      %v6853 = vmax.f32 %v6597, 0.0
      %v6854 = vmax.f32 %v6598, 0.0
      %v6855 = vmax.f32 %v6599, 0.0
      %v6856 = vmax.f32 %v6600, 0.0
      %v6857 = vmax.f32 %v6601, 0.0
      %v6858 = vmax.f32 %v6602, 0.0
      %v6859 = vmax.f32 %v6603, 0.0
      %v6860 = vmax.f32 %v6604, 0.0
      %v6861 = vmax.f32 %v6605, 0.0
      %v6862 = vmax.f32 %v6606, 0.0
      %v6863 = vmax.f32 %v6607, 0.0
      %v6864 = vmax.f32 %v6608, 0.0
      %v6865 = vmax.f32 %v6609, 0.0
      %v6866 = vmax.f32 %v6610, 0.0
      %v6867 = vmax.f32 %v6611, 0.0
      %v6868 = vmax.f32 %v6612, 0.0
      %v6869 = vmax.f32 %v6613, 0.0
      %v6870 = vmax.f32 %v6614, 0.0
      %v6871 = vmax.f32 %v6615, 0.0
      %v6872 = vmax.f32 %v6616, 0.0
      %v6873 = vmax.f32 %v6617, 0.0
      %v6874 = vmax.f32 %v6618, 0.0
      %v6875 = vmax.f32 %v6619, 0.0
      %v6876 = vmax.f32 %v6620, 0.0
      %v6877 = vmax.f32 %v6621, 0.0
      %v6878 = vmax.f32 %v6622, 0.0
      %v6879 = vmax.f32 %v6623, 0.0
      %v6880 = vmax.f32 %v6624, 0.0
      %v6881 = vmax.f32 %v6625, 0.0
      %v6882 = vmax.f32 %v6626, 0.0
      %v6883 = vmax.f32 %v6627, 0.0
      %v6884 = vmax.f32 %v6628, 0.0
      %v6885 = vmax.f32 %v6629, 0.0
      %v6886 = vmax.f32 %v6630, 0.0
      %v6887 = vmax.f32 %v6631, 0.0
      %v6888 = vmax.f32 %v6632, 0.0
      %v6889 = vmax.f32 %v6633, 0.0
      %v6890 = vld [vmem:[%s224] sm:$0xff]
      %v6891 = vld [vmem:[%s224 + $0x8] sm:$0xff]
      %v6892 = vld [vmem:[%s224 + $0x10] sm:$0xff]
      %v6893 = vld [vmem:[%s224 + $0x18] sm:$0xff]
      %v6894 = vld [vmem:[%s224 + $0x20] sm:$0xff]
      %v6895 = vld [vmem:[%s224 + $0x28] sm:$0xff]
      %v6896 = vld [vmem:[%s224 + $0x30] sm:$0xff]
      %v6897 = vld [vmem:[%s224 + $0x38] sm:$0xff]
      %v6898 = vld [vmem:[%s224 + $0x40] sm:$0xff]
      %v6899 = vld [vmem:[%s224 + $0x48] sm:$0xff]
      %v6900 = vld [vmem:[%s224 + $0x50] sm:$0xff]
      %v6901 = vld [vmem:[%s224 + $0x58] sm:$0xff]
      %v6902 = vld [vmem:[%s224 + $0x60] sm:$0xff]
      %v6903 = vld [vmem:[%s224 + $0x68] sm:$0xff]
      %v6904 = vld [vmem:[%s224 + $0x70] sm:$0xff]
      %v6905 = vld [vmem:[%s224 + $0x78] sm:$0xff]
      %v6906 = vld [vmem:[%s224 + $0x80] sm:$0xff]
      %v6907 = vld [vmem:[%s224 + $0x88] sm:$0xff]
      %v6908 = vld [vmem:[%s224 + $0x90] sm:$0xff]
      %v6909 = vld [vmem:[%s224 + $0x98] sm:$0xff]
      %v6910 = vld [vmem:[%s224 + $0xa0] sm:$0xff]
      %v6911 = vld [vmem:[%s224 + $0xa8] sm:$0xff]
      %v6912 = vld [vmem:[%s224 + $0xb0] sm:$0xff]
      %v6913 = vld [vmem:[%s224 + $0xb8] sm:$0xff]
      %v6914 = vld [vmem:[%s224 + $0xc0] sm:$0xff]
      %v6915 = vld [vmem:[%s224 + $0xc8] sm:$0xff]
      %v6916 = vld [vmem:[%s224 + $0xd0] sm:$0xff]
      %v6917 = vld [vmem:[%s224 + $0xd8] sm:$0xff]
      %v6918 = vld [vmem:[%s224 + $0xe0] sm:$0xff]
      %v6919 = vld [vmem:[%s224 + $0xe8] sm:$0xff]
      %v6920 = vld [vmem:[%s224 + $0xf0] sm:$0xff]
      %v6921 = vld [vmem:[%s224 + $0xf8] sm:$0xff]
      %v6922 = vld [vmem:[%s224 + $0x100] sm:$0xff]
      %v6923 = vld [vmem:[%s224 + $0x108] sm:$0xff]
      %v6924 = vld [vmem:[%s224 + $0x110] sm:$0xff]
      %v6925 = vld [vmem:[%s224 + $0x118] sm:$0xff]
      %v6926 = vld [vmem:[%s224 + $0x120] sm:$0xff]
      %v6927 = vld [vmem:[%s224 + $0x128] sm:$0xff]
      %v6928 = vld [vmem:[%s224 + $0x130] sm:$0xff]
      %v6929 = vld [vmem:[%s224 + $0x138] sm:$0xff]
      %v6930 = vld [vmem:[%s224 + $0x140] sm:$0xff]
      %v6931 = vld [vmem:[%s224 + $0x148] sm:$0xff]
      %v6932 = vld [vmem:[%s224 + $0x150] sm:$0xff]
      %v6933 = vld [vmem:[%s224 + $0x158] sm:$0xff]
      %v6934 = vld [vmem:[%s224 + $0x160] sm:$0xff]
      %v6935 = vld [vmem:[%s224 + $0x168] sm:$0xff]
      %v6936 = vld [vmem:[%s224 + $0x170] sm:$0xff]
      %v6937 = vld [vmem:[%s224 + $0x178] sm:$0xff]
      %v6938 = vld [vmem:[%s224 + $0x180] sm:$0xff]
      %v6939 = vld [vmem:[%s224 + $0x188] sm:$0xff]
      %v6940 = vld [vmem:[%s224 + $0x190] sm:$0xff]
      %v6941 = vld [vmem:[%s224 + $0x198] sm:$0xff]
      %v6942 = vld [vmem:[%s224 + $0x1a0] sm:$0xff]
      %v6943 = vld [vmem:[%s224 + $0x1a8] sm:$0xff]
      %v6944 = vld [vmem:[%s224 + $0x1b0] sm:$0xff]
      %v6945 = vld [vmem:[%s224 + $0x1b8] sm:$0xff]
      %v6946 = vld [vmem:[%s224 + $0x1c0] sm:$0xff]
      %v6947 = vld [vmem:[%s224 + $0x1c8] sm:$0xff]
      %v6948 = vld [vmem:[%s224 + $0x1d0] sm:$0xff]
      %v6949 = vld [vmem:[%s224 + $0x1d8] sm:$0xff]
      %v6950 = vld [vmem:[%s224 + $0x1e0] sm:$0xff]
      %v6951 = vld [vmem:[%s224 + $0x1e8] sm:$0xff]
      %v6952 = vld [vmem:[%s224 + $0x1f0] sm:$0xff]
      %v6953 = vld [vmem:[%s224 + $0x1f8] sm:$0xff]
      %v6954 = vpack.c.bf16 %v6636, %v6634
      %v6955 = vpack.c.bf16 %v6637, %v6635
      %v6956 = vpack.c.bf16 %v6640, %v6638
      %v6957 = vpack.c.bf16 %v6641, %v6639
      %v6958 = vpack.c.bf16 %v6644, %v6642
      %v6959 = vpack.c.bf16 %v6645, %v6643
      %v6960 = vpack.c.bf16 %v6648, %v6646
      %v6961 = vpack.c.bf16 %v6649, %v6647
      %v6962 = vpack.c.bf16 %v6652, %v6650
      %v6963 = vpack.c.bf16 %v6653, %v6651
      %v6964 = vpack.c.bf16 %v6656, %v6654
      %v6965 = vpack.c.bf16 %v6657, %v6655
      %v6966 = vpack.c.bf16 %v6660, %v6658
      %v6967 = vpack.c.bf16 %v6661, %v6659
      %v6968 = vpack.c.bf16 %v6664, %v6662
      %v6969 = vpack.c.bf16 %v6665, %v6663
      %v6970 = vpack.c.bf16 %v6668, %v6666
      %v6971 = vpack.c.bf16 %v6669, %v6667
      %v6972 = vpack.c.bf16 %v6672, %v6670
      %v6973 = vpack.c.bf16 %v6673, %v6671
      %v6974 = vpack.c.bf16 %v6676, %v6674
      %v6975 = vpack.c.bf16 %v6677, %v6675
      %v6976 = vpack.c.bf16 %v6680, %v6678
      %v6977 = vpack.c.bf16 %v6681, %v6679
      %v6978 = vpack.c.bf16 %v6684, %v6682
      %v6979 = vpack.c.bf16 %v6685, %v6683
      %v6980 = vpack.c.bf16 %v6688, %v6686
      %v6981 = vpack.c.bf16 %v6689, %v6687
      %v6982 = vpack.c.bf16 %v6692, %v6690
      %v6983 = vpack.c.bf16 %v6693, %v6691
      %v6984 = vpack.c.bf16 %v6696, %v6694
      %v6985 = vpack.c.bf16 %v6697, %v6695
      %v6986 = vpack.c.bf16 %v6700, %v6698
      %v6987 = vpack.c.bf16 %v6701, %v6699
      %v6988 = vpack.c.bf16 %v6704, %v6702
      %v6989 = vpack.c.bf16 %v6705, %v6703
      %v6990 = vpack.c.bf16 %v6708, %v6706
      %v6991 = vpack.c.bf16 %v6709, %v6707
      %v6992 = vpack.c.bf16 %v6712, %v6710
      %v6993 = vpack.c.bf16 %v6713, %v6711
      %v6994 = vpack.c.bf16 %v6716, %v6714
      %v6995 = vpack.c.bf16 %v6717, %v6715
      %v6996 = vpack.c.bf16 %v6720, %v6718
      %v6997 = vpack.c.bf16 %v6721, %v6719
      %v6998 = vpack.c.bf16 %v6724, %v6722
      %v6999 = vpack.c.bf16 %v6725, %v6723
      %v7000 = vpack.c.bf16 %v6728, %v6726
      %v7001 = vpack.c.bf16 %v6729, %v6727
      %v7002 = vpack.c.bf16 %v6732, %v6730
      %v7003 = vpack.c.bf16 %v6733, %v6731
      %v7004 = vpack.c.bf16 %v6736, %v6734
      %v7005 = vpack.c.bf16 %v6737, %v6735
      %v7006 = vpack.c.bf16 %v6740, %v6738
      %v7007 = vpack.c.bf16 %v6741, %v6739
      %v7008 = vpack.c.bf16 %v6744, %v6742
      %v7009 = vpack.c.bf16 %v6745, %v6743
      %v7010 = vpack.c.bf16 %v6748, %v6746
      %v7011 = vpack.c.bf16 %v6749, %v6747
      %v7012 = vpack.c.bf16 %v6752, %v6750
      %v7013 = vpack.c.bf16 %v6753, %v6751
      %v7014 = vpack.c.bf16 %v6756, %v6754
      %v7015 = vpack.c.bf16 %v6757, %v6755
      %v7016 = vpack.c.bf16 %v6760, %v6758
      %v7017 = vpack.c.bf16 %v6761, %v6759
      %v7018 = vpack.c.bf16 %v6764, %v6762
      %v7019 = vpack.c.bf16 %v6765, %v6763
      %v7020 = vpack.c.bf16 %v6768, %v6766
      %v7021 = vpack.c.bf16 %v6769, %v6767
      %v7022 = vpack.c.bf16 %v6772, %v6770
      %v7023 = vpack.c.bf16 %v6773, %v6771
      %v7024 = vpack.c.bf16 %v6776, %v6774
      %v7025 = vpack.c.bf16 %v6777, %v6775
      %v7026 = vpack.c.bf16 %v6780, %v6778
      %v7027 = vpack.c.bf16 %v6781, %v6779
      %v7028 = vpack.c.bf16 %v6784, %v6782
      %v7029 = vpack.c.bf16 %v6785, %v6783
      %v7030 = vpack.c.bf16 %v6788, %v6786
      %v7031 = vpack.c.bf16 %v6789, %v6787
      %v7032 = vpack.c.bf16 %v6792, %v6790
      %v7033 = vpack.c.bf16 %v6793, %v6791
      %v7034 = vpack.c.bf16 %v6796, %v6794
      %v7035 = vpack.c.bf16 %v6797, %v6795
      %v7036 = vpack.c.bf16 %v6800, %v6798
      %v7037 = vpack.c.bf16 %v6801, %v6799
      %v7038 = vpack.c.bf16 %v6804, %v6802
      %v7039 = vpack.c.bf16 %v6805, %v6803
      %v7040 = vpack.c.bf16 %v6808, %v6806
      %v7041 = vpack.c.bf16 %v6809, %v6807
      %v7042 = vpack.c.bf16 %v6812, %v6810
      %v7043 = vpack.c.bf16 %v6813, %v6811
      %v7044 = vpack.c.bf16 %v6816, %v6814
      %v7045 = vpack.c.bf16 %v6817, %v6815
      %v7046 = vpack.c.bf16 %v6820, %v6818
      %v7047 = vpack.c.bf16 %v6821, %v6819
      %v7048 = vpack.c.bf16 %v6824, %v6822
      %v7049 = vpack.c.bf16 %v6825, %v6823
      %v7050 = vpack.c.bf16 %v6828, %v6826
      %v7051 = vpack.c.bf16 %v6829, %v6827
      %v7052 = vpack.c.bf16 %v6832, %v6830
      %v7053 = vpack.c.bf16 %v6833, %v6831
      %v7054 = vpack.c.bf16 %v6836, %v6834
      %v7055 = vpack.c.bf16 %v6837, %v6835
      %v7056 = vpack.c.bf16 %v6840, %v6838
      %v7057 = vpack.c.bf16 %v6841, %v6839
      %v7058 = vpack.c.bf16 %v6844, %v6842
      %v7059 = vpack.c.bf16 %v6845, %v6843
      %v7060 = vpack.c.bf16 %v6848, %v6846
      %v7061 = vpack.c.bf16 %v6849, %v6847
      %v7062 = vpack.c.bf16 %v6852, %v6850
      %v7063 = vpack.c.bf16 %v6853, %v6851
      %v7064 = vpack.c.bf16 %v6856, %v6854
      %v7065 = vpack.c.bf16 %v6857, %v6855
      %v7066 = vpack.c.bf16 %v6860, %v6858
      %v7067 = vpack.c.bf16 %v6861, %v6859
      %v7068 = vpack.c.bf16 %v6864, %v6862
      %v7069 = vpack.c.bf16 %v6865, %v6863
      %v7070 = vpack.c.bf16 %v6868, %v6866
      %v7071 = vpack.c.bf16 %v6869, %v6867
      %v7072 = vpack.c.bf16 %v6872, %v6870
      %v7073 = vpack.c.bf16 %v6873, %v6871
      %v7074 = vpack.c.bf16 %v6876, %v6874
      %v7075 = vpack.c.bf16 %v6877, %v6875
      %v7076 = vpack.c.bf16 %v6880, %v6878
      %v7077 = vpack.c.bf16 %v6881, %v6879
      %v7078 = vpack.c.bf16 %v6884, %v6882
      %v7079 = vpack.c.bf16 %v6885, %v6883
      %v7080 = vpack.c.bf16 %v6888, %v6886
      %v7081 = vpack.c.bf16 %v6889, %v6887
      %v7146 = vunpack.c.l.b16 %v6890
      %v7147 = vunpack.c.h.b16 %v6890
      %v7148 = vunpack.c.l.b16 %v6891
      %v7149 = vunpack.c.h.b16 %v6891
      %v7150 = vunpack.c.l.b16 %v6892
      %v7151 = vunpack.c.h.b16 %v6892
      %v7152 = vunpack.c.l.b16 %v6893
      %v7153 = vunpack.c.h.b16 %v6893
      %v7154 = vunpack.c.l.b16 %v6894
      %v7155 = vunpack.c.h.b16 %v6894
      %v7156 = vunpack.c.l.b16 %v6895
      %v7157 = vunpack.c.h.b16 %v6895
      %v7158 = vunpack.c.l.b16 %v6896
      %v7159 = vunpack.c.h.b16 %v6896
      %v7160 = vunpack.c.l.b16 %v6897
      %v7161 = vunpack.c.h.b16 %v6897
      %v7162 = vunpack.c.l.b16 %v6898
      %v7163 = vunpack.c.h.b16 %v6898
      %v7164 = vunpack.c.l.b16 %v6899
      %v7165 = vunpack.c.h.b16 %v6899
      %v7166 = vunpack.c.l.b16 %v6900
      %v7167 = vunpack.c.h.b16 %v6900
      %v7168 = vunpack.c.l.b16 %v6901
      %v7169 = vunpack.c.h.b16 %v6901
      %v7170 = vunpack.c.l.b16 %v6902
      %v7171 = vunpack.c.h.b16 %v6902
      %v7172 = vunpack.c.l.b16 %v6903
      %v7173 = vunpack.c.h.b16 %v6903
      %v7174 = vunpack.c.l.b16 %v6904
      %v7175 = vunpack.c.h.b16 %v6904
      %v7176 = vunpack.c.l.b16 %v6905
      %v7177 = vunpack.c.h.b16 %v6905
      %v7178 = vunpack.c.l.b16 %v6906
      %v7179 = vunpack.c.h.b16 %v6906
      %v7180 = vunpack.c.l.b16 %v6907
      %v7181 = vunpack.c.h.b16 %v6907
      %v7182 = vunpack.c.l.b16 %v6908
      %v7183 = vunpack.c.h.b16 %v6908
      %v7184 = vunpack.c.l.b16 %v6909
      %v7185 = vunpack.c.h.b16 %v6909
      %v7186 = vunpack.c.l.b16 %v6910
      %v7187 = vunpack.c.h.b16 %v6910
      %v7188 = vunpack.c.l.b16 %v6911
      %v7189 = vunpack.c.h.b16 %v6911
      %v7190 = vunpack.c.l.b16 %v6912
      %v7191 = vunpack.c.h.b16 %v6912
      %v7192 = vunpack.c.l.b16 %v6913
      %v7193 = vunpack.c.h.b16 %v6913
      %v7194 = vunpack.c.l.b16 %v6914
      %v7195 = vunpack.c.h.b16 %v6914
      %v7196 = vunpack.c.l.b16 %v6915
      %v7197 = vunpack.c.h.b16 %v6915
      %v7198 = vunpack.c.l.b16 %v6916
      %v7199 = vunpack.c.h.b16 %v6916
      %v7200 = vunpack.c.l.b16 %v6917
      %v7201 = vunpack.c.h.b16 %v6917
      %v7202 = vunpack.c.l.b16 %v6918
      %v7203 = vunpack.c.h.b16 %v6918
      %v7204 = vunpack.c.l.b16 %v6919
      %v7205 = vunpack.c.h.b16 %v6919
      %v7206 = vunpack.c.l.b16 %v6920
      %v7207 = vunpack.c.h.b16 %v6920
      %v7208 = vunpack.c.l.b16 %v6921
      %v7209 = vunpack.c.h.b16 %v6921
      %v7210 = vunpack.c.l.b16 %v6922
      %v7211 = vunpack.c.h.b16 %v6922
      %v7212 = vunpack.c.l.b16 %v6923
      %v7213 = vunpack.c.h.b16 %v6923
      %v7214 = vunpack.c.l.b16 %v6924
      %v7215 = vunpack.c.h.b16 %v6924
      %v7216 = vunpack.c.l.b16 %v6925
      %v7217 = vunpack.c.h.b16 %v6925
      %v7218 = vunpack.c.l.b16 %v6926
      %v7219 = vunpack.c.h.b16 %v6926
      %v7220 = vunpack.c.l.b16 %v6927
      %v7221 = vunpack.c.h.b16 %v6927
      %v7222 = vunpack.c.l.b16 %v6928
      %v7223 = vunpack.c.h.b16 %v6928
      %v7224 = vunpack.c.l.b16 %v6929
      %v7225 = vunpack.c.h.b16 %v6929
      %v7226 = vunpack.c.l.b16 %v6930
      %v7227 = vunpack.c.h.b16 %v6930
      %v7228 = vunpack.c.l.b16 %v6931
      %v7229 = vunpack.c.h.b16 %v6931
      %v7230 = vunpack.c.l.b16 %v6932
      %v7231 = vunpack.c.h.b16 %v6932
      %v7232 = vunpack.c.l.b16 %v6933
      %v7233 = vunpack.c.h.b16 %v6933
      %v7234 = vunpack.c.l.b16 %v6934
      %v7235 = vunpack.c.h.b16 %v6934
      %v7236 = vunpack.c.l.b16 %v6935
      %v7237 = vunpack.c.h.b16 %v6935
      %v7238 = vunpack.c.l.b16 %v6936
      %v7239 = vunpack.c.h.b16 %v6936
      %v7240 = vunpack.c.l.b16 %v6937
      %v7241 = vunpack.c.h.b16 %v6937
      %v7242 = vunpack.c.l.b16 %v6938
      %v7243 = vunpack.c.h.b16 %v6938
      %v7244 = vunpack.c.l.b16 %v6939
      %v7245 = vunpack.c.h.b16 %v6939
      %v7246 = vunpack.c.l.b16 %v6940
      %v7247 = vunpack.c.h.b16 %v6940
      %v7248 = vunpack.c.l.b16 %v6941
      %v7249 = vunpack.c.h.b16 %v6941
      %v7250 = vunpack.c.l.b16 %v6942
      %v7251 = vunpack.c.h.b16 %v6942
      %v7252 = vunpack.c.l.b16 %v6943
      %v7253 = vunpack.c.h.b16 %v6943
      %v7254 = vunpack.c.l.b16 %v6944
      %v7255 = vunpack.c.h.b16 %v6944
      %v7256 = vunpack.c.l.b16 %v6945
      %v7257 = vunpack.c.h.b16 %v6945
      %v7258 = vunpack.c.l.b16 %v6946
      %v7259 = vunpack.c.h.b16 %v6946
      %v7260 = vunpack.c.l.b16 %v6947
      %v7261 = vunpack.c.h.b16 %v6947
      %v7262 = vunpack.c.l.b16 %v6948
      %v7263 = vunpack.c.h.b16 %v6948
      %v7264 = vunpack.c.l.b16 %v6949
      %v7265 = vunpack.c.h.b16 %v6949
      %v7266 = vunpack.c.l.b16 %v6950
      %v7267 = vunpack.c.h.b16 %v6950
      %v7268 = vunpack.c.l.b16 %v6951
      %v7269 = vunpack.c.h.b16 %v6951
      %v7270 = vunpack.c.l.b16 %v6952
      %v7271 = vunpack.c.h.b16 %v6952
      %v7272 = vunpack.c.l.b16 %v6953
      %v7273 = vunpack.c.h.b16 %v6953
      %v7274 = vpack.c.b16 %v7154, %v7146
      %v7275 = vpack.c.b16 %v7155, %v7147
      %v7276 = vpack.c.b16 %v7156, %v7148
      %v7277 = vpack.c.b16 %v7157, %v7149
      %v7278 = vpack.c.b16 %v7158, %v7150
      %v7279 = vpack.c.b16 %v7159, %v7151
      %v7280 = vpack.c.b16 %v7160, %v7152
      %v7281 = vpack.c.b16 %v7161, %v7153
      %v7282 = vpack.c.b16 %v7170, %v7162
      %v7283 = vpack.c.b16 %v7171, %v7163
      %v7284 = vpack.c.b16 %v7172, %v7164
      %v7285 = vpack.c.b16 %v7173, %v7165
      %v7286 = vpack.c.b16 %v7174, %v7166
      %v7287 = vpack.c.b16 %v7175, %v7167
      %v7288 = vpack.c.b16 %v7176, %v7168
      %v7289 = vpack.c.b16 %v7177, %v7169
      %v7290 = vpack.c.b16 %v7186, %v7178
      %v7291 = vpack.c.b16 %v7187, %v7179
      %v7292 = vpack.c.b16 %v7188, %v7180
      %v7293 = vpack.c.b16 %v7189, %v7181
      %v7294 = vpack.c.b16 %v7190, %v7182
      %v7295 = vpack.c.b16 %v7191, %v7183
      %v7296 = vpack.c.b16 %v7192, %v7184
      %v7297 = vpack.c.b16 %v7193, %v7185
      %v7298 = vpack.c.b16 %v7202, %v7194
      %v7299 = vpack.c.b16 %v7203, %v7195
      %v7300 = vpack.c.b16 %v7204, %v7196
      %v7301 = vpack.c.b16 %v7205, %v7197
      %v7302 = vpack.c.b16 %v7206, %v7198
      %v7303 = vpack.c.b16 %v7207, %v7199
      %v7304 = vpack.c.b16 %v7208, %v7200
      %v7305 = vpack.c.b16 %v7209, %v7201
      %v7306 = vpack.c.b16 %v7218, %v7210
      %v7307 = vpack.c.b16 %v7219, %v7211
      %v7308 = vpack.c.b16 %v7220, %v7212
      %v7309 = vpack.c.b16 %v7221, %v7213
      %v7310 = vpack.c.b16 %v7222, %v7214
      %v7311 = vpack.c.b16 %v7223, %v7215
      %v7312 = vpack.c.b16 %v7224, %v7216
      %v7313 = vpack.c.b16 %v7225, %v7217
      %v7314 = vpack.c.b16 %v7234, %v7226
      %v7315 = vpack.c.b16 %v7235, %v7227
      %v7316 = vpack.c.b16 %v7236, %v7228
      %v7317 = vpack.c.b16 %v7237, %v7229
      %v7318 = vpack.c.b16 %v7238, %v7230
      %v7319 = vpack.c.b16 %v7239, %v7231
      %v7320 = vpack.c.b16 %v7240, %v7232
      %v7321 = vpack.c.b16 %v7241, %v7233
      %v7322 = vpack.c.b16 %v7250, %v7242
      %v7323 = vpack.c.b16 %v7251, %v7243
      %v7324 = vpack.c.b16 %v7252, %v7244
      %v7325 = vpack.c.b16 %v7253, %v7245
      %v7326 = vpack.c.b16 %v7254, %v7246
      %v7327 = vpack.c.b16 %v7255, %v7247
      %v7328 = vpack.c.b16 %v7256, %v7248
      %v7329 = vpack.c.b16 %v7257, %v7249
      %v7330 = vpack.c.b16 %v7266, %v7258
      %v7331 = vpack.c.b16 %v7267, %v7259
      %v7332 = vpack.c.b16 %v7268, %v7260
      %v7333 = vpack.c.b16 %v7269, %v7261
      %v7334 = vpack.c.b16 %v7270, %v7262
      %v7335 = vpack.c.b16 %v7271, %v7263
      %v7336 = vpack.c.b16 %v7272, %v7264
      %v7337 = vpack.c.b16 %v7273, %v7265
      %7402 = vmatpush.bf16.msra.mxu0 %v6968
      %7403 = vmatpush.bf16.msra.mxu0 %v6966
      %7404 = vmatpush.bf16.msra.mxu0 %v6964
      %7405 = vmatpush.bf16.msra.mxu0 %v6962
      %7406 = vmatpush.bf16.msra.mxu0 %v6960
      %7407 = vmatpush.bf16.msra.mxu0 %v6958
      %7408 = vmatpush.bf16.msra.mxu0 %v6956
      %7409 = vmatpush.bf16.msra.mxu0 %v6954
      %7410 = vmatmul.bf16.gmra.mxu0 %v7274
      %v7411 = vpop.f32.mrf.mxu0
      %v7412 = vadd.f32 0.0, %v7411
      %v7413 = vpop.f32.mrf.mxu0
      %v7414 = vadd.f32 0.0, %v7413
      %7415 = vmatmul.bf16.gmra.mxu0 %v7282
      %v7416 = vpop.f32.mrf.mxu0
      %v7417 = vadd.f32 0.0, %v7416
      %v7418 = vpop.f32.mrf.mxu0
      %v7419 = vadd.f32 0.0, %v7418
      %7420 = vmatmul.bf16.gmra.mxu0 %v7290
      %v7421 = vpop.f32.mrf.mxu0
      %v7422 = vadd.f32 0.0, %v7421
      %v7423 = vpop.f32.mrf.mxu0
      %v7424 = vadd.f32 0.0, %v7423
      %7425 = vmatmul.bf16.gmra.mxu0 %v7298
      %v7426 = vpop.f32.mrf.mxu0
      %v7427 = vadd.f32 0.0, %v7426
      %v7428 = vpop.f32.mrf.mxu0
      %v7429 = vadd.f32 0.0, %v7428
      %7430 = vmatmul.bf16.gmra.mxu0 %v7306
      %v7431 = vpop.f32.mrf.mxu0
      %v7432 = vadd.f32 0.0, %v7431
      %v7433 = vpop.f32.mrf.mxu0
      %v7434 = vadd.f32 0.0, %v7433
      %7435 = vmatmul.bf16.gmra.mxu0 %v7314
      %v7436 = vpop.f32.mrf.mxu0
      %v7437 = vadd.f32 0.0, %v7436
      %v7438 = vpop.f32.mrf.mxu0
      %v7439 = vadd.f32 0.0, %v7438
      %7440 = vmatmul.bf16.gmra.mxu0 %v7322
      %v7441 = vpop.f32.mrf.mxu0
      %v7442 = vadd.f32 0.0, %v7441
      %v7443 = vpop.f32.mrf.mxu0
      %v7444 = vadd.f32 0.0, %v7443
      %7445 = vmatmul.bf16.gmra.mxu0 %v7330
      %v7446 = vpop.f32.mrf.mxu0
      %v7447 = vadd.f32 0.0, %v7446
      %v7448 = vpop.f32.mrf.mxu0
      %v7449 = vadd.f32 0.0, %v7448
      %7450 = vdwg.mxu0
      %7451 = vmatpush.bf16.msra.mxu0 %v6984
      %7452 = vmatpush.bf16.msra.mxu0 %v6982
      %7453 = vmatpush.bf16.msra.mxu0 %v6980
      %7454 = vmatpush.bf16.msra.mxu0 %v6978
      %7455 = vmatpush.bf16.msra.mxu0 %v6976
      %7456 = vmatpush.bf16.msra.mxu0 %v6974
      %7457 = vmatpush.bf16.msra.mxu0 %v6972
      %7458 = vmatpush.bf16.msra.mxu0 %v6970
      %7459 = vmatmul.bf16.gmra.mxu0 %v7275
      %v7460 = vpop.f32.mrf.mxu0
      %v7461 = vadd.f32 %v7412, %v7460
      %v7462 = vpop.f32.mrf.mxu0
      %v7463 = vadd.f32 %v7414, %v7462
      %7464 = vmatmul.bf16.gmra.mxu0 %v7283
      %v7465 = vpop.f32.mrf.mxu0
      %v7466 = vadd.f32 %v7417, %v7465
      %v7467 = vpop.f32.mrf.mxu0
      %v7468 = vadd.f32 %v7419, %v7467
      %7469 = vmatmul.bf16.gmra.mxu0 %v7291
      %v7470 = vpop.f32.mrf.mxu0
      %v7471 = vadd.f32 %v7422, %v7470
      %v7472 = vpop.f32.mrf.mxu0
      %v7473 = vadd.f32 %v7424, %v7472
      %7474 = vmatmul.bf16.gmra.mxu0 %v7299
      %v7475 = vpop.f32.mrf.mxu0
      %v7476 = vadd.f32 %v7427, %v7475
      %v7477 = vpop.f32.mrf.mxu0
      %v7478 = vadd.f32 %v7429, %v7477
      %7479 = vmatmul.bf16.gmra.mxu0 %v7307
      %v7480 = vpop.f32.mrf.mxu0
      %v7481 = vadd.f32 %v7432, %v7480
      %v7482 = vpop.f32.mrf.mxu0
      %v7483 = vadd.f32 %v7434, %v7482
      %7484 = vmatmul.bf16.gmra.mxu0 %v7315
      %v7485 = vpop.f32.mrf.mxu0
      %v7486 = vadd.f32 %v7437, %v7485
      %v7487 = vpop.f32.mrf.mxu0
      %v7488 = vadd.f32 %v7439, %v7487
      %7489 = vmatmul.bf16.gmra.mxu0 %v7323
      %v7490 = vpop.f32.mrf.mxu0
      %v7491 = vadd.f32 %v7442, %v7490
      %v7492 = vpop.f32.mrf.mxu0
      %v7493 = vadd.f32 %v7444, %v7492
      %7494 = vmatmul.bf16.gmra.mxu0 %v7331
      %v7495 = vpop.f32.mrf.mxu0
      %v7496 = vadd.f32 %v7447, %v7495
      %v7497 = vpop.f32.mrf.mxu0
      %v7498 = vadd.f32 %v7449, %v7497
      %7499 = vdwg.mxu0
      %7500 = vmatpush.bf16.msra.mxu0 %v7000
      %7501 = vmatpush.bf16.msra.mxu0 %v6998
      %7502 = vmatpush.bf16.msra.mxu0 %v6996
      %7503 = vmatpush.bf16.msra.mxu0 %v6994
      %7504 = vmatpush.bf16.msra.mxu0 %v6992
      %7505 = vmatpush.bf16.msra.mxu0 %v6990
      %7506 = vmatpush.bf16.msra.mxu0 %v6988
      %7507 = vmatpush.bf16.msra.mxu0 %v6986
      %7508 = vmatmul.bf16.gmra.mxu0 %v7276
      %v7509 = vpop.f32.mrf.mxu0
      %v7510 = vadd.f32 %v7461, %v7509
      %v7511 = vpop.f32.mrf.mxu0
      %v7512 = vadd.f32 %v7463, %v7511
      %7513 = vmatmul.bf16.gmra.mxu0 %v7284
      %v7514 = vpop.f32.mrf.mxu0
      %v7515 = vadd.f32 %v7466, %v7514
      %v7516 = vpop.f32.mrf.mxu0
      %v7517 = vadd.f32 %v7468, %v7516
      %7518 = vmatmul.bf16.gmra.mxu0 %v7292
      %v7519 = vpop.f32.mrf.mxu0
      %v7520 = vadd.f32 %v7471, %v7519
      %v7521 = vpop.f32.mrf.mxu0
      %v7522 = vadd.f32 %v7473, %v7521
      %7523 = vmatmul.bf16.gmra.mxu0 %v7300
      %v7524 = vpop.f32.mrf.mxu0
      %v7525 = vadd.f32 %v7476, %v7524
      %v7526 = vpop.f32.mrf.mxu0
      %v7527 = vadd.f32 %v7478, %v7526
      %7528 = vmatmul.bf16.gmra.mxu0 %v7308
      %v7529 = vpop.f32.mrf.mxu0
      %v7530 = vadd.f32 %v7481, %v7529
      %v7531 = vpop.f32.mrf.mxu0
      %v7532 = vadd.f32 %v7483, %v7531
      %7533 = vmatmul.bf16.gmra.mxu0 %v7316
      %v7534 = vpop.f32.mrf.mxu0
      %v7535 = vadd.f32 %v7486, %v7534
      %v7536 = vpop.f32.mrf.mxu0
      %v7537 = vadd.f32 %v7488, %v7536
      %7538 = vmatmul.bf16.gmra.mxu0 %v7324
      %v7539 = vpop.f32.mrf.mxu0
      %v7540 = vadd.f32 %v7491, %v7539
      %v7541 = vpop.f32.mrf.mxu0
      %v7542 = vadd.f32 %v7493, %v7541
      %7543 = vmatmul.bf16.gmra.mxu0 %v7332
      %v7544 = vpop.f32.mrf.mxu0
      %v7545 = vadd.f32 %v7496, %v7544
      %v7546 = vpop.f32.mrf.mxu0
      %v7547 = vadd.f32 %v7498, %v7546
      %7548 = vdwg.mxu0
      %7549 = vmatpush.bf16.msra.mxu0 %v7016
      %7550 = vmatpush.bf16.msra.mxu0 %v7014
      %7551 = vmatpush.bf16.msra.mxu0 %v7012
      %7552 = vmatpush.bf16.msra.mxu0 %v7010
      %7553 = vmatpush.bf16.msra.mxu0 %v7008
      %7554 = vmatpush.bf16.msra.mxu0 %v7006
      %7555 = vmatpush.bf16.msra.mxu0 %v7004
      %7556 = vmatpush.bf16.msra.mxu0 %v7002
      %7557 = vmatmul.bf16.gmra.mxu0 %v7277
      %v7558 = vpop.f32.mrf.mxu0
      %v7559 = vadd.f32 %v7510, %v7558
      %v7560 = vpop.f32.mrf.mxu0
      %v7561 = vadd.f32 %v7512, %v7560
      %7562 = vmatmul.bf16.gmra.mxu0 %v7285
      %v7563 = vpop.f32.mrf.mxu0
      %v7564 = vadd.f32 %v7515, %v7563
      %v7565 = vpop.f32.mrf.mxu0
      %v7566 = vadd.f32 %v7517, %v7565
      %7567 = vmatmul.bf16.gmra.mxu0 %v7293
      %v7568 = vpop.f32.mrf.mxu0
      %v7569 = vadd.f32 %v7520, %v7568
      %v7570 = vpop.f32.mrf.mxu0
      %v7571 = vadd.f32 %v7522, %v7570
      %7572 = vmatmul.bf16.gmra.mxu0 %v7301
      %v7573 = vpop.f32.mrf.mxu0
      %v7574 = vadd.f32 %v7525, %v7573
      %v7575 = vpop.f32.mrf.mxu0
      %v7576 = vadd.f32 %v7527, %v7575
      %7577 = vmatmul.bf16.gmra.mxu0 %v7309
      %v7578 = vpop.f32.mrf.mxu0
      %v7579 = vadd.f32 %v7530, %v7578
      %v7580 = vpop.f32.mrf.mxu0
      %v7581 = vadd.f32 %v7532, %v7580
      %7582 = vmatmul.bf16.gmra.mxu0 %v7317
      %v7583 = vpop.f32.mrf.mxu0
      %v7584 = vadd.f32 %v7535, %v7583
      %v7585 = vpop.f32.mrf.mxu0
      %v7586 = vadd.f32 %v7537, %v7585
      %7587 = vmatmul.bf16.gmra.mxu0 %v7325
      %v7588 = vpop.f32.mrf.mxu0
      %v7589 = vadd.f32 %v7540, %v7588
      %v7590 = vpop.f32.mrf.mxu0
      %v7591 = vadd.f32 %v7542, %v7590
      %7592 = vmatmul.bf16.gmra.mxu0 %v7333
      %v7593 = vpop.f32.mrf.mxu0
      %v7594 = vadd.f32 %v7545, %v7593
      %v7595 = vpop.f32.mrf.mxu0
      %v7596 = vadd.f32 %v7547, %v7595
      %7597 = vdwg.mxu0
      %7598 = vmatpush.bf16.msra.mxu0 %v7032
      %7599 = vmatpush.bf16.msra.mxu0 %v7030
      %7600 = vmatpush.bf16.msra.mxu0 %v7028
      %7601 = vmatpush.bf16.msra.mxu0 %v7026
      %7602 = vmatpush.bf16.msra.mxu0 %v7024
      %7603 = vmatpush.bf16.msra.mxu0 %v7022
      %7604 = vmatpush.bf16.msra.mxu0 %v7020
      %7605 = vmatpush.bf16.msra.mxu0 %v7018
      %7606 = vmatmul.bf16.gmra.mxu0 %v7278
      %v7607 = vpop.f32.mrf.mxu0
      %v7608 = vadd.f32 %v7559, %v7607
      %v7609 = vpop.f32.mrf.mxu0
      %v7610 = vadd.f32 %v7561, %v7609
      %7611 = vmatmul.bf16.gmra.mxu0 %v7286
      %v7612 = vpop.f32.mrf.mxu0
      %v7613 = vadd.f32 %v7564, %v7612
      %v7614 = vpop.f32.mrf.mxu0
      %v7615 = vadd.f32 %v7566, %v7614
      %7616 = vmatmul.bf16.gmra.mxu0 %v7294
      %v7617 = vpop.f32.mrf.mxu0
      %v7618 = vadd.f32 %v7569, %v7617
      %v7619 = vpop.f32.mrf.mxu0
      %v7620 = vadd.f32 %v7571, %v7619
      %7621 = vmatmul.bf16.gmra.mxu0 %v7302
      %v7622 = vpop.f32.mrf.mxu0
      %v7623 = vadd.f32 %v7574, %v7622
      %v7624 = vpop.f32.mrf.mxu0
      %v7625 = vadd.f32 %v7576, %v7624
      %7626 = vmatmul.bf16.gmra.mxu0 %v7310
      %v7627 = vpop.f32.mrf.mxu0
      %v7628 = vadd.f32 %v7579, %v7627
      %v7629 = vpop.f32.mrf.mxu0
      %v7630 = vadd.f32 %v7581, %v7629
      %7631 = vmatmul.bf16.gmra.mxu0 %v7318
      %v7632 = vpop.f32.mrf.mxu0
      %v7633 = vadd.f32 %v7584, %v7632
      %v7634 = vpop.f32.mrf.mxu0
      %v7635 = vadd.f32 %v7586, %v7634
      %7636 = vmatmul.bf16.gmra.mxu0 %v7326
      %v7637 = vpop.f32.mrf.mxu0
      %v7638 = vadd.f32 %v7589, %v7637
      %v7639 = vpop.f32.mrf.mxu0
      %v7640 = vadd.f32 %v7591, %v7639
      %7641 = vmatmul.bf16.gmra.mxu0 %v7334
      %v7642 = vpop.f32.mrf.mxu0
      %v7643 = vadd.f32 %v7594, %v7642
      %v7644 = vpop.f32.mrf.mxu0
      %v7645 = vadd.f32 %v7596, %v7644
      %7646 = vdwg.mxu0
      %7647 = vmatpush.bf16.msra.mxu0 %v7048
      %7648 = vmatpush.bf16.msra.mxu0 %v7046
      %7649 = vmatpush.bf16.msra.mxu0 %v7044
      %7650 = vmatpush.bf16.msra.mxu0 %v7042
      %7651 = vmatpush.bf16.msra.mxu0 %v7040
      %7652 = vmatpush.bf16.msra.mxu0 %v7038
      %7653 = vmatpush.bf16.msra.mxu0 %v7036
      %7654 = vmatpush.bf16.msra.mxu0 %v7034
      %7655 = vmatmul.bf16.gmra.mxu0 %v7279
      %v7656 = vpop.f32.mrf.mxu0
      %v7657 = vadd.f32 %v7608, %v7656
      %v7658 = vpop.f32.mrf.mxu0
      %v7659 = vadd.f32 %v7610, %v7658
      %7660 = vmatmul.bf16.gmra.mxu0 %v7287
      %v7661 = vpop.f32.mrf.mxu0
      %v7662 = vadd.f32 %v7613, %v7661
      %v7663 = vpop.f32.mrf.mxu0
      %v7664 = vadd.f32 %v7615, %v7663
      %7665 = vmatmul.bf16.gmra.mxu0 %v7295
      %v7666 = vpop.f32.mrf.mxu0
      %v7667 = vadd.f32 %v7618, %v7666
      %v7668 = vpop.f32.mrf.mxu0
      %v7669 = vadd.f32 %v7620, %v7668
      %7670 = vmatmul.bf16.gmra.mxu0 %v7303
      %v7671 = vpop.f32.mrf.mxu0
      %v7672 = vadd.f32 %v7623, %v7671
      %v7673 = vpop.f32.mrf.mxu0
      %v7674 = vadd.f32 %v7625, %v7673
      %7675 = vmatmul.bf16.gmra.mxu0 %v7311
      %v7676 = vpop.f32.mrf.mxu0
      %v7677 = vadd.f32 %v7628, %v7676
      %v7678 = vpop.f32.mrf.mxu0
      %v7679 = vadd.f32 %v7630, %v7678
      %7680 = vmatmul.bf16.gmra.mxu0 %v7319
      %v7681 = vpop.f32.mrf.mxu0
      %v7682 = vadd.f32 %v7633, %v7681
      %v7683 = vpop.f32.mrf.mxu0
      %v7684 = vadd.f32 %v7635, %v7683
      %7685 = vmatmul.bf16.gmra.mxu0 %v7327
      %v7686 = vpop.f32.mrf.mxu0
      %v7687 = vadd.f32 %v7638, %v7686
      %v7688 = vpop.f32.mrf.mxu0
      %v7689 = vadd.f32 %v7640, %v7688
      %7690 = vmatmul.bf16.gmra.mxu0 %v7335
      %v7691 = vpop.f32.mrf.mxu0
      %v7692 = vadd.f32 %v7643, %v7691
      %v7693 = vpop.f32.mrf.mxu0
      %v7694 = vadd.f32 %v7645, %v7693
      %7695 = vdwg.mxu0
      %7696 = vmatpush.bf16.msra.mxu0 %v7064
      %7697 = vmatpush.bf16.msra.mxu0 %v7062
      %7698 = vmatpush.bf16.msra.mxu0 %v7060
      %7699 = vmatpush.bf16.msra.mxu0 %v7058
      %7700 = vmatpush.bf16.msra.mxu0 %v7056
      %7701 = vmatpush.bf16.msra.mxu0 %v7054
      %7702 = vmatpush.bf16.msra.mxu0 %v7052
      %7703 = vmatpush.bf16.msra.mxu0 %v7050
      %7704 = vmatmul.bf16.gmra.mxu0 %v7280
      %v7705 = vpop.f32.mrf.mxu0
      %v7706 = vadd.f32 %v7657, %v7705
      %v7707 = vpop.f32.mrf.mxu0
      %v7708 = vadd.f32 %v7659, %v7707
      %7709 = vmatmul.bf16.gmra.mxu0 %v7288
      %v7710 = vpop.f32.mrf.mxu0
      %v7711 = vadd.f32 %v7662, %v7710
      %v7712 = vpop.f32.mrf.mxu0
      %v7713 = vadd.f32 %v7664, %v7712
      %7714 = vmatmul.bf16.gmra.mxu0 %v7296
      %v7715 = vpop.f32.mrf.mxu0
      %v7716 = vadd.f32 %v7667, %v7715
      %v7717 = vpop.f32.mrf.mxu0
      %v7718 = vadd.f32 %v7669, %v7717
      %7719 = vmatmul.bf16.gmra.mxu0 %v7304
      %v7720 = vpop.f32.mrf.mxu0
      %v7721 = vadd.f32 %v7672, %v7720
      %v7722 = vpop.f32.mrf.mxu0
      %v7723 = vadd.f32 %v7674, %v7722
      %7724 = vmatmul.bf16.gmra.mxu0 %v7312
      %v7725 = vpop.f32.mrf.mxu0
      %v7726 = vadd.f32 %v7677, %v7725
      %v7727 = vpop.f32.mrf.mxu0
      %v7728 = vadd.f32 %v7679, %v7727
      %7729 = vmatmul.bf16.gmra.mxu0 %v7320
      %v7730 = vpop.f32.mrf.mxu0
      %v7731 = vadd.f32 %v7682, %v7730
      %v7732 = vpop.f32.mrf.mxu0
      %v7733 = vadd.f32 %v7684, %v7732
      %7734 = vmatmul.bf16.gmra.mxu0 %v7328
      %v7735 = vpop.f32.mrf.mxu0
      %v7736 = vadd.f32 %v7687, %v7735
      %v7737 = vpop.f32.mrf.mxu0
      %v7738 = vadd.f32 %v7689, %v7737
      %7739 = vmatmul.bf16.gmra.mxu0 %v7336
      %v7740 = vpop.f32.mrf.mxu0
      %v7741 = vadd.f32 %v7692, %v7740
      %v7742 = vpop.f32.mrf.mxu0
      %v7743 = vadd.f32 %v7694, %v7742
      %7744 = vdwg.mxu0
      %7745 = vmatpush.bf16.msra.mxu0 %v7080
      %7746 = vmatpush.bf16.msra.mxu0 %v7078
      %7747 = vmatpush.bf16.msra.mxu0 %v7076
      %7748 = vmatpush.bf16.msra.mxu0 %v7074
      %7749 = vmatpush.bf16.msra.mxu0 %v7072
      %7750 = vmatpush.bf16.msra.mxu0 %v7070
      %7751 = vmatpush.bf16.msra.mxu0 %v7068
      %7752 = vmatpush.bf16.msra.mxu0 %v7066
      %7753 = vmatmul.bf16.gmra.mxu0 %v7281
      %v7754 = vpop.f32.mrf.mxu0
      %v7755 = vadd.f32 %v7706, %v7754
      %v7756 = vpop.f32.mrf.mxu0
      %v7757 = vadd.f32 %v7708, %v7756
      %7758 = vmatmul.bf16.gmra.mxu0 %v7289
      %v7759 = vpop.f32.mrf.mxu0
      %v7760 = vadd.f32 %v7711, %v7759
      %v7761 = vpop.f32.mrf.mxu0
      %v7762 = vadd.f32 %v7713, %v7761
      %7763 = vmatmul.bf16.gmra.mxu0 %v7297
      %v7764 = vpop.f32.mrf.mxu0
      %v7765 = vadd.f32 %v7716, %v7764
      %v7766 = vpop.f32.mrf.mxu0
      %v7767 = vadd.f32 %v7718, %v7766
      %7768 = vmatmul.bf16.gmra.mxu0 %v7305
      %v7769 = vpop.f32.mrf.mxu0
      %v7770 = vadd.f32 %v7721, %v7769
      %v7771 = vpop.f32.mrf.mxu0
      %v7772 = vadd.f32 %v7723, %v7771
      %7773 = vmatmul.bf16.gmra.mxu0 %v7313
      %v7774 = vpop.f32.mrf.mxu0
      %v7775 = vadd.f32 %v7726, %v7774
      %v7776 = vpop.f32.mrf.mxu0
      %v7777 = vadd.f32 %v7728, %v7776
      %7778 = vmatmul.bf16.gmra.mxu0 %v7321
      %v7779 = vpop.f32.mrf.mxu0
      %v7780 = vadd.f32 %v7731, %v7779
      %v7781 = vpop.f32.mrf.mxu0
      %v7782 = vadd.f32 %v7733, %v7781
      %7783 = vmatmul.bf16.gmra.mxu0 %v7329
      %v7784 = vpop.f32.mrf.mxu0
      %v7785 = vadd.f32 %v7736, %v7784
      %v7786 = vpop.f32.mrf.mxu0
      %v7787 = vadd.f32 %v7738, %v7786
      %7788 = vmatmul.bf16.gmra.mxu0 %v7337
      %v7789 = vpop.f32.mrf.mxu0
      %v7790 = vadd.f32 %v7741, %v7789
      %v7791 = vpop.f32.mrf.mxu0
      %v7792 = vadd.f32 %v7743, %v7791
      %7793 = vdwg.mxu0
      %7794 = vmatpush.bf16.msra.mxu0 %v6969
      %7795 = vmatpush.bf16.msra.mxu0 %v6967
      %7796 = vmatpush.bf16.msra.mxu0 %v6965
      %7797 = vmatpush.bf16.msra.mxu0 %v6963
      %7798 = vmatpush.bf16.msra.mxu0 %v6961
      %7799 = vmatpush.bf16.msra.mxu0 %v6959
      %7800 = vmatpush.bf16.msra.mxu0 %v6957
      %7801 = vmatpush.bf16.msra.mxu0 %v6955
      %7802 = vmatmul.bf16.gmra.mxu0 %v7274
      %v7803 = vpop.f32.mrf.mxu0
      %v7804 = vadd.f32 0.0, %v7803
      %v7805 = vpop.f32.mrf.mxu0
      %v7806 = vadd.f32 0.0, %v7805
      %7807 = vmatmul.bf16.gmra.mxu0 %v7282
      %v7808 = vpop.f32.mrf.mxu0
      %v7809 = vadd.f32 0.0, %v7808
      %v7810 = vpop.f32.mrf.mxu0
      %v7811 = vadd.f32 0.0, %v7810
      %7812 = vmatmul.bf16.gmra.mxu0 %v7290
      %v7813 = vpop.f32.mrf.mxu0
      %v7814 = vadd.f32 0.0, %v7813
      %v7815 = vpop.f32.mrf.mxu0
      %v7816 = vadd.f32 0.0, %v7815
      %7817 = vmatmul.bf16.gmra.mxu0 %v7298
      %v7818 = vpop.f32.mrf.mxu0
      %v7819 = vadd.f32 0.0, %v7818
      %v7820 = vpop.f32.mrf.mxu0
      %v7821 = vadd.f32 0.0, %v7820
      %7822 = vmatmul.bf16.gmra.mxu0 %v7306
      %v7823 = vpop.f32.mrf.mxu0
      %v7824 = vadd.f32 0.0, %v7823
      %v7825 = vpop.f32.mrf.mxu0
      %v7826 = vadd.f32 0.0, %v7825
      %7827 = vmatmul.bf16.gmra.mxu0 %v7314
      %v7828 = vpop.f32.mrf.mxu0
      %v7829 = vadd.f32 0.0, %v7828
      %v7830 = vpop.f32.mrf.mxu0
      %v7831 = vadd.f32 0.0, %v7830
      %7832 = vmatmul.bf16.gmra.mxu0 %v7322
      %v7833 = vpop.f32.mrf.mxu0
      %v7834 = vadd.f32 0.0, %v7833
      %v7835 = vpop.f32.mrf.mxu0
      %v7836 = vadd.f32 0.0, %v7835
      %7837 = vmatmul.bf16.gmra.mxu0 %v7330
      %v7838 = vpop.f32.mrf.mxu0
      %v7839 = vadd.f32 0.0, %v7838
      %v7840 = vpop.f32.mrf.mxu0
      %v7841 = vadd.f32 0.0, %v7840
      %7842 = vdwg.mxu0
      %7843 = vmatpush.bf16.msra.mxu0 %v6985
      %7844 = vmatpush.bf16.msra.mxu0 %v6983
      %7845 = vmatpush.bf16.msra.mxu0 %v6981
      %7846 = vmatpush.bf16.msra.mxu0 %v6979
      %7847 = vmatpush.bf16.msra.mxu0 %v6977
      %7848 = vmatpush.bf16.msra.mxu0 %v6975
      %7849 = vmatpush.bf16.msra.mxu0 %v6973
      %7850 = vmatpush.bf16.msra.mxu0 %v6971
      %7851 = vmatmul.bf16.gmra.mxu0 %v7275
      %v7852 = vpop.f32.mrf.mxu0
      %v7853 = vadd.f32 %v7804, %v7852
      %v7854 = vpop.f32.mrf.mxu0
      %v7855 = vadd.f32 %v7806, %v7854
      %7856 = vmatmul.bf16.gmra.mxu0 %v7283
      %v7857 = vpop.f32.mrf.mxu0
      %v7858 = vadd.f32 %v7809, %v7857
      %v7859 = vpop.f32.mrf.mxu0
      %v7860 = vadd.f32 %v7811, %v7859
      %7861 = vmatmul.bf16.gmra.mxu0 %v7291
      %v7862 = vpop.f32.mrf.mxu0
      %v7863 = vadd.f32 %v7814, %v7862
      %v7864 = vpop.f32.mrf.mxu0
      %v7865 = vadd.f32 %v7816, %v7864
      %7866 = vmatmul.bf16.gmra.mxu0 %v7299
      %v7867 = vpop.f32.mrf.mxu0
      %v7868 = vadd.f32 %v7819, %v7867
      %v7869 = vpop.f32.mrf.mxu0
      %v7870 = vadd.f32 %v7821, %v7869
      %7871 = vmatmul.bf16.gmra.mxu0 %v7307
      %v7872 = vpop.f32.mrf.mxu0
      %v7873 = vadd.f32 %v7824, %v7872
      %v7874 = vpop.f32.mrf.mxu0
      %v7875 = vadd.f32 %v7826, %v7874
      %7876 = vmatmul.bf16.gmra.mxu0 %v7315
      %v7877 = vpop.f32.mrf.mxu0
      %v7878 = vadd.f32 %v7829, %v7877
      %v7879 = vpop.f32.mrf.mxu0
      %v7880 = vadd.f32 %v7831, %v7879
      %7881 = vmatmul.bf16.gmra.mxu0 %v7323
      %v7882 = vpop.f32.mrf.mxu0
      %v7883 = vadd.f32 %v7834, %v7882
      %v7884 = vpop.f32.mrf.mxu0
      %v7885 = vadd.f32 %v7836, %v7884
      %7886 = vmatmul.bf16.gmra.mxu0 %v7331
      %v7887 = vpop.f32.mrf.mxu0
      %v7888 = vadd.f32 %v7839, %v7887
      %v7889 = vpop.f32.mrf.mxu0
      %v7890 = vadd.f32 %v7841, %v7889
      %7891 = vdwg.mxu0
      %7892 = vmatpush.bf16.msra.mxu0 %v7001
      %7893 = vmatpush.bf16.msra.mxu0 %v6999
      %7894 = vmatpush.bf16.msra.mxu0 %v6997
      %7895 = vmatpush.bf16.msra.mxu0 %v6995
      %7896 = vmatpush.bf16.msra.mxu0 %v6993
      %7897 = vmatpush.bf16.msra.mxu0 %v6991
      %7898 = vmatpush.bf16.msra.mxu0 %v6989
      %7899 = vmatpush.bf16.msra.mxu0 %v6987
      %7900 = vmatmul.bf16.gmra.mxu0 %v7276
      %v7901 = vpop.f32.mrf.mxu0
      %v7902 = vadd.f32 %v7853, %v7901
      %v7903 = vpop.f32.mrf.mxu0
      %v7904 = vadd.f32 %v7855, %v7903
      %7905 = vmatmul.bf16.gmra.mxu0 %v7284
      %v7906 = vpop.f32.mrf.mxu0
      %v7907 = vadd.f32 %v7858, %v7906
      %v7908 = vpop.f32.mrf.mxu0
      %v7909 = vadd.f32 %v7860, %v7908
      %7910 = vmatmul.bf16.gmra.mxu0 %v7292
      %v7911 = vpop.f32.mrf.mxu0
      %v7912 = vadd.f32 %v7863, %v7911
      %v7913 = vpop.f32.mrf.mxu0
      %v7914 = vadd.f32 %v7865, %v7913
      %7915 = vmatmul.bf16.gmra.mxu0 %v7300
      %v7916 = vpop.f32.mrf.mxu0
      %v7917 = vadd.f32 %v7868, %v7916
      %v7918 = vpop.f32.mrf.mxu0
      %v7919 = vadd.f32 %v7870, %v7918
      %7920 = vmatmul.bf16.gmra.mxu0 %v7308
      %v7921 = vpop.f32.mrf.mxu0
      %v7922 = vadd.f32 %v7873, %v7921
      %v7923 = vpop.f32.mrf.mxu0
      %v7924 = vadd.f32 %v7875, %v7923
      %7925 = vmatmul.bf16.gmra.mxu0 %v7316
      %v7926 = vpop.f32.mrf.mxu0
      %v7927 = vadd.f32 %v7878, %v7926
      %v7928 = vpop.f32.mrf.mxu0
      %v7929 = vadd.f32 %v7880, %v7928
      %7930 = vmatmul.bf16.gmra.mxu0 %v7324
      %v7931 = vpop.f32.mrf.mxu0
      %v7932 = vadd.f32 %v7883, %v7931
      %v7933 = vpop.f32.mrf.mxu0
      %v7934 = vadd.f32 %v7885, %v7933
      %7935 = vmatmul.bf16.gmra.mxu0 %v7332
      %v7936 = vpop.f32.mrf.mxu0
      %v7937 = vadd.f32 %v7888, %v7936
      %v7938 = vpop.f32.mrf.mxu0
      %v7939 = vadd.f32 %v7890, %v7938
      %7940 = vdwg.mxu0
      %7941 = vmatpush.bf16.msra.mxu0 %v7017
      %7942 = vmatpush.bf16.msra.mxu0 %v7015
      %7943 = vmatpush.bf16.msra.mxu0 %v7013
      %7944 = vmatpush.bf16.msra.mxu0 %v7011
      %7945 = vmatpush.bf16.msra.mxu0 %v7009
      %7946 = vmatpush.bf16.msra.mxu0 %v7007
      %7947 = vmatpush.bf16.msra.mxu0 %v7005
      %7948 = vmatpush.bf16.msra.mxu0 %v7003
      %7949 = vmatmul.bf16.gmra.mxu0 %v7277
      %v7950 = vpop.f32.mrf.mxu0
      %v7951 = vadd.f32 %v7902, %v7950
      %v7952 = vpop.f32.mrf.mxu0
      %v7953 = vadd.f32 %v7904, %v7952
      %7954 = vmatmul.bf16.gmra.mxu0 %v7285
      %v7955 = vpop.f32.mrf.mxu0
      %v7956 = vadd.f32 %v7907, %v7955
      %v7957 = vpop.f32.mrf.mxu0
      %v7958 = vadd.f32 %v7909, %v7957
      %7959 = vmatmul.bf16.gmra.mxu0 %v7293
      %v7960 = vpop.f32.mrf.mxu0
      %v7961 = vadd.f32 %v7912, %v7960
      %v7962 = vpop.f32.mrf.mxu0
      %v7963 = vadd.f32 %v7914, %v7962
      %7964 = vmatmul.bf16.gmra.mxu0 %v7301
      %v7965 = vpop.f32.mrf.mxu0
      %v7966 = vadd.f32 %v7917, %v7965
      %v7967 = vpop.f32.mrf.mxu0
      %v7968 = vadd.f32 %v7919, %v7967
      %7969 = vmatmul.bf16.gmra.mxu0 %v7309
      %v7970 = vpop.f32.mrf.mxu0
      %v7971 = vadd.f32 %v7922, %v7970
      %v7972 = vpop.f32.mrf.mxu0
      %v7973 = vadd.f32 %v7924, %v7972
      %7974 = vmatmul.bf16.gmra.mxu0 %v7317
      %v7975 = vpop.f32.mrf.mxu0
      %v7976 = vadd.f32 %v7927, %v7975
      %v7977 = vpop.f32.mrf.mxu0
      %v7978 = vadd.f32 %v7929, %v7977
      %7979 = vmatmul.bf16.gmra.mxu0 %v7325
      %v7980 = vpop.f32.mrf.mxu0
      %v7981 = vadd.f32 %v7932, %v7980
      %v7982 = vpop.f32.mrf.mxu0
      %v7983 = vadd.f32 %v7934, %v7982
      %7984 = vmatmul.bf16.gmra.mxu0 %v7333
      %v7985 = vpop.f32.mrf.mxu0
      %v7986 = vadd.f32 %v7937, %v7985
      %v7987 = vpop.f32.mrf.mxu0
      %v7988 = vadd.f32 %v7939, %v7987
      %7989 = vdwg.mxu0
      %7990 = vmatpush.bf16.msra.mxu0 %v7033
      %7991 = vmatpush.bf16.msra.mxu0 %v7031
      %7992 = vmatpush.bf16.msra.mxu0 %v7029
      %7993 = vmatpush.bf16.msra.mxu0 %v7027
      %7994 = vmatpush.bf16.msra.mxu0 %v7025
      %7995 = vmatpush.bf16.msra.mxu0 %v7023
      %7996 = vmatpush.bf16.msra.mxu0 %v7021
      %7997 = vmatpush.bf16.msra.mxu0 %v7019
      %7998 = vmatmul.bf16.gmra.mxu0 %v7278
      %v7999 = vpop.f32.mrf.mxu0
      %v8000 = vadd.f32 %v7951, %v7999
      %v8001 = vpop.f32.mrf.mxu0
      %v8002 = vadd.f32 %v7953, %v8001
      %8003 = vmatmul.bf16.gmra.mxu0 %v7286
      %v8004 = vpop.f32.mrf.mxu0
      %v8005 = vadd.f32 %v7956, %v8004
      %v8006 = vpop.f32.mrf.mxu0
      %v8007 = vadd.f32 %v7958, %v8006
      %8008 = vmatmul.bf16.gmra.mxu0 %v7294
      %v8009 = vpop.f32.mrf.mxu0
      %v8010 = vadd.f32 %v7961, %v8009
      %v8011 = vpop.f32.mrf.mxu0
      %v8012 = vadd.f32 %v7963, %v8011
      %8013 = vmatmul.bf16.gmra.mxu0 %v7302
      %v8014 = vpop.f32.mrf.mxu0
      %v8015 = vadd.f32 %v7966, %v8014
      %v8016 = vpop.f32.mrf.mxu0
      %v8017 = vadd.f32 %v7968, %v8016
      %8018 = vmatmul.bf16.gmra.mxu0 %v7310
      %v8019 = vpop.f32.mrf.mxu0
      %v8020 = vadd.f32 %v7971, %v8019
      %v8021 = vpop.f32.mrf.mxu0
      %v8022 = vadd.f32 %v7973, %v8021
      %8023 = vmatmul.bf16.gmra.mxu0 %v7318
      %v8024 = vpop.f32.mrf.mxu0
      %v8025 = vadd.f32 %v7976, %v8024
      %v8026 = vpop.f32.mrf.mxu0
      %v8027 = vadd.f32 %v7978, %v8026
      %8028 = vmatmul.bf16.gmra.mxu0 %v7326
      %v8029 = vpop.f32.mrf.mxu0
      %v8030 = vadd.f32 %v7981, %v8029
      %v8031 = vpop.f32.mrf.mxu0
      %v8032 = vadd.f32 %v7983, %v8031
      %8033 = vmatmul.bf16.gmra.mxu0 %v7334
      %v8034 = vpop.f32.mrf.mxu0
      %v8035 = vadd.f32 %v7986, %v8034
      %v8036 = vpop.f32.mrf.mxu0
      %v8037 = vadd.f32 %v7988, %v8036
      %8038 = vdwg.mxu0
      %8039 = vmatpush.bf16.msra.mxu0 %v7049
      %8040 = vmatpush.bf16.msra.mxu0 %v7047
      %8041 = vmatpush.bf16.msra.mxu0 %v7045
      %8042 = vmatpush.bf16.msra.mxu0 %v7043
      %8043 = vmatpush.bf16.msra.mxu0 %v7041
      %8044 = vmatpush.bf16.msra.mxu0 %v7039
      %8045 = vmatpush.bf16.msra.mxu0 %v7037
      %8046 = vmatpush.bf16.msra.mxu0 %v7035
      %8047 = vmatmul.bf16.gmra.mxu0 %v7279
      %v8048 = vpop.f32.mrf.mxu0
      %v8049 = vadd.f32 %v8000, %v8048
      %v8050 = vpop.f32.mrf.mxu0
      %v8051 = vadd.f32 %v8002, %v8050
      %8052 = vmatmul.bf16.gmra.mxu0 %v7287
      %v8053 = vpop.f32.mrf.mxu0
      %v8054 = vadd.f32 %v8005, %v8053
      %v8055 = vpop.f32.mrf.mxu0
      %v8056 = vadd.f32 %v8007, %v8055
      %8057 = vmatmul.bf16.gmra.mxu0 %v7295
      %v8058 = vpop.f32.mrf.mxu0
      %v8059 = vadd.f32 %v8010, %v8058
      %v8060 = vpop.f32.mrf.mxu0
      %v8061 = vadd.f32 %v8012, %v8060
      %8062 = vmatmul.bf16.gmra.mxu0 %v7303
      %v8063 = vpop.f32.mrf.mxu0
      %v8064 = vadd.f32 %v8015, %v8063
      %v8065 = vpop.f32.mrf.mxu0
      %v8066 = vadd.f32 %v8017, %v8065
      %8067 = vmatmul.bf16.gmra.mxu0 %v7311
      %v8068 = vpop.f32.mrf.mxu0
      %v8069 = vadd.f32 %v8020, %v8068
      %v8070 = vpop.f32.mrf.mxu0
      %v8071 = vadd.f32 %v8022, %v8070
      %8072 = vmatmul.bf16.gmra.mxu0 %v7319
      %v8073 = vpop.f32.mrf.mxu0
      %v8074 = vadd.f32 %v8025, %v8073
      %v8075 = vpop.f32.mrf.mxu0
      %v8076 = vadd.f32 %v8027, %v8075
      %8077 = vmatmul.bf16.gmra.mxu0 %v7327
      %v8078 = vpop.f32.mrf.mxu0
      %v8079 = vadd.f32 %v8030, %v8078
      %v8080 = vpop.f32.mrf.mxu0
      %v8081 = vadd.f32 %v8032, %v8080
      %8082 = vmatmul.bf16.gmra.mxu0 %v7335
      %v8083 = vpop.f32.mrf.mxu0
      %v8084 = vadd.f32 %v8035, %v8083
      %v8085 = vpop.f32.mrf.mxu0
      %v8086 = vadd.f32 %v8037, %v8085
      %8087 = vdwg.mxu0
      %8088 = vmatpush.bf16.msra.mxu0 %v7065
      %8089 = vmatpush.bf16.msra.mxu0 %v7063
      %8090 = vmatpush.bf16.msra.mxu0 %v7061
      %8091 = vmatpush.bf16.msra.mxu0 %v7059
      %8092 = vmatpush.bf16.msra.mxu0 %v7057
      %8093 = vmatpush.bf16.msra.mxu0 %v7055
      %8094 = vmatpush.bf16.msra.mxu0 %v7053
      %8095 = vmatpush.bf16.msra.mxu0 %v7051
      %8096 = vmatmul.bf16.gmra.mxu0 %v7280
      %v8097 = vpop.f32.mrf.mxu0
      %v8098 = vadd.f32 %v8049, %v8097
      %v8099 = vpop.f32.mrf.mxu0
      %v8100 = vadd.f32 %v8051, %v8099
      %8101 = vmatmul.bf16.gmra.mxu0 %v7288
      %v8102 = vpop.f32.mrf.mxu0
      %v8103 = vadd.f32 %v8054, %v8102
      %v8104 = vpop.f32.mrf.mxu0
      %v8105 = vadd.f32 %v8056, %v8104
      %8106 = vmatmul.bf16.gmra.mxu0 %v7296
      %v8107 = vpop.f32.mrf.mxu0
      %v8108 = vadd.f32 %v8059, %v8107
      %v8109 = vpop.f32.mrf.mxu0
      %v8110 = vadd.f32 %v8061, %v8109
      %8111 = vmatmul.bf16.gmra.mxu0 %v7304
      %v8112 = vpop.f32.mrf.mxu0
      %v8113 = vadd.f32 %v8064, %v8112
      %v8114 = vpop.f32.mrf.mxu0
      %v8115 = vadd.f32 %v8066, %v8114
      %8116 = vmatmul.bf16.gmra.mxu0 %v7312
      %v8117 = vpop.f32.mrf.mxu0
      %v8118 = vadd.f32 %v8069, %v8117
      %v8119 = vpop.f32.mrf.mxu0
      %v8120 = vadd.f32 %v8071, %v8119
      %8121 = vmatmul.bf16.gmra.mxu0 %v7320
      %v8122 = vpop.f32.mrf.mxu0
      %v8123 = vadd.f32 %v8074, %v8122
      %v8124 = vpop.f32.mrf.mxu0
      %v8125 = vadd.f32 %v8076, %v8124
      %8126 = vmatmul.bf16.gmra.mxu0 %v7328
      %v8127 = vpop.f32.mrf.mxu0
      %v8128 = vadd.f32 %v8079, %v8127
      %v8129 = vpop.f32.mrf.mxu0
      %v8130 = vadd.f32 %v8081, %v8129
      %8131 = vmatmul.bf16.gmra.mxu0 %v7336
      %v8132 = vpop.f32.mrf.mxu0
      %v8133 = vadd.f32 %v8084, %v8132
      %v8134 = vpop.f32.mrf.mxu0
      %v8135 = vadd.f32 %v8086, %v8134
      %8136 = vdwg.mxu0
      %8137 = vmatpush.bf16.msra.mxu0 %v7081
      %8138 = vmatpush.bf16.msra.mxu0 %v7079
      %8139 = vmatpush.bf16.msra.mxu0 %v7077
      %8140 = vmatpush.bf16.msra.mxu0 %v7075
      %8141 = vmatpush.bf16.msra.mxu0 %v7073
      %8142 = vmatpush.bf16.msra.mxu0 %v7071
      %8143 = vmatpush.bf16.msra.mxu0 %v7069
      %8144 = vmatpush.bf16.msra.mxu0 %v7067
      %8145 = vmatmul.bf16.gmra.mxu0 %v7281
      %v8146 = vpop.f32.mrf.mxu0
      %v8147 = vadd.f32 %v8098, %v8146
      %v8148 = vpop.f32.mrf.mxu0
      %v8149 = vadd.f32 %v8100, %v8148
      %8150 = vmatmul.bf16.gmra.mxu0 %v7289
      %v8151 = vpop.f32.mrf.mxu0
      %v8152 = vadd.f32 %v8103, %v8151
      %v8153 = vpop.f32.mrf.mxu0
      %v8154 = vadd.f32 %v8105, %v8153
      %8155 = vmatmul.bf16.gmra.mxu0 %v7297
      %v8156 = vpop.f32.mrf.mxu0
      %v8157 = vadd.f32 %v8108, %v8156
      %v8158 = vpop.f32.mrf.mxu0
      %v8159 = vadd.f32 %v8110, %v8158
      %8160 = vmatmul.bf16.gmra.mxu0 %v7305
      %v8161 = vpop.f32.mrf.mxu0
      %v8162 = vadd.f32 %v8113, %v8161
      %v8163 = vpop.f32.mrf.mxu0
      %v8164 = vadd.f32 %v8115, %v8163
      %8165 = vmatmul.bf16.gmra.mxu0 %v7313
      %v8166 = vpop.f32.mrf.mxu0
      %v8167 = vadd.f32 %v8118, %v8166
      %v8168 = vpop.f32.mrf.mxu0
      %v8169 = vadd.f32 %v8120, %v8168
      %8170 = vmatmul.bf16.gmra.mxu0 %v7321
      %v8171 = vpop.f32.mrf.mxu0
      %v8172 = vadd.f32 %v8123, %v8171
      %v8173 = vpop.f32.mrf.mxu0
      %v8174 = vadd.f32 %v8125, %v8173
      %8175 = vmatmul.bf16.gmra.mxu0 %v7329
      %v8176 = vpop.f32.mrf.mxu0
      %v8177 = vadd.f32 %v8128, %v8176
      %v8178 = vpop.f32.mrf.mxu0
      %v8179 = vadd.f32 %v8130, %v8178
      %8180 = vmatmul.bf16.gmra.mxu0 %v7337
      %v8181 = vpop.f32.mrf.mxu0
      %v8182 = vadd.f32 %v8133, %v8181
      %v8183 = vpop.f32.mrf.mxu0
      %v8184 = vadd.f32 %v8135, %v8183
      %8185 = vdwg.mxu0
      %8186 = vst [vmem:[%s231] sm:$0xff] %v7755
      %8187 = vst.msk [vmem:[%s231 + $0x8] sm:$0xff] %vm489, %v8147
      %8188 = vst [vmem:[%s231 + $0x10] sm:$0xff] %v7757
      %8189 = vst.msk [vmem:[%s231 + $0x18] sm:$0xff] %vm489, %v8149
      %8190 = vst [vmem:[%s231 + $0x20] sm:$0xff] %v7760
      %8191 = vst.msk [vmem:[%s231 + $0x28] sm:$0xff] %vm489, %v8152
      %8192 = vst [vmem:[%s231 + $0x30] sm:$0xff] %v7762
      %8193 = vst.msk [vmem:[%s231 + $0x38] sm:$0xff] %vm489, %v8154
      %8194 = vst [vmem:[%s231 + $0x40] sm:$0xff] %v7765
      %8195 = vst.msk [vmem:[%s231 + $0x48] sm:$0xff] %vm489, %v8157
      %8196 = vst [vmem:[%s231 + $0x50] sm:$0xff] %v7767
      %8197 = vst.msk [vmem:[%s231 + $0x58] sm:$0xff] %vm489, %v8159
      %8198 = vst [vmem:[%s231 + $0x60] sm:$0xff] %v7770
      %8199 = vst.msk [vmem:[%s231 + $0x68] sm:$0xff] %vm489, %v8162
      %8200 = vst [vmem:[%s231 + $0x70] sm:$0xff] %v7772
      %8201 = vst.msk [vmem:[%s231 + $0x78] sm:$0xff] %vm489, %v8164
      %8202 = vst [vmem:[%s231 + $0x80] sm:$0xff] %v7775
      %8203 = vst.msk [vmem:[%s231 + $0x88] sm:$0xff] %vm489, %v8167
      %8204 = vst [vmem:[%s231 + $0x90] sm:$0xff] %v7777
      %8205 = vst.msk [vmem:[%s231 + $0x98] sm:$0xff] %vm489, %v8169
      %8206 = vst [vmem:[%s231 + $0xa0] sm:$0xff] %v7780
      %8207 = vst.msk [vmem:[%s231 + $0xa8] sm:$0xff] %vm489, %v8172
      %8208 = vst [vmem:[%s231 + $0xb0] sm:$0xff] %v7782
      %8209 = vst.msk [vmem:[%s231 + $0xb8] sm:$0xff] %vm489, %v8174
      %8210 = vst [vmem:[%s231 + $0xc0] sm:$0xff] %v7785
      %8211 = vst.msk [vmem:[%s231 + $0xc8] sm:$0xff] %vm489, %v8177
      %8212 = vst [vmem:[%s231 + $0xd0] sm:$0xff] %v7787
      %8213 = vst.msk [vmem:[%s231 + $0xd8] sm:$0xff] %vm489, %v8179
      %8214 = vst [vmem:[%s231 + $0xe0] sm:$0xff] %v7790
      %8215 = vst.msk [vmem:[%s231 + $0xe8] sm:$0xff] %vm489, %v8182
      %8216 = vst [vmem:[%s231 + $0xf0] sm:$0xff] %v7792
      %8217 = vst.msk [vmem:[%s231 + $0xf8] sm:$0xff] %vm489, %v8184
      %s8218 = smul.u32 16, %s16
      %p8219 = scmp.lt.s32.totalorder %s8218, 31
      %s8220 = scalar_select %p8219, %s8218, 31
      %s8221 = smul.addr %s8220, 2
      %s8222 = smul.addr %s8221, 8
      %s8223 = scalar_lea.vmem %s5, %s8222
      // Predicated region
      $region41: #{forward.1} parent=39 // pred_check
        %p8224 = pneg %p144
      $region42: #{forward.1} parent=39 // pred_check_branch
        %8226 = sbr.rel (%p8224) target = $region44
      $region43: #{forward.1} parent=39 // pred_region
        %s8227 = smul.u32 16, %s16
      $region44: #{forward.1} parent=39 // pred_fallthru
        _
    $region40: #{forward.1} parent=5 // pred_fallthru
      _
    %p8228 = scmp.le.s32.totalorder 2, %s11
    // Predicated region
    $region45: #{forward.1} parent=5 // pred_check
      %p8229 = pneg %p8228
    $region46: #{forward.1} parent=5 // pred_check_branch
      %8231 = sbr.rel (%p8229) target = $region48
    $region47: #{forward.1} parent=5 // pred_region
      %s8232 = ssub.s32 %s11, 2
      // Predicated region
      $region49: #{forward.1} parent=47 // pred_check
        %p8233 = pneg %p150
      $region50: #{forward.1} parent=47 // pred_check_branch
        %8235 = sbr.rel (%p8233) target = $region52
      $region51: #{forward.1} parent=47 // pred_region
        %s8236 = smul.u32 16, %s17
        %p8237 = scmp.lt.s32.totalorder %s8236, 31
        %s8238 = scalar_select %p8237, %s8236, 31
        %s8239 = smul.addr %s8238, 2
        %s8240 = smul.addr %s8239, 8
        %s8241 = scalar_lea.vmem %s5, %s8240
      $region52: #{forward.1} parent=47 // pred_fallthru
        _
    $region48: #{forward.1} parent=5 // pred_fallthru
      _
  $region6: #{forward.1} parent=0 // loop_footer
    %s15 = sadd.s32 1, %s11
  $region7: #{forward.1} parent=0 // loop_footer_branch
    %10 = sbr.rel target = $region3
  $region8: #{forward.1} parent=0 // loop_exit
    _

</llo_original>
